<compile_context>
chip_gen: v6e
topology: v6e:2x2x1
jax: 0.10.0
libtpu: 0.0.40
codegen_flags: <defaults>
</compile_context>

<pallas_src>
import math

import jax
import jax.numpy as jnp
from jax.experimental import pallas as pl
from jax.experimental.pallas import tpu as pltpu


def _round_up(x, m):
    return ((x + m - 1) // m) * m


def _pick_bpg(B, P, cap=8):
    """Largest divisor of B that is <= cap; fall back to 1 if the point count is
    not 128-lane aligned (keeps the lane-slab assembly aligned)."""
    if P % 128 != 0:
        return 1
    for d in range(min(B, cap), 0, -1):
        if B % d == 0:
            return d
    return 1


# ----------------------------------------------------------------------------
# Kernel
# ----------------------------------------------------------------------------
def make_kernel(bpg, P, cf, cl, cin1_pad, cin2_pad,
                spec_b1, spec_t1, spec_b2, spec_t2, cdt):
    """All arguments are static Python values.
    spec_*: per-MLP list of (slab_layer_index, din_used, dout)."""
    f32 = jnp.float32
    relu = lambda v: jnp.maximum(v, 0.0)

    def kernel(x1_ref, x2_ref, w_ref, b_ref, selT_ref, bias_ref, out_ref,
               x1s_ref, x2s_ref):

        def wslice(l, din, dout):
            # Static slices of the packed slabs (zero-padded in the wrapper).
            return w_ref[l, 0:dout, 0:din], b_ref[l, 0:dout, :]

        def run_mlp(x, spec, act, act_on_last=False):
            """x: (din0, N) -> f32 (dout_last, N); activation between layers
            (and on the last layer iff act_on_last).  Matmul inputs are cdt,
            accumulation/bias/activation are f32."""
            n = len(spec)
            y = None
            for j, (l, din, dout) in enumerate(spec):
                w, bvec = wslice(l, din, dout)
                y = jnp.dot(w, x, preferred_element_type=f32) + bvec
                if j < n - 1 or act_on_last:
                    y = act(y)
                if j < n - 1:
                    x = y.astype(cdt)
            return y

        # ---- assemble the bpg batches of this step into (cin_pad, bpg*P) f32
        #      slabs in VMEM scratch (channel pad lives only in VMEM, not HBM) ----
        if cin1_pad > cf:
            x1s_ref[cf:cin1_pad, :] = jnp.zeros((cin1_pad - cf, bpg * P), f32)
        if cin2_pad > cl:
            x2s_ref[cl:cin2_pad, :] = jnp.zeros((cin2_pad - cl, bpg * P), f32)
        for b in range(bpg):                                   # static, tiny
            x1s_ref[0:cf, b * P:(b + 1) * P] = x1_ref[b].astype(f32)
            x2s_ref[0:cl, b * P:(b + 1) * P] = x2_ref[b].astype(f32)
        x1 = x1s_ref[...]                                      # (cin1_pad, bpg*P)
        x2 = x2s_ref[...]                                      # (cin2_pad, bpg*P)

        # ---- stage 1: all bpg batches share the lane axis ----
        br = run_mlp(x1, spec_b1, relu)                        # (modes, bpg*P) f32
        tr = run_mlp(x2, spec_t1, relu)                        # (modes, bpg*P) f32
        merged_f32 = br * tr                                   # 'bpm,bpm->bpm'
        merged = merged_f32.astype(cdt)

        # ---- per-batch mean over points, assembled to (modes, bpg) ----
        avgs = [jnp.mean(merged_f32[:, b * P:(b + 1) * P], axis=1, keepdims=True)
                for b in range(bpg)]
        if bpg == 1:
            avg = avgs[0]
        else:
            lane = jax.lax.broadcasted_iota(jnp.int32, (1, bpg), 1)
            avg = sum(avgs[b] * (lane == b).astype(f32) for b in range(bpg))

        # ---- stage-2 branch MLP, batched over the bpg lane axis ----
        ob = run_mlp(avg.astype(cdt), spec_b2, relu)           # (modes*out_c, bpg) f32

        # ---- stage-2 trunk hidden layers (all but the last), batched ----
        hidden_spec = spec_t2[:-1]
        if hidden_spec:
            h = run_mlp(merged, hidden_spec, jnp.sin, act_on_last=True).astype(cdt)
        else:
            h = merged                                         # single-layer trunk stage 2

        # ---- fused last trunk layer + einsum('bmc,bpmc->bpc') ----
        l_last, din_last, dout_last = spec_t2[-1]
        w_last, b_last = wslice(l_last, din_last, dout_last)   # (mc, hid), (mc, 1)
        w_last = w_last.astype(f32)                            # hoisted out of the loop
        selT = selT_ref[...]                                   # (out_c, mc) f32
        bias = bias_ref[0]                                     # scalar b (SMEM)

        for b in range(bpg):                                   # static, unrolled
            obb = ob[:, b:b + 1]                               # (mc, 1) f32
            # A = selT @ diag(obb) @ W_last^T ; c0 = selT @ (obb * b_last)
            A = jnp.dot(selT, obb * w_last, preferred_element_type=f32)   # (out_c, hid)
            c0 = jnp.dot(selT, obb * b_last, preferred_element_type=f32)  # (out_c, 1)
            o = jnp.dot(A.astype(cdt), h[:, b * P:(b + 1) * P],
                        preferred_element_type=f32) + c0 + bias
            out_ref[b] = o.astype(out_ref.dtype)

    return kernel


# ----------------------------------------------------------------------------
# Wrapper
# ----------------------------------------------------------------------------
def geodeeponet_forward(x1, x2, p_b1, p_t1, p_b2, p_t2, b_scalar, *,
                        modes, out_c, compute_dtype=jnp.bfloat16,
                        bpg_cap=8, vmem_limit_bytes=None):
    B, cf, H, W = x1.shape
    _, cl, _, _ = x2.shape
    P = H * W
    cdt = compute_dtype

    # 'b c h w -> b c (h w)': free reshape; P stays contiguous on the lane axis.
    # No HBM-side channel padding (block dims equal the full array dims).
    x1f = x1.reshape(B, cf, P).astype(cdt)
    x2f = x2.reshape(B, cl, P).astype(cdt)

    # channel pad (to the 8-sublane granularity) happens only inside VMEM scratch
    cin1_pad = _round_up(cf, 8)
    cin2_pad = _round_up(cl, 8)

    # ---- pack all Linear layers into one W^T slab + one f32 bias slab ----
    all_layers = list(p_b1) + list(p_t1) + list(p_b2) + list(p_t2)
    dout_max = max(w.shape[1] for w, _ in all_layers)
    din_max = max(max(w.shape[0] for w, _ in all_layers), cin1_pad, cin2_pad)
    wts, bcs = [], []
    for w, b in all_layers:
        din, dout = w.shape
        wts.append(jnp.pad(w.T.astype(cdt),
                           ((0, dout_max - dout), (0, din_max - din))))
        bcs.append(jnp.pad(b.reshape(-1, 1).astype(jnp.float32),
                           ((0, dout_max - dout), (0, 0))))
    wslab = jnp.stack(wts)            # (L, dout_max, din_max)  cdt
    bslab = jnp.stack(bcs)            # (L, dout_max, 1)        f32

    # selection matrix selT[c, k] = (k % out_c == c), hoisted out of the kernel
    mc = modes * out_c
    selT = (jnp.arange(mc)[None, :] % out_c ==
            jnp.arange(out_c)[:, None]).astype(jnp.float32)    # (out_c, mc)

    # static per-MLP layer specs: (slab index, contraction dim used, out dim)
    def mk_spec(layer_params, offset, first_din=None):
        spec = []
        for j, (w, _) in enumerate(layer_params):
            din, dout = w.shape
            if j == 0 and first_din is not None:
                din = first_din
            spec.append((offset + j, din, dout))
        return spec

    o = 0
    spec_b1 = mk_spec(p_b1, o, cin1_pad); o += len(p_b1)
    spec_t1 = mk_spec(p_t1, o, cin2_pad); o += len(p_t1)
    spec_b2 = mk_spec(p_b2, o);           o += len(p_b2)
    spec_t2 = mk_spec(p_t2, o);           o += len(p_t2)

    bpg = _pick_bpg(B, P, bpg_cap)
    grid = (B // bpg,)

    kernel = make_kernel(bpg, P, cf, cl, cin1_pad, cin2_pad,
                         spec_b1, spec_t1, spec_b2, spec_t2, cdt)

    in_specs = [
        pl.BlockSpec((bpg, cf, P), lambda i: (i, 0, 0)),
        pl.BlockSpec((bpg, cl, P), lambda i: (i, 0, 0)),
        pl.BlockSpec(wslab.shape, lambda i: (0, 0, 0)),      # grid-constant
        pl.BlockSpec(bslab.shape, lambda i: (0, 0, 0)),      # grid-constant
        pl.BlockSpec(selT.shape, lambda i: (0, 0)),          # grid-constant
        pl.BlockSpec(memory_space=pltpu.MemorySpace.SMEM),   # scalar bias b
    ]
    scratch_shapes = [
        pltpu.VMEM((cin1_pad, bpg * P), jnp.float32),
        pltpu.VMEM((cin2_pad, bpg * P), jnp.float32),
    ]

    cp_kwargs = dict(dimension_semantics=("parallel",))
    if vmem_limit_bytes is not None:
        cp_kwargs["vmem_limit_bytes"] = int(vmem_limit_bytes)
    compiler_params = pltpu.CompilerParams(**cp_kwargs)

    out = pl.pallas_call(
        kernel,
        out_shape=jax.ShapeDtypeStruct((B, out_c, P), jnp.float32),
        grid_spec=pltpu.PrefetchScalarGridSpec(
            num_scalar_prefetch=0,
            grid=grid,
            in_specs=in_specs,
            out_specs=pl.BlockSpec((bpg, out_c, P), lambda i: (i, 0, 0)),
            scratch_shapes=scratch_shapes,
        ),
        compiler_params=compiler_params,
    )(x1f, x2f, wslab, bslab, selT, b_scalar.astype(jnp.float32))

    # 'b c (h w) -> b c h w': free reshape, no transpose needed.
    return out.reshape(B, out_c, H, W)


# ----------------------------------------------------------------------------
# Deterministic parameter construction (matches nn.Linear shapes)
# ----------------------------------------------------------------------------
def init_linear(key, din, dout):
    k1, k2 = jax.random.split(key)
    bound = 1.0 / math.sqrt(din)
    w = jax.random.uniform(k1, (din, dout), jnp.float32, -bound, bound)
    b = jax.random.uniform(k2, (1, dout), jnp.float32, -bound, bound)
    return w, b


def init_mlp(key, dims):
    params = []
    for i in range(len(dims) - 1):
        key, sub = jax.random.split(key)
        params.append(init_linear(sub, dims[i], dims[i + 1]))
    return key, params


# ----------------------------------------------------------------------------
# Pure-JAX reference of the PyTorch forward (for correctness check)
# ----------------------------------------------------------------------------
def ref_forward(x1, x2, p_b1, p_t1, p_b2, p_t2, b_scalar, *, modes, out_c):
    def mlp(x, params, act):
        n = len(params)
        for i, (w, b) in enumerate(params):
            x = x @ w + b
            if i < n - 1:
                x = act(x)
        return x

    B, cf, H, W = x1.shape
    P = H * W
    x1f = jnp.transpose(x1, (0, 2, 3, 1)).reshape(B, P, cf)
    x2f = jnp.transpose(x2, (0, 2, 3, 1)).reshape(B, P, x2.shape[1])

    relu = lambda v: jnp.maximum(v, 0.0)
    ib = mlp(x1f, p_b1, relu)
    it = mlp(x2f, p_t1, relu)
    merged = ib * it                               # 'bpm,bpm->bpm'
    avg = jnp.mean(merged, axis=1)                 # (B, M)
    ob = mlp(avg, p_b2, relu)                      # (B, M*C)
    ot = mlp(merged, p_t2, jnp.sin)                # (B, P, M*C)
    ob = ob.reshape(B, modes, out_c)
    ot = ot.reshape(B, P, modes, out_c)
    out = jnp.einsum('bmc,bpmc->bpc', ob, ot) + b_scalar[0]
    return out.reshape(B, H, W, out_c).transpose(0, 3, 1, 2)


# ----------------------------------------------------------------------------
if __name__ == "__main__":
    B, H, W = 2, 16, 16
    input_channels_func = 3      # (Re, SDF, Mask)
    input_channels_loc = 3       # (x, y, SDF)
    output_channels = 2
    modes = 32
    branch_net_layers = [32, 32]
    trunk_net_layers = [32, 32]

    dims_b1 = [input_channels_func] + branch_net_layers + [modes]
    dims_b2 = [modes] + branch_net_layers + [modes * output_channels]
    dims_t1 = [input_channels_loc] + trunk_net_layers + [modes]
    dims_t2 = [modes] + trunk_net_layers + [modes * output_channels]

    key = jax.random.PRNGKey(0)
    key, p_b1 = init_mlp(key, dims_b1)
    key, p_t1 = init_mlp(key, dims_t1)
    key, p_b2 = init_mlp(key, dims_b2)
    key, p_t2 = init_mlp(key, dims_t2)
    b_scalar = jnp.zeros((1,), jnp.float32)        # self.b = torch.tensor(0.0)

    key, k1, k2 = jax.random.split(key, 3)
    x1 = jax.random.normal(k1, (B, input_channels_func, H, W), jnp.float32)
    x2 = jax.random.normal(k2, (B, input_channels_loc, H, W), jnp.float32)

    ref = ref_forward(x1, x2, p_b1, p_t1, p_b2, p_t2, b_scalar,
                      modes=modes, out_c=output_channels)

    # f32 compute path: tight check against the PyTorch-equivalent reference.
    out_f32 = geodeeponet_forward(x1, x2, p_b1, p_t1, p_b2, p_t2, b_scalar,
                                  modes=modes, out_c=output_channels,
                                  compute_dtype=jnp.float32)
    out_f32 = jax.block_until_ready(out_f32)
    assert out_f32.shape == (B, output_channels, H, W)
    assert jnp.allclose(out_f32, ref, rtol=1e-4, atol=1e-4), \
        float(jnp.max(jnp.abs(out_f32 - ref)))

    # bf16 compute path (default; MXU-native and half the input/weight DMA bytes).
    out_bf16 = geodeeponet_forward(x1, x2, p_b1, p_t1, p_b2, p_t2, b_scalar,
                                   modes=modes, out_c=output_channels)
    out_bf16 = jax.block_until_ready(out_bf16)
    assert out_bf16.shape == (B, output_channels, H, W)
    assert jnp.allclose(out_bf16, ref, rtol=2e-2, atol=2e-2), \
        float(jnp.max(jnp.abs(out_bf16 - ref)))

    print("KERNEL_OK")
</pallas_src>

<mosaic_0001>
module attributes {stable_mosaic.version = 11 : i64} {
  func.func @kernel(%arg0: i32, %arg1: memref<2x3x256xf32, #tpu.memory_space<vmem>>, %arg2: memref<2x3x256xf32, #tpu.memory_space<vmem>>, %arg3: memref<12x64x32xf32, #tpu.memory_space<vmem>>, %arg4: memref<12x64x1xf32, #tpu.memory_space<vmem>>, %arg5: memref<2x64xf32, #tpu.memory_space<vmem>>, %arg6: memref<1xf32, #tpu.memory_space<smem>>, %arg7: memref<2x2x256xf32, #tpu.memory_space<vmem>>, %arg8: memref<8x512xf32, #tpu.memory_space<vmem>>, %arg9: memref<8x512xf32, #tpu.memory_space<vmem>>) attributes {dimension_semantics = [#tpu.dimension_semantics<parallel>], iteration_bounds = array<i64: 1>, scalar_prefetch = 0 : i64, scratch_operands = 2 : i64, tpu.core_type = #tpu.core_type<tc>, window_params = [{transform_indices = @transform_0, window_bounds = array<i64: 2, 3, 256>}, {transform_indices = @transform_1, window_bounds = array<i64: 2, 3, 256>}, {pipeline_mode = #tpu.pipeline_mode<synchronous>, transform_indices = @transform_2, window_bounds = array<i64: 12, 64, 32>}, {pipeline_mode = #tpu.pipeline_mode<synchronous>, transform_indices = @transform_3, window_bounds = array<i64: 12, 64, 1>}, {pipeline_mode = #tpu.pipeline_mode<synchronous>, transform_indices = @transform_4, window_bounds = array<i64: 2, 64>}, {transform_indices = @transform_5, window_bounds = array<i64: 1>}, {transform_indices = @transform_6, window_bounds = array<i64: 2, 2, 256>}]} {
    %cst = arith.constant 0.000000e+00 : f32
    %0 = vector.broadcast %cst : f32 to vector<5x512xf32>
    %c3 = arith.constant 3 : index
    %c0 = arith.constant 0 : index
    %1 = vector.load %arg8[%c3, %c0] : memref<8x512xf32, #tpu.memory_space<vmem>>, vector<5x512xf32>
    tpu.vector_store %arg8[%c3, %c0], %0 {strides = array<i32>} : memref<8x512xf32, #tpu.memory_space<vmem>>, vector<5x512xf32>,
    %cst_0 = arith.constant 0.000000e+00 : f32
    %2 = vector.broadcast %cst_0 : f32 to vector<5x512xf32>
    %c3_1 = arith.constant 3 : index
    %c0_2 = arith.constant 0 : index
    %3 = vector.load %arg9[%c3_1, %c0_2] : memref<8x512xf32, #tpu.memory_space<vmem>>, vector<5x512xf32>
    tpu.vector_store %arg9[%c3_1, %c0_2], %2 {strides = array<i32>} : memref<8x512xf32, #tpu.memory_space<vmem>>, vector<5x512xf32>,
    %c0_3 = arith.constant 0 : index
    %c0_4 = arith.constant 0 : index
    %c0_5 = arith.constant 0 : index
    %4 = vector.load %arg1[%c0_3, %c0_4, %c0_5] : memref<2x3x256xf32, #tpu.memory_space<vmem>>, vector<1x3x256xf32>
    %5 = vector.shape_cast %4 : vector<1x3x256xf32> to vector<3x256xf32>
    %c0_6 = arith.constant 0 : index
    %c0_7 = arith.constant 0 : index
    %6 = vector.load %arg8[%c0_6, %c0_7] : memref<8x512xf32, #tpu.memory_space<vmem>>, vector<3x256xf32>
    tpu.vector_store %arg8[%c0_6, %c0_7], %5 {strides = array<i32>} : memref<8x512xf32, #tpu.memory_space<vmem>>, vector<3x256xf32>,
    %c0_8 = arith.constant 0 : index
    %c0_9 = arith.constant 0 : index
    %c0_10 = arith.constant 0 : index
    %7 = vector.load %arg2[%c0_8, %c0_9, %c0_10] : memref<2x3x256xf32, #tpu.memory_space<vmem>>, vector<1x3x256xf32>
    %8 = vector.shape_cast %7 : vector<1x3x256xf32> to vector<3x256xf32>
    %c0_11 = arith.constant 0 : index
    %c0_12 = arith.constant 0 : index
    %9 = vector.load %arg9[%c0_11, %c0_12] : memref<8x512xf32, #tpu.memory_space<vmem>>, vector<3x256xf32>
    tpu.vector_store %arg9[%c0_11, %c0_12], %8 {strides = array<i32>} : memref<8x512xf32, #tpu.memory_space<vmem>>, vector<3x256xf32>,
    %c1 = arith.constant 1 : index
    %c0_13 = arith.constant 0 : index
    %c0_14 = arith.constant 0 : index
    %10 = vector.load %arg1[%c1, %c0_13, %c0_14] : memref<2x3x256xf32, #tpu.memory_space<vmem>>, vector<1x3x256xf32>
    %11 = vector.shape_cast %10 : vector<1x3x256xf32> to vector<3x256xf32>
    %c0_15 = arith.constant 0 : index
    %c256 = arith.constant 256 : index
    %12 = vector.load %arg8[%c0_15, %c256] : memref<8x512xf32, #tpu.memory_space<vmem>>, vector<3x256xf32>
    tpu.vector_store %arg8[%c0_15, %c256], %11 {strides = array<i32>} : memref<8x512xf32, #tpu.memory_space<vmem>>, vector<3x256xf32>,
    %c1_16 = arith.constant 1 : index
    %c0_17 = arith.constant 0 : index
    %c0_18 = arith.constant 0 : index
    %13 = vector.load %arg2[%c1_16, %c0_17, %c0_18] : memref<2x3x256xf32, #tpu.memory_space<vmem>>, vector<1x3x256xf32>
    %14 = vector.shape_cast %13 : vector<1x3x256xf32> to vector<3x256xf32>
    %c0_19 = arith.constant 0 : index
    %c256_20 = arith.constant 256 : index
    %15 = vector.load %arg9[%c0_19, %c256_20] : memref<8x512xf32, #tpu.memory_space<vmem>>, vector<3x256xf32>
    tpu.vector_store %arg9[%c0_19, %c256_20], %14 {strides = array<i32>} : memref<8x512xf32, #tpu.memory_space<vmem>>, vector<3x256xf32>,
    %c0_21 = arith.constant 0 : index
    %c0_22 = arith.constant 0 : index
    %16 = vector.load %arg8[%c0_21, %c0_22] : memref<8x512xf32, #tpu.memory_space<vmem>>, vector<8x512xf32>
    %c0_23 = arith.constant 0 : index
    %c0_24 = arith.constant 0 : index
    %17 = vector.load %arg9[%c0_23, %c0_24] : memref<8x512xf32, #tpu.memory_space<vmem>>, vector<8x512xf32>
    %c0_25 = arith.constant 0 : index
    %c0_26 = arith.constant 0 : index
    %c0_27 = arith.constant 0 : index
    %18 = vector.load %arg3[%c0_25, %c0_26, %c0_27] : memref<12x64x32xf32, #tpu.memory_space<vmem>>, vector<1x32x8xf32>
    %19 = vector.shape_cast %18 : vector<1x32x8xf32> to vector<32x8xf32>
    %c0_28 = arith.constant 0 : index
    %c0_29 = arith.constant 0 : index
    %c0_30 = arith.constant 0 : index
    %20 = vector.load %arg4[%c0_28, %c0_29, %c0_30] : memref<12x64x1xf32, #tpu.memory_space<vmem>>, vector<1x32x1xf32>
    %21 = vector.shape_cast %20 : vector<1x32x1xf32> to vector<32x1xf32>
    %cst_31 = arith.constant dense<0.000000e+00> : vector<32x512xf32>
    %22 = tpu.matmul %19, %16, %cst_31 {dimension_numbers = #tpu.dot_dimension_numbers<[1], [0], [0], [1], [0, 0, 1, 1], [], []>} : vector<32x8xf32>, vector<8x512xf32>, vector<32x512xf32> -> vector<32x512xf32>
    %23 = vector.broadcast %21 : vector<32x1xf32> to vector<32x512xf32>
    %24 = arith.addf %22, %23 : vector<32x512xf32>
    %cst_32 = arith.constant 0.000000e+00 : f32
    %25 = vector.broadcast %cst_32 : f32 to vector<32x512xf32>
    %26 = arith.maximumf %24, %25 : vector<32x512xf32>
    %c1_33 = arith.constant 1 : index
    %c0_34 = arith.constant 0 : index
    %c0_35 = arith.constant 0 : index
    %27 = vector.load %arg3[%c1_33, %c0_34, %c0_35] : memref<12x64x32xf32, #tpu.memory_space<vmem>>, vector<1x32x32xf32>
    %28 = vector.shape_cast %27 : vector<1x32x32xf32> to vector<32x32xf32>
    %c1_36 = arith.constant 1 : index
    %c0_37 = arith.constant 0 : index
    %c0_38 = arith.constant 0 : index
    %29 = vector.load %arg4[%c1_36, %c0_37, %c0_38] : memref<12x64x1xf32, #tpu.memory_space<vmem>>, vector<1x32x1xf32>
    %30 = vector.shape_cast %29 : vector<1x32x1xf32> to vector<32x1xf32>
    %cst_39 = arith.constant dense<0.000000e+00> : vector<32x512xf32>
    %31 = tpu.matmul %28, %26, %cst_39 {dimension_numbers = #tpu.dot_dimension_numbers<[1], [0], [0], [1], [0, 0, 1, 1], [], []>} : vector<32x32xf32>, vector<32x512xf32>, vector<32x512xf32> -> vector<32x512xf32>
    %32 = vector.broadcast %30 : vector<32x1xf32> to vector<32x512xf32>
    %33 = arith.addf %31, %32 : vector<32x512xf32>
    %cst_40 = arith.constant 0.000000e+00 : f32
    %34 = vector.broadcast %cst_40 : f32 to vector<32x512xf32>
    %35 = arith.maximumf %33, %34 : vector<32x512xf32>
    %c2 = arith.constant 2 : index
    %c0_41 = arith.constant 0 : index
    %c0_42 = arith.constant 0 : index
    %36 = vector.load %arg3[%c2, %c0_41, %c0_42] : memref<12x64x32xf32, #tpu.memory_space<vmem>>, vector<1x32x32xf32>
    %37 = vector.shape_cast %36 : vector<1x32x32xf32> to vector<32x32xf32>
    %c2_43 = arith.constant 2 : index
    %c0_44 = arith.constant 0 : index
    %c0_45 = arith.constant 0 : index
    %38 = vector.load %arg4[%c2_43, %c0_44, %c0_45] : memref<12x64x1xf32, #tpu.memory_space<vmem>>, vector<1x32x1xf32>
    %39 = vector.shape_cast %38 : vector<1x32x1xf32> to vector<32x1xf32>
    %cst_46 = arith.constant dense<0.000000e+00> : vector<32x512xf32>
    %40 = tpu.matmul %37, %35, %cst_46 {dimension_numbers = #tpu.dot_dimension_numbers<[1], [0], [0], [1], [0, 0, 1, 1], [], []>} : vector<32x32xf32>, vector<32x512xf32>, vector<32x512xf32> -> vector<32x512xf32>
    %41 = vector.broadcast %39 : vector<32x1xf32> to vector<32x512xf32>
    %42 = arith.addf %40, %41 : vector<32x512xf32>
    %c3_47 = arith.constant 3 : index
    %c0_48 = arith.constant 0 : index
    %c0_49 = arith.constant 0 : index
    %43 = vector.load %arg3[%c3_47, %c0_48, %c0_49] : memref<12x64x32xf32, #tpu.memory_space<vmem>>, vector<1x32x8xf32>
    %44 = vector.shape_cast %43 : vector<1x32x8xf32> to vector<32x8xf32>
    %c3_50 = arith.constant 3 : index
    %c0_51 = arith.constant 0 : index
    %c0_52 = arith.constant 0 : index
    %45 = vector.load %arg4[%c3_50, %c0_51, %c0_52] : memref<12x64x1xf32, #tpu.memory_space<vmem>>, vector<1x32x1xf32>
    %46 = vector.shape_cast %45 : vector<1x32x1xf32> to vector<32x1xf32>
    %cst_53 = arith.constant dense<0.000000e+00> : vector<32x512xf32>
    %47 = tpu.matmul %44, %17, %cst_53 {dimension_numbers = #tpu.dot_dimension_numbers<[1], [0], [0], [1], [0, 0, 1, 1], [], []>} : vector<32x8xf32>, vector<8x512xf32>, vector<32x512xf32> -> vector<32x512xf32>
    %48 = vector.broadcast %46 : vector<32x1xf32> to vector<32x512xf32>
    %49 = arith.addf %47, %48 : vector<32x512xf32>
    %cst_54 = arith.constant 0.000000e+00 : f32
    %50 = vector.broadcast %cst_54 : f32 to vector<32x512xf32>
    %51 = arith.maximumf %49, %50 : vector<32x512xf32>
    %c4 = arith.constant 4 : index
    %c0_55 = arith.constant 0 : index
    %c0_56 = arith.constant 0 : index
    %52 = vector.load %arg3[%c4, %c0_55, %c0_56] : memref<12x64x32xf32, #tpu.memory_space<vmem>>, vector<1x32x32xf32>
    %53 = vector.shape_cast %52 : vector<1x32x32xf32> to vector<32x32xf32>
    %c4_57 = arith.constant 4 : index
    %c0_58 = arith.constant 0 : index
    %c0_59 = arith.constant 0 : index
    %54 = vector.load %arg4[%c4_57, %c0_58, %c0_59] : memref<12x64x1xf32, #tpu.memory_space<vmem>>, vector<1x32x1xf32>
    %55 = vector.shape_cast %54 : vector<1x32x1xf32> to vector<32x1xf32>
    %cst_60 = arith.constant dense<0.000000e+00> : vector<32x512xf32>
    %56 = tpu.matmul %53, %51, %cst_60 {dimension_numbers = #tpu.dot_dimension_numbers<[1], [0], [0], [1], [0, 0, 1, 1], [], []>} : vector<32x32xf32>, vector<32x512xf32>, vector<32x512xf32> -> vector<32x512xf32>
    %57 = vector.broadcast %55 : vector<32x1xf32> to vector<32x512xf32>
    %58 = arith.addf %56, %57 : vector<32x512xf32>
    %cst_61 = arith.constant 0.000000e+00 : f32
    %59 = vector.broadcast %cst_61 : f32 to vector<32x512xf32>
    %60 = arith.maximumf %58, %59 : vector<32x512xf32>
    %c5 = arith.constant 5 : index
    %c0_62 = arith.constant 0 : index
    %c0_63 = arith.constant 0 : index
    %61 = vector.load %arg3[%c5, %c0_62, %c0_63] : memref<12x64x32xf32, #tpu.memory_space<vmem>>, vector<1x32x32xf32>
    %62 = vector.shape_cast %61 : vector<1x32x32xf32> to vector<32x32xf32>
    %c5_64 = arith.constant 5 : index
    %c0_65 = arith.constant 0 : index
    %c0_66 = arith.constant 0 : index
    %63 = vector.load %arg4[%c5_64, %c0_65, %c0_66] : memref<12x64x1xf32, #tpu.memory_space<vmem>>, vector<1x32x1xf32>
    %64 = vector.shape_cast %63 : vector<1x32x1xf32> to vector<32x1xf32>
    %cst_67 = arith.constant dense<0.000000e+00> : vector<32x512xf32>
    %65 = tpu.matmul %62, %60, %cst_67 {dimension_numbers = #tpu.dot_dimension_numbers<[1], [0], [0], [1], [0, 0, 1, 1], [], []>} : vector<32x32xf32>, vector<32x512xf32>, vector<32x512xf32> -> vector<32x512xf32>
    %66 = vector.broadcast %64 : vector<32x1xf32> to vector<32x512xf32>
    %67 = arith.addf %65, %66 : vector<32x512xf32>
    %68 = arith.mulf %42, %67 : vector<32x512xf32>
    %69 = vector.extract_strided_slice %68 {offsets = [0, 0], sizes = [32, 256], strides = [1, 1]} : vector<32x512xf32> to vector<32x256xf32>
    %cst_68 = arith.constant dense<0.000000e+00> : vector<32xf32>
    %70 = vector.multi_reduction <add>, %69, %cst_68 [1] : vector<32x256xf32> to vector<32xf32>
    %71 = vector.shape_cast %70 : vector<32xf32> to vector<32x1xf32>
    %cst_69 = arith.constant 2.560000e+02 : f32
    %72 = vector.broadcast %cst_69 : f32 to vector<32x1xf32>
    %73 = arith.divf %71, %72 : vector<32x1xf32>
    %74 = vector.extract_strided_slice %68 {offsets = [0, 256], sizes = [32, 256], strides = [1, 1]} : vector<32x512xf32> to vector<32x256xf32>
    %cst_70 = arith.constant dense<0.000000e+00> : vector<32xf32>
    %75 = vector.multi_reduction <add>, %74, %cst_70 [1] : vector<32x256xf32> to vector<32xf32>
    %76 = vector.shape_cast %75 : vector<32xf32> to vector<32x1xf32>
    %cst_71 = arith.constant 2.560000e+02 : f32
    %77 = vector.broadcast %cst_71 : f32 to vector<32x1xf32>
    %78 = arith.divf %76, %77 : vector<32x1xf32>
    %79 = tpu.iota {dimensions = array<i32: 1>} : vector<1x2xi32>
    %c0_i32 = arith.constant 0 : i32
    %80 = vector.broadcast %c0_i32 : i32 to vector<1x2xi32>
    %81 = arith.cmpi eq, %79, %80 : vector<1x2xi32>
    %82 = arith.extui %81 : vector<1x2xi1> to vector<1x2xi32>
    %83 = arith.sitofp %82 : vector<1x2xi32> to vector<1x2xf32>
    %84 = vector.broadcast %73 : vector<32x1xf32> to vector<32x2xf32>
    %85 = vector.broadcast %83 : vector<1x2xf32> to vector<32x2xf32>
    %86 = arith.mulf %84, %85 : vector<32x2xf32>
    %cst_72 = arith.constant 0.000000e+00 : f32
    %87 = vector.broadcast %cst_72 : f32 to vector<32x2xf32>
    %88 = arith.addf %87, %86 : vector<32x2xf32>
    %c1_i32 = arith.constant 1 : i32
    %89 = vector.broadcast %c1_i32 : i32 to vector<1x2xi32>
    %90 = arith.cmpi eq, %79, %89 : vector<1x2xi32>
    %91 = arith.extui %90 : vector<1x2xi1> to vector<1x2xi32>
    %92 = arith.sitofp %91 : vector<1x2xi32> to vector<1x2xf32>
    %93 = vector.broadcast %78 : vector<32x1xf32> to vector<32x2xf32>
    %94 = vector.broadcast %92 : vector<1x2xf32> to vector<32x2xf32>
    %95 = arith.mulf %93, %94 : vector<32x2xf32>
    %96 = arith.addf %88, %95 : vector<32x2xf32>
    %c6 = arith.constant 6 : index
    %c0_73 = arith.constant 0 : index
    %c0_74 = arith.constant 0 : index
    %97 = vector.load %arg3[%c6, %c0_73, %c0_74] : memref<12x64x32xf32, #tpu.memory_space<vmem>>, vector<1x32x32xf32>
    %98 = vector.shape_cast %97 : vector<1x32x32xf32> to vector<32x32xf32>
    %c6_75 = arith.constant 6 : index
    %c0_76 = arith.constant 0 : index
    %c0_77 = arith.constant 0 : index
    %99 = vector.load %arg4[%c6_75, %c0_76, %c0_77] : memref<12x64x1xf32, #tpu.memory_space<vmem>>, vector<1x32x1xf32>
    %100 = vector.shape_cast %99 : vector<1x32x1xf32> to vector<32x1xf32>
    %cst_78 = arith.constant dense<0.000000e+00> : vector<32x2xf32>
    %101 = tpu.matmul %98, %96, %cst_78 {dimension_numbers = #tpu.dot_dimension_numbers<[1], [0], [0], [1], [0, 0, 1, 1], [], []>} : vector<32x32xf32>, vector<32x2xf32>, vector<32x2xf32> -> vector<32x2xf32>
    %102 = vector.broadcast %100 : vector<32x1xf32> to vector<32x2xf32>
    %103 = arith.addf %101, %102 : vector<32x2xf32>
    %cst_79 = arith.constant 0.000000e+00 : f32
    %104 = vector.broadcast %cst_79 : f32 to vector<32x2xf32>
    %105 = arith.maximumf %103, %104 : vector<32x2xf32>
    %c7 = arith.constant 7 : index
    %c0_80 = arith.constant 0 : index
    %c0_81 = arith.constant 0 : index
    %106 = vector.load %arg3[%c7, %c0_80, %c0_81] : memref<12x64x32xf32, #tpu.memory_space<vmem>>, vector<1x32x32xf32>
    %107 = vector.shape_cast %106 : vector<1x32x32xf32> to vector<32x32xf32>
    %c7_82 = arith.constant 7 : index
    %c0_83 = arith.constant 0 : index
    %c0_84 = arith.constant 0 : index
    %108 = vector.load %arg4[%c7_82, %c0_83, %c0_84] : memref<12x64x1xf32, #tpu.memory_space<vmem>>, vector<1x32x1xf32>
    %109 = vector.shape_cast %108 : vector<1x32x1xf32> to vector<32x1xf32>
    %cst_85 = arith.constant dense<0.000000e+00> : vector<32x2xf32>
    %110 = tpu.matmul %107, %105, %cst_85 {dimension_numbers = #tpu.dot_dimension_numbers<[1], [0], [0], [1], [0, 0, 1, 1], [], []>} : vector<32x32xf32>, vector<32x2xf32>, vector<32x2xf32> -> vector<32x2xf32>
    %111 = vector.broadcast %109 : vector<32x1xf32> to vector<32x2xf32>
    %112 = arith.addf %110, %111 : vector<32x2xf32>
    %cst_86 = arith.constant 0.000000e+00 : f32
    %113 = vector.broadcast %cst_86 : f32 to vector<32x2xf32>
    %114 = arith.maximumf %112, %113 : vector<32x2xf32>
    %c8 = arith.constant 8 : index
    %c0_87 = arith.constant 0 : index
    %c0_88 = arith.constant 0 : index
    %115 = vector.load %arg3[%c8, %c0_87, %c0_88] : memref<12x64x32xf32, #tpu.memory_space<vmem>>, vector<1x64x32xf32>
    %116 = vector.shape_cast %115 : vector<1x64x32xf32> to vector<64x32xf32>
    %c8_89 = arith.constant 8 : index
    %c0_90 = arith.constant 0 : index
    %c0_91 = arith.constant 0 : index
    %117 = vector.load %arg4[%c8_89, %c0_90, %c0_91] : memref<12x64x1xf32, #tpu.memory_space<vmem>>, vector<1x64x1xf32>
    %118 = vector.shape_cast %117 : vector<1x64x1xf32> to vector<64x1xf32>
    %cst_92 = arith.constant dense<0.000000e+00> : vector<64x2xf32>
    %119 = tpu.matmul %116, %114, %cst_92 {dimension_numbers = #tpu.dot_dimension_numbers<[1], [0], [0], [1], [0, 0, 1, 1], [], []>} : vector<64x32xf32>, vector<32x2xf32>, vector<64x2xf32> -> vector<64x2xf32>
    %120 = vector.broadcast %118 : vector<64x1xf32> to vector<64x2xf32>
    %121 = arith.addf %119, %120 : vector<64x2xf32>
    %c9 = arith.constant 9 : index
    %c0_93 = arith.constant 0 : index
    %c0_94 = arith.constant 0 : index
    %122 = vector.load %arg3[%c9, %c0_93, %c0_94] : memref<12x64x32xf32, #tpu.memory_space<vmem>>, vector<1x32x32xf32>
    %123 = vector.shape_cast %122 : vector<1x32x32xf32> to vector<32x32xf32>
    %c9_95 = arith.constant 9 : index
    %c0_96 = arith.constant 0 : index
    %c0_97 = arith.constant 0 : index
    %124 = vector.load %arg4[%c9_95, %c0_96, %c0_97] : memref<12x64x1xf32, #tpu.memory_space<vmem>>, vector<1x32x1xf32>
    %125 = vector.shape_cast %124 : vector<1x32x1xf32> to vector<32x1xf32>
    %cst_98 = arith.constant dense<0.000000e+00> : vector<32x512xf32>
    %126 = tpu.matmul %123, %68, %cst_98 {dimension_numbers = #tpu.dot_dimension_numbers<[1], [0], [0], [1], [0, 0, 1, 1], [], []>} : vector<32x32xf32>, vector<32x512xf32>, vector<32x512xf32> -> vector<32x512xf32>
    %127 = vector.broadcast %125 : vector<32x1xf32> to vector<32x512xf32>
    %128 = arith.addf %126, %127 : vector<32x512xf32>
    %129 = math.sin %128 : vector<32x512xf32>
    %c10 = arith.constant 10 : index
    %c0_99 = arith.constant 0 : index
    %c0_100 = arith.constant 0 : index
    %130 = vector.load %arg3[%c10, %c0_99, %c0_100] : memref<12x64x32xf32, #tpu.memory_space<vmem>>, vector<1x32x32xf32>
    %131 = vector.shape_cast %130 : vector<1x32x32xf32> to vector<32x32xf32>
    %c10_101 = arith.constant 10 : index
    %c0_102 = arith.constant 0 : index
    %c0_103 = arith.constant 0 : index
    %132 = vector.load %arg4[%c10_101, %c0_102, %c0_103] : memref<12x64x1xf32, #tpu.memory_space<vmem>>, vector<1x32x1xf32>
    %133 = vector.shape_cast %132 : vector<1x32x1xf32> to vector<32x1xf32>
    %cst_104 = arith.constant dense<0.000000e+00> : vector<32x512xf32>
    %134 = tpu.matmul %131, %129, %cst_104 {dimension_numbers = #tpu.dot_dimension_numbers<[1], [0], [0], [1], [0, 0, 1, 1], [], []>} : vector<32x32xf32>, vector<32x512xf32>, vector<32x512xf32> -> vector<32x512xf32>
    %135 = vector.broadcast %133 : vector<32x1xf32> to vector<32x512xf32>
    %136 = arith.addf %134, %135 : vector<32x512xf32>
    %137 = math.sin %136 : vector<32x512xf32>
    %c11 = arith.constant 11 : index
    %c0_105 = arith.constant 0 : index
    %c0_106 = arith.constant 0 : index
    %138 = vector.load %arg3[%c11, %c0_105, %c0_106] : memref<12x64x32xf32, #tpu.memory_space<vmem>>, vector<1x64x32xf32>
    %139 = vector.shape_cast %138 : vector<1x64x32xf32> to vector<64x32xf32>
    %c11_107 = arith.constant 11 : index
    %c0_108 = arith.constant 0 : index
    %c0_109 = arith.constant 0 : index
    %140 = vector.load %arg4[%c11_107, %c0_108, %c0_109] : memref<12x64x1xf32, #tpu.memory_space<vmem>>, vector<1x64x1xf32>
    %141 = vector.shape_cast %140 : vector<1x64x1xf32> to vector<64x1xf32>
    %c0_110 = arith.constant 0 : index
    %c0_111 = arith.constant 0 : index
    %142 = vector.load %arg5[%c0_110, %c0_111] : memref<2x64xf32, #tpu.memory_space<vmem>>, vector<2x64xf32>
    %c0_112 = arith.constant 0 : index
    %143 = memref.load %arg6[%c0_112] : memref<1xf32, #tpu.memory_space<smem>>
    %144 = vector.extract_strided_slice %121 {offsets = [0, 0], sizes = [64, 1], strides = [1, 1]} : vector<64x2xf32> to vector<64x1xf32>
    %145 = vector.broadcast %144 : vector<64x1xf32> to vector<64x32xf32>
    %146 = arith.mulf %145, %139 : vector<64x32xf32>
    %cst_113 = arith.constant dense<0.000000e+00> : vector<2x32xf32>
    %147 = tpu.matmul %142, %146, %cst_113 {dimension_numbers = #tpu.dot_dimension_numbers<[1], [0], [0], [1], [0, 0, 1, 1], [], []>} : vector<2x64xf32>, vector<64x32xf32>, vector<2x32xf32> -> vector<2x32xf32>
    %148 = arith.mulf %144, %141 : vector<64x1xf32>
    %cst_114 = arith.constant dense<0.000000e+00> : vector<2x1xf32>
    %149 = tpu.matmul %142, %148, %cst_114 {dimension_numbers = #tpu.dot_dimension_numbers<[1], [0], [0], [1], [0, 0, 1, 1], [], []>} : vector<2x64xf32>, vector<64x1xf32>, vector<2x1xf32> -> vector<2x1xf32>
    %150 = vector.extract_strided_slice %137 {offsets = [0, 0], sizes = [32, 256], strides = [1, 1]} : vector<32x512xf32> to vector<32x256xf32>
    %cst_115 = arith.constant dense<0.000000e+00> : vector<2x256xf32>
    %151 = tpu.matmul %147, %150, %cst_115 {dimension_numbers = #tpu.dot_dimension_numbers<[1], [0], [0], [1], [0, 0, 1, 1], [], []>} : vector<2x32xf32>, vector<32x256xf32>, vector<2x256xf32> -> vector<2x256xf32>
    %152 = vector.broadcast %149 : vector<2x1xf32> to vector<2x256xf32>
    %153 = arith.addf %151, %152 : vector<2x256xf32>
    %154 = vector.broadcast %143 : f32 to vector<2x256xf32>
    %155 = arith.addf %153, %154 : vector<2x256xf32>
    %c0_116 = arith.constant 0 : index
    %c0_117 = arith.constant 0 : index
    %c0_118 = arith.constant 0 : index
    %156 = vector.load %arg7[%c0_116, %c0_117, %c0_118] : memref<2x2x256xf32, #tpu.memory_space<vmem>>, vector<1x2x256xf32>
    %157 = vector.shape_cast %156 : vector<1x2x256xf32> to vector<2x256xf32>
    %158 = vector.shape_cast %155 : vector<2x256xf32> to vector<1x2x256xf32>
    tpu.vector_store %arg7[%c0_116, %c0_117, %c0_118], %158 {strides = array<i32>} : memref<2x2x256xf32, #tpu.memory_space<vmem>>, vector<1x2x256xf32>,
    %159 = vector.extract_strided_slice %121 {offsets = [0, 1], sizes = [64, 1], strides = [1, 1]} : vector<64x2xf32> to vector<64x1xf32>
    %160 = vector.broadcast %159 : vector<64x1xf32> to vector<64x32xf32>
    %161 = arith.mulf %160, %139 : vector<64x32xf32>
    %cst_119 = arith.constant dense<0.000000e+00> : vector<2x32xf32>
    %162 = tpu.matmul %142, %161, %cst_119 {dimension_numbers = #tpu.dot_dimension_numbers<[1], [0], [0], [1], [0, 0, 1, 1], [], []>} : vector<2x64xf32>, vector<64x32xf32>, vector<2x32xf32> -> vector<2x32xf32>
    %163 = arith.mulf %159, %141 : vector<64x1xf32>
    %cst_120 = arith.constant dense<0.000000e+00> : vector<2x1xf32>
    %164 = tpu.matmul %142, %163, %cst_120 {dimension_numbers = #tpu.dot_dimension_numbers<[1], [0], [0], [1], [0, 0, 1, 1], [], []>} : vector<2x64xf32>, vector<64x1xf32>, vector<2x1xf32> -> vector<2x1xf32>
    %165 = vector.extract_strided_slice %137 {offsets = [0, 256], sizes = [32, 256], strides = [1, 1]} : vector<32x512xf32> to vector<32x256xf32>
    %cst_121 = arith.constant dense<0.000000e+00> : vector<2x256xf32>
    %166 = tpu.matmul %162, %165, %cst_121 {dimension_numbers = #tpu.dot_dimension_numbers<[1], [0], [0], [1], [0, 0, 1, 1], [], []>} : vector<2x32xf32>, vector<32x256xf32>, vector<2x256xf32> -> vector<2x256xf32>
    %167 = vector.broadcast %164 : vector<2x1xf32> to vector<2x256xf32>
    %168 = arith.addf %166, %167 : vector<2x256xf32>
    %169 = vector.broadcast %143 : f32 to vector<2x256xf32>
    %170 = arith.addf %168, %169 : vector<2x256xf32>
    %c1_122 = arith.constant 1 : index
    %c0_123 = arith.constant 0 : index
    %c0_124 = arith.constant 0 : index
    %171 = vector.load %arg7[%c1_122, %c0_123, %c0_124] : memref<2x2x256xf32, #tpu.memory_space<vmem>>, vector<1x2x256xf32>
    %172 = vector.shape_cast %171 : vector<1x2x256xf32> to vector<2x256xf32>
    %173 = vector.shape_cast %170 : vector<2x256xf32> to vector<1x2x256xf32>
    tpu.vector_store %arg7[%c1_122, %c0_123, %c0_124], %173 {strides = array<i32>} : memref<2x2x256xf32, #tpu.memory_space<vmem>>, vector<1x2x256xf32>,
    return
  }
  func.func @transform_0(%arg0: i32) -> (i32, i32, i32) {
    %c0_i32 = arith.constant 0 : i32
    %c0_i32_0 = arith.constant 0 : i32
    %c0_i32_1 = arith.constant 0 : i32
    return %arg0, %c0_i32, %c0_i32_0 : i32, i32, i32
  }
  func.func @transform_1(%arg0: i32) -> (i32, i32, i32) {
    %c0_i32 = arith.constant 0 : i32
    %c0_i32_0 = arith.constant 0 : i32
    %c0_i32_1 = arith.constant 0 : i32
    return %arg0, %c0_i32, %c0_i32_0 : i32, i32, i32
  }
  func.func @transform_2(%arg0: i32) -> (i32, i32, i32) {
    %c0_i32 = arith.constant 0 : i32
    %c0_i32_0 = arith.constant 0 : i32
    %c0_i32_1 = arith.constant 0 : i32
    %c0_i32_2 = arith.constant 0 : i32
    return %c0_i32, %c0_i32_0, %c0_i32_1 : i32, i32, i32
  }
  func.func @transform_3(%arg0: i32) -> (i32, i32, i32) {
    %c0_i32 = arith.constant 0 : i32
    %c0_i32_0 = arith.constant 0 : i32
    %c0_i32_1 = arith.constant 0 : i32
    %c0_i32_2 = arith.constant 0 : i32
    return %c0_i32, %c0_i32_0, %c0_i32_1 : i32, i32, i32
  }
  func.func @transform_4(%arg0: i32) -> (i32, i32) {
    %c0_i32 = arith.constant 0 : i32
    %c0_i32_0 = arith.constant 0 : i32
    %c0_i32_1 = arith.constant 0 : i32
    return %c0_i32, %c0_i32_0 : i32, i32
  }
  func.func @transform_5(%arg0: i32) -> i32 {
    %c0_i32 = arith.constant 0 : i32
    %c0_i32_0 = arith.constant 0 : i32
    return %c0_i32 : i32
  }
  func.func @transform_6(%arg0: i32) -> (i32, i32, i32) {
    %c0_i32 = arith.constant 0 : i32
    %c0_i32_0 = arith.constant 0 : i32
    %c0_i32_1 = arith.constant 0 : i32
    return %arg0, %c0_i32, %c0_i32_0 : i32, i32, i32
  }
}

</mosaic_0001>

<llo_original>
// kernel: tpu_custom_call.1
$region0: #{tpu_custom_call.1}
  #allocation0 [shape = 'u32[]', space=smem, size = 0x4, offset = 0x4, fixed_abs, tag = 'smem constant byte address 0x4 - core index']
  #allocation1 [shape = 'u32[144,128]{1,0:T(1,128)}', space=vmem, size = 0x12000, scoped, tag = 'internal scratch']
  #allocation2 [shape = 'f32[8,512]{1,0:T(8,128)}', space=vmem, size = 0x4000, scoped, tag = 'scratch operand']
  #allocation3 [shape = 'f32[8,512]{1,0:T(8,128)}', space=vmem, size = 0x4000, scoped, tag = 'scratch operand']
  #allocation4 [shape = 'f32[1]{0:T(128)S(6)}', space=smem, size = 0x200, scoped, tag = 'scoped memory for tpu_custom_call.1']
  %s0 = inlined_call_operand.vmem [shape: f32[2,3,256], index: 0, kind: input, shape index: {}]
  %s1 = inlined_call_operand.vmem [shape: f32[2,3,256], index: 1, kind: input, shape index: {}]
  %s2 = inlined_call_operand.vmem [shape: f32[12,64,32], index: 2, kind: input, shape index: {}]
  %s3 = inlined_call_operand.vmem [shape: f32[12,64,1], index: 3, kind: input, shape index: {}]
  %s4 = inlined_call_operand.vmem [shape: f32[2,64], index: 4, kind: input, shape index: {}]
  %s5 = inlined_call_operand.<no memory space> [shape: f32[1], index: 5, kind: input, shape index: {}]
  %s6 = inlined_call_operand.hbm [shape: f32[2,2,256], index: 6, kind: output, shape index: {}]
  %s7 = sld [smem:[#allocation0]]
  $region34: #{tpu_custom_call.1} parent=0
    _
  %s9 = ssub.s32 1, %s7
  %s10 = scalar_select 0, %s9, %s7
  %11 = sst [smem:[#allocation4]] %s5
  $region1: #{tpu_custom_call.1} parent=0
    #allocation5 [shape = 'u8[4096]{0}', space=vmem, size = 0x1000, scoped, tag = 'output window, operand 0, single buffered']
    #allocation6 [shape = 's32[1]{0}', space=sflag, size = 0x4, scoped, tag = 'scoped memory for tpu_custom_call.1']
    %12 = vsyncpa [#allocation6], 0
    // Predicated region
    $region2: #{tpu_custom_call.1} parent=1 // pred_check
      _
    $region3: #{tpu_custom_call.1} parent=1 // pred_check_branch
      %14 = sbr.rel (0) target = $region5
    $region4: #{tpu_custom_call.1} parent=1 // pred_region
      _
    $region5: #{tpu_custom_call.1} parent=1 // pred_fallthru
      _
    // Predicated region
    $region6: #{tpu_custom_call.1} parent=1 // pred_check
      _
    $region7: #{tpu_custom_call.1} parent=1 // pred_check_branch
      %16 = sbr.rel (0) target = $region9
    $region8: #{tpu_custom_call.1} parent=1 // pred_region
      _
    $region9: #{tpu_custom_call.1} parent=1 // pred_fallthru
      _
    // Predicated region
    $region10: #{tpu_custom_call.1} parent=1 // pred_check
      _
    $region11: #{tpu_custom_call.1} parent=1 // pred_check_branch
      %18 = sbr.rel (0) target = $region13
    $region12: #{tpu_custom_call.1} parent=1 // pred_region
      _
    $region13: #{tpu_custom_call.1} parent=1 // pred_fallthru
      _
    // Predicated region
    $region14: #{tpu_custom_call.1} parent=1 // pred_check
      _
    $region15: #{tpu_custom_call.1} parent=1 // pred_check_branch
      %20 = sbr.rel (0) target = $region17
    $region16: #{tpu_custom_call.1} parent=1 // pred_region
      _
    $region17: #{tpu_custom_call.1} parent=1 // pred_fallthru
      _
    // Predicated region
    $region18: #{tpu_custom_call.1} parent=1 // pred_check
      _
    $region19: #{tpu_custom_call.1} parent=1 // pred_check_branch
      %22 = sbr.rel (0) target = $region21
    $region20: #{tpu_custom_call.1} parent=1 // pred_region
      _
    $region21: #{tpu_custom_call.1} parent=1 // pred_fallthru
      _
    // Predicated region
    $region22: #{tpu_custom_call.1} parent=1 // pred_check
      _
    $region23: #{tpu_custom_call.1} parent=1 // pred_check_branch
      %24 = sbr.rel (0) target = $region25
    $region24: #{tpu_custom_call.1} parent=1 // pred_region
      _
    $region25: #{tpu_custom_call.1} parent=1 // pred_fallthru
      _
    %25 = vst [vmem:[#allocation2] sm:$0xf8] 0.0
    %26 = vst [vmem:[#allocation2 + $0x8] sm:$0xf8] 0.0
    %27 = vst [vmem:[#allocation2 + $0x10] sm:$0xf8] 0.0
    %28 = vst [vmem:[#allocation2 + $0x18] sm:$0xf8] 0.0
    %29 = vst [vmem:[#allocation3] sm:$0xf8] 0.0
    %30 = vst [vmem:[#allocation3 + $0x8] sm:$0xf8] 0.0
    %31 = vst [vmem:[#allocation3 + $0x10] sm:$0xf8] 0.0
    %32 = vst [vmem:[#allocation3 + $0x18] sm:$0xf8] 0.0
    %v33 = vld [vmem:[%s0] sm:$0x77]
    %v35 = vcombine.high %v33, %v33
    %37 = vst [vmem:[#allocation2] sm:$0x7] %v33
    %38 = vst [vmem:[#allocation2 + $0x8] sm:$0x7] %v35
    %v39 = vld [vmem:[%s1] sm:$0x77]
    %v41 = vcombine.high %v39, %v39
    %43 = vst [vmem:[#allocation3] sm:$0x7] %v39
    %44 = vst [vmem:[#allocation3 + $0x8] sm:$0x7] %v41
    %s45 = scalar_lea.vmem %s0, 8
    %v46 = vld [vmem:[%s45] sm:$0x77]
    %v48 = vcombine.high %v46, %v46
    %50 = vst [vmem:[#allocation2 + $0x10] sm:$0x7] %v46
    %51 = vst [vmem:[#allocation2 + $0x18] sm:$0x7] %v48
    %s52 = scalar_lea.vmem %s1, 8
    %v53 = vld [vmem:[%s52] sm:$0x77]
    %v55 = vcombine.high %v53, %v53
    %57 = vst [vmem:[#allocation3 + $0x10] sm:$0x7] %v53
    %58 = vst [vmem:[#allocation3 + $0x18] sm:$0x7] %v55
    %v59 = vld [vmem:[#allocation2] sm:$0xff]
    %v60 = vld [vmem:[#allocation2 + $0x8] sm:$0xff]
    %v61 = vld [vmem:[#allocation2 + $0x10] sm:$0xff]
    %v62 = vld [vmem:[#allocation2 + $0x18] sm:$0xff]
    %v63 = vld [vmem:[#allocation3] sm:$0xff]
    %v64 = vld [vmem:[#allocation3 + $0x8] sm:$0xff]
    %v65 = vld [vmem:[#allocation3 + $0x10] sm:$0xff]
    %v66 = vld [vmem:[#allocation3 + $0x18] sm:$0xff]
    %v67 = vld [vmem:[%s2] sm:$0xff]
    %v68 = vld [vmem:[%s2 + $0x8] sm:$0xff]
    %v69 = vld [vmem:[%s2 + $0x10] sm:$0xff]
    %v70 = vld [vmem:[%s2 + $0x18] sm:$0xff]
    %v71 = vld [vmem:[%s3] sm:$0xff]
    %v72 = vld [vmem:[%s3 + $0x8] sm:$0xff]
    %v73 = vld [vmem:[%s3 + $0x10] sm:$0xff]
    %v74 = vld [vmem:[%s3 + $0x18] sm:$0xff]
    %76 = vset.pattern.permute.xlu0 0
    %77 = vperm.xlu0 %76, %v71
    %v78 = vpop.permute.xlu0 %77
    %81 = vset.pattern.permute.xlu0 0
    %82 = vperm.xlu0 %81, %v72
    %v83 = vpop.permute.xlu0 %82
    %86 = vset.pattern.permute.xlu0 0
    %87 = vperm.xlu0 %86, %v73
    %v88 = vpop.permute.xlu0 %87
    %91 = vset.pattern.permute.xlu0 0
    %92 = vperm.xlu0 %91, %v74
    %v93 = vpop.permute.xlu0 %92
    %vm95 = vcmask 64512
    %v97 = vsel %vm95, %v67, 0
    %v100 = vsel %vm95, %v68, 0
    %v103 = vsel %vm95, %v69, 0
    %v106 = vsel %vm95, %v70, 0
    %108 = vmatprep.subr.mxu0 0.0
    %109 = vmatpush1.msra.mxu0 0.0
    %110 = vmatprep.subr.mxu0 0.0
    %111 = vmatpush1.msra.mxu0 0.0
    %112 = vmatprep.subr.mxu0 0.0
    %113 = vmatpush1.msra.mxu0 0.0
    %114 = vmatprep.subr.mxu0 0.0
    %115 = vmatpush1.msra.mxu0 0.0
    %116 = vmatprep.subr.mxu0 0.0
    %117 = vmatpush1.msra.mxu0 0.0
    %118 = vmatprep.subr.mxu0 0.0
    %119 = vmatpush1.msra.mxu0 0.0
    %120 = vmatprep.subr.mxu0 0.0
    %121 = vmatpush1.msra.mxu0 0.0
    %122 = vmatprep.subr.mxu0 0.0
    %123 = vmatpush1.msra.mxu0 0.0
    %124 = vmatprep.subr.mxu0 0.0
    %125 = vmatpush1.msra.mxu0 0.0
    %126 = vmatprep.subr.mxu0 0.0
    %127 = vmatpush1.msra.mxu0 0.0
    %128 = vmatprep.subr.mxu0 0.0
    %129 = vmatpush1.msra.mxu0 0.0
    %130 = vmatprep.subr.mxu0 0.0
    %131 = vmatpush1.msra.mxu0 0.0
    %132 = vmatprep.subr.mxu0 0.0
    %133 = vmatpush1.msra.mxu0 0.0
    %134 = vmatprep.subr.mxu0 0.0
    %135 = vmatpush1.msra.mxu0 0.0
    %136 = vmatprep.subr.mxu0 0.0
    %137 = vmatpush1.msra.mxu0 0.0
    %138 = vmatprep.subr.mxu0 %v60
    %139 = vmatpush1.msra.mxu0 %v59
    %140 = vmatprep.subr.mxu0 0.0
    %141 = vmatpush2.msra.mxu0 0.0
    %142 = vmatprep.subr.mxu0 0.0
    %143 = vmatpush2.msra.mxu0 0.0
    %144 = vmatprep.subr.mxu0 0.0
    %145 = vmatpush2.msra.mxu0 0.0
    %146 = vmatprep.subr.mxu0 0.0
    %147 = vmatpush2.msra.mxu0 0.0
    %148 = vmatprep.subr.mxu0 0.0
    %149 = vmatpush2.msra.mxu0 0.0
    %150 = vmatprep.subr.mxu0 0.0
    %151 = vmatpush2.msra.mxu0 0.0
    %152 = vmatprep.subr.mxu0 0.0
    %153 = vmatpush2.msra.mxu0 0.0
    %154 = vmatprep.subr.mxu0 0.0
    %155 = vmatpush2.msra.mxu0 0.0
    %156 = vmatprep.subr.mxu0 0.0
    %157 = vmatpush2.msra.mxu0 0.0
    %158 = vmatprep.subr.mxu0 0.0
    %159 = vmatpush2.msra.mxu0 0.0
    %160 = vmatprep.subr.mxu0 0.0
    %161 = vmatpush2.msra.mxu0 0.0
    %162 = vmatprep.subr.mxu0 0.0
    %163 = vmatpush2.msra.mxu0 0.0
    %164 = vmatprep.subr.mxu0 0.0
    %165 = vmatpush2.msra.mxu0 0.0
    %166 = vmatprep.subr.mxu0 0.0
    %167 = vmatpush2.msra.mxu0 0.0
    %168 = vmatprep.subr.mxu0 0.0
    %169 = vmatpush2.msra.mxu0 0.0
    %170 = vmatprep.subr.mxu0 0.0
    %171 = vmatpush2.msra.mxu0 0.0
    %172 = vmatprep.mubr.f32.mxu0 0.0
    %173 = vmatmul.mubr.f32.gmra.mxu0 %v97
    %v174 = vpop.f32.mrf.mxu0
    %v175 = vadd.f32 %v78, %v174
    %v176 = vpop.f32.mrf.mxu0
    %v177 = vadd.f32 %v78, %v176
    %178 = vmatprep.mubr.f32.mxu0 0.0
    %179 = vmatmul.mubr.f32.gmra.mxu0 %v100
    %v180 = vpop.f32.mrf.mxu0
    %v181 = vadd.f32 %v83, %v180
    %v182 = vpop.f32.mrf.mxu0
    %v183 = vadd.f32 %v83, %v182
    %184 = vmatprep.mubr.f32.mxu0 0.0
    %185 = vmatmul.mubr.f32.gmra.mxu0 %v103
    %v186 = vpop.f32.mrf.mxu0
    %v187 = vadd.f32 %v88, %v186
    %v188 = vpop.f32.mrf.mxu0
    %v189 = vadd.f32 %v88, %v188
    %190 = vmatprep.mubr.f32.mxu0 0.0
    %191 = vmatmul.mubr.f32.gmra.mxu0 %v106
    %v192 = vpop.f32.mrf.mxu0
    %v193 = vadd.f32 %v93, %v192
    %v194 = vpop.f32.mrf.mxu0
    %v195 = vadd.f32 %v93, %v194
    %196 = vdwg.mxu0
    %197 = vmatprep.subr.mxu0 0.0
    %198 = vmatpush1.msra.mxu0 0.0
    %199 = vmatprep.subr.mxu0 0.0
    %200 = vmatpush1.msra.mxu0 0.0
    %201 = vmatprep.subr.mxu0 0.0
    %202 = vmatpush1.msra.mxu0 0.0
    %203 = vmatprep.subr.mxu0 0.0
    %204 = vmatpush1.msra.mxu0 0.0
    %205 = vmatprep.subr.mxu0 0.0
    %206 = vmatpush1.msra.mxu0 0.0
    %207 = vmatprep.subr.mxu0 0.0
    %208 = vmatpush1.msra.mxu0 0.0
    %209 = vmatprep.subr.mxu0 0.0
    %210 = vmatpush1.msra.mxu0 0.0
    %211 = vmatprep.subr.mxu0 0.0
    %212 = vmatpush1.msra.mxu0 0.0
    %213 = vmatprep.subr.mxu0 0.0
    %214 = vmatpush1.msra.mxu0 0.0
    %215 = vmatprep.subr.mxu0 0.0
    %216 = vmatpush1.msra.mxu0 0.0
    %217 = vmatprep.subr.mxu0 0.0
    %218 = vmatpush1.msra.mxu0 0.0
    %219 = vmatprep.subr.mxu0 0.0
    %220 = vmatpush1.msra.mxu0 0.0
    %221 = vmatprep.subr.mxu0 0.0
    %222 = vmatpush1.msra.mxu0 0.0
    %223 = vmatprep.subr.mxu0 0.0
    %224 = vmatpush1.msra.mxu0 0.0
    %225 = vmatprep.subr.mxu0 0.0
    %226 = vmatpush1.msra.mxu0 0.0
    %227 = vmatprep.subr.mxu0 %v62
    %228 = vmatpush1.msra.mxu0 %v61
    %229 = vmatprep.subr.mxu0 0.0
    %230 = vmatpush2.msra.mxu0 0.0
    %231 = vmatprep.subr.mxu0 0.0
    %232 = vmatpush2.msra.mxu0 0.0
    %233 = vmatprep.subr.mxu0 0.0
    %234 = vmatpush2.msra.mxu0 0.0
    %235 = vmatprep.subr.mxu0 0.0
    %236 = vmatpush2.msra.mxu0 0.0
    %237 = vmatprep.subr.mxu0 0.0
    %238 = vmatpush2.msra.mxu0 0.0
    %239 = vmatprep.subr.mxu0 0.0
    %240 = vmatpush2.msra.mxu0 0.0
    %241 = vmatprep.subr.mxu0 0.0
    %242 = vmatpush2.msra.mxu0 0.0
    %243 = vmatprep.subr.mxu0 0.0
    %244 = vmatpush2.msra.mxu0 0.0
    %245 = vmatprep.subr.mxu0 0.0
    %246 = vmatpush2.msra.mxu0 0.0
    %247 = vmatprep.subr.mxu0 0.0
    %248 = vmatpush2.msra.mxu0 0.0
    %249 = vmatprep.subr.mxu0 0.0
    %250 = vmatpush2.msra.mxu0 0.0
    %251 = vmatprep.subr.mxu0 0.0
    %252 = vmatpush2.msra.mxu0 0.0
    %253 = vmatprep.subr.mxu0 0.0
    %254 = vmatpush2.msra.mxu0 0.0
    %255 = vmatprep.subr.mxu0 0.0
    %256 = vmatpush2.msra.mxu0 0.0
    %257 = vmatprep.subr.mxu0 0.0
    %258 = vmatpush2.msra.mxu0 0.0
    %259 = vmatprep.subr.mxu0 0.0
    %260 = vmatpush2.msra.mxu0 0.0
    %261 = vmatprep.mubr.f32.mxu0 0.0
    %262 = vmatmul.mubr.f32.gmra.mxu0 %v97
    %v263 = vpop.f32.mrf.mxu0
    %v264 = vadd.f32 %v78, %v263
    %v265 = vpop.f32.mrf.mxu0
    %v266 = vadd.f32 %v78, %v265
    %267 = vmatprep.mubr.f32.mxu0 0.0
    %268 = vmatmul.mubr.f32.gmra.mxu0 %v100
    %v269 = vpop.f32.mrf.mxu0
    %v270 = vadd.f32 %v83, %v269
    %v271 = vpop.f32.mrf.mxu0
    %v272 = vadd.f32 %v83, %v271
    %273 = vmatprep.mubr.f32.mxu0 0.0
    %274 = vmatmul.mubr.f32.gmra.mxu0 %v103
    %v275 = vpop.f32.mrf.mxu0
    %v276 = vadd.f32 %v88, %v275
    %v277 = vpop.f32.mrf.mxu0
    %v278 = vadd.f32 %v88, %v277
    %279 = vmatprep.mubr.f32.mxu0 0.0
    %280 = vmatmul.mubr.f32.gmra.mxu0 %v106
    %v281 = vpop.f32.mrf.mxu0
    %v282 = vadd.f32 %v93, %v281
    %v283 = vpop.f32.mrf.mxu0
    %v284 = vadd.f32 %v93, %v283
    %285 = vdwg.mxu0
    %v286 = vmax.f32 %v175, 0.0
    %v287 = vmax.f32 %v177, 0.0
    %v288 = vmax.f32 %v264, 0.0
    %v289 = vmax.f32 %v266, 0.0
    %v290 = vmax.f32 %v181, 0.0
    %v291 = vmax.f32 %v183, 0.0
    %v292 = vmax.f32 %v270, 0.0
    %v293 = vmax.f32 %v272, 0.0
    %v294 = vmax.f32 %v187, 0.0
    %v295 = vmax.f32 %v189, 0.0
    %v296 = vmax.f32 %v276, 0.0
    %v297 = vmax.f32 %v278, 0.0
    %v298 = vmax.f32 %v193, 0.0
    %v299 = vmax.f32 %v195, 0.0
    %v300 = vmax.f32 %v282, 0.0
    %v301 = vmax.f32 %v284, 0.0
    %s302 = scalar_lea.vmem %s2, 64
    %v303 = vld [vmem:[%s302] sm:$0xff]
    %v304 = vld [vmem:[%s302 + $0x8] sm:$0xff]
    %v305 = vld [vmem:[%s302 + $0x10] sm:$0xff]
    %v306 = vld [vmem:[%s302 + $0x18] sm:$0xff]
    %s307 = scalar_lea.vmem %s3, 64
    %v308 = vld [vmem:[%s307] sm:$0xff]
    %v309 = vld [vmem:[%s307 + $0x8] sm:$0xff]
    %v310 = vld [vmem:[%s307 + $0x10] sm:$0xff]
    %v311 = vld [vmem:[%s307 + $0x18] sm:$0xff]
    %313 = vset.pattern.permute.xlu0 0
    %314 = vperm.xlu0 %313, %v308
    %v315 = vpop.permute.xlu0 %314
    %318 = vset.pattern.permute.xlu0 0
    %319 = vperm.xlu0 %318, %v309
    %v320 = vpop.permute.xlu0 %319
    %323 = vset.pattern.permute.xlu0 0
    %324 = vperm.xlu0 %323, %v310
    %v325 = vpop.permute.xlu0 %324
    %328 = vset.pattern.permute.xlu0 0
    %329 = vperm.xlu0 %328, %v311
    %v330 = vpop.permute.xlu0 %329
    %vm332 = vcmask 261120
    %v334 = vsel %vm332, %v303, 0
    %v337 = vsel %vm332, %v304, 0
    %v340 = vsel %vm332, %v305, 0
    %v343 = vsel %vm332, %v306, 0
    %345 = vmatprep.subr.mxu0 0.0
    %346 = vmatpush1.msra.mxu0 0.0
    %347 = vmatprep.subr.mxu0 0.0
    %348 = vmatpush1.msra.mxu0 0.0
    %349 = vmatprep.subr.mxu0 0.0
    %350 = vmatpush1.msra.mxu0 0.0
    %351 = vmatprep.subr.mxu0 0.0
    %352 = vmatpush1.msra.mxu0 0.0
    %353 = vmatprep.subr.mxu0 0.0
    %354 = vmatpush1.msra.mxu0 0.0
    %355 = vmatprep.subr.mxu0 0.0
    %356 = vmatpush1.msra.mxu0 0.0
    %357 = vmatprep.subr.mxu0 0.0
    %358 = vmatpush1.msra.mxu0 0.0
    %359 = vmatprep.subr.mxu0 0.0
    %360 = vmatpush1.msra.mxu0 0.0
    %361 = vmatprep.subr.mxu0 0.0
    %362 = vmatpush1.msra.mxu0 0.0
    %363 = vmatprep.subr.mxu0 0.0
    %364 = vmatpush1.msra.mxu0 0.0
    %365 = vmatprep.subr.mxu0 0.0
    %366 = vmatpush1.msra.mxu0 0.0
    %367 = vmatprep.subr.mxu0 0.0
    %368 = vmatpush1.msra.mxu0 0.0
    %369 = vmatprep.subr.mxu0 %v299
    %370 = vmatpush1.msra.mxu0 %v298
    %371 = vmatprep.subr.mxu0 %v295
    %372 = vmatpush1.msra.mxu0 %v294
    %373 = vmatprep.subr.mxu0 %v291
    %374 = vmatpush1.msra.mxu0 %v290
    %375 = vmatprep.subr.mxu0 %v287
    %376 = vmatpush1.msra.mxu0 %v286
    %377 = vmatprep.subr.mxu0 0.0
    %378 = vmatpush2.msra.mxu0 0.0
    %379 = vmatprep.subr.mxu0 0.0
    %380 = vmatpush2.msra.mxu0 0.0
    %381 = vmatprep.subr.mxu0 0.0
    %382 = vmatpush2.msra.mxu0 0.0
    %383 = vmatprep.subr.mxu0 0.0
    %384 = vmatpush2.msra.mxu0 0.0
    %385 = vmatprep.subr.mxu0 0.0
    %386 = vmatpush2.msra.mxu0 0.0
    %387 = vmatprep.subr.mxu0 0.0
    %388 = vmatpush2.msra.mxu0 0.0
    %389 = vmatprep.subr.mxu0 0.0
    %390 = vmatpush2.msra.mxu0 0.0
    %391 = vmatprep.subr.mxu0 0.0
    %392 = vmatpush2.msra.mxu0 0.0
    %393 = vmatprep.subr.mxu0 0.0
    %394 = vmatpush2.msra.mxu0 0.0
    %395 = vmatprep.subr.mxu0 0.0
    %396 = vmatpush2.msra.mxu0 0.0
    %397 = vmatprep.subr.mxu0 0.0
    %398 = vmatpush2.msra.mxu0 0.0
    %399 = vmatprep.subr.mxu0 0.0
    %400 = vmatpush2.msra.mxu0 0.0
    %401 = vmatprep.subr.mxu0 0.0
    %402 = vmatpush2.msra.mxu0 0.0
    %403 = vmatprep.subr.mxu0 0.0
    %404 = vmatpush2.msra.mxu0 0.0
    %405 = vmatprep.subr.mxu0 0.0
    %406 = vmatpush2.msra.mxu0 0.0
    %407 = vmatprep.subr.mxu0 0.0
    %408 = vmatpush2.msra.mxu0 0.0
    %409 = vmatprep.mubr.f32.mxu0 0.0
    %410 = vmatmul.mubr.f32.gmra.mxu0 %v334
    %v411 = vpop.f32.mrf.mxu0
    %v412 = vadd.f32 %v315, %v411
    %v413 = vpop.f32.mrf.mxu0
    %v414 = vadd.f32 %v315, %v413
    %415 = vmatprep.mubr.f32.mxu0 0.0
    %416 = vmatmul.mubr.f32.gmra.mxu0 %v337
    %v417 = vpop.f32.mrf.mxu0
    %v418 = vadd.f32 %v320, %v417
    %v419 = vpop.f32.mrf.mxu0
    %v420 = vadd.f32 %v320, %v419
    %421 = vmatprep.mubr.f32.mxu0 0.0
    %422 = vmatmul.mubr.f32.gmra.mxu0 %v340
    %v423 = vpop.f32.mrf.mxu0
    %v424 = vadd.f32 %v325, %v423
    %v425 = vpop.f32.mrf.mxu0
    %v426 = vadd.f32 %v325, %v425
    %427 = vmatprep.mubr.f32.mxu0 0.0
    %428 = vmatmul.mubr.f32.gmra.mxu0 %v343
    %v429 = vpop.f32.mrf.mxu0
    %v430 = vadd.f32 %v330, %v429
    %v431 = vpop.f32.mrf.mxu0
    %v432 = vadd.f32 %v330, %v431
    %433 = vdwg.mxu0
    %434 = vmatprep.subr.mxu0 0.0
    %435 = vmatpush1.msra.mxu0 0.0
    %436 = vmatprep.subr.mxu0 0.0
    %437 = vmatpush1.msra.mxu0 0.0
    %438 = vmatprep.subr.mxu0 0.0
    %439 = vmatpush1.msra.mxu0 0.0
    %440 = vmatprep.subr.mxu0 0.0
    %441 = vmatpush1.msra.mxu0 0.0
    %442 = vmatprep.subr.mxu0 0.0
    %443 = vmatpush1.msra.mxu0 0.0
    %444 = vmatprep.subr.mxu0 0.0
    %445 = vmatpush1.msra.mxu0 0.0
    %446 = vmatprep.subr.mxu0 0.0
    %447 = vmatpush1.msra.mxu0 0.0
    %448 = vmatprep.subr.mxu0 0.0
    %449 = vmatpush1.msra.mxu0 0.0
    %450 = vmatprep.subr.mxu0 0.0
    %451 = vmatpush1.msra.mxu0 0.0
    %452 = vmatprep.subr.mxu0 0.0
    %453 = vmatpush1.msra.mxu0 0.0
    %454 = vmatprep.subr.mxu0 0.0
    %455 = vmatpush1.msra.mxu0 0.0
    %456 = vmatprep.subr.mxu0 0.0
    %457 = vmatpush1.msra.mxu0 0.0
    %458 = vmatprep.subr.mxu0 %v301
    %459 = vmatpush1.msra.mxu0 %v300
    %460 = vmatprep.subr.mxu0 %v297
    %461 = vmatpush1.msra.mxu0 %v296
    %462 = vmatprep.subr.mxu0 %v293
    %463 = vmatpush1.msra.mxu0 %v292
    %464 = vmatprep.subr.mxu0 %v289
    %465 = vmatpush1.msra.mxu0 %v288
    %466 = vmatprep.subr.mxu0 0.0
    %467 = vmatpush2.msra.mxu0 0.0
    %468 = vmatprep.subr.mxu0 0.0
    %469 = vmatpush2.msra.mxu0 0.0
    %470 = vmatprep.subr.mxu0 0.0
    %471 = vmatpush2.msra.mxu0 0.0
    %472 = vmatprep.subr.mxu0 0.0
    %473 = vmatpush2.msra.mxu0 0.0
    %474 = vmatprep.subr.mxu0 0.0
    %475 = vmatpush2.msra.mxu0 0.0
    %476 = vmatprep.subr.mxu0 0.0
    %477 = vmatpush2.msra.mxu0 0.0
    %478 = vmatprep.subr.mxu0 0.0
    %479 = vmatpush2.msra.mxu0 0.0
    %480 = vmatprep.subr.mxu0 0.0
    %481 = vmatpush2.msra.mxu0 0.0
    %482 = vmatprep.subr.mxu0 0.0
    %483 = vmatpush2.msra.mxu0 0.0
    %484 = vmatprep.subr.mxu0 0.0
    %485 = vmatpush2.msra.mxu0 0.0
    %486 = vmatprep.subr.mxu0 0.0
    %487 = vmatpush2.msra.mxu0 0.0
    %488 = vmatprep.subr.mxu0 0.0
    %489 = vmatpush2.msra.mxu0 0.0
    %490 = vmatprep.subr.mxu0 0.0
    %491 = vmatpush2.msra.mxu0 0.0
    %492 = vmatprep.subr.mxu0 0.0
    %493 = vmatpush2.msra.mxu0 0.0
    %494 = vmatprep.subr.mxu0 0.0
    %495 = vmatpush2.msra.mxu0 0.0
    %496 = vmatprep.subr.mxu0 0.0
    %497 = vmatpush2.msra.mxu0 0.0
    %498 = vmatprep.mubr.f32.mxu0 0.0
    %499 = vmatmul.mubr.f32.gmra.mxu0 %v334
    %v500 = vpop.f32.mrf.mxu0
    %v501 = vadd.f32 %v315, %v500
    %v502 = vpop.f32.mrf.mxu0
    %v503 = vadd.f32 %v315, %v502
    %504 = vmatprep.mubr.f32.mxu0 0.0
    %505 = vmatmul.mubr.f32.gmra.mxu0 %v337
    %v506 = vpop.f32.mrf.mxu0
    %v507 = vadd.f32 %v320, %v506
    %v508 = vpop.f32.mrf.mxu0
    %v509 = vadd.f32 %v320, %v508
    %510 = vmatprep.mubr.f32.mxu0 0.0
    %511 = vmatmul.mubr.f32.gmra.mxu0 %v340
    %v512 = vpop.f32.mrf.mxu0
    %v513 = vadd.f32 %v325, %v512
    %v514 = vpop.f32.mrf.mxu0
    %v515 = vadd.f32 %v325, %v514
    %516 = vmatprep.mubr.f32.mxu0 0.0
    %517 = vmatmul.mubr.f32.gmra.mxu0 %v343
    %v518 = vpop.f32.mrf.mxu0
    %v519 = vadd.f32 %v330, %v518
    %v520 = vpop.f32.mrf.mxu0
    %v521 = vadd.f32 %v330, %v520
    %522 = vdwg.mxu0
    %v523 = vmax.f32 %v412, 0.0
    %v524 = vmax.f32 %v414, 0.0
    %v525 = vmax.f32 %v501, 0.0
    %v526 = vmax.f32 %v503, 0.0
    %v527 = vmax.f32 %v418, 0.0
    %v528 = vmax.f32 %v420, 0.0
    %v529 = vmax.f32 %v507, 0.0
    %v530 = vmax.f32 %v509, 0.0
    %v531 = vmax.f32 %v424, 0.0
    %v532 = vmax.f32 %v426, 0.0
    %v533 = vmax.f32 %v513, 0.0
    %v534 = vmax.f32 %v515, 0.0
    %v535 = vmax.f32 %v430, 0.0
    %v536 = vmax.f32 %v432, 0.0
    %v537 = vmax.f32 %v519, 0.0
    %v538 = vmax.f32 %v521, 0.0
    %s539 = scalar_lea.vmem %s2, 128
    %v540 = vld [vmem:[%s539] sm:$0xff]
    %v541 = vld [vmem:[%s539 + $0x8] sm:$0xff]
    %v542 = vld [vmem:[%s539 + $0x10] sm:$0xff]
    %v543 = vld [vmem:[%s539 + $0x18] sm:$0xff]
    %s544 = scalar_lea.vmem %s3, 128
    %v545 = vld [vmem:[%s544] sm:$0xff]
    %v546 = vld [vmem:[%s544 + $0x8] sm:$0xff]
    %v547 = vld [vmem:[%s544 + $0x10] sm:$0xff]
    %v548 = vld [vmem:[%s544 + $0x18] sm:$0xff]
    %550 = vset.pattern.permute.xlu0 0
    %551 = vperm.xlu0 %550, %v545
    %v552 = vpop.permute.xlu0 %551
    %555 = vset.pattern.permute.xlu0 0
    %556 = vperm.xlu0 %555, %v546
    %v557 = vpop.permute.xlu0 %556
    %560 = vset.pattern.permute.xlu0 0
    %561 = vperm.xlu0 %560, %v547
    %v562 = vpop.permute.xlu0 %561
    %565 = vset.pattern.permute.xlu0 0
    %566 = vperm.xlu0 %565, %v548
    %v567 = vpop.permute.xlu0 %566
    %v570 = vsel %vm332, %v540, 0
    %v573 = vsel %vm332, %v541, 0
    %v576 = vsel %vm332, %v542, 0
    %v579 = vsel %vm332, %v543, 0
    %581 = vmatprep.subr.mxu0 0.0
    %582 = vmatpush1.msra.mxu0 0.0
    %583 = vmatprep.subr.mxu0 0.0
    %584 = vmatpush1.msra.mxu0 0.0
    %585 = vmatprep.subr.mxu0 0.0
    %586 = vmatpush1.msra.mxu0 0.0
    %587 = vmatprep.subr.mxu0 0.0
    %588 = vmatpush1.msra.mxu0 0.0
    %589 = vmatprep.subr.mxu0 0.0
    %590 = vmatpush1.msra.mxu0 0.0
    %591 = vmatprep.subr.mxu0 0.0
    %592 = vmatpush1.msra.mxu0 0.0
    %593 = vmatprep.subr.mxu0 0.0
    %594 = vmatpush1.msra.mxu0 0.0
    %595 = vmatprep.subr.mxu0 0.0
    %596 = vmatpush1.msra.mxu0 0.0
    %597 = vmatprep.subr.mxu0 0.0
    %598 = vmatpush1.msra.mxu0 0.0
    %599 = vmatprep.subr.mxu0 0.0
    %600 = vmatpush1.msra.mxu0 0.0
    %601 = vmatprep.subr.mxu0 0.0
    %602 = vmatpush1.msra.mxu0 0.0
    %603 = vmatprep.subr.mxu0 0.0
    %604 = vmatpush1.msra.mxu0 0.0
    %605 = vmatprep.subr.mxu0 %v536
    %606 = vmatpush1.msra.mxu0 %v535
    %607 = vmatprep.subr.mxu0 %v532
    %608 = vmatpush1.msra.mxu0 %v531
    %609 = vmatprep.subr.mxu0 %v528
    %610 = vmatpush1.msra.mxu0 %v527
    %611 = vmatprep.subr.mxu0 %v524
    %612 = vmatpush1.msra.mxu0 %v523
    %613 = vmatprep.subr.mxu0 0.0
    %614 = vmatpush2.msra.mxu0 0.0
    %615 = vmatprep.subr.mxu0 0.0
    %616 = vmatpush2.msra.mxu0 0.0
    %617 = vmatprep.subr.mxu0 0.0
    %618 = vmatpush2.msra.mxu0 0.0
    %619 = vmatprep.subr.mxu0 0.0
    %620 = vmatpush2.msra.mxu0 0.0
    %621 = vmatprep.subr.mxu0 0.0
    %622 = vmatpush2.msra.mxu0 0.0
    %623 = vmatprep.subr.mxu0 0.0
    %624 = vmatpush2.msra.mxu0 0.0
    %625 = vmatprep.subr.mxu0 0.0
    %626 = vmatpush2.msra.mxu0 0.0
    %627 = vmatprep.subr.mxu0 0.0
    %628 = vmatpush2.msra.mxu0 0.0
    %629 = vmatprep.subr.mxu0 0.0
    %630 = vmatpush2.msra.mxu0 0.0
    %631 = vmatprep.subr.mxu0 0.0
    %632 = vmatpush2.msra.mxu0 0.0
    %633 = vmatprep.subr.mxu0 0.0
    %634 = vmatpush2.msra.mxu0 0.0
    %635 = vmatprep.subr.mxu0 0.0
    %636 = vmatpush2.msra.mxu0 0.0
    %637 = vmatprep.subr.mxu0 0.0
    %638 = vmatpush2.msra.mxu0 0.0
    %639 = vmatprep.subr.mxu0 0.0
    %640 = vmatpush2.msra.mxu0 0.0
    %641 = vmatprep.subr.mxu0 0.0
    %642 = vmatpush2.msra.mxu0 0.0
    %643 = vmatprep.subr.mxu0 0.0
    %644 = vmatpush2.msra.mxu0 0.0
    %645 = vmatprep.mubr.f32.mxu0 0.0
    %646 = vmatmul.mubr.f32.gmra.mxu0 %v570
    %v647 = vpop.f32.mrf.mxu0
    %v648 = vadd.f32 %v552, %v647
    %v649 = vpop.f32.mrf.mxu0
    %v650 = vadd.f32 %v552, %v649
    %651 = vmatprep.mubr.f32.mxu0 0.0
    %652 = vmatmul.mubr.f32.gmra.mxu0 %v573
    %v653 = vpop.f32.mrf.mxu0
    %v654 = vadd.f32 %v557, %v653
    %v655 = vpop.f32.mrf.mxu0
    %v656 = vadd.f32 %v557, %v655
    %657 = vmatprep.mubr.f32.mxu0 0.0
    %658 = vmatmul.mubr.f32.gmra.mxu0 %v576
    %v659 = vpop.f32.mrf.mxu0
    %v660 = vadd.f32 %v562, %v659
    %v661 = vpop.f32.mrf.mxu0
    %v662 = vadd.f32 %v562, %v661
    %663 = vmatprep.mubr.f32.mxu0 0.0
    %664 = vmatmul.mubr.f32.gmra.mxu0 %v579
    %v665 = vpop.f32.mrf.mxu0
    %v666 = vadd.f32 %v567, %v665
    %v667 = vpop.f32.mrf.mxu0
    %v668 = vadd.f32 %v567, %v667
    %669 = vdwg.mxu0
    %670 = vmatprep.subr.mxu0 0.0
    %671 = vmatpush1.msra.mxu0 0.0
    %672 = vmatprep.subr.mxu0 0.0
    %673 = vmatpush1.msra.mxu0 0.0
    %674 = vmatprep.subr.mxu0 0.0
    %675 = vmatpush1.msra.mxu0 0.0
    %676 = vmatprep.subr.mxu0 0.0
    %677 = vmatpush1.msra.mxu0 0.0
    %678 = vmatprep.subr.mxu0 0.0
    %679 = vmatpush1.msra.mxu0 0.0
    %680 = vmatprep.subr.mxu0 0.0
    %681 = vmatpush1.msra.mxu0 0.0
    %682 = vmatprep.subr.mxu0 0.0
    %683 = vmatpush1.msra.mxu0 0.0
    %684 = vmatprep.subr.mxu0 0.0
    %685 = vmatpush1.msra.mxu0 0.0
    %686 = vmatprep.subr.mxu0 0.0
    %687 = vmatpush1.msra.mxu0 0.0
    %688 = vmatprep.subr.mxu0 0.0
    %689 = vmatpush1.msra.mxu0 0.0
    %690 = vmatprep.subr.mxu0 0.0
    %691 = vmatpush1.msra.mxu0 0.0
    %692 = vmatprep.subr.mxu0 0.0
    %693 = vmatpush1.msra.mxu0 0.0
    %694 = vmatprep.subr.mxu0 %v538
    %695 = vmatpush1.msra.mxu0 %v537
    %696 = vmatprep.subr.mxu0 %v534
    %697 = vmatpush1.msra.mxu0 %v533
    %698 = vmatprep.subr.mxu0 %v530
    %699 = vmatpush1.msra.mxu0 %v529
    %700 = vmatprep.subr.mxu0 %v526
    %701 = vmatpush1.msra.mxu0 %v525
    %702 = vmatprep.subr.mxu0 0.0
    %703 = vmatpush2.msra.mxu0 0.0
    %704 = vmatprep.subr.mxu0 0.0
    %705 = vmatpush2.msra.mxu0 0.0
    %706 = vmatprep.subr.mxu0 0.0
    %707 = vmatpush2.msra.mxu0 0.0
    %708 = vmatprep.subr.mxu0 0.0
    %709 = vmatpush2.msra.mxu0 0.0
    %710 = vmatprep.subr.mxu0 0.0
    %711 = vmatpush2.msra.mxu0 0.0
    %712 = vmatprep.subr.mxu0 0.0
    %713 = vmatpush2.msra.mxu0 0.0
    %714 = vmatprep.subr.mxu0 0.0
    %715 = vmatpush2.msra.mxu0 0.0
    %716 = vmatprep.subr.mxu0 0.0
    %717 = vmatpush2.msra.mxu0 0.0
    %718 = vmatprep.subr.mxu0 0.0
    %719 = vmatpush2.msra.mxu0 0.0
    %720 = vmatprep.subr.mxu0 0.0
    %721 = vmatpush2.msra.mxu0 0.0
    %722 = vmatprep.subr.mxu0 0.0
    %723 = vmatpush2.msra.mxu0 0.0
    %724 = vmatprep.subr.mxu0 0.0
    %725 = vmatpush2.msra.mxu0 0.0
    %726 = vmatprep.subr.mxu0 0.0
    %727 = vmatpush2.msra.mxu0 0.0
    %728 = vmatprep.subr.mxu0 0.0
    %729 = vmatpush2.msra.mxu0 0.0
    %730 = vmatprep.subr.mxu0 0.0
    %731 = vmatpush2.msra.mxu0 0.0
    %732 = vmatprep.subr.mxu0 0.0
    %733 = vmatpush2.msra.mxu0 0.0
    %734 = vmatprep.mubr.f32.mxu0 0.0
    %735 = vmatmul.mubr.f32.gmra.mxu0 %v570
    %v736 = vpop.f32.mrf.mxu0
    %v737 = vadd.f32 %v552, %v736
    %v738 = vpop.f32.mrf.mxu0
    %v739 = vadd.f32 %v552, %v738
    %740 = vmatprep.mubr.f32.mxu0 0.0
    %741 = vmatmul.mubr.f32.gmra.mxu0 %v573
    %v742 = vpop.f32.mrf.mxu0
    %v743 = vadd.f32 %v557, %v742
    %v744 = vpop.f32.mrf.mxu0
    %v745 = vadd.f32 %v557, %v744
    %746 = vmatprep.mubr.f32.mxu0 0.0
    %747 = vmatmul.mubr.f32.gmra.mxu0 %v576
    %v748 = vpop.f32.mrf.mxu0
    %v749 = vadd.f32 %v562, %v748
    %v750 = vpop.f32.mrf.mxu0
    %v751 = vadd.f32 %v562, %v750
    %752 = vmatprep.mubr.f32.mxu0 0.0
    %753 = vmatmul.mubr.f32.gmra.mxu0 %v579
    %v754 = vpop.f32.mrf.mxu0
    %v755 = vadd.f32 %v567, %v754
    %v756 = vpop.f32.mrf.mxu0
    %v757 = vadd.f32 %v567, %v756
    %758 = vdwg.mxu0
    %s759 = scalar_lea.vmem %s2, 192
    %v760 = vld [vmem:[%s759] sm:$0xff]
    %v761 = vld [vmem:[%s759 + $0x8] sm:$0xff]
    %v762 = vld [vmem:[%s759 + $0x10] sm:$0xff]
    %v763 = vld [vmem:[%s759 + $0x18] sm:$0xff]
    %s764 = scalar_lea.vmem %s3, 192
    %v765 = vld [vmem:[%s764] sm:$0xff]
    %v766 = vld [vmem:[%s764 + $0x8] sm:$0xff]
    %v767 = vld [vmem:[%s764 + $0x10] sm:$0xff]
    %v768 = vld [vmem:[%s764 + $0x18] sm:$0xff]
    %770 = vset.pattern.permute.xlu0 0
    %771 = vperm.xlu0 %770, %v765
    %v772 = vpop.permute.xlu0 %771
    %775 = vset.pattern.permute.xlu0 0
    %776 = vperm.xlu0 %775, %v766
    %v777 = vpop.permute.xlu0 %776
    %780 = vset.pattern.permute.xlu0 0
    %781 = vperm.xlu0 %780, %v767
    %v782 = vpop.permute.xlu0 %781
    %785 = vset.pattern.permute.xlu0 0
    %786 = vperm.xlu0 %785, %v768
    %v787 = vpop.permute.xlu0 %786
    %v790 = vsel %vm95, %v760, 0
    %v793 = vsel %vm95, %v761, 0
    %v796 = vsel %vm95, %v762, 0
    %v799 = vsel %vm95, %v763, 0
    %801 = vmatprep.subr.mxu0 0.0
    %802 = vmatpush1.msra.mxu0 0.0
    %803 = vmatprep.subr.mxu0 0.0
    %804 = vmatpush1.msra.mxu0 0.0
    %805 = vmatprep.subr.mxu0 0.0
    %806 = vmatpush1.msra.mxu0 0.0
    %807 = vmatprep.subr.mxu0 0.0
    %808 = vmatpush1.msra.mxu0 0.0
    %809 = vmatprep.subr.mxu0 0.0
    %810 = vmatpush1.msra.mxu0 0.0
    %811 = vmatprep.subr.mxu0 0.0
    %812 = vmatpush1.msra.mxu0 0.0
    %813 = vmatprep.subr.mxu0 0.0
    %814 = vmatpush1.msra.mxu0 0.0
    %815 = vmatprep.subr.mxu0 0.0
    %816 = vmatpush1.msra.mxu0 0.0
    %817 = vmatprep.subr.mxu0 0.0
    %818 = vmatpush1.msra.mxu0 0.0
    %819 = vmatprep.subr.mxu0 0.0
    %820 = vmatpush1.msra.mxu0 0.0
    %821 = vmatprep.subr.mxu0 0.0
    %822 = vmatpush1.msra.mxu0 0.0
    %823 = vmatprep.subr.mxu0 0.0
    %824 = vmatpush1.msra.mxu0 0.0
    %825 = vmatprep.subr.mxu0 0.0
    %826 = vmatpush1.msra.mxu0 0.0
    %827 = vmatprep.subr.mxu0 0.0
    %828 = vmatpush1.msra.mxu0 0.0
    %829 = vmatprep.subr.mxu0 0.0
    %830 = vmatpush1.msra.mxu0 0.0
    %831 = vmatprep.subr.mxu0 %v64
    %832 = vmatpush1.msra.mxu0 %v63
    %833 = vmatprep.subr.mxu0 0.0
    %834 = vmatpush2.msra.mxu0 0.0
    %835 = vmatprep.subr.mxu0 0.0
    %836 = vmatpush2.msra.mxu0 0.0
    %837 = vmatprep.subr.mxu0 0.0
    %838 = vmatpush2.msra.mxu0 0.0
    %839 = vmatprep.subr.mxu0 0.0
    %840 = vmatpush2.msra.mxu0 0.0
    %841 = vmatprep.subr.mxu0 0.0
    %842 = vmatpush2.msra.mxu0 0.0
    %843 = vmatprep.subr.mxu0 0.0
    %844 = vmatpush2.msra.mxu0 0.0
    %845 = vmatprep.subr.mxu0 0.0
    %846 = vmatpush2.msra.mxu0 0.0
    %847 = vmatprep.subr.mxu0 0.0
    %848 = vmatpush2.msra.mxu0 0.0
    %849 = vmatprep.subr.mxu0 0.0
    %850 = vmatpush2.msra.mxu0 0.0
    %851 = vmatprep.subr.mxu0 0.0
    %852 = vmatpush2.msra.mxu0 0.0
    %853 = vmatprep.subr.mxu0 0.0
    %854 = vmatpush2.msra.mxu0 0.0
    %855 = vmatprep.subr.mxu0 0.0
    %856 = vmatpush2.msra.mxu0 0.0
    %857 = vmatprep.subr.mxu0 0.0
    %858 = vmatpush2.msra.mxu0 0.0
    %859 = vmatprep.subr.mxu0 0.0
    %860 = vmatpush2.msra.mxu0 0.0
    %861 = vmatprep.subr.mxu0 0.0
    %862 = vmatpush2.msra.mxu0 0.0
    %863 = vmatprep.subr.mxu0 0.0
    %864 = vmatpush2.msra.mxu0 0.0
    %865 = vmatprep.mubr.f32.mxu0 0.0
    %866 = vmatmul.mubr.f32.gmra.mxu0 %v790
    %v867 = vpop.f32.mrf.mxu0
    %v868 = vadd.f32 %v772, %v867
    %v869 = vpop.f32.mrf.mxu0
    %v870 = vadd.f32 %v772, %v869
    %871 = vmatprep.mubr.f32.mxu0 0.0
    %872 = vmatmul.mubr.f32.gmra.mxu0 %v793
    %v873 = vpop.f32.mrf.mxu0
    %v874 = vadd.f32 %v777, %v873
    %v875 = vpop.f32.mrf.mxu0
    %v876 = vadd.f32 %v777, %v875
    %877 = vmatprep.mubr.f32.mxu0 0.0
    %878 = vmatmul.mubr.f32.gmra.mxu0 %v796
    %v879 = vpop.f32.mrf.mxu0
    %v880 = vadd.f32 %v782, %v879
    %v881 = vpop.f32.mrf.mxu0
    %v882 = vadd.f32 %v782, %v881
    %883 = vmatprep.mubr.f32.mxu0 0.0
    %884 = vmatmul.mubr.f32.gmra.mxu0 %v799
    %v885 = vpop.f32.mrf.mxu0
    %v886 = vadd.f32 %v787, %v885
    %v887 = vpop.f32.mrf.mxu0
    %v888 = vadd.f32 %v787, %v887
    %889 = vdwg.mxu0
    %890 = vmatprep.subr.mxu0 0.0
    %891 = vmatpush1.msra.mxu0 0.0
    %892 = vmatprep.subr.mxu0 0.0
    %893 = vmatpush1.msra.mxu0 0.0
    %894 = vmatprep.subr.mxu0 0.0
    %895 = vmatpush1.msra.mxu0 0.0
    %896 = vmatprep.subr.mxu0 0.0
    %897 = vmatpush1.msra.mxu0 0.0
    %898 = vmatprep.subr.mxu0 0.0
    %899 = vmatpush1.msra.mxu0 0.0
    %900 = vmatprep.subr.mxu0 0.0
    %901 = vmatpush1.msra.mxu0 0.0
    %902 = vmatprep.subr.mxu0 0.0
    %903 = vmatpush1.msra.mxu0 0.0
    %904 = vmatprep.subr.mxu0 0.0
    %905 = vmatpush1.msra.mxu0 0.0
    %906 = vmatprep.subr.mxu0 0.0
    %907 = vmatpush1.msra.mxu0 0.0
    %908 = vmatprep.subr.mxu0 0.0
    %909 = vmatpush1.msra.mxu0 0.0
    %910 = vmatprep.subr.mxu0 0.0
    %911 = vmatpush1.msra.mxu0 0.0
    %912 = vmatprep.subr.mxu0 0.0
    %913 = vmatpush1.msra.mxu0 0.0
    %914 = vmatprep.subr.mxu0 0.0
    %915 = vmatpush1.msra.mxu0 0.0
    %916 = vmatprep.subr.mxu0 0.0
    %917 = vmatpush1.msra.mxu0 0.0
    %918 = vmatprep.subr.mxu0 0.0
    %919 = vmatpush1.msra.mxu0 0.0
    %920 = vmatprep.subr.mxu0 %v66
    %921 = vmatpush1.msra.mxu0 %v65
    %922 = vmatprep.subr.mxu0 0.0
    %923 = vmatpush2.msra.mxu0 0.0
    %924 = vmatprep.subr.mxu0 0.0
    %925 = vmatpush2.msra.mxu0 0.0
    %926 = vmatprep.subr.mxu0 0.0
    %927 = vmatpush2.msra.mxu0 0.0
    %928 = vmatprep.subr.mxu0 0.0
    %929 = vmatpush2.msra.mxu0 0.0
    %930 = vmatprep.subr.mxu0 0.0
    %931 = vmatpush2.msra.mxu0 0.0
    %932 = vmatprep.subr.mxu0 0.0
    %933 = vmatpush2.msra.mxu0 0.0
    %934 = vmatprep.subr.mxu0 0.0
    %935 = vmatpush2.msra.mxu0 0.0
    %936 = vmatprep.subr.mxu0 0.0
    %937 = vmatpush2.msra.mxu0 0.0
    %938 = vmatprep.subr.mxu0 0.0
    %939 = vmatpush2.msra.mxu0 0.0
    %940 = vmatprep.subr.mxu0 0.0
    %941 = vmatpush2.msra.mxu0 0.0
    %942 = vmatprep.subr.mxu0 0.0
    %943 = vmatpush2.msra.mxu0 0.0
    %944 = vmatprep.subr.mxu0 0.0
    %945 = vmatpush2.msra.mxu0 0.0
    %946 = vmatprep.subr.mxu0 0.0
    %947 = vmatpush2.msra.mxu0 0.0
    %948 = vmatprep.subr.mxu0 0.0
    %949 = vmatpush2.msra.mxu0 0.0
    %950 = vmatprep.subr.mxu0 0.0
    %951 = vmatpush2.msra.mxu0 0.0
    %952 = vmatprep.subr.mxu0 0.0
    %953 = vmatpush2.msra.mxu0 0.0
    %954 = vmatprep.mubr.f32.mxu0 0.0
    %955 = vmatmul.mubr.f32.gmra.mxu0 %v790
    %v956 = vpop.f32.mrf.mxu0
    %v957 = vadd.f32 %v772, %v956
    %v958 = vpop.f32.mrf.mxu0
    %v959 = vadd.f32 %v772, %v958
    %960 = vmatprep.mubr.f32.mxu0 0.0
    %961 = vmatmul.mubr.f32.gmra.mxu0 %v793
    %v962 = vpop.f32.mrf.mxu0
    %v963 = vadd.f32 %v777, %v962
    %v964 = vpop.f32.mrf.mxu0
    %v965 = vadd.f32 %v777, %v964
    %966 = vmatprep.mubr.f32.mxu0 0.0
    %967 = vmatmul.mubr.f32.gmra.mxu0 %v796
    %v968 = vpop.f32.mrf.mxu0
    %v969 = vadd.f32 %v782, %v968
    %v970 = vpop.f32.mrf.mxu0
    %v971 = vadd.f32 %v782, %v970
    %972 = vmatprep.mubr.f32.mxu0 0.0
    %973 = vmatmul.mubr.f32.gmra.mxu0 %v799
    %v974 = vpop.f32.mrf.mxu0
    %v975 = vadd.f32 %v787, %v974
    %v976 = vpop.f32.mrf.mxu0
    %v977 = vadd.f32 %v787, %v976
    %978 = vdwg.mxu0
    %v979 = vmax.f32 %v868, 0.0
    %v980 = vmax.f32 %v870, 0.0
    %v981 = vmax.f32 %v957, 0.0
    %v982 = vmax.f32 %v959, 0.0
    %v983 = vmax.f32 %v874, 0.0
    %v984 = vmax.f32 %v876, 0.0
    %v985 = vmax.f32 %v963, 0.0
    %v986 = vmax.f32 %v965, 0.0
    %v987 = vmax.f32 %v880, 0.0
    %v988 = vmax.f32 %v882, 0.0
    %v989 = vmax.f32 %v969, 0.0
    %v990 = vmax.f32 %v971, 0.0
    %v991 = vmax.f32 %v886, 0.0
    %v992 = vmax.f32 %v888, 0.0
    %v993 = vmax.f32 %v975, 0.0
    %v994 = vmax.f32 %v977, 0.0
    %s995 = scalar_lea.vmem %s2, 256
    %v996 = vld [vmem:[%s995] sm:$0xff]
    %v997 = vld [vmem:[%s995 + $0x8] sm:$0xff]
    %v998 = vld [vmem:[%s995 + $0x10] sm:$0xff]
    %v999 = vld [vmem:[%s995 + $0x18] sm:$0xff]
    %s1000 = scalar_lea.vmem %s3, 256
    %v1001 = vld [vmem:[%s1000] sm:$0xff]
    %v1002 = vld [vmem:[%s1000 + $0x8] sm:$0xff]
    %v1003 = vld [vmem:[%s1000 + $0x10] sm:$0xff]
    %v1004 = vld [vmem:[%s1000 + $0x18] sm:$0xff]
    %1006 = vset.pattern.permute.xlu0 0
    %1007 = vperm.xlu0 %1006, %v1001
    %v1008 = vpop.permute.xlu0 %1007
    %1011 = vset.pattern.permute.xlu0 0
    %1012 = vperm.xlu0 %1011, %v1002
    %v1013 = vpop.permute.xlu0 %1012
    %1016 = vset.pattern.permute.xlu0 0
    %1017 = vperm.xlu0 %1016, %v1003
    %v1018 = vpop.permute.xlu0 %1017
    %1021 = vset.pattern.permute.xlu0 0
    %1022 = vperm.xlu0 %1021, %v1004
    %v1023 = vpop.permute.xlu0 %1022
    %v1026 = vsel %vm332, %v996, 0
    %v1029 = vsel %vm332, %v997, 0
    %v1032 = vsel %vm332, %v998, 0
    %v1035 = vsel %vm332, %v999, 0
    %1037 = vmatprep.subr.mxu0 0.0
    %1038 = vmatpush1.msra.mxu0 0.0
    %1039 = vmatprep.subr.mxu0 0.0
    %1040 = vmatpush1.msra.mxu0 0.0
    %1041 = vmatprep.subr.mxu0 0.0
    %1042 = vmatpush1.msra.mxu0 0.0
    %1043 = vmatprep.subr.mxu0 0.0
    %1044 = vmatpush1.msra.mxu0 0.0
    %1045 = vmatprep.subr.mxu0 0.0
    %1046 = vmatpush1.msra.mxu0 0.0
    %1047 = vmatprep.subr.mxu0 0.0
    %1048 = vmatpush1.msra.mxu0 0.0
    %1049 = vmatprep.subr.mxu0 0.0
    %1050 = vmatpush1.msra.mxu0 0.0
    %1051 = vmatprep.subr.mxu0 0.0
    %1052 = vmatpush1.msra.mxu0 0.0
    %1053 = vmatprep.subr.mxu0 0.0
    %1054 = vmatpush1.msra.mxu0 0.0
    %1055 = vmatprep.subr.mxu0 0.0
    %1056 = vmatpush1.msra.mxu0 0.0
    %1057 = vmatprep.subr.mxu0 0.0
    %1058 = vmatpush1.msra.mxu0 0.0
    %1059 = vmatprep.subr.mxu0 0.0
    %1060 = vmatpush1.msra.mxu0 0.0
    %1061 = vmatprep.subr.mxu0 %v992
    %1062 = vmatpush1.msra.mxu0 %v991
    %1063 = vmatprep.subr.mxu0 %v988
    %1064 = vmatpush1.msra.mxu0 %v987
    %1065 = vmatprep.subr.mxu0 %v984
    %1066 = vmatpush1.msra.mxu0 %v983
    %1067 = vmatprep.subr.mxu0 %v980
    %1068 = vmatpush1.msra.mxu0 %v979
    %1069 = vmatprep.subr.mxu0 0.0
    %1070 = vmatpush2.msra.mxu0 0.0
    %1071 = vmatprep.subr.mxu0 0.0
    %1072 = vmatpush2.msra.mxu0 0.0
    %1073 = vmatprep.subr.mxu0 0.0
    %1074 = vmatpush2.msra.mxu0 0.0
    %1075 = vmatprep.subr.mxu0 0.0
    %1076 = vmatpush2.msra.mxu0 0.0
    %1077 = vmatprep.subr.mxu0 0.0
    %1078 = vmatpush2.msra.mxu0 0.0
    %1079 = vmatprep.subr.mxu0 0.0
    %1080 = vmatpush2.msra.mxu0 0.0
    %1081 = vmatprep.subr.mxu0 0.0
    %1082 = vmatpush2.msra.mxu0 0.0
    %1083 = vmatprep.subr.mxu0 0.0
    %1084 = vmatpush2.msra.mxu0 0.0
    %1085 = vmatprep.subr.mxu0 0.0
    %1086 = vmatpush2.msra.mxu0 0.0
    %1087 = vmatprep.subr.mxu0 0.0
    %1088 = vmatpush2.msra.mxu0 0.0
    %1089 = vmatprep.subr.mxu0 0.0
    %1090 = vmatpush2.msra.mxu0 0.0
    %1091 = vmatprep.subr.mxu0 0.0
    %1092 = vmatpush2.msra.mxu0 0.0
    %1093 = vmatprep.subr.mxu0 0.0
    %1094 = vmatpush2.msra.mxu0 0.0
    %1095 = vmatprep.subr.mxu0 0.0
    %1096 = vmatpush2.msra.mxu0 0.0
    %1097 = vmatprep.subr.mxu0 0.0
    %1098 = vmatpush2.msra.mxu0 0.0
    %1099 = vmatprep.subr.mxu0 0.0
    %1100 = vmatpush2.msra.mxu0 0.0
    %1101 = vmatprep.mubr.f32.mxu0 0.0
    %1102 = vmatmul.mubr.f32.gmra.mxu0 %v1026
    %v1103 = vpop.f32.mrf.mxu0
    %v1104 = vadd.f32 %v1008, %v1103
    %v1105 = vpop.f32.mrf.mxu0
    %v1106 = vadd.f32 %v1008, %v1105
    %1107 = vmatprep.mubr.f32.mxu0 0.0
    %1108 = vmatmul.mubr.f32.gmra.mxu0 %v1029
    %v1109 = vpop.f32.mrf.mxu0
    %v1110 = vadd.f32 %v1013, %v1109
    %v1111 = vpop.f32.mrf.mxu0
    %v1112 = vadd.f32 %v1013, %v1111
    %1113 = vmatprep.mubr.f32.mxu0 0.0
    %1114 = vmatmul.mubr.f32.gmra.mxu0 %v1032
    %v1115 = vpop.f32.mrf.mxu0
    %v1116 = vadd.f32 %v1018, %v1115
    %v1117 = vpop.f32.mrf.mxu0
    %v1118 = vadd.f32 %v1018, %v1117
    %1119 = vmatprep.mubr.f32.mxu0 0.0
    %1120 = vmatmul.mubr.f32.gmra.mxu0 %v1035
    %v1121 = vpop.f32.mrf.mxu0
    %v1122 = vadd.f32 %v1023, %v1121
    %v1123 = vpop.f32.mrf.mxu0
    %v1124 = vadd.f32 %v1023, %v1123
    %1125 = vdwg.mxu0
    %1126 = vmatprep.subr.mxu0 0.0
    %1127 = vmatpush1.msra.mxu0 0.0
    %1128 = vmatprep.subr.mxu0 0.0
    %1129 = vmatpush1.msra.mxu0 0.0
    %1130 = vmatprep.subr.mxu0 0.0
    %1131 = vmatpush1.msra.mxu0 0.0
    %1132 = vmatprep.subr.mxu0 0.0
    %1133 = vmatpush1.msra.mxu0 0.0
    %1134 = vmatprep.subr.mxu0 0.0
    %1135 = vmatpush1.msra.mxu0 0.0
    %1136 = vmatprep.subr.mxu0 0.0
    %1137 = vmatpush1.msra.mxu0 0.0
    %1138 = vmatprep.subr.mxu0 0.0
    %1139 = vmatpush1.msra.mxu0 0.0
    %1140 = vmatprep.subr.mxu0 0.0
    %1141 = vmatpush1.msra.mxu0 0.0
    %1142 = vmatprep.subr.mxu0 0.0
    %1143 = vmatpush1.msra.mxu0 0.0
    %1144 = vmatprep.subr.mxu0 0.0
    %1145 = vmatpush1.msra.mxu0 0.0
    %1146 = vmatprep.subr.mxu0 0.0
    %1147 = vmatpush1.msra.mxu0 0.0
    %1148 = vmatprep.subr.mxu0 0.0
    %1149 = vmatpush1.msra.mxu0 0.0
    %1150 = vmatprep.subr.mxu0 %v994
    %1151 = vmatpush1.msra.mxu0 %v993
    %1152 = vmatprep.subr.mxu0 %v990
    %1153 = vmatpush1.msra.mxu0 %v989
    %1154 = vmatprep.subr.mxu0 %v986
    %1155 = vmatpush1.msra.mxu0 %v985
    %1156 = vmatprep.subr.mxu0 %v982
    %1157 = vmatpush1.msra.mxu0 %v981
    %1158 = vmatprep.subr.mxu0 0.0
    %1159 = vmatpush2.msra.mxu0 0.0
    %1160 = vmatprep.subr.mxu0 0.0
    %1161 = vmatpush2.msra.mxu0 0.0
    %1162 = vmatprep.subr.mxu0 0.0
    %1163 = vmatpush2.msra.mxu0 0.0
    %1164 = vmatprep.subr.mxu0 0.0
    %1165 = vmatpush2.msra.mxu0 0.0
    %1166 = vmatprep.subr.mxu0 0.0
    %1167 = vmatpush2.msra.mxu0 0.0
    %1168 = vmatprep.subr.mxu0 0.0
    %1169 = vmatpush2.msra.mxu0 0.0
    %1170 = vmatprep.subr.mxu0 0.0
    %1171 = vmatpush2.msra.mxu0 0.0
    %1172 = vmatprep.subr.mxu0 0.0
    %1173 = vmatpush2.msra.mxu0 0.0
    %1174 = vmatprep.subr.mxu0 0.0
    %1175 = vmatpush2.msra.mxu0 0.0
    %1176 = vmatprep.subr.mxu0 0.0
    %1177 = vmatpush2.msra.mxu0 0.0
    %1178 = vmatprep.subr.mxu0 0.0
    %1179 = vmatpush2.msra.mxu0 0.0
    %1180 = vmatprep.subr.mxu0 0.0
    %1181 = vmatpush2.msra.mxu0 0.0
    %1182 = vmatprep.subr.mxu0 0.0
    %1183 = vmatpush2.msra.mxu0 0.0
    %1184 = vmatprep.subr.mxu0 0.0
    %1185 = vmatpush2.msra.mxu0 0.0
    %1186 = vmatprep.subr.mxu0 0.0
    %1187 = vmatpush2.msra.mxu0 0.0
    %1188 = vmatprep.subr.mxu0 0.0
    %1189 = vmatpush2.msra.mxu0 0.0
    %1190 = vmatprep.mubr.f32.mxu0 0.0
    %1191 = vmatmul.mubr.f32.gmra.mxu0 %v1026
    %v1192 = vpop.f32.mrf.mxu0
    %v1193 = vadd.f32 %v1008, %v1192
    %v1194 = vpop.f32.mrf.mxu0
    %v1195 = vadd.f32 %v1008, %v1194
    %1196 = vmatprep.mubr.f32.mxu0 0.0
    %1197 = vmatmul.mubr.f32.gmra.mxu0 %v1029
    %v1198 = vpop.f32.mrf.mxu0
    %v1199 = vadd.f32 %v1013, %v1198
    %v1200 = vpop.f32.mrf.mxu0
    %v1201 = vadd.f32 %v1013, %v1200
    %1202 = vmatprep.mubr.f32.mxu0 0.0
    %1203 = vmatmul.mubr.f32.gmra.mxu0 %v1032
    %v1204 = vpop.f32.mrf.mxu0
    %v1205 = vadd.f32 %v1018, %v1204
    %v1206 = vpop.f32.mrf.mxu0
    %v1207 = vadd.f32 %v1018, %v1206
    %1208 = vmatprep.mubr.f32.mxu0 0.0
    %1209 = vmatmul.mubr.f32.gmra.mxu0 %v1035
    %v1210 = vpop.f32.mrf.mxu0
    %v1211 = vadd.f32 %v1023, %v1210
    %v1212 = vpop.f32.mrf.mxu0
    %v1213 = vadd.f32 %v1023, %v1212
    %1214 = vdwg.mxu0
    %v1215 = vmax.f32 %v1104, 0.0
    %v1216 = vmax.f32 %v1106, 0.0
    %v1217 = vmax.f32 %v1193, 0.0
    %v1218 = vmax.f32 %v1195, 0.0
    %v1219 = vmax.f32 %v1110, 0.0
    %v1220 = vmax.f32 %v1112, 0.0
    %v1221 = vmax.f32 %v1199, 0.0
    %v1222 = vmax.f32 %v1201, 0.0
    %v1223 = vmax.f32 %v1116, 0.0
    %v1224 = vmax.f32 %v1118, 0.0
    %v1225 = vmax.f32 %v1205, 0.0
    %v1226 = vmax.f32 %v1207, 0.0
    %v1227 = vmax.f32 %v1122, 0.0
    %v1228 = vmax.f32 %v1124, 0.0
    %v1229 = vmax.f32 %v1211, 0.0
    %v1230 = vmax.f32 %v1213, 0.0
    %s1231 = scalar_lea.vmem %s2, 320
    %v1232 = vld [vmem:[%s1231] sm:$0xff]
    %v1233 = vld [vmem:[%s1231 + $0x8] sm:$0xff]
    %v1234 = vld [vmem:[%s1231 + $0x10] sm:$0xff]
    %v1235 = vld [vmem:[%s1231 + $0x18] sm:$0xff]
    %s1236 = scalar_lea.vmem %s3, 320
    %v1237 = vld [vmem:[%s1236] sm:$0xff]
    %v1238 = vld [vmem:[%s1236 + $0x8] sm:$0xff]
    %v1239 = vld [vmem:[%s1236 + $0x10] sm:$0xff]
    %v1240 = vld [vmem:[%s1236 + $0x18] sm:$0xff]
    %1242 = vset.pattern.permute.xlu0 0
    %1243 = vperm.xlu0 %1242, %v1237
    %v1244 = vpop.permute.xlu0 %1243
    %1247 = vset.pattern.permute.xlu0 0
    %1248 = vperm.xlu0 %1247, %v1238
    %v1249 = vpop.permute.xlu0 %1248
    %1252 = vset.pattern.permute.xlu0 0
    %1253 = vperm.xlu0 %1252, %v1239
    %v1254 = vpop.permute.xlu0 %1253
    %1257 = vset.pattern.permute.xlu0 0
    %1258 = vperm.xlu0 %1257, %v1240
    %v1259 = vpop.permute.xlu0 %1258
    %v1262 = vsel %vm332, %v1232, 0
    %v1265 = vsel %vm332, %v1233, 0
    %v1268 = vsel %vm332, %v1234, 0
    %v1271 = vsel %vm332, %v1235, 0
    %1273 = vmatprep.subr.mxu0 0.0
    %1274 = vmatpush1.msra.mxu0 0.0
    %1275 = vmatprep.subr.mxu0 0.0
    %1276 = vmatpush1.msra.mxu0 0.0
    %1277 = vmatprep.subr.mxu0 0.0
    %1278 = vmatpush1.msra.mxu0 0.0
    %1279 = vmatprep.subr.mxu0 0.0
    %1280 = vmatpush1.msra.mxu0 0.0
    %1281 = vmatprep.subr.mxu0 0.0
    %1282 = vmatpush1.msra.mxu0 0.0
    %1283 = vmatprep.subr.mxu0 0.0
    %1284 = vmatpush1.msra.mxu0 0.0
    %1285 = vmatprep.subr.mxu0 0.0
    %1286 = vmatpush1.msra.mxu0 0.0
    %1287 = vmatprep.subr.mxu0 0.0
    %1288 = vmatpush1.msra.mxu0 0.0
    %1289 = vmatprep.subr.mxu0 0.0
    %1290 = vmatpush1.msra.mxu0 0.0
    %1291 = vmatprep.subr.mxu0 0.0
    %1292 = vmatpush1.msra.mxu0 0.0
    %1293 = vmatprep.subr.mxu0 0.0
    %1294 = vmatpush1.msra.mxu0 0.0
    %1295 = vmatprep.subr.mxu0 0.0
    %1296 = vmatpush1.msra.mxu0 0.0
    %1297 = vmatprep.subr.mxu0 %v1228
    %1298 = vmatpush1.msra.mxu0 %v1227
    %1299 = vmatprep.subr.mxu0 %v1224
    %1300 = vmatpush1.msra.mxu0 %v1223
    %1301 = vmatprep.subr.mxu0 %v1220
    %1302 = vmatpush1.msra.mxu0 %v1219
    %1303 = vmatprep.subr.mxu0 %v1216
    %1304 = vmatpush1.msra.mxu0 %v1215
    %1305 = vmatprep.subr.mxu0 0.0
    %1306 = vmatpush2.msra.mxu0 0.0
    %1307 = vmatprep.subr.mxu0 0.0
    %1308 = vmatpush2.msra.mxu0 0.0
    %1309 = vmatprep.subr.mxu0 0.0
    %1310 = vmatpush2.msra.mxu0 0.0
    %1311 = vmatprep.subr.mxu0 0.0
    %1312 = vmatpush2.msra.mxu0 0.0
    %1313 = vmatprep.subr.mxu0 0.0
    %1314 = vmatpush2.msra.mxu0 0.0
    %1315 = vmatprep.subr.mxu0 0.0
    %1316 = vmatpush2.msra.mxu0 0.0
    %1317 = vmatprep.subr.mxu0 0.0
    %1318 = vmatpush2.msra.mxu0 0.0
    %1319 = vmatprep.subr.mxu0 0.0
    %1320 = vmatpush2.msra.mxu0 0.0
    %1321 = vmatprep.subr.mxu0 0.0
    %1322 = vmatpush2.msra.mxu0 0.0
    %1323 = vmatprep.subr.mxu0 0.0
    %1324 = vmatpush2.msra.mxu0 0.0
    %1325 = vmatprep.subr.mxu0 0.0
    %1326 = vmatpush2.msra.mxu0 0.0
    %1327 = vmatprep.subr.mxu0 0.0
    %1328 = vmatpush2.msra.mxu0 0.0
    %1329 = vmatprep.subr.mxu0 0.0
    %1330 = vmatpush2.msra.mxu0 0.0
    %1331 = vmatprep.subr.mxu0 0.0
    %1332 = vmatpush2.msra.mxu0 0.0
    %1333 = vmatprep.subr.mxu0 0.0
    %1334 = vmatpush2.msra.mxu0 0.0
    %1335 = vmatprep.subr.mxu0 0.0
    %1336 = vmatpush2.msra.mxu0 0.0
    %1337 = vmatprep.mubr.f32.mxu0 0.0
    %1338 = vmatmul.mubr.f32.gmra.mxu0 %v1262
    %v1339 = vpop.f32.mrf.mxu0
    %v1340 = vadd.f32 %v1244, %v1339
    %v1341 = vpop.f32.mrf.mxu0
    %v1342 = vadd.f32 %v1244, %v1341
    %1343 = vmatprep.mubr.f32.mxu0 0.0
    %1344 = vmatmul.mubr.f32.gmra.mxu0 %v1265
    %v1345 = vpop.f32.mrf.mxu0
    %v1346 = vadd.f32 %v1249, %v1345
    %v1347 = vpop.f32.mrf.mxu0
    %v1348 = vadd.f32 %v1249, %v1347
    %1349 = vmatprep.mubr.f32.mxu0 0.0
    %1350 = vmatmul.mubr.f32.gmra.mxu0 %v1268
    %v1351 = vpop.f32.mrf.mxu0
    %v1352 = vadd.f32 %v1254, %v1351
    %v1353 = vpop.f32.mrf.mxu0
    %v1354 = vadd.f32 %v1254, %v1353
    %1355 = vmatprep.mubr.f32.mxu0 0.0
    %1356 = vmatmul.mubr.f32.gmra.mxu0 %v1271
    %v1357 = vpop.f32.mrf.mxu0
    %v1358 = vadd.f32 %v1259, %v1357
    %v1359 = vpop.f32.mrf.mxu0
    %v1360 = vadd.f32 %v1259, %v1359
    %1361 = vdwg.mxu0
    %1362 = vmatprep.subr.mxu0 0.0
    %1363 = vmatpush1.msra.mxu0 0.0
    %1364 = vmatprep.subr.mxu0 0.0
    %1365 = vmatpush1.msra.mxu0 0.0
    %1366 = vmatprep.subr.mxu0 0.0
    %1367 = vmatpush1.msra.mxu0 0.0
    %1368 = vmatprep.subr.mxu0 0.0
    %1369 = vmatpush1.msra.mxu0 0.0
    %1370 = vmatprep.subr.mxu0 0.0
    %1371 = vmatpush1.msra.mxu0 0.0
    %1372 = vmatprep.subr.mxu0 0.0
    %1373 = vmatpush1.msra.mxu0 0.0
    %1374 = vmatprep.subr.mxu0 0.0
    %1375 = vmatpush1.msra.mxu0 0.0
    %1376 = vmatprep.subr.mxu0 0.0
    %1377 = vmatpush1.msra.mxu0 0.0
    %1378 = vmatprep.subr.mxu0 0.0
    %1379 = vmatpush1.msra.mxu0 0.0
    %1380 = vmatprep.subr.mxu0 0.0
    %1381 = vmatpush1.msra.mxu0 0.0
    %1382 = vmatprep.subr.mxu0 0.0
    %1383 = vmatpush1.msra.mxu0 0.0
    %1384 = vmatprep.subr.mxu0 0.0
    %1385 = vmatpush1.msra.mxu0 0.0
    %1386 = vmatprep.subr.mxu0 %v1230
    %1387 = vmatpush1.msra.mxu0 %v1229
    %1388 = vmatprep.subr.mxu0 %v1226
    %1389 = vmatpush1.msra.mxu0 %v1225
    %1390 = vmatprep.subr.mxu0 %v1222
    %1391 = vmatpush1.msra.mxu0 %v1221
    %1392 = vmatprep.subr.mxu0 %v1218
    %1393 = vmatpush1.msra.mxu0 %v1217
    %1394 = vmatprep.subr.mxu0 0.0
    %1395 = vmatpush2.msra.mxu0 0.0
    %1396 = vmatprep.subr.mxu0 0.0
    %1397 = vmatpush2.msra.mxu0 0.0
    %1398 = vmatprep.subr.mxu0 0.0
    %1399 = vmatpush2.msra.mxu0 0.0
    %1400 = vmatprep.subr.mxu0 0.0
    %1401 = vmatpush2.msra.mxu0 0.0
    %1402 = vmatprep.subr.mxu0 0.0
    %1403 = vmatpush2.msra.mxu0 0.0
    %1404 = vmatprep.subr.mxu0 0.0
    %1405 = vmatpush2.msra.mxu0 0.0
    %1406 = vmatprep.subr.mxu0 0.0
    %1407 = vmatpush2.msra.mxu0 0.0
    %1408 = vmatprep.subr.mxu0 0.0
    %1409 = vmatpush2.msra.mxu0 0.0
    %1410 = vmatprep.subr.mxu0 0.0
    %1411 = vmatpush2.msra.mxu0 0.0
    %1412 = vmatprep.subr.mxu0 0.0
    %1413 = vmatpush2.msra.mxu0 0.0
    %1414 = vmatprep.subr.mxu0 0.0
    %1415 = vmatpush2.msra.mxu0 0.0
    %1416 = vmatprep.subr.mxu0 0.0
    %1417 = vmatpush2.msra.mxu0 0.0
    %1418 = vmatprep.subr.mxu0 0.0
    %1419 = vmatpush2.msra.mxu0 0.0
    %1420 = vmatprep.subr.mxu0 0.0
    %1421 = vmatpush2.msra.mxu0 0.0
    %1422 = vmatprep.subr.mxu0 0.0
    %1423 = vmatpush2.msra.mxu0 0.0
    %1424 = vmatprep.subr.mxu0 0.0
    %1425 = vmatpush2.msra.mxu0 0.0
    %1426 = vmatprep.mubr.f32.mxu0 0.0
    %1427 = vmatmul.mubr.f32.gmra.mxu0 %v1262
    %v1428 = vpop.f32.mrf.mxu0
    %v1429 = vadd.f32 %v1244, %v1428
    %v1430 = vpop.f32.mrf.mxu0
    %v1431 = vadd.f32 %v1244, %v1430
    %1432 = vmatprep.mubr.f32.mxu0 0.0
    %1433 = vmatmul.mubr.f32.gmra.mxu0 %v1265
    %v1434 = vpop.f32.mrf.mxu0
    %v1435 = vadd.f32 %v1249, %v1434
    %v1436 = vpop.f32.mrf.mxu0
    %v1437 = vadd.f32 %v1249, %v1436
    %1438 = vmatprep.mubr.f32.mxu0 0.0
    %1439 = vmatmul.mubr.f32.gmra.mxu0 %v1268
    %v1440 = vpop.f32.mrf.mxu0
    %v1441 = vadd.f32 %v1254, %v1440
    %v1442 = vpop.f32.mrf.mxu0
    %v1443 = vadd.f32 %v1254, %v1442
    %1444 = vmatprep.mubr.f32.mxu0 0.0
    %1445 = vmatmul.mubr.f32.gmra.mxu0 %v1271
    %v1446 = vpop.f32.mrf.mxu0
    %v1447 = vadd.f32 %v1259, %v1446
    %v1448 = vpop.f32.mrf.mxu0
    %v1449 = vadd.f32 %v1259, %v1448
    %1450 = vdwg.mxu0
    %v1451 = vmul.f32 %v648, %v1340
    %v1452 = vmul.f32 %v650, %v1342
    %v1453 = vmul.f32 %v737, %v1429
    %v1454 = vmul.f32 %v739, %v1431
    %v1455 = vmul.f32 %v654, %v1346
    %v1456 = vmul.f32 %v656, %v1348
    %v1457 = vmul.f32 %v743, %v1435
    %v1458 = vmul.f32 %v745, %v1437
    %v1459 = vmul.f32 %v660, %v1352
    %v1460 = vmul.f32 %v662, %v1354
    %v1461 = vmul.f32 %v749, %v1441
    %v1462 = vmul.f32 %v751, %v1443
    %v1463 = vmul.f32 %v666, %v1358
    %v1464 = vmul.f32 %v668, %v1360
    %v1465 = vmul.f32 %v755, %v1447
    %v1466 = vmul.f32 %v757, %v1449
    %v1467 = vadd.f32 %v1451, %v1452
    %1468 = vadd.xlane.f32.xlu0 %v1467
    %v1469 = vpop.xlane.xlu0 %1468
    %v1470 = vadd.f32 %v1455, %v1456
    %1471 = vadd.xlane.f32.xlu0 %v1470
    %v1472 = vpop.xlane.xlu0 %1471
    %v1473 = vadd.f32 %v1459, %v1460
    %1474 = vadd.xlane.f32.xlu0 %v1473
    %v1475 = vpop.xlane.xlu0 %1474
    %v1476 = vadd.f32 %v1463, %v1464
    %1477 = vadd.xlane.f32.xlu0 %v1476
    %v1478 = vpop.xlane.xlu0 %1477
    %v1479 = vrcp.pop 256.0
    %v1480 = vmul.f32 %v1469, %v1479
    %v1481 = vmul.f32 %v1472, %v1479
    %v1482 = vmul.f32 %v1475, %v1479
    %v1483 = vmul.f32 %v1478, %v1479
    %v1484 = vadd.f32 %v1453, %v1454
    %1485 = vadd.xlane.f32.xlu0 %v1484
    %v1486 = vpop.xlane.xlu0 %1485
    %v1487 = vadd.f32 %v1457, %v1458
    %1488 = vadd.xlane.f32.xlu0 %v1487
    %v1489 = vpop.xlane.xlu0 %1488
    %v1490 = vadd.f32 %v1461, %v1462
    %1491 = vadd.xlane.f32.xlu0 %v1490
    %v1492 = vpop.xlane.xlu0 %1491
    %v1493 = vadd.f32 %v1465, %v1466
    %1494 = vadd.xlane.f32.xlu0 %v1493
    %v1495 = vpop.xlane.xlu0 %1494
    %v1496 = vmul.f32 %v1486, %v1479
    %v1497 = vmul.f32 %v1489, %v1479
    %v1498 = vmul.f32 %v1492, %v1479
    %v1499 = vmul.f32 %v1495, %v1479
    %v1500 = vlaneseq
    %v1501 = vand.u32 %v1500, 127
    %vm1502 = vcmp.eq.s32.totalorder %v1501, 0
    %v1503 = vsel %vm1502, 1, 0
    %v1504 = vcvt.s32.f32 %v1503
    %v1505 = vmul.f32 %v1480, %v1504
    %v1506 = vmul.f32 %v1481, %v1504
    %v1507 = vmul.f32 %v1482, %v1504
    %v1508 = vmul.f32 %v1483, %v1504
    %v1509 = vadd.f32 %v1505, 0.0
    %v1510 = vadd.f32 %v1506, 0.0
    %v1511 = vadd.f32 %v1507, 0.0
    %v1512 = vadd.f32 %v1508, 0.0
    %vm1513 = vcmp.eq.s32.totalorder %v1501, 1
    %v1514 = vsel %vm1513, 1, 0
    %v1515 = vcvt.s32.f32 %v1514
    %v1516 = vmul.f32 %v1496, %v1515
    %v1517 = vmul.f32 %v1497, %v1515
    %v1518 = vmul.f32 %v1498, %v1515
    %v1519 = vmul.f32 %v1499, %v1515
    %v1520 = vadd.f32 %v1509, %v1516
    %v1521 = vadd.f32 %v1510, %v1517
    %v1522 = vadd.f32 %v1511, %v1518
    %v1523 = vadd.f32 %v1512, %v1519
    %s1524 = scalar_lea.vmem %s2, 384
    %v1525 = vld [vmem:[%s1524] sm:$0xff]
    %v1526 = vld [vmem:[%s1524 + $0x8] sm:$0xff]
    %v1527 = vld [vmem:[%s1524 + $0x10] sm:$0xff]
    %v1528 = vld [vmem:[%s1524 + $0x18] sm:$0xff]
    %s1529 = scalar_lea.vmem %s3, 384
    %v1530 = vld [vmem:[%s1529] sm:$0xff]
    %v1531 = vld [vmem:[%s1529 + $0x8] sm:$0xff]
    %v1532 = vld [vmem:[%s1529 + $0x10] sm:$0xff]
    %v1533 = vld [vmem:[%s1529 + $0x18] sm:$0xff]
    %1535 = vset.pattern.permute.xlu0 0
    %1536 = vperm.xlu0 %1535, %v1530
    %v1537 = vpop.permute.xlu0 %1536
    %1540 = vset.pattern.permute.xlu0 0
    %1541 = vperm.xlu0 %1540, %v1531
    %v1542 = vpop.permute.xlu0 %1541
    %1545 = vset.pattern.permute.xlu0 0
    %1546 = vperm.xlu0 %1545, %v1532
    %v1547 = vpop.permute.xlu0 %1546
    %1550 = vset.pattern.permute.xlu0 0
    %1551 = vperm.xlu0 %1550, %v1533
    %v1552 = vpop.permute.xlu0 %1551
    %v1555 = vsel %vm332, %v1525, 0
    %v1558 = vsel %vm332, %v1526, 0
    %v1561 = vsel %vm332, %v1527, 0
    %v1564 = vsel %vm332, %v1528, 0
    %1566 = vmatprep.subr.mxu0 0.0
    %1567 = vmatpush1.msra.mxu0 0.0
    %1568 = vmatprep.subr.mxu0 0.0
    %1569 = vmatpush1.msra.mxu0 0.0
    %1570 = vmatprep.subr.mxu0 0.0
    %1571 = vmatpush1.msra.mxu0 0.0
    %1572 = vmatprep.subr.mxu0 0.0
    %1573 = vmatpush1.msra.mxu0 0.0
    %1574 = vmatprep.subr.mxu0 0.0
    %1575 = vmatpush1.msra.mxu0 0.0
    %1576 = vmatprep.subr.mxu0 0.0
    %1577 = vmatpush1.msra.mxu0 0.0
    %1578 = vmatprep.subr.mxu0 0.0
    %1579 = vmatpush1.msra.mxu0 0.0
    %1580 = vmatprep.subr.mxu0 0.0
    %1581 = vmatpush1.msra.mxu0 0.0
    %1582 = vmatprep.subr.mxu0 0.0
    %1583 = vmatpush1.msra.mxu0 0.0
    %1584 = vmatprep.subr.mxu0 0.0
    %1585 = vmatpush1.msra.mxu0 0.0
    %1586 = vmatprep.subr.mxu0 0.0
    %1587 = vmatpush1.msra.mxu0 0.0
    %1588 = vmatprep.subr.mxu0 0.0
    %1589 = vmatpush1.msra.mxu0 0.0
    %1590 = vmatprep.subr.mxu0 0.0
    %1591 = vmatpush1.msra.mxu0 %v1523
    %1592 = vmatprep.subr.mxu0 0.0
    %1593 = vmatpush1.msra.mxu0 %v1522
    %1594 = vmatprep.subr.mxu0 0.0
    %1595 = vmatpush1.msra.mxu0 %v1521
    %1596 = vmatprep.subr.mxu0 0.0
    %1597 = vmatpush1.msra.mxu0 %v1520
    %1598 = vmatprep.subr.mxu0 0.0
    %1599 = vmatpush2.msra.mxu0 0.0
    %1600 = vmatprep.subr.mxu0 0.0
    %1601 = vmatpush2.msra.mxu0 0.0
    %1602 = vmatprep.subr.mxu0 0.0
    %1603 = vmatpush2.msra.mxu0 0.0
    %1604 = vmatprep.subr.mxu0 0.0
    %1605 = vmatpush2.msra.mxu0 0.0
    %1606 = vmatprep.subr.mxu0 0.0
    %1607 = vmatpush2.msra.mxu0 0.0
    %1608 = vmatprep.subr.mxu0 0.0
    %1609 = vmatpush2.msra.mxu0 0.0
    %1610 = vmatprep.subr.mxu0 0.0
    %1611 = vmatpush2.msra.mxu0 0.0
    %1612 = vmatprep.subr.mxu0 0.0
    %1613 = vmatpush2.msra.mxu0 0.0
    %1614 = vmatprep.subr.mxu0 0.0
    %1615 = vmatpush2.msra.mxu0 0.0
    %1616 = vmatprep.subr.mxu0 0.0
    %1617 = vmatpush2.msra.mxu0 0.0
    %1618 = vmatprep.subr.mxu0 0.0
    %1619 = vmatpush2.msra.mxu0 0.0
    %1620 = vmatprep.subr.mxu0 0.0
    %1621 = vmatpush2.msra.mxu0 0.0
    %1622 = vmatprep.subr.mxu0 0.0
    %1623 = vmatpush2.msra.mxu0 0.0
    %1624 = vmatprep.subr.mxu0 0.0
    %1625 = vmatpush2.msra.mxu0 0.0
    %1626 = vmatprep.subr.mxu0 0.0
    %1627 = vmatpush2.msra.mxu0 0.0
    %1628 = vmatprep.subr.mxu0 0.0
    %1629 = vmatpush2.msra.mxu0 0.0
    %1630 = vmatprep.mubr.f32.mxu0 0.0
    %1631 = vmatmul.mubr.f32.gmra.mxu0 %v1555
    %v1632 = vpop.f32.mrf.mxu0
    %v1633 = vadd.f32 %v1537, %v1632
    %v1634 = vpop.f32.mrf.mxu0
    %1635 = vmatprep.mubr.f32.mxu0 0.0
    %1636 = vmatmul.mubr.f32.gmra.mxu0 %v1558
    %v1637 = vpop.f32.mrf.mxu0
    %v1638 = vadd.f32 %v1542, %v1637
    %v1639 = vpop.f32.mrf.mxu0
    %1640 = vmatprep.mubr.f32.mxu0 0.0
    %1641 = vmatmul.mubr.f32.gmra.mxu0 %v1561
    %v1642 = vpop.f32.mrf.mxu0
    %v1643 = vadd.f32 %v1547, %v1642
    %v1644 = vpop.f32.mrf.mxu0
    %1645 = vmatprep.mubr.f32.mxu0 0.0
    %1646 = vmatmul.mubr.f32.gmra.mxu0 %v1564
    %v1647 = vpop.f32.mrf.mxu0
    %v1648 = vadd.f32 %v1552, %v1647
    %v1649 = vpop.f32.mrf.mxu0
    %1650 = vdwg.mxu0
    %v1651 = vmax.f32 %v1633, 0.0
    %v1652 = vmax.f32 %v1638, 0.0
    %v1653 = vmax.f32 %v1643, 0.0
    %v1654 = vmax.f32 %v1648, 0.0
    %s1655 = scalar_lea.vmem %s2, 448
    %v1656 = vld [vmem:[%s1655] sm:$0xff]
    %v1657 = vld [vmem:[%s1655 + $0x8] sm:$0xff]
    %v1658 = vld [vmem:[%s1655 + $0x10] sm:$0xff]
    %v1659 = vld [vmem:[%s1655 + $0x18] sm:$0xff]
    %s1660 = scalar_lea.vmem %s3, 448
    %v1661 = vld [vmem:[%s1660] sm:$0xff]
    %v1662 = vld [vmem:[%s1660 + $0x8] sm:$0xff]
    %v1663 = vld [vmem:[%s1660 + $0x10] sm:$0xff]
    %v1664 = vld [vmem:[%s1660 + $0x18] sm:$0xff]
    %1666 = vset.pattern.permute.xlu0 0
    %1667 = vperm.xlu0 %1666, %v1661
    %v1668 = vpop.permute.xlu0 %1667
    %1671 = vset.pattern.permute.xlu0 0
    %1672 = vperm.xlu0 %1671, %v1662
    %v1673 = vpop.permute.xlu0 %1672
    %1676 = vset.pattern.permute.xlu0 0
    %1677 = vperm.xlu0 %1676, %v1663
    %v1678 = vpop.permute.xlu0 %1677
    %1681 = vset.pattern.permute.xlu0 0
    %1682 = vperm.xlu0 %1681, %v1664
    %v1683 = vpop.permute.xlu0 %1682
    %v1686 = vsel %vm332, %v1656, 0
    %v1689 = vsel %vm332, %v1657, 0
    %v1692 = vsel %vm332, %v1658, 0
    %v1695 = vsel %vm332, %v1659, 0
    %1697 = vmatprep.subr.mxu0 0.0
    %1698 = vmatpush1.msra.mxu0 0.0
    %1699 = vmatprep.subr.mxu0 0.0
    %1700 = vmatpush1.msra.mxu0 0.0
    %1701 = vmatprep.subr.mxu0 0.0
    %1702 = vmatpush1.msra.mxu0 0.0
    %1703 = vmatprep.subr.mxu0 0.0
    %1704 = vmatpush1.msra.mxu0 0.0
    %1705 = vmatprep.subr.mxu0 0.0
    %1706 = vmatpush1.msra.mxu0 0.0
    %1707 = vmatprep.subr.mxu0 0.0
    %1708 = vmatpush1.msra.mxu0 0.0
    %1709 = vmatprep.subr.mxu0 0.0
    %1710 = vmatpush1.msra.mxu0 0.0
    %1711 = vmatprep.subr.mxu0 0.0
    %1712 = vmatpush1.msra.mxu0 0.0
    %1713 = vmatprep.subr.mxu0 0.0
    %1714 = vmatpush1.msra.mxu0 0.0
    %1715 = vmatprep.subr.mxu0 0.0
    %1716 = vmatpush1.msra.mxu0 0.0
    %1717 = vmatprep.subr.mxu0 0.0
    %1718 = vmatpush1.msra.mxu0 0.0
    %1719 = vmatprep.subr.mxu0 0.0
    %1720 = vmatpush1.msra.mxu0 0.0
    %1721 = vmatprep.subr.mxu0 0.0
    %1722 = vmatpush1.msra.mxu0 %v1654
    %1723 = vmatprep.subr.mxu0 0.0
    %1724 = vmatpush1.msra.mxu0 %v1653
    %1725 = vmatprep.subr.mxu0 0.0
    %1726 = vmatpush1.msra.mxu0 %v1652
    %1727 = vmatprep.subr.mxu0 0.0
    %1728 = vmatpush1.msra.mxu0 %v1651
    %1729 = vmatprep.subr.mxu0 0.0
    %1730 = vmatpush2.msra.mxu0 0.0
    %1731 = vmatprep.subr.mxu0 0.0
    %1732 = vmatpush2.msra.mxu0 0.0
    %1733 = vmatprep.subr.mxu0 0.0
    %1734 = vmatpush2.msra.mxu0 0.0
    %1735 = vmatprep.subr.mxu0 0.0
    %1736 = vmatpush2.msra.mxu0 0.0
    %1737 = vmatprep.subr.mxu0 0.0
    %1738 = vmatpush2.msra.mxu0 0.0
    %1739 = vmatprep.subr.mxu0 0.0
    %1740 = vmatpush2.msra.mxu0 0.0
    %1741 = vmatprep.subr.mxu0 0.0
    %1742 = vmatpush2.msra.mxu0 0.0
    %1743 = vmatprep.subr.mxu0 0.0
    %1744 = vmatpush2.msra.mxu0 0.0
    %1745 = vmatprep.subr.mxu0 0.0
    %1746 = vmatpush2.msra.mxu0 0.0
    %1747 = vmatprep.subr.mxu0 0.0
    %1748 = vmatpush2.msra.mxu0 0.0
    %1749 = vmatprep.subr.mxu0 0.0
    %1750 = vmatpush2.msra.mxu0 0.0
    %1751 = vmatprep.subr.mxu0 0.0
    %1752 = vmatpush2.msra.mxu0 0.0
    %1753 = vmatprep.subr.mxu0 0.0
    %1754 = vmatpush2.msra.mxu0 0.0
    %1755 = vmatprep.subr.mxu0 0.0
    %1756 = vmatpush2.msra.mxu0 0.0
    %1757 = vmatprep.subr.mxu0 0.0
    %1758 = vmatpush2.msra.mxu0 0.0
    %1759 = vmatprep.subr.mxu0 0.0
    %1760 = vmatpush2.msra.mxu0 0.0
    %1761 = vmatprep.mubr.f32.mxu0 0.0
    %1762 = vmatmul.mubr.f32.gmra.mxu0 %v1686
    %v1763 = vpop.f32.mrf.mxu0
    %v1764 = vadd.f32 %v1668, %v1763
    %v1765 = vpop.f32.mrf.mxu0
    %1766 = vmatprep.mubr.f32.mxu0 0.0
    %1767 = vmatmul.mubr.f32.gmra.mxu0 %v1689
    %v1768 = vpop.f32.mrf.mxu0
    %v1769 = vadd.f32 %v1673, %v1768
    %v1770 = vpop.f32.mrf.mxu0
    %1771 = vmatprep.mubr.f32.mxu0 0.0
    %1772 = vmatmul.mubr.f32.gmra.mxu0 %v1692
    %v1773 = vpop.f32.mrf.mxu0
    %v1774 = vadd.f32 %v1678, %v1773
    %v1775 = vpop.f32.mrf.mxu0
    %1776 = vmatprep.mubr.f32.mxu0 0.0
    %1777 = vmatmul.mubr.f32.gmra.mxu0 %v1695
    %v1778 = vpop.f32.mrf.mxu0
    %v1779 = vadd.f32 %v1683, %v1778
    %v1780 = vpop.f32.mrf.mxu0
    %1781 = vdwg.mxu0
    %v1782 = vmax.f32 %v1764, 0.0
    %v1783 = vmax.f32 %v1769, 0.0
    %v1784 = vmax.f32 %v1774, 0.0
    %v1785 = vmax.f32 %v1779, 0.0
    %s1786 = scalar_lea.vmem %s2, 512
    %v1787 = vld [vmem:[%s1786] sm:$0xff]
    %v1788 = vld [vmem:[%s1786 + $0x8] sm:$0xff]
    %v1789 = vld [vmem:[%s1786 + $0x10] sm:$0xff]
    %v1790 = vld [vmem:[%s1786 + $0x18] sm:$0xff]
    %v1791 = vld [vmem:[%s1786 + $0x20] sm:$0xff]
    %v1792 = vld [vmem:[%s1786 + $0x28] sm:$0xff]
    %v1793 = vld [vmem:[%s1786 + $0x30] sm:$0xff]
    %v1794 = vld [vmem:[%s1786 + $0x38] sm:$0xff]
    %s1795 = scalar_lea.vmem %s3, 512
    %v1796 = vld [vmem:[%s1795] sm:$0xff]
    %v1797 = vld [vmem:[%s1795 + $0x8] sm:$0xff]
    %v1798 = vld [vmem:[%s1795 + $0x10] sm:$0xff]
    %v1799 = vld [vmem:[%s1795 + $0x18] sm:$0xff]
    %v1800 = vld [vmem:[%s1795 + $0x20] sm:$0xff]
    %v1801 = vld [vmem:[%s1795 + $0x28] sm:$0xff]
    %v1802 = vld [vmem:[%s1795 + $0x30] sm:$0xff]
    %v1803 = vld [vmem:[%s1795 + $0x38] sm:$0xff]
    %1805 = vset.pattern.permute.xlu0 0
    %1806 = vperm.xlu0 %1805, %v1796
    %v1807 = vpop.permute.xlu0 %1806
    %1810 = vset.pattern.permute.xlu0 0
    %1811 = vperm.xlu0 %1810, %v1797
    %v1812 = vpop.permute.xlu0 %1811
    %1815 = vset.pattern.permute.xlu0 0
    %1816 = vperm.xlu0 %1815, %v1798
    %v1817 = vpop.permute.xlu0 %1816
    %1820 = vset.pattern.permute.xlu0 0
    %1821 = vperm.xlu0 %1820, %v1799
    %v1822 = vpop.permute.xlu0 %1821
    %1825 = vset.pattern.permute.xlu0 0
    %1826 = vperm.xlu0 %1825, %v1800
    %v1827 = vpop.permute.xlu0 %1826
    %1830 = vset.pattern.permute.xlu0 0
    %1831 = vperm.xlu0 %1830, %v1801
    %v1832 = vpop.permute.xlu0 %1831
    %1835 = vset.pattern.permute.xlu0 0
    %1836 = vperm.xlu0 %1835, %v1802
    %v1837 = vpop.permute.xlu0 %1836
    %1840 = vset.pattern.permute.xlu0 0
    %1841 = vperm.xlu0 %1840, %v1803
    %v1842 = vpop.permute.xlu0 %1841
    %v1845 = vsel %vm332, %v1787, 0
    %v1848 = vsel %vm332, %v1788, 0
    %v1851 = vsel %vm332, %v1789, 0
    %v1854 = vsel %vm332, %v1790, 0
    %v1857 = vsel %vm332, %v1791, 0
    %v1860 = vsel %vm332, %v1792, 0
    %v1863 = vsel %vm332, %v1793, 0
    %v1866 = vsel %vm332, %v1794, 0
    %1868 = vmatprep.subr.mxu0 0.0
    %1869 = vmatpush1.msra.mxu0 0.0
    %1870 = vmatprep.subr.mxu0 0.0
    %1871 = vmatpush1.msra.mxu0 0.0
    %1872 = vmatprep.subr.mxu0 0.0
    %1873 = vmatpush1.msra.mxu0 0.0
    %1874 = vmatprep.subr.mxu0 0.0
    %1875 = vmatpush1.msra.mxu0 0.0
    %1876 = vmatprep.subr.mxu0 0.0
    %1877 = vmatpush1.msra.mxu0 0.0
    %1878 = vmatprep.subr.mxu0 0.0
    %1879 = vmatpush1.msra.mxu0 0.0
    %1880 = vmatprep.subr.mxu0 0.0
    %1881 = vmatpush1.msra.mxu0 0.0
    %1882 = vmatprep.subr.mxu0 0.0
    %1883 = vmatpush1.msra.mxu0 0.0
    %1884 = vmatprep.subr.mxu0 0.0
    %1885 = vmatpush1.msra.mxu0 0.0
    %1886 = vmatprep.subr.mxu0 0.0
    %1887 = vmatpush1.msra.mxu0 0.0
    %1888 = vmatprep.subr.mxu0 0.0
    %1889 = vmatpush1.msra.mxu0 0.0
    %1890 = vmatprep.subr.mxu0 0.0
    %1891 = vmatpush1.msra.mxu0 0.0
    %1892 = vmatprep.subr.mxu0 0.0
    %1893 = vmatpush1.msra.mxu0 %v1785
    %1894 = vmatprep.subr.mxu0 0.0
    %1895 = vmatpush1.msra.mxu0 %v1784
    %1896 = vmatprep.subr.mxu0 0.0
    %1897 = vmatpush1.msra.mxu0 %v1783
    %1898 = vmatprep.subr.mxu0 0.0
    %1899 = vmatpush1.msra.mxu0 %v1782
    %1900 = vmatprep.subr.mxu0 0.0
    %1901 = vmatpush2.msra.mxu0 0.0
    %1902 = vmatprep.subr.mxu0 0.0
    %1903 = vmatpush2.msra.mxu0 0.0
    %1904 = vmatprep.subr.mxu0 0.0
    %1905 = vmatpush2.msra.mxu0 0.0
    %1906 = vmatprep.subr.mxu0 0.0
    %1907 = vmatpush2.msra.mxu0 0.0
    %1908 = vmatprep.subr.mxu0 0.0
    %1909 = vmatpush2.msra.mxu0 0.0
    %1910 = vmatprep.subr.mxu0 0.0
    %1911 = vmatpush2.msra.mxu0 0.0
    %1912 = vmatprep.subr.mxu0 0.0
    %1913 = vmatpush2.msra.mxu0 0.0
    %1914 = vmatprep.subr.mxu0 0.0
    %1915 = vmatpush2.msra.mxu0 0.0
    %1916 = vmatprep.subr.mxu0 0.0
    %1917 = vmatpush2.msra.mxu0 0.0
    %1918 = vmatprep.subr.mxu0 0.0
    %1919 = vmatpush2.msra.mxu0 0.0
    %1920 = vmatprep.subr.mxu0 0.0
    %1921 = vmatpush2.msra.mxu0 0.0
    %1922 = vmatprep.subr.mxu0 0.0
    %1923 = vmatpush2.msra.mxu0 0.0
    %1924 = vmatprep.subr.mxu0 0.0
    %1925 = vmatpush2.msra.mxu0 0.0
    %1926 = vmatprep.subr.mxu0 0.0
    %1927 = vmatpush2.msra.mxu0 0.0
    %1928 = vmatprep.subr.mxu0 0.0
    %1929 = vmatpush2.msra.mxu0 0.0
    %1930 = vmatprep.subr.mxu0 0.0
    %1931 = vmatpush2.msra.mxu0 0.0
    %1932 = vmatprep.mubr.f32.mxu0 0.0
    %1933 = vmatmul.mubr.f32.gmra.mxu0 %v1845
    %v1934 = vpop.f32.mrf.mxu0
    %v1935 = vadd.f32 %v1807, %v1934
    %v1936 = vpop.f32.mrf.mxu0
    %1937 = vmatprep.mubr.f32.mxu0 0.0
    %1938 = vmatmul.mubr.f32.gmra.mxu0 %v1848
    %v1939 = vpop.f32.mrf.mxu0
    %v1940 = vadd.f32 %v1812, %v1939
    %v1941 = vpop.f32.mrf.mxu0
    %1942 = vmatprep.mubr.f32.mxu0 0.0
    %1943 = vmatmul.mubr.f32.gmra.mxu0 %v1851
    %v1944 = vpop.f32.mrf.mxu0
    %v1945 = vadd.f32 %v1817, %v1944
    %v1946 = vpop.f32.mrf.mxu0
    %1947 = vmatprep.mubr.f32.mxu0 0.0
    %1948 = vmatmul.mubr.f32.gmra.mxu0 %v1854
    %v1949 = vpop.f32.mrf.mxu0
    %v1950 = vadd.f32 %v1822, %v1949
    %v1951 = vpop.f32.mrf.mxu0
    %1952 = vmatprep.mubr.f32.mxu0 0.0
    %1953 = vmatmul.mubr.f32.gmra.mxu0 %v1857
    %v1954 = vpop.f32.mrf.mxu0
    %v1955 = vadd.f32 %v1827, %v1954
    %v1956 = vpop.f32.mrf.mxu0
    %1957 = vmatprep.mubr.f32.mxu0 0.0
    %1958 = vmatmul.mubr.f32.gmra.mxu0 %v1860
    %v1959 = vpop.f32.mrf.mxu0
    %v1960 = vadd.f32 %v1832, %v1959
    %v1961 = vpop.f32.mrf.mxu0
    %1962 = vmatprep.mubr.f32.mxu0 0.0
    %1963 = vmatmul.mubr.f32.gmra.mxu0 %v1863
    %v1964 = vpop.f32.mrf.mxu0
    %v1965 = vadd.f32 %v1837, %v1964
    %v1966 = vpop.f32.mrf.mxu0
    %1967 = vmatprep.mubr.f32.mxu0 0.0
    %1968 = vmatmul.mubr.f32.gmra.mxu0 %v1866
    %v1969 = vpop.f32.mrf.mxu0
    %v1970 = vadd.f32 %v1842, %v1969
    %v1971 = vpop.f32.mrf.mxu0
    %1972 = vdwg.mxu0
    %s1973 = scalar_lea.vmem %s2, 576
    %v1974 = vld [vmem:[%s1973] sm:$0xff]
    %v1975 = vld [vmem:[%s1973 + $0x8] sm:$0xff]
    %v1976 = vld [vmem:[%s1973 + $0x10] sm:$0xff]
    %v1977 = vld [vmem:[%s1973 + $0x18] sm:$0xff]
    %s1978 = scalar_lea.vmem %s3, 576
    %v1979 = vld [vmem:[%s1978] sm:$0xff]
    %v1980 = vld [vmem:[%s1978 + $0x8] sm:$0xff]
    %v1981 = vld [vmem:[%s1978 + $0x10] sm:$0xff]
    %v1982 = vld [vmem:[%s1978 + $0x18] sm:$0xff]
    %1984 = vset.pattern.permute.xlu0 0
    %1985 = vperm.xlu0 %1984, %v1979
    %v1986 = vpop.permute.xlu0 %1985
    %1989 = vset.pattern.permute.xlu0 0
    %1990 = vperm.xlu0 %1989, %v1980
    %v1991 = vpop.permute.xlu0 %1990
    %1994 = vset.pattern.permute.xlu0 0
    %1995 = vperm.xlu0 %1994, %v1981
    %v1996 = vpop.permute.xlu0 %1995
    %1999 = vset.pattern.permute.xlu0 0
    %2000 = vperm.xlu0 %1999, %v1982
    %v2001 = vpop.permute.xlu0 %2000
    %v2004 = vsel %vm332, %v1974, 0
    %v2007 = vsel %vm332, %v1975, 0
    %v2010 = vsel %vm332, %v1976, 0
    %v2013 = vsel %vm332, %v1977, 0
    %2015 = vmatprep.subr.mxu0 0.0
    %2016 = vmatpush1.msra.mxu0 0.0
    %2017 = vmatprep.subr.mxu0 0.0
    %2018 = vmatpush1.msra.mxu0 0.0
    %2019 = vmatprep.subr.mxu0 0.0
    %2020 = vmatpush1.msra.mxu0 0.0
    %2021 = vmatprep.subr.mxu0 0.0
    %2022 = vmatpush1.msra.mxu0 0.0
    %2023 = vmatprep.subr.mxu0 0.0
    %2024 = vmatpush1.msra.mxu0 0.0
    %2025 = vmatprep.subr.mxu0 0.0
    %2026 = vmatpush1.msra.mxu0 0.0
    %2027 = vmatprep.subr.mxu0 0.0
    %2028 = vmatpush1.msra.mxu0 0.0
    %2029 = vmatprep.subr.mxu0 0.0
    %2030 = vmatpush1.msra.mxu0 0.0
    %2031 = vmatprep.subr.mxu0 0.0
    %2032 = vmatpush1.msra.mxu0 0.0
    %2033 = vmatprep.subr.mxu0 0.0
    %2034 = vmatpush1.msra.mxu0 0.0
    %2035 = vmatprep.subr.mxu0 0.0
    %2036 = vmatpush1.msra.mxu0 0.0
    %2037 = vmatprep.subr.mxu0 0.0
    %2038 = vmatpush1.msra.mxu0 0.0
    %2039 = vmatprep.subr.mxu0 %v1464
    %2040 = vmatpush1.msra.mxu0 %v1463
    %2041 = vmatprep.subr.mxu0 %v1460
    %2042 = vmatpush1.msra.mxu0 %v1459
    %2043 = vmatprep.subr.mxu0 %v1456
    %2044 = vmatpush1.msra.mxu0 %v1455
    %2045 = vmatprep.subr.mxu0 %v1452
    %2046 = vmatpush1.msra.mxu0 %v1451
    %2047 = vmatprep.subr.mxu0 0.0
    %2048 = vmatpush2.msra.mxu0 0.0
    %2049 = vmatprep.subr.mxu0 0.0
    %2050 = vmatpush2.msra.mxu0 0.0
    %2051 = vmatprep.subr.mxu0 0.0
    %2052 = vmatpush2.msra.mxu0 0.0
    %2053 = vmatprep.subr.mxu0 0.0
    %2054 = vmatpush2.msra.mxu0 0.0
    %2055 = vmatprep.subr.mxu0 0.0
    %2056 = vmatpush2.msra.mxu0 0.0
    %2057 = vmatprep.subr.mxu0 0.0
    %2058 = vmatpush2.msra.mxu0 0.0
    %2059 = vmatprep.subr.mxu0 0.0
    %2060 = vmatpush2.msra.mxu0 0.0
    %2061 = vmatprep.subr.mxu0 0.0
    %2062 = vmatpush2.msra.mxu0 0.0
    %2063 = vmatprep.subr.mxu0 0.0
    %2064 = vmatpush2.msra.mxu0 0.0
    %2065 = vmatprep.subr.mxu0 0.0
    %2066 = vmatpush2.msra.mxu0 0.0
    %2067 = vmatprep.subr.mxu0 0.0
    %2068 = vmatpush2.msra.mxu0 0.0
    %2069 = vmatprep.subr.mxu0 0.0
    %2070 = vmatpush2.msra.mxu0 0.0
    %2071 = vmatprep.subr.mxu0 0.0
    %2072 = vmatpush2.msra.mxu0 0.0
    %2073 = vmatprep.subr.mxu0 0.0
    %2074 = vmatpush2.msra.mxu0 0.0
    %2075 = vmatprep.subr.mxu0 0.0
    %2076 = vmatpush2.msra.mxu0 0.0
    %2077 = vmatprep.subr.mxu0 0.0
    %2078 = vmatpush2.msra.mxu0 0.0
    %2079 = vmatprep.mubr.f32.mxu0 0.0
    %2080 = vmatmul.mubr.f32.gmra.mxu0 %v2004
    %v2081 = vpop.f32.mrf.mxu0
    %v2082 = vadd.f32 %v1986, %v2081
    %v2083 = vpop.f32.mrf.mxu0
    %v2084 = vadd.f32 %v1986, %v2083
    %2085 = vmatprep.mubr.f32.mxu0 0.0
    %2086 = vmatmul.mubr.f32.gmra.mxu0 %v2007
    %v2087 = vpop.f32.mrf.mxu0
    %v2088 = vadd.f32 %v1991, %v2087
    %v2089 = vpop.f32.mrf.mxu0
    %v2090 = vadd.f32 %v1991, %v2089
    %2091 = vmatprep.mubr.f32.mxu0 0.0
    %2092 = vmatmul.mubr.f32.gmra.mxu0 %v2010
    %v2093 = vpop.f32.mrf.mxu0
    %v2094 = vadd.f32 %v1996, %v2093
    %v2095 = vpop.f32.mrf.mxu0
    %v2096 = vadd.f32 %v1996, %v2095
    %2097 = vmatprep.mubr.f32.mxu0 0.0
    %2098 = vmatmul.mubr.f32.gmra.mxu0 %v2013
    %v2099 = vpop.f32.mrf.mxu0
    %v2100 = vadd.f32 %v2001, %v2099
    %v2101 = vpop.f32.mrf.mxu0
    %v2102 = vadd.f32 %v2001, %v2101
    %2103 = vdwg.mxu0
    %2104 = vmatprep.subr.mxu0 0.0
    %2105 = vmatpush1.msra.mxu0 0.0
    %2106 = vmatprep.subr.mxu0 0.0
    %2107 = vmatpush1.msra.mxu0 0.0
    %2108 = vmatprep.subr.mxu0 0.0
    %2109 = vmatpush1.msra.mxu0 0.0
    %2110 = vmatprep.subr.mxu0 0.0
    %2111 = vmatpush1.msra.mxu0 0.0
    %2112 = vmatprep.subr.mxu0 0.0
    %2113 = vmatpush1.msra.mxu0 0.0
    %2114 = vmatprep.subr.mxu0 0.0
    %2115 = vmatpush1.msra.mxu0 0.0
    %2116 = vmatprep.subr.mxu0 0.0
    %2117 = vmatpush1.msra.mxu0 0.0
    %2118 = vmatprep.subr.mxu0 0.0
    %2119 = vmatpush1.msra.mxu0 0.0
    %2120 = vmatprep.subr.mxu0 0.0
    %2121 = vmatpush1.msra.mxu0 0.0
    %2122 = vmatprep.subr.mxu0 0.0
    %2123 = vmatpush1.msra.mxu0 0.0
    %2124 = vmatprep.subr.mxu0 0.0
    %2125 = vmatpush1.msra.mxu0 0.0
    %2126 = vmatprep.subr.mxu0 0.0
    %2127 = vmatpush1.msra.mxu0 0.0
    %2128 = vmatprep.subr.mxu0 %v1466
    %2129 = vmatpush1.msra.mxu0 %v1465
    %2130 = vmatprep.subr.mxu0 %v1462
    %2131 = vmatpush1.msra.mxu0 %v1461
    %2132 = vmatprep.subr.mxu0 %v1458
    %2133 = vmatpush1.msra.mxu0 %v1457
    %2134 = vmatprep.subr.mxu0 %v1454
    %2135 = vmatpush1.msra.mxu0 %v1453
    %2136 = vmatprep.subr.mxu0 0.0
    %2137 = vmatpush2.msra.mxu0 0.0
    %2138 = vmatprep.subr.mxu0 0.0
    %2139 = vmatpush2.msra.mxu0 0.0
    %2140 = vmatprep.subr.mxu0 0.0
    %2141 = vmatpush2.msra.mxu0 0.0
    %2142 = vmatprep.subr.mxu0 0.0
    %2143 = vmatpush2.msra.mxu0 0.0
    %2144 = vmatprep.subr.mxu0 0.0
    %2145 = vmatpush2.msra.mxu0 0.0
    %2146 = vmatprep.subr.mxu0 0.0
    %2147 = vmatpush2.msra.mxu0 0.0
    %2148 = vmatprep.subr.mxu0 0.0
    %2149 = vmatpush2.msra.mxu0 0.0
    %2150 = vmatprep.subr.mxu0 0.0
    %2151 = vmatpush2.msra.mxu0 0.0
    %2152 = vmatprep.subr.mxu0 0.0
    %2153 = vmatpush2.msra.mxu0 0.0
    %2154 = vmatprep.subr.mxu0 0.0
    %2155 = vmatpush2.msra.mxu0 0.0
    %2156 = vmatprep.subr.mxu0 0.0
    %2157 = vmatpush2.msra.mxu0 0.0
    %2158 = vmatprep.subr.mxu0 0.0
    %2159 = vmatpush2.msra.mxu0 0.0
    %2160 = vmatprep.subr.mxu0 0.0
    %2161 = vmatpush2.msra.mxu0 0.0
    %2162 = vmatprep.subr.mxu0 0.0
    %2163 = vmatpush2.msra.mxu0 0.0
    %2164 = vmatprep.subr.mxu0 0.0
    %2165 = vmatpush2.msra.mxu0 0.0
    %2166 = vmatprep.subr.mxu0 0.0
    %2167 = vmatpush2.msra.mxu0 0.0
    %2168 = vmatprep.mubr.f32.mxu0 0.0
    %2169 = vmatmul.mubr.f32.gmra.mxu0 %v2004
    %v2170 = vpop.f32.mrf.mxu0
    %v2171 = vadd.f32 %v1986, %v2170
    %v2172 = vpop.f32.mrf.mxu0
    %v2173 = vadd.f32 %v1986, %v2172
    %2174 = vmatprep.mubr.f32.mxu0 0.0
    %2175 = vmatmul.mubr.f32.gmra.mxu0 %v2007
    %v2176 = vpop.f32.mrf.mxu0
    %v2177 = vadd.f32 %v1991, %v2176
    %v2178 = vpop.f32.mrf.mxu0
    %v2179 = vadd.f32 %v1991, %v2178
    %2180 = vmatprep.mubr.f32.mxu0 0.0
    %2181 = vmatmul.mubr.f32.gmra.mxu0 %v2010
    %v2182 = vpop.f32.mrf.mxu0
    %v2183 = vadd.f32 %v1996, %v2182
    %v2184 = vpop.f32.mrf.mxu0
    %v2185 = vadd.f32 %v1996, %v2184
    %2186 = vmatprep.mubr.f32.mxu0 0.0
    %2187 = vmatmul.mubr.f32.gmra.mxu0 %v2013
    %v2188 = vpop.f32.mrf.mxu0
    %v2189 = vadd.f32 %v2001, %v2188
    %v2190 = vpop.f32.mrf.mxu0
    %v2191 = vadd.f32 %v2001, %v2190
    %2192 = vdwg.mxu0
    %v2193 = vand.u32 2147483647, %v2082
    %vm2194 = vcmp.le.f32.partialorder %v2193, 0.7853982
    %vm2195 = vcmp.lt.s32.totalorder %v2082, 0
    %v2196 = vand.u32 %v2082, 2139095040
    %v2197 = vshrl.u32 %v2196, 23
    %v2198 = vsub.s32 %v2197, 127
    %v2199 = vand.u32 2147483647, %v2082
    %v2200 = vand.u32 %v2199, 8388607
    %v2201 = vor.u32 %v2200, 8388608
    %v2202 = vsub.s32 0, %v2201
    %v2203 = vadd.s32 %v2198, 1
    %vm2204 = vcmp.gt.s32.totalorder %v2203, 0
    %v2205 = vsel %vm2204, %v2203, 0
    %v2206 = vshrl.u32 %v2205, 5
    %v2207 = vand.u32 %v2205, 31
    %v2208 = vsub.s32 32, %v2207
    %v2209 = vshrl.u32 683565275, %v2208
    %v2210 = vshll.u32 683565275, %v2207
    %v2211 = vshrl.u32 2475754826, %v2208
    %v2212 = vor.u32 %v2210, %v2211
    %v2213 = vshll.u32 2475754826, %v2207
    %v2214 = vshrl.u32 2131351028, %v2208
    %v2215 = vor.u32 %v2213, %v2214
    %v2216 = vshll.u32 2131351028, %v2207
    %v2217 = vshrl.u32 2102212464, %v2208
    %v2218 = vor.u32 %v2216, %v2217
    %v2219 = vshll.u32 2102212464, %v2207
    %v2220 = vshrl.u32 920167782, %v2208
    %v2221 = vor.u32 %v2219, %v2220
    %v2222 = vshll.u32 920167782, %v2207
    %v2223 = vshrl.u32 1326507024, %v2208
    %v2224 = vor.u32 %v2222, %v2223
    %vm2225 = vcmp.lt.s32.totalorder %v2206, 1
    %vm2226 = vcmp.lt.s32.totalorder %v2206, 2
    %vm2227 = vcmp.lt.s32.totalorder %v2206, 3
    %vm2228 = vcmp.lt.s32.totalorder %v2206, 4
    %v2229 = vsel %vm2225, %v2209, %v2212
    %v2230 = vsel %vm2228, %v2218, 2102212464
    %v2231 = vsel %vm2227, %v2215, %v2230
    %v2232 = vsel %vm2226, %v2229, %v2231
    %v2233 = vsel %vm2225, %v2212, %v2215
    %v2234 = vsel %vm2228, %v2221, 920167782
    %v2235 = vsel %vm2227, %v2218, %v2234
    %v2236 = vsel %vm2226, %v2233, %v2235
    %v2237 = vsel %vm2225, %v2215, %v2218
    %v2238 = vsel %vm2228, %v2224, 1326507024
    %v2239 = vsel %vm2227, %v2221, %v2238
    %v2240 = vsel %vm2226, %v2237, %v2239
    %v2241 = vshll.u32 %v2201, 8
    %v2242 = vmul.u32.u64.compose %v2241, %v2240
    %v2243 = vextract.low.u32 %v2242
    %v2244 = vextract.high.u32 %v2242
    %v2245 = vmul.u32.u64.compose %v2241, %v2236
    %v2246 = vextract.low.u32 %v2245
    %v2247 = vextract.high.u32 %v2245
    %v2248 = vmul.u32 %v2241, %v2232
    %v2249 = vadd.s32 %v2244, %v2246
    %vm2250 = vc.u32 %v2244, %v2246
    %v2251 = vadd.s32 %v2247, 1
    %v2252 = vsel %vm2250, %v2251, %v2247
    %v2253 = vadd.s32 %v2248, %v2252
    %v2254 = vadd.s32 %v2253, 536870912
    %v2255 = vshrl.u32 %v2254, 30
    %v2256 = vshll.u32 %v2255, 30
    %v2257 = vsub.s32 %v2253, %v2256
    %vm2258 = vcmp.lt.s32.totalorder %v2257, 0
    %v2259 = vsub.s32 0, %v2257
    %v2260 = vsel %vm2258, %v2259, %v2257
    %v2261 = vclz %v2260
    %v2262 = vsub.s32 %v2261, 2
    %vm2263 = vcmp.gt.s32.totalorder 0, %v2262
    %v2264 = vsel %vm2263, 0, %v2262
    %v2265 = vsub.s32 32, %v2264
    %v2266 = vshll.u32 %v2257, %v2264
    %v2267 = vshrl.u32 %v2249, %v2265
    %v2268 = vor.u32 %v2266, %v2267
    %v2269 = vsub.s32 4294967266, %v2264
    %v2270 = vadd.s32 %v2269, 127
    %v2271 = vshll.u32 %v2270, 23
    %v2272 = vor.u32 4788187, %v2271
    %v2273 = vand.u32 2147483647, %v2272
    %v2275 = vcvt.s32.f32 %v2268
    %v2276 = vmul.f32 %v2275, %v2273
    %v2277 = vxor.u32 %v2276, 2147483648
    %v2278 = vsel %vm2195, %v2277, %v2276
    %v2279 = vsub.s32 4, %v2255
    %v2280 = vsel %vm2195, %v2279, %v2255
    %v2281 = vsel %vm2194, %v2082, %v2278
    %v2282 = vsel %vm2194, 0, %v2280
    %v2283 = vcosq.f32.pop %v2281
    %v2284 = vsinq.f32.pop %v2281
    %vm2285 = vweird.f32 %v2082
    %v2286 = vadd.s32 %v2282, 3
    %v2287 = vand.u32 %v2286, 3
    %vm2288 = vcmp.lt.s32.totalorder %v2287, 2
    %vm2289 = vcmp.eq.s32.totalorder %v2287, 0
    %v2290 = vxor.u32 %v2284, 2147483648
    %v2291 = vsel %vm2289, %v2283, %v2290
    %vm2292 = vcmp.eq.s32.totalorder %v2287, 2
    %v2293 = vxor.u32 %v2283, 2147483648
    %v2294 = vsel %vm2292, %v2293, %v2284
    %v2295 = vsel %vm2288, %v2291, %v2294
    %v2296 = vsel %vm2285, nan, %v2295
    %v2297 = vand.u32 2147483647, %v2084
    %vm2298 = vcmp.le.f32.partialorder %v2297, 0.7853982
    %vm2299 = vcmp.lt.s32.totalorder %v2084, 0
    %v2300 = vand.u32 %v2084, 2139095040
    %v2301 = vshrl.u32 %v2300, 23
    %v2302 = vsub.s32 %v2301, 127
    %v2303 = vand.u32 2147483647, %v2084
    %v2304 = vand.u32 %v2303, 8388607
    %v2305 = vor.u32 %v2304, 8388608
    %v2306 = vsub.s32 0, %v2305
    %v2307 = vadd.s32 %v2302, 1
    %vm2308 = vcmp.gt.s32.totalorder %v2307, 0
    %v2309 = vsel %vm2308, %v2307, 0
    %v2310 = vshrl.u32 %v2309, 5
    %v2311 = vand.u32 %v2309, 31
    %v2312 = vsub.s32 32, %v2311
    %v2313 = vshrl.u32 683565275, %v2312
    %v2314 = vshll.u32 683565275, %v2311
    %v2315 = vshrl.u32 2475754826, %v2312
    %v2316 = vor.u32 %v2314, %v2315
    %v2317 = vshll.u32 2475754826, %v2311
    %v2318 = vshrl.u32 2131351028, %v2312
    %v2319 = vor.u32 %v2317, %v2318
    %v2320 = vshll.u32 2131351028, %v2311
    %v2321 = vshrl.u32 2102212464, %v2312
    %v2322 = vor.u32 %v2320, %v2321
    %v2323 = vshll.u32 2102212464, %v2311
    %v2324 = vshrl.u32 920167782, %v2312
    %v2325 = vor.u32 %v2323, %v2324
    %v2326 = vshll.u32 920167782, %v2311
    %v2327 = vshrl.u32 1326507024, %v2312
    %v2328 = vor.u32 %v2326, %v2327
    %vm2329 = vcmp.lt.s32.totalorder %v2310, 1
    %vm2330 = vcmp.lt.s32.totalorder %v2310, 2
    %vm2331 = vcmp.lt.s32.totalorder %v2310, 3
    %vm2332 = vcmp.lt.s32.totalorder %v2310, 4
    %v2333 = vsel %vm2329, %v2313, %v2316
    %v2334 = vsel %vm2332, %v2322, 2102212464
    %v2335 = vsel %vm2331, %v2319, %v2334
    %v2336 = vsel %vm2330, %v2333, %v2335
    %v2337 = vsel %vm2329, %v2316, %v2319
    %v2338 = vsel %vm2332, %v2325, 920167782
    %v2339 = vsel %vm2331, %v2322, %v2338
    %v2340 = vsel %vm2330, %v2337, %v2339
    %v2341 = vsel %vm2329, %v2319, %v2322
    %v2342 = vsel %vm2332, %v2328, 1326507024
    %v2343 = vsel %vm2331, %v2325, %v2342
    %v2344 = vsel %vm2330, %v2341, %v2343
    %v2345 = vshll.u32 %v2305, 8
    %v2346 = vmul.u32.u64.compose %v2345, %v2344
    %v2347 = vextract.low.u32 %v2346
    %v2348 = vextract.high.u32 %v2346
    %v2349 = vmul.u32.u64.compose %v2345, %v2340
    %v2350 = vextract.low.u32 %v2349
    %v2351 = vextract.high.u32 %v2349
    %v2352 = vmul.u32 %v2345, %v2336
    %v2353 = vadd.s32 %v2348, %v2350
    %vm2354 = vc.u32 %v2348, %v2350
    %v2355 = vadd.s32 %v2351, 1
    %v2356 = vsel %vm2354, %v2355, %v2351
    %v2357 = vadd.s32 %v2352, %v2356
    %v2358 = vadd.s32 %v2357, 536870912
    %v2359 = vshrl.u32 %v2358, 30
    %v2360 = vshll.u32 %v2359, 30
    %v2361 = vsub.s32 %v2357, %v2360
    %vm2362 = vcmp.lt.s32.totalorder %v2361, 0
    %v2363 = vsub.s32 0, %v2361
    %v2364 = vsel %vm2362, %v2363, %v2361
    %v2365 = vclz %v2364
    %v2366 = vsub.s32 %v2365, 2
    %vm2367 = vcmp.gt.s32.totalorder 0, %v2366
    %v2368 = vsel %vm2367, 0, %v2366
    %v2369 = vsub.s32 32, %v2368
    %v2370 = vshll.u32 %v2361, %v2368
    %v2371 = vshrl.u32 %v2353, %v2369
    %v2372 = vor.u32 %v2370, %v2371
    %v2373 = vsub.s32 4294967266, %v2368
    %v2374 = vadd.s32 %v2373, 127
    %v2375 = vshll.u32 %v2374, 23
    %v2376 = vor.u32 4788187, %v2375
    %v2377 = vand.u32 2147483647, %v2376
    %v2379 = vcvt.s32.f32 %v2372
    %v2380 = vmul.f32 %v2379, %v2377
    %v2381 = vxor.u32 %v2380, 2147483648
    %v2382 = vsel %vm2299, %v2381, %v2380
    %v2383 = vsub.s32 4, %v2359
    %v2384 = vsel %vm2299, %v2383, %v2359
    %v2385 = vsel %vm2298, %v2084, %v2382
    %v2386 = vsel %vm2298, 0, %v2384
    %v2387 = vcosq.f32.pop %v2385
    %v2388 = vsinq.f32.pop %v2385
    %vm2389 = vweird.f32 %v2084
    %v2390 = vadd.s32 %v2386, 3
    %v2391 = vand.u32 %v2390, 3
    %vm2392 = vcmp.lt.s32.totalorder %v2391, 2
    %vm2393 = vcmp.eq.s32.totalorder %v2391, 0
    %v2394 = vxor.u32 %v2388, 2147483648
    %v2395 = vsel %vm2393, %v2387, %v2394
    %vm2396 = vcmp.eq.s32.totalorder %v2391, 2
    %v2397 = vxor.u32 %v2387, 2147483648
    %v2398 = vsel %vm2396, %v2397, %v2388
    %v2399 = vsel %vm2392, %v2395, %v2398
    %v2400 = vsel %vm2389, nan, %v2399
    %v2401 = vand.u32 2147483647, %v2171
    %vm2402 = vcmp.le.f32.partialorder %v2401, 0.7853982
    %vm2403 = vcmp.lt.s32.totalorder %v2171, 0
    %v2404 = vand.u32 %v2171, 2139095040
    %v2405 = vshrl.u32 %v2404, 23
    %v2406 = vsub.s32 %v2405, 127
    %v2407 = vand.u32 2147483647, %v2171
    %v2408 = vand.u32 %v2407, 8388607
    %v2409 = vor.u32 %v2408, 8388608
    %v2410 = vsub.s32 0, %v2409
    %v2411 = vadd.s32 %v2406, 1
    %vm2412 = vcmp.gt.s32.totalorder %v2411, 0
    %v2413 = vsel %vm2412, %v2411, 0
    %v2414 = vshrl.u32 %v2413, 5
    %v2415 = vand.u32 %v2413, 31
    %v2416 = vsub.s32 32, %v2415
    %v2417 = vshrl.u32 683565275, %v2416
    %v2418 = vshll.u32 683565275, %v2415
    %v2419 = vshrl.u32 2475754826, %v2416
    %v2420 = vor.u32 %v2418, %v2419
    %v2421 = vshll.u32 2475754826, %v2415
    %v2422 = vshrl.u32 2131351028, %v2416
    %v2423 = vor.u32 %v2421, %v2422
    %v2424 = vshll.u32 2131351028, %v2415
    %v2425 = vshrl.u32 2102212464, %v2416
    %v2426 = vor.u32 %v2424, %v2425
    %v2427 = vshll.u32 2102212464, %v2415
    %v2428 = vshrl.u32 920167782, %v2416
    %v2429 = vor.u32 %v2427, %v2428
    %v2430 = vshll.u32 920167782, %v2415
    %v2431 = vshrl.u32 1326507024, %v2416
    %v2432 = vor.u32 %v2430, %v2431
    %vm2433 = vcmp.lt.s32.totalorder %v2414, 1
    %vm2434 = vcmp.lt.s32.totalorder %v2414, 2
    %vm2435 = vcmp.lt.s32.totalorder %v2414, 3
    %vm2436 = vcmp.lt.s32.totalorder %v2414, 4
    %v2437 = vsel %vm2433, %v2417, %v2420
    %v2438 = vsel %vm2436, %v2426, 2102212464
    %v2439 = vsel %vm2435, %v2423, %v2438
    %v2440 = vsel %vm2434, %v2437, %v2439
    %v2441 = vsel %vm2433, %v2420, %v2423
    %v2442 = vsel %vm2436, %v2429, 920167782
    %v2443 = vsel %vm2435, %v2426, %v2442
    %v2444 = vsel %vm2434, %v2441, %v2443
    %v2445 = vsel %vm2433, %v2423, %v2426
    %v2446 = vsel %vm2436, %v2432, 1326507024
    %v2447 = vsel %vm2435, %v2429, %v2446
    %v2448 = vsel %vm2434, %v2445, %v2447
    %v2449 = vshll.u32 %v2409, 8
    %v2450 = vmul.u32.u64.compose %v2449, %v2448
    %v2451 = vextract.low.u32 %v2450
    %v2452 = vextract.high.u32 %v2450
    %v2453 = vmul.u32.u64.compose %v2449, %v2444
    %v2454 = vextract.low.u32 %v2453
    %v2455 = vextract.high.u32 %v2453
    %v2456 = vmul.u32 %v2449, %v2440
    %v2457 = vadd.s32 %v2452, %v2454
    %vm2458 = vc.u32 %v2452, %v2454
    %v2459 = vadd.s32 %v2455, 1
    %v2460 = vsel %vm2458, %v2459, %v2455
    %v2461 = vadd.s32 %v2456, %v2460
    %v2462 = vadd.s32 %v2461, 536870912
    %v2463 = vshrl.u32 %v2462, 30
    %v2464 = vshll.u32 %v2463, 30
    %v2465 = vsub.s32 %v2461, %v2464
    %vm2466 = vcmp.lt.s32.totalorder %v2465, 0
    %v2467 = vsub.s32 0, %v2465
    %v2468 = vsel %vm2466, %v2467, %v2465
    %v2469 = vclz %v2468
    %v2470 = vsub.s32 %v2469, 2
    %vm2471 = vcmp.gt.s32.totalorder 0, %v2470
    %v2472 = vsel %vm2471, 0, %v2470
    %v2473 = vsub.s32 32, %v2472
    %v2474 = vshll.u32 %v2465, %v2472
    %v2475 = vshrl.u32 %v2457, %v2473
    %v2476 = vor.u32 %v2474, %v2475
    %v2477 = vsub.s32 4294967266, %v2472
    %v2478 = vadd.s32 %v2477, 127
    %v2479 = vshll.u32 %v2478, 23
    %v2480 = vor.u32 4788187, %v2479
    %v2481 = vand.u32 2147483647, %v2480
    %v2483 = vcvt.s32.f32 %v2476
    %v2484 = vmul.f32 %v2483, %v2481
    %v2485 = vxor.u32 %v2484, 2147483648
    %v2486 = vsel %vm2403, %v2485, %v2484
    %v2487 = vsub.s32 4, %v2463
    %v2488 = vsel %vm2403, %v2487, %v2463
    %v2489 = vsel %vm2402, %v2171, %v2486
    %v2490 = vsel %vm2402, 0, %v2488
    %v2491 = vcosq.f32.pop %v2489
    %v2492 = vsinq.f32.pop %v2489
    %vm2493 = vweird.f32 %v2171
    %v2494 = vadd.s32 %v2490, 3
    %v2495 = vand.u32 %v2494, 3
    %vm2496 = vcmp.lt.s32.totalorder %v2495, 2
    %vm2497 = vcmp.eq.s32.totalorder %v2495, 0
    %v2498 = vxor.u32 %v2492, 2147483648
    %v2499 = vsel %vm2497, %v2491, %v2498
    %vm2500 = vcmp.eq.s32.totalorder %v2495, 2
    %v2501 = vxor.u32 %v2491, 2147483648
    %v2502 = vsel %vm2500, %v2501, %v2492
    %v2503 = vsel %vm2496, %v2499, %v2502
    %v2504 = vsel %vm2493, nan, %v2503
    %v2505 = vand.u32 2147483647, %v2173
    %vm2506 = vcmp.le.f32.partialorder %v2505, 0.7853982
    %vm2507 = vcmp.lt.s32.totalorder %v2173, 0
    %v2508 = vand.u32 %v2173, 2139095040
    %v2509 = vshrl.u32 %v2508, 23
    %v2510 = vsub.s32 %v2509, 127
    %v2511 = vand.u32 2147483647, %v2173
    %v2512 = vand.u32 %v2511, 8388607
    %v2513 = vor.u32 %v2512, 8388608
    %v2514 = vsub.s32 0, %v2513
    %v2515 = vadd.s32 %v2510, 1
    %vm2516 = vcmp.gt.s32.totalorder %v2515, 0
    %v2517 = vsel %vm2516, %v2515, 0
    %v2518 = vshrl.u32 %v2517, 5
    %v2519 = vand.u32 %v2517, 31
    %v2520 = vsub.s32 32, %v2519
    %v2521 = vshrl.u32 683565275, %v2520
    %v2522 = vshll.u32 683565275, %v2519
    %v2523 = vshrl.u32 2475754826, %v2520
    %v2524 = vor.u32 %v2522, %v2523
    %v2525 = vshll.u32 2475754826, %v2519
    %v2526 = vshrl.u32 2131351028, %v2520
    %v2527 = vor.u32 %v2525, %v2526
    %v2528 = vshll.u32 2131351028, %v2519
    %v2529 = vshrl.u32 2102212464, %v2520
    %v2530 = vor.u32 %v2528, %v2529
    %v2531 = vshll.u32 2102212464, %v2519
    %v2532 = vshrl.u32 920167782, %v2520
    %v2533 = vor.u32 %v2531, %v2532
    %v2534 = vshll.u32 920167782, %v2519
    %v2535 = vshrl.u32 1326507024, %v2520
    %v2536 = vor.u32 %v2534, %v2535
    %vm2537 = vcmp.lt.s32.totalorder %v2518, 1
    %vm2538 = vcmp.lt.s32.totalorder %v2518, 2
    %vm2539 = vcmp.lt.s32.totalorder %v2518, 3
    %vm2540 = vcmp.lt.s32.totalorder %v2518, 4
    %v2541 = vsel %vm2537, %v2521, %v2524
    %v2542 = vsel %vm2540, %v2530, 2102212464
    %v2543 = vsel %vm2539, %v2527, %v2542
    %v2544 = vsel %vm2538, %v2541, %v2543
    %v2545 = vsel %vm2537, %v2524, %v2527
    %v2546 = vsel %vm2540, %v2533, 920167782
    %v2547 = vsel %vm2539, %v2530, %v2546
    %v2548 = vsel %vm2538, %v2545, %v2547
    %v2549 = vsel %vm2537, %v2527, %v2530
    %v2550 = vsel %vm2540, %v2536, 1326507024
    %v2551 = vsel %vm2539, %v2533, %v2550
    %v2552 = vsel %vm2538, %v2549, %v2551
    %v2553 = vshll.u32 %v2513, 8
    %v2554 = vmul.u32.u64.compose %v2553, %v2552
    %v2555 = vextract.low.u32 %v2554
    %v2556 = vextract.high.u32 %v2554
    %v2557 = vmul.u32.u64.compose %v2553, %v2548
    %v2558 = vextract.low.u32 %v2557
    %v2559 = vextract.high.u32 %v2557
    %v2560 = vmul.u32 %v2553, %v2544
    %v2561 = vadd.s32 %v2556, %v2558
    %vm2562 = vc.u32 %v2556, %v2558
    %v2563 = vadd.s32 %v2559, 1
    %v2564 = vsel %vm2562, %v2563, %v2559
    %v2565 = vadd.s32 %v2560, %v2564
    %v2566 = vadd.s32 %v2565, 536870912
    %v2567 = vshrl.u32 %v2566, 30
    %v2568 = vshll.u32 %v2567, 30
    %v2569 = vsub.s32 %v2565, %v2568
    %vm2570 = vcmp.lt.s32.totalorder %v2569, 0
    %v2571 = vsub.s32 0, %v2569
    %v2572 = vsel %vm2570, %v2571, %v2569
    %v2573 = vclz %v2572
    %v2574 = vsub.s32 %v2573, 2
    %vm2575 = vcmp.gt.s32.totalorder 0, %v2574
    %v2576 = vsel %vm2575, 0, %v2574
    %v2577 = vsub.s32 32, %v2576
    %v2578 = vshll.u32 %v2569, %v2576
    %v2579 = vshrl.u32 %v2561, %v2577
    %v2580 = vor.u32 %v2578, %v2579
    %v2581 = vsub.s32 4294967266, %v2576
    %v2582 = vadd.s32 %v2581, 127
    %v2583 = vshll.u32 %v2582, 23
    %v2584 = vor.u32 4788187, %v2583
    %v2585 = vand.u32 2147483647, %v2584
    %v2587 = vcvt.s32.f32 %v2580
    %v2588 = vmul.f32 %v2587, %v2585
    %v2589 = vxor.u32 %v2588, 2147483648
    %v2590 = vsel %vm2507, %v2589, %v2588
    %v2591 = vsub.s32 4, %v2567
    %v2592 = vsel %vm2507, %v2591, %v2567
    %v2593 = vsel %vm2506, %v2173, %v2590
    %v2594 = vsel %vm2506, 0, %v2592
    %v2595 = vcosq.f32.pop %v2593
    %v2596 = vsinq.f32.pop %v2593
    %vm2597 = vweird.f32 %v2173
    %v2598 = vadd.s32 %v2594, 3
    %v2599 = vand.u32 %v2598, 3
    %vm2600 = vcmp.lt.s32.totalorder %v2599, 2
    %vm2601 = vcmp.eq.s32.totalorder %v2599, 0
    %v2602 = vxor.u32 %v2596, 2147483648
    %v2603 = vsel %vm2601, %v2595, %v2602
    %vm2604 = vcmp.eq.s32.totalorder %v2599, 2
    %v2605 = vxor.u32 %v2595, 2147483648
    %v2606 = vsel %vm2604, %v2605, %v2596
    %v2607 = vsel %vm2600, %v2603, %v2606
    %v2608 = vsel %vm2597, nan, %v2607
    %v2609 = vand.u32 2147483647, %v2088
    %vm2610 = vcmp.le.f32.partialorder %v2609, 0.7853982
    %vm2611 = vcmp.lt.s32.totalorder %v2088, 0
    %v2612 = vand.u32 %v2088, 2139095040
    %v2613 = vshrl.u32 %v2612, 23
    %v2614 = vsub.s32 %v2613, 127
    %v2615 = vand.u32 2147483647, %v2088
    %v2616 = vand.u32 %v2615, 8388607
    %v2617 = vor.u32 %v2616, 8388608
    %v2618 = vsub.s32 0, %v2617
    %v2619 = vadd.s32 %v2614, 1
    %vm2620 = vcmp.gt.s32.totalorder %v2619, 0
    %v2621 = vsel %vm2620, %v2619, 0
    %v2622 = vshrl.u32 %v2621, 5
    %v2623 = vand.u32 %v2621, 31
    %v2624 = vsub.s32 32, %v2623
    %v2625 = vshrl.u32 683565275, %v2624
    %v2626 = vshll.u32 683565275, %v2623
    %v2627 = vshrl.u32 2475754826, %v2624
    %v2628 = vor.u32 %v2626, %v2627
    %v2629 = vshll.u32 2475754826, %v2623
    %v2630 = vshrl.u32 2131351028, %v2624
    %v2631 = vor.u32 %v2629, %v2630
    %v2632 = vshll.u32 2131351028, %v2623
    %v2633 = vshrl.u32 2102212464, %v2624
    %v2634 = vor.u32 %v2632, %v2633
    %v2635 = vshll.u32 2102212464, %v2623
    %v2636 = vshrl.u32 920167782, %v2624
    %v2637 = vor.u32 %v2635, %v2636
    %v2638 = vshll.u32 920167782, %v2623
    %v2639 = vshrl.u32 1326507024, %v2624
    %v2640 = vor.u32 %v2638, %v2639
    %vm2641 = vcmp.lt.s32.totalorder %v2622, 1
    %vm2642 = vcmp.lt.s32.totalorder %v2622, 2
    %vm2643 = vcmp.lt.s32.totalorder %v2622, 3
    %vm2644 = vcmp.lt.s32.totalorder %v2622, 4
    %v2645 = vsel %vm2641, %v2625, %v2628
    %v2646 = vsel %vm2644, %v2634, 2102212464
    %v2647 = vsel %vm2643, %v2631, %v2646
    %v2648 = vsel %vm2642, %v2645, %v2647
    %v2649 = vsel %vm2641, %v2628, %v2631
    %v2650 = vsel %vm2644, %v2637, 920167782
    %v2651 = vsel %vm2643, %v2634, %v2650
    %v2652 = vsel %vm2642, %v2649, %v2651
    %v2653 = vsel %vm2641, %v2631, %v2634
    %v2654 = vsel %vm2644, %v2640, 1326507024
    %v2655 = vsel %vm2643, %v2637, %v2654
    %v2656 = vsel %vm2642, %v2653, %v2655
    %v2657 = vshll.u32 %v2617, 8
    %v2658 = vmul.u32.u64.compose %v2657, %v2656
    %v2659 = vextract.low.u32 %v2658
    %v2660 = vextract.high.u32 %v2658
    %v2661 = vmul.u32.u64.compose %v2657, %v2652
    %v2662 = vextract.low.u32 %v2661
    %v2663 = vextract.high.u32 %v2661
    %v2664 = vmul.u32 %v2657, %v2648
    %v2665 = vadd.s32 %v2660, %v2662
    %vm2666 = vc.u32 %v2660, %v2662
    %v2667 = vadd.s32 %v2663, 1
    %v2668 = vsel %vm2666, %v2667, %v2663
    %v2669 = vadd.s32 %v2664, %v2668
    %v2670 = vadd.s32 %v2669, 536870912
    %v2671 = vshrl.u32 %v2670, 30
    %v2672 = vshll.u32 %v2671, 30
    %v2673 = vsub.s32 %v2669, %v2672
    %vm2674 = vcmp.lt.s32.totalorder %v2673, 0
    %v2675 = vsub.s32 0, %v2673
    %v2676 = vsel %vm2674, %v2675, %v2673
    %v2677 = vclz %v2676
    %v2678 = vsub.s32 %v2677, 2
    %vm2679 = vcmp.gt.s32.totalorder 0, %v2678
    %v2680 = vsel %vm2679, 0, %v2678
    %v2681 = vsub.s32 32, %v2680
    %v2682 = vshll.u32 %v2673, %v2680
    %v2683 = vshrl.u32 %v2665, %v2681
    %v2684 = vor.u32 %v2682, %v2683
    %v2685 = vsub.s32 4294967266, %v2680
    %v2686 = vadd.s32 %v2685, 127
    %v2687 = vshll.u32 %v2686, 23
    %v2688 = vor.u32 4788187, %v2687
    %v2689 = vand.u32 2147483647, %v2688
    %v2691 = vcvt.s32.f32 %v2684
    %v2692 = vmul.f32 %v2691, %v2689
    %v2693 = vxor.u32 %v2692, 2147483648
    %v2694 = vsel %vm2611, %v2693, %v2692
    %v2695 = vsub.s32 4, %v2671
    %v2696 = vsel %vm2611, %v2695, %v2671
    %v2697 = vsel %vm2610, %v2088, %v2694
    %v2698 = vsel %vm2610, 0, %v2696
    %v2699 = vcosq.f32.pop %v2697
    %v2700 = vsinq.f32.pop %v2697
    %vm2701 = vweird.f32 %v2088
    %v2702 = vadd.s32 %v2698, 3
    %v2703 = vand.u32 %v2702, 3
    %vm2704 = vcmp.lt.s32.totalorder %v2703, 2
    %vm2705 = vcmp.eq.s32.totalorder %v2703, 0
    %v2706 = vxor.u32 %v2700, 2147483648
    %v2707 = vsel %vm2705, %v2699, %v2706
    %vm2708 = vcmp.eq.s32.totalorder %v2703, 2
    %v2709 = vxor.u32 %v2699, 2147483648
    %v2710 = vsel %vm2708, %v2709, %v2700
    %v2711 = vsel %vm2704, %v2707, %v2710
    %v2712 = vsel %vm2701, nan, %v2711
    %v2713 = vand.u32 2147483647, %v2090
    %vm2714 = vcmp.le.f32.partialorder %v2713, 0.7853982
    %vm2715 = vcmp.lt.s32.totalorder %v2090, 0
    %v2716 = vand.u32 %v2090, 2139095040
    %v2717 = vshrl.u32 %v2716, 23
    %v2718 = vsub.s32 %v2717, 127
    %v2719 = vand.u32 2147483647, %v2090
    %v2720 = vand.u32 %v2719, 8388607
    %v2721 = vor.u32 %v2720, 8388608
    %v2722 = vsub.s32 0, %v2721
    %v2723 = vadd.s32 %v2718, 1
    %vm2724 = vcmp.gt.s32.totalorder %v2723, 0
    %v2725 = vsel %vm2724, %v2723, 0
    %v2726 = vshrl.u32 %v2725, 5
    %v2727 = vand.u32 %v2725, 31
    %v2728 = vsub.s32 32, %v2727
    %v2729 = vshrl.u32 683565275, %v2728
    %v2730 = vshll.u32 683565275, %v2727
    %v2731 = vshrl.u32 2475754826, %v2728
    %v2732 = vor.u32 %v2730, %v2731
    %v2733 = vshll.u32 2475754826, %v2727
    %v2734 = vshrl.u32 2131351028, %v2728
    %v2735 = vor.u32 %v2733, %v2734
    %v2736 = vshll.u32 2131351028, %v2727
    %v2737 = vshrl.u32 2102212464, %v2728
    %v2738 = vor.u32 %v2736, %v2737
    %v2739 = vshll.u32 2102212464, %v2727
    %v2740 = vshrl.u32 920167782, %v2728
    %v2741 = vor.u32 %v2739, %v2740
    %v2742 = vshll.u32 920167782, %v2727
    %v2743 = vshrl.u32 1326507024, %v2728
    %v2744 = vor.u32 %v2742, %v2743
    %vm2745 = vcmp.lt.s32.totalorder %v2726, 1
    %vm2746 = vcmp.lt.s32.totalorder %v2726, 2
    %vm2747 = vcmp.lt.s32.totalorder %v2726, 3
    %vm2748 = vcmp.lt.s32.totalorder %v2726, 4
    %v2749 = vsel %vm2745, %v2729, %v2732
    %v2750 = vsel %vm2748, %v2738, 2102212464
    %v2751 = vsel %vm2747, %v2735, %v2750
    %v2752 = vsel %vm2746, %v2749, %v2751
    %v2753 = vsel %vm2745, %v2732, %v2735
    %v2754 = vsel %vm2748, %v2741, 920167782
    %v2755 = vsel %vm2747, %v2738, %v2754
    %v2756 = vsel %vm2746, %v2753, %v2755
    %v2757 = vsel %vm2745, %v2735, %v2738
    %v2758 = vsel %vm2748, %v2744, 1326507024
    %v2759 = vsel %vm2747, %v2741, %v2758
    %v2760 = vsel %vm2746, %v2757, %v2759
    %v2761 = vshll.u32 %v2721, 8
    %v2762 = vmul.u32.u64.compose %v2761, %v2760
    %v2763 = vextract.low.u32 %v2762
    %v2764 = vextract.high.u32 %v2762
    %v2765 = vmul.u32.u64.compose %v2761, %v2756
    %v2766 = vextract.low.u32 %v2765
    %v2767 = vextract.high.u32 %v2765
    %v2768 = vmul.u32 %v2761, %v2752
    %v2769 = vadd.s32 %v2764, %v2766
    %vm2770 = vc.u32 %v2764, %v2766
    %v2771 = vadd.s32 %v2767, 1
    %v2772 = vsel %vm2770, %v2771, %v2767
    %v2773 = vadd.s32 %v2768, %v2772
    %v2774 = vadd.s32 %v2773, 536870912
    %v2775 = vshrl.u32 %v2774, 30
    %v2776 = vshll.u32 %v2775, 30
    %v2777 = vsub.s32 %v2773, %v2776
    %vm2778 = vcmp.lt.s32.totalorder %v2777, 0
    %v2779 = vsub.s32 0, %v2777
    %v2780 = vsel %vm2778, %v2779, %v2777
    %v2781 = vclz %v2780
    %v2782 = vsub.s32 %v2781, 2
    %vm2783 = vcmp.gt.s32.totalorder 0, %v2782
    %v2784 = vsel %vm2783, 0, %v2782
    %v2785 = vsub.s32 32, %v2784
    %v2786 = vshll.u32 %v2777, %v2784
    %v2787 = vshrl.u32 %v2769, %v2785
    %v2788 = vor.u32 %v2786, %v2787
    %v2789 = vsub.s32 4294967266, %v2784
    %v2790 = vadd.s32 %v2789, 127
    %v2791 = vshll.u32 %v2790, 23
    %v2792 = vor.u32 4788187, %v2791
    %v2793 = vand.u32 2147483647, %v2792
    %v2795 = vcvt.s32.f32 %v2788
    %v2796 = vmul.f32 %v2795, %v2793
    %v2797 = vxor.u32 %v2796, 2147483648
    %v2798 = vsel %vm2715, %v2797, %v2796
    %v2799 = vsub.s32 4, %v2775
    %v2800 = vsel %vm2715, %v2799, %v2775
    %v2801 = vsel %vm2714, %v2090, %v2798
    %v2802 = vsel %vm2714, 0, %v2800
    %v2803 = vcosq.f32.pop %v2801
    %v2804 = vsinq.f32.pop %v2801
    %vm2805 = vweird.f32 %v2090
    %v2806 = vadd.s32 %v2802, 3
    %v2807 = vand.u32 %v2806, 3
    %vm2808 = vcmp.lt.s32.totalorder %v2807, 2
    %vm2809 = vcmp.eq.s32.totalorder %v2807, 0
    %v2810 = vxor.u32 %v2804, 2147483648
    %v2811 = vsel %vm2809, %v2803, %v2810
    %vm2812 = vcmp.eq.s32.totalorder %v2807, 2
    %v2813 = vxor.u32 %v2803, 2147483648
    %v2814 = vsel %vm2812, %v2813, %v2804
    %v2815 = vsel %vm2808, %v2811, %v2814
    %v2816 = vsel %vm2805, nan, %v2815
    %v2817 = vand.u32 2147483647, %v2177
    %vm2818 = vcmp.le.f32.partialorder %v2817, 0.7853982
    %vm2819 = vcmp.lt.s32.totalorder %v2177, 0
    %v2820 = vand.u32 %v2177, 2139095040
    %v2821 = vshrl.u32 %v2820, 23
    %v2822 = vsub.s32 %v2821, 127
    %v2823 = vand.u32 2147483647, %v2177
    %v2824 = vand.u32 %v2823, 8388607
    %v2825 = vor.u32 %v2824, 8388608
    %v2826 = vsub.s32 0, %v2825
    %v2827 = vadd.s32 %v2822, 1
    %vm2828 = vcmp.gt.s32.totalorder %v2827, 0
    %v2829 = vsel %vm2828, %v2827, 0
    %v2830 = vshrl.u32 %v2829, 5
    %v2831 = vand.u32 %v2829, 31
    %v2832 = vsub.s32 32, %v2831
    %v2833 = vshrl.u32 683565275, %v2832
    %v2834 = vshll.u32 683565275, %v2831
    %v2835 = vshrl.u32 2475754826, %v2832
    %v2836 = vor.u32 %v2834, %v2835
    %v2837 = vshll.u32 2475754826, %v2831
    %v2838 = vshrl.u32 2131351028, %v2832
    %v2839 = vor.u32 %v2837, %v2838
    %v2840 = vshll.u32 2131351028, %v2831
    %v2841 = vshrl.u32 2102212464, %v2832
    %v2842 = vor.u32 %v2840, %v2841
    %v2843 = vshll.u32 2102212464, %v2831
    %v2844 = vshrl.u32 920167782, %v2832
    %v2845 = vor.u32 %v2843, %v2844
    %v2846 = vshll.u32 920167782, %v2831
    %v2847 = vshrl.u32 1326507024, %v2832
    %v2848 = vor.u32 %v2846, %v2847
    %vm2849 = vcmp.lt.s32.totalorder %v2830, 1
    %vm2850 = vcmp.lt.s32.totalorder %v2830, 2
    %vm2851 = vcmp.lt.s32.totalorder %v2830, 3
    %vm2852 = vcmp.lt.s32.totalorder %v2830, 4
    %v2853 = vsel %vm2849, %v2833, %v2836
    %v2854 = vsel %vm2852, %v2842, 2102212464
    %v2855 = vsel %vm2851, %v2839, %v2854
    %v2856 = vsel %vm2850, %v2853, %v2855
    %v2857 = vsel %vm2849, %v2836, %v2839
    %v2858 = vsel %vm2852, %v2845, 920167782
    %v2859 = vsel %vm2851, %v2842, %v2858
    %v2860 = vsel %vm2850, %v2857, %v2859
    %v2861 = vsel %vm2849, %v2839, %v2842
    %v2862 = vsel %vm2852, %v2848, 1326507024
    %v2863 = vsel %vm2851, %v2845, %v2862
    %v2864 = vsel %vm2850, %v2861, %v2863
    %v2865 = vshll.u32 %v2825, 8
    %v2866 = vmul.u32.u64.compose %v2865, %v2864
    %v2867 = vextract.low.u32 %v2866
    %v2868 = vextract.high.u32 %v2866
    %v2869 = vmul.u32.u64.compose %v2865, %v2860
    %v2870 = vextract.low.u32 %v2869
    %v2871 = vextract.high.u32 %v2869
    %v2872 = vmul.u32 %v2865, %v2856
    %v2873 = vadd.s32 %v2868, %v2870
    %vm2874 = vc.u32 %v2868, %v2870
    %v2875 = vadd.s32 %v2871, 1
    %v2876 = vsel %vm2874, %v2875, %v2871
    %v2877 = vadd.s32 %v2872, %v2876
    %v2878 = vadd.s32 %v2877, 536870912
    %v2879 = vshrl.u32 %v2878, 30
    %v2880 = vshll.u32 %v2879, 30
    %v2881 = vsub.s32 %v2877, %v2880
    %vm2882 = vcmp.lt.s32.totalorder %v2881, 0
    %v2883 = vsub.s32 0, %v2881
    %v2884 = vsel %vm2882, %v2883, %v2881
    %v2885 = vclz %v2884
    %v2886 = vsub.s32 %v2885, 2
    %vm2887 = vcmp.gt.s32.totalorder 0, %v2886
    %v2888 = vsel %vm2887, 0, %v2886
    %v2889 = vsub.s32 32, %v2888
    %v2890 = vshll.u32 %v2881, %v2888
    %v2891 = vshrl.u32 %v2873, %v2889
    %v2892 = vor.u32 %v2890, %v2891
    %v2893 = vsub.s32 4294967266, %v2888
    %v2894 = vadd.s32 %v2893, 127
    %v2895 = vshll.u32 %v2894, 23
    %v2896 = vor.u32 4788187, %v2895
    %v2897 = vand.u32 2147483647, %v2896
    %v2899 = vcvt.s32.f32 %v2892
    %v2900 = vmul.f32 %v2899, %v2897
    %v2901 = vxor.u32 %v2900, 2147483648
    %v2902 = vsel %vm2819, %v2901, %v2900
    %v2903 = vsub.s32 4, %v2879
    %v2904 = vsel %vm2819, %v2903, %v2879
    %v2905 = vsel %vm2818, %v2177, %v2902
    %v2906 = vsel %vm2818, 0, %v2904
    %v2907 = vcosq.f32.pop %v2905
    %v2908 = vsinq.f32.pop %v2905
    %vm2909 = vweird.f32 %v2177
    %v2910 = vadd.s32 %v2906, 3
    %v2911 = vand.u32 %v2910, 3
    %vm2912 = vcmp.lt.s32.totalorder %v2911, 2
    %vm2913 = vcmp.eq.s32.totalorder %v2911, 0
    %v2914 = vxor.u32 %v2908, 2147483648
    %v2915 = vsel %vm2913, %v2907, %v2914
    %vm2916 = vcmp.eq.s32.totalorder %v2911, 2
    %v2917 = vxor.u32 %v2907, 2147483648
    %v2918 = vsel %vm2916, %v2917, %v2908
    %v2919 = vsel %vm2912, %v2915, %v2918
    %v2920 = vsel %vm2909, nan, %v2919
    %v2921 = vand.u32 2147483647, %v2179
    %vm2922 = vcmp.le.f32.partialorder %v2921, 0.7853982
    %vm2923 = vcmp.lt.s32.totalorder %v2179, 0
    %v2924 = vand.u32 %v2179, 2139095040
    %v2925 = vshrl.u32 %v2924, 23
    %v2926 = vsub.s32 %v2925, 127
    %v2927 = vand.u32 2147483647, %v2179
    %v2928 = vand.u32 %v2927, 8388607
    %v2929 = vor.u32 %v2928, 8388608
    %v2930 = vsub.s32 0, %v2929
    %v2931 = vadd.s32 %v2926, 1
    %vm2932 = vcmp.gt.s32.totalorder %v2931, 0
    %v2933 = vsel %vm2932, %v2931, 0
    %v2934 = vshrl.u32 %v2933, 5
    %v2935 = vand.u32 %v2933, 31
    %v2936 = vsub.s32 32, %v2935
    %v2937 = vshrl.u32 683565275, %v2936
    %v2938 = vshll.u32 683565275, %v2935
    %v2939 = vshrl.u32 2475754826, %v2936
    %v2940 = vor.u32 %v2938, %v2939
    %v2941 = vshll.u32 2475754826, %v2935
    %v2942 = vshrl.u32 2131351028, %v2936
    %v2943 = vor.u32 %v2941, %v2942
    %v2944 = vshll.u32 2131351028, %v2935
    %v2945 = vshrl.u32 2102212464, %v2936
    %v2946 = vor.u32 %v2944, %v2945
    %v2947 = vshll.u32 2102212464, %v2935
    %v2948 = vshrl.u32 920167782, %v2936
    %v2949 = vor.u32 %v2947, %v2948
    %v2950 = vshll.u32 920167782, %v2935
    %v2951 = vshrl.u32 1326507024, %v2936
    %v2952 = vor.u32 %v2950, %v2951
    %vm2953 = vcmp.lt.s32.totalorder %v2934, 1
    %vm2954 = vcmp.lt.s32.totalorder %v2934, 2
    %vm2955 = vcmp.lt.s32.totalorder %v2934, 3
    %vm2956 = vcmp.lt.s32.totalorder %v2934, 4
    %v2957 = vsel %vm2953, %v2937, %v2940
    %v2958 = vsel %vm2956, %v2946, 2102212464
    %v2959 = vsel %vm2955, %v2943, %v2958
    %v2960 = vsel %vm2954, %v2957, %v2959
    %v2961 = vsel %vm2953, %v2940, %v2943
    %v2962 = vsel %vm2956, %v2949, 920167782
    %v2963 = vsel %vm2955, %v2946, %v2962
    %v2964 = vsel %vm2954, %v2961, %v2963
    %v2965 = vsel %vm2953, %v2943, %v2946
    %v2966 = vsel %vm2956, %v2952, 1326507024
    %v2967 = vsel %vm2955, %v2949, %v2966
    %v2968 = vsel %vm2954, %v2965, %v2967
    %v2969 = vshll.u32 %v2929, 8
    %v2970 = vmul.u32.u64.compose %v2969, %v2968
    %v2971 = vextract.low.u32 %v2970
    %v2972 = vextract.high.u32 %v2970
    %v2973 = vmul.u32.u64.compose %v2969, %v2964
    %v2974 = vextract.low.u32 %v2973
    %v2975 = vextract.high.u32 %v2973
    %v2976 = vmul.u32 %v2969, %v2960
    %v2977 = vadd.s32 %v2972, %v2974
    %vm2978 = vc.u32 %v2972, %v2974
    %v2979 = vadd.s32 %v2975, 1
    %v2980 = vsel %vm2978, %v2979, %v2975
    %v2981 = vadd.s32 %v2976, %v2980
    %v2982 = vadd.s32 %v2981, 536870912
    %v2983 = vshrl.u32 %v2982, 30
    %v2984 = vshll.u32 %v2983, 30
    %v2985 = vsub.s32 %v2981, %v2984
    %vm2986 = vcmp.lt.s32.totalorder %v2985, 0
    %v2987 = vsub.s32 0, %v2985
    %v2988 = vsel %vm2986, %v2987, %v2985
    %v2989 = vclz %v2988
    %v2990 = vsub.s32 %v2989, 2
    %vm2991 = vcmp.gt.s32.totalorder 0, %v2990
    %v2992 = vsel %vm2991, 0, %v2990
    %v2993 = vsub.s32 32, %v2992
    %v2994 = vshll.u32 %v2985, %v2992
    %v2995 = vshrl.u32 %v2977, %v2993
    %v2996 = vor.u32 %v2994, %v2995
    %v2997 = vsub.s32 4294967266, %v2992
    %v2998 = vadd.s32 %v2997, 127
    %v2999 = vshll.u32 %v2998, 23
    %v3000 = vor.u32 4788187, %v2999
    %v3001 = vand.u32 2147483647, %v3000
    %v3003 = vcvt.s32.f32 %v2996
    %v3004 = vmul.f32 %v3003, %v3001
    %v3005 = vxor.u32 %v3004, 2147483648
    %v3006 = vsel %vm2923, %v3005, %v3004
    %v3007 = vsub.s32 4, %v2983
    %v3008 = vsel %vm2923, %v3007, %v2983
    %v3009 = vsel %vm2922, %v2179, %v3006
    %v3010 = vsel %vm2922, 0, %v3008
    %v3011 = vcosq.f32.pop %v3009
    %v3012 = vsinq.f32.pop %v3009
    %vm3013 = vweird.f32 %v2179
    %v3014 = vadd.s32 %v3010, 3
    %v3015 = vand.u32 %v3014, 3
    %vm3016 = vcmp.lt.s32.totalorder %v3015, 2
    %vm3017 = vcmp.eq.s32.totalorder %v3015, 0
    %v3018 = vxor.u32 %v3012, 2147483648
    %v3019 = vsel %vm3017, %v3011, %v3018
    %vm3020 = vcmp.eq.s32.totalorder %v3015, 2
    %v3021 = vxor.u32 %v3011, 2147483648
    %v3022 = vsel %vm3020, %v3021, %v3012
    %v3023 = vsel %vm3016, %v3019, %v3022
    %v3024 = vsel %vm3013, nan, %v3023
    %v3025 = vand.u32 2147483647, %v2094
    %vm3026 = vcmp.le.f32.partialorder %v3025, 0.7853982
    %vm3027 = vcmp.lt.s32.totalorder %v2094, 0
    %v3028 = vand.u32 %v2094, 2139095040
    %v3029 = vshrl.u32 %v3028, 23
    %v3030 = vsub.s32 %v3029, 127
    %v3031 = vand.u32 2147483647, %v2094
    %v3032 = vand.u32 %v3031, 8388607
    %v3033 = vor.u32 %v3032, 8388608
    %v3034 = vsub.s32 0, %v3033
    %v3035 = vadd.s32 %v3030, 1
    %vm3036 = vcmp.gt.s32.totalorder %v3035, 0
    %v3037 = vsel %vm3036, %v3035, 0
    %v3038 = vshrl.u32 %v3037, 5
    %v3039 = vand.u32 %v3037, 31
    %v3040 = vsub.s32 32, %v3039
    %v3041 = vshrl.u32 683565275, %v3040
    %v3042 = vshll.u32 683565275, %v3039
    %v3043 = vshrl.u32 2475754826, %v3040
    %v3044 = vor.u32 %v3042, %v3043
    %v3045 = vshll.u32 2475754826, %v3039
    %v3046 = vshrl.u32 2131351028, %v3040
    %v3047 = vor.u32 %v3045, %v3046
    %v3048 = vshll.u32 2131351028, %v3039
    %v3049 = vshrl.u32 2102212464, %v3040
    %v3050 = vor.u32 %v3048, %v3049
    %v3051 = vshll.u32 2102212464, %v3039
    %v3052 = vshrl.u32 920167782, %v3040
    %v3053 = vor.u32 %v3051, %v3052
    %v3054 = vshll.u32 920167782, %v3039
    %v3055 = vshrl.u32 1326507024, %v3040
    %v3056 = vor.u32 %v3054, %v3055
    %vm3057 = vcmp.lt.s32.totalorder %v3038, 1
    %vm3058 = vcmp.lt.s32.totalorder %v3038, 2
    %vm3059 = vcmp.lt.s32.totalorder %v3038, 3
    %vm3060 = vcmp.lt.s32.totalorder %v3038, 4
    %v3061 = vsel %vm3057, %v3041, %v3044
    %v3062 = vsel %vm3060, %v3050, 2102212464
    %v3063 = vsel %vm3059, %v3047, %v3062
    %v3064 = vsel %vm3058, %v3061, %v3063
    %v3065 = vsel %vm3057, %v3044, %v3047
    %v3066 = vsel %vm3060, %v3053, 920167782
    %v3067 = vsel %vm3059, %v3050, %v3066
    %v3068 = vsel %vm3058, %v3065, %v3067
    %v3069 = vsel %vm3057, %v3047, %v3050
    %v3070 = vsel %vm3060, %v3056, 1326507024
    %v3071 = vsel %vm3059, %v3053, %v3070
    %v3072 = vsel %vm3058, %v3069, %v3071
    %v3073 = vshll.u32 %v3033, 8
    %v3074 = vmul.u32.u64.compose %v3073, %v3072
    %v3075 = vextract.low.u32 %v3074
    %v3076 = vextract.high.u32 %v3074
    %v3077 = vmul.u32.u64.compose %v3073, %v3068
    %v3078 = vextract.low.u32 %v3077
    %v3079 = vextract.high.u32 %v3077
    %v3080 = vmul.u32 %v3073, %v3064
    %v3081 = vadd.s32 %v3076, %v3078
    %vm3082 = vc.u32 %v3076, %v3078
    %v3083 = vadd.s32 %v3079, 1
    %v3084 = vsel %vm3082, %v3083, %v3079
    %v3085 = vadd.s32 %v3080, %v3084
    %v3086 = vadd.s32 %v3085, 536870912
    %v3087 = vshrl.u32 %v3086, 30
    %v3088 = vshll.u32 %v3087, 30
    %v3089 = vsub.s32 %v3085, %v3088
    %vm3090 = vcmp.lt.s32.totalorder %v3089, 0
    %v3091 = vsub.s32 0, %v3089
    %v3092 = vsel %vm3090, %v3091, %v3089
    %v3093 = vclz %v3092
    %v3094 = vsub.s32 %v3093, 2
    %vm3095 = vcmp.gt.s32.totalorder 0, %v3094
    %v3096 = vsel %vm3095, 0, %v3094
    %v3097 = vsub.s32 32, %v3096
    %v3098 = vshll.u32 %v3089, %v3096
    %v3099 = vshrl.u32 %v3081, %v3097
    %v3100 = vor.u32 %v3098, %v3099
    %v3101 = vsub.s32 4294967266, %v3096
    %v3102 = vadd.s32 %v3101, 127
    %v3103 = vshll.u32 %v3102, 23
    %v3104 = vor.u32 4788187, %v3103
    %v3105 = vand.u32 2147483647, %v3104
    %v3107 = vcvt.s32.f32 %v3100
    %v3108 = vmul.f32 %v3107, %v3105
    %v3109 = vxor.u32 %v3108, 2147483648
    %v3110 = vsel %vm3027, %v3109, %v3108
    %v3111 = vsub.s32 4, %v3087
    %v3112 = vsel %vm3027, %v3111, %v3087
    %v3113 = vsel %vm3026, %v2094, %v3110
    %v3114 = vsel %vm3026, 0, %v3112
    %v3115 = vcosq.f32.pop %v3113
    %v3116 = vsinq.f32.pop %v3113
    %vm3117 = vweird.f32 %v2094
    %v3118 = vadd.s32 %v3114, 3
    %v3119 = vand.u32 %v3118, 3
    %vm3120 = vcmp.lt.s32.totalorder %v3119, 2
    %vm3121 = vcmp.eq.s32.totalorder %v3119, 0
    %v3122 = vxor.u32 %v3116, 2147483648
    %v3123 = vsel %vm3121, %v3115, %v3122
    %vm3124 = vcmp.eq.s32.totalorder %v3119, 2
    %v3125 = vxor.u32 %v3115, 2147483648
    %v3126 = vsel %vm3124, %v3125, %v3116
    %v3127 = vsel %vm3120, %v3123, %v3126
    %v3128 = vsel %vm3117, nan, %v3127
    %v3129 = vand.u32 2147483647, %v2096
    %vm3130 = vcmp.le.f32.partialorder %v3129, 0.7853982
    %vm3131 = vcmp.lt.s32.totalorder %v2096, 0
    %v3132 = vand.u32 %v2096, 2139095040
    %v3133 = vshrl.u32 %v3132, 23
    %v3134 = vsub.s32 %v3133, 127
    %v3135 = vand.u32 2147483647, %v2096
    %v3136 = vand.u32 %v3135, 8388607
    %v3137 = vor.u32 %v3136, 8388608
    %v3138 = vsub.s32 0, %v3137
    %v3139 = vadd.s32 %v3134, 1
    %vm3140 = vcmp.gt.s32.totalorder %v3139, 0
    %v3141 = vsel %vm3140, %v3139, 0
    %v3142 = vshrl.u32 %v3141, 5
    %v3143 = vand.u32 %v3141, 31
    %v3144 = vsub.s32 32, %v3143
    %v3145 = vshrl.u32 683565275, %v3144
    %v3146 = vshll.u32 683565275, %v3143
    %v3147 = vshrl.u32 2475754826, %v3144
    %v3148 = vor.u32 %v3146, %v3147
    %v3149 = vshll.u32 2475754826, %v3143
    %v3150 = vshrl.u32 2131351028, %v3144
    %v3151 = vor.u32 %v3149, %v3150
    %v3152 = vshll.u32 2131351028, %v3143
    %v3153 = vshrl.u32 2102212464, %v3144
    %v3154 = vor.u32 %v3152, %v3153
    %v3155 = vshll.u32 2102212464, %v3143
    %v3156 = vshrl.u32 920167782, %v3144
    %v3157 = vor.u32 %v3155, %v3156
    %v3158 = vshll.u32 920167782, %v3143
    %v3159 = vshrl.u32 1326507024, %v3144
    %v3160 = vor.u32 %v3158, %v3159
    %vm3161 = vcmp.lt.s32.totalorder %v3142, 1
    %vm3162 = vcmp.lt.s32.totalorder %v3142, 2
    %vm3163 = vcmp.lt.s32.totalorder %v3142, 3
    %vm3164 = vcmp.lt.s32.totalorder %v3142, 4
    %v3165 = vsel %vm3161, %v3145, %v3148
    %v3166 = vsel %vm3164, %v3154, 2102212464
    %v3167 = vsel %vm3163, %v3151, %v3166
    %v3168 = vsel %vm3162, %v3165, %v3167
    %v3169 = vsel %vm3161, %v3148, %v3151
    %v3170 = vsel %vm3164, %v3157, 920167782
    %v3171 = vsel %vm3163, %v3154, %v3170
    %v3172 = vsel %vm3162, %v3169, %v3171
    %v3173 = vsel %vm3161, %v3151, %v3154
    %v3174 = vsel %vm3164, %v3160, 1326507024
    %v3175 = vsel %vm3163, %v3157, %v3174
    %v3176 = vsel %vm3162, %v3173, %v3175
    %v3177 = vshll.u32 %v3137, 8
    %v3178 = vmul.u32.u64.compose %v3177, %v3176
    %v3179 = vextract.low.u32 %v3178
    %v3180 = vextract.high.u32 %v3178
    %v3181 = vmul.u32.u64.compose %v3177, %v3172
    %v3182 = vextract.low.u32 %v3181
    %v3183 = vextract.high.u32 %v3181
    %v3184 = vmul.u32 %v3177, %v3168
    %v3185 = vadd.s32 %v3180, %v3182
    %vm3186 = vc.u32 %v3180, %v3182
    %v3187 = vadd.s32 %v3183, 1
    %v3188 = vsel %vm3186, %v3187, %v3183
    %v3189 = vadd.s32 %v3184, %v3188
    %v3190 = vadd.s32 %v3189, 536870912
    %v3191 = vshrl.u32 %v3190, 30
    %v3192 = vshll.u32 %v3191, 30
    %v3193 = vsub.s32 %v3189, %v3192
    %vm3194 = vcmp.lt.s32.totalorder %v3193, 0
    %v3195 = vsub.s32 0, %v3193
    %v3196 = vsel %vm3194, %v3195, %v3193
    %v3197 = vclz %v3196
    %v3198 = vsub.s32 %v3197, 2
    %vm3199 = vcmp.gt.s32.totalorder 0, %v3198
    %v3200 = vsel %vm3199, 0, %v3198
    %v3201 = vsub.s32 32, %v3200
    %v3202 = vshll.u32 %v3193, %v3200
    %v3203 = vshrl.u32 %v3185, %v3201
    %v3204 = vor.u32 %v3202, %v3203
    %v3205 = vsub.s32 4294967266, %v3200
    %v3206 = vadd.s32 %v3205, 127
    %v3207 = vshll.u32 %v3206, 23
    %v3208 = vor.u32 4788187, %v3207
    %v3209 = vand.u32 2147483647, %v3208
    %v3211 = vcvt.s32.f32 %v3204
    %v3212 = vmul.f32 %v3211, %v3209
    %v3213 = vxor.u32 %v3212, 2147483648
    %v3214 = vsel %vm3131, %v3213, %v3212
    %v3215 = vsub.s32 4, %v3191
    %v3216 = vsel %vm3131, %v3215, %v3191
    %v3217 = vsel %vm3130, %v2096, %v3214
    %v3218 = vsel %vm3130, 0, %v3216
    %v3219 = vcosq.f32.pop %v3217
    %v3220 = vsinq.f32.pop %v3217
    %vm3221 = vweird.f32 %v2096
    %v3222 = vadd.s32 %v3218, 3
    %v3223 = vand.u32 %v3222, 3
    %vm3224 = vcmp.lt.s32.totalorder %v3223, 2
    %vm3225 = vcmp.eq.s32.totalorder %v3223, 0
    %v3226 = vxor.u32 %v3220, 2147483648
    %v3227 = vsel %vm3225, %v3219, %v3226
    %vm3228 = vcmp.eq.s32.totalorder %v3223, 2
    %v3229 = vxor.u32 %v3219, 2147483648
    %v3230 = vsel %vm3228, %v3229, %v3220
    %v3231 = vsel %vm3224, %v3227, %v3230
    %v3232 = vsel %vm3221, nan, %v3231
    %v3233 = vand.u32 2147483647, %v2183
    %vm3234 = vcmp.le.f32.partialorder %v3233, 0.7853982
    %vm3235 = vcmp.lt.s32.totalorder %v2183, 0
    %v3236 = vand.u32 %v2183, 2139095040
    %v3237 = vshrl.u32 %v3236, 23
    %v3238 = vsub.s32 %v3237, 127
    %v3239 = vand.u32 2147483647, %v2183
    %v3240 = vand.u32 %v3239, 8388607
    %v3241 = vor.u32 %v3240, 8388608
    %v3242 = vsub.s32 0, %v3241
    %v3243 = vadd.s32 %v3238, 1
    %vm3244 = vcmp.gt.s32.totalorder %v3243, 0
    %v3245 = vsel %vm3244, %v3243, 0
    %v3246 = vshrl.u32 %v3245, 5
    %v3247 = vand.u32 %v3245, 31
    %v3248 = vsub.s32 32, %v3247
    %v3249 = vshrl.u32 683565275, %v3248
    %v3250 = vshll.u32 683565275, %v3247
    %v3251 = vshrl.u32 2475754826, %v3248
    %v3252 = vor.u32 %v3250, %v3251
    %v3253 = vshll.u32 2475754826, %v3247
    %v3254 = vshrl.u32 2131351028, %v3248
    %v3255 = vor.u32 %v3253, %v3254
    %v3256 = vshll.u32 2131351028, %v3247
    %v3257 = vshrl.u32 2102212464, %v3248
    %v3258 = vor.u32 %v3256, %v3257
    %v3259 = vshll.u32 2102212464, %v3247
    %v3260 = vshrl.u32 920167782, %v3248
    %v3261 = vor.u32 %v3259, %v3260
    %v3262 = vshll.u32 920167782, %v3247
    %v3263 = vshrl.u32 1326507024, %v3248
    %v3264 = vor.u32 %v3262, %v3263
    %vm3265 = vcmp.lt.s32.totalorder %v3246, 1
    %vm3266 = vcmp.lt.s32.totalorder %v3246, 2
    %vm3267 = vcmp.lt.s32.totalorder %v3246, 3
    %vm3268 = vcmp.lt.s32.totalorder %v3246, 4
    %v3269 = vsel %vm3265, %v3249, %v3252
    %v3270 = vsel %vm3268, %v3258, 2102212464
    %v3271 = vsel %vm3267, %v3255, %v3270
    %v3272 = vsel %vm3266, %v3269, %v3271
    %v3273 = vsel %vm3265, %v3252, %v3255
    %v3274 = vsel %vm3268, %v3261, 920167782
    %v3275 = vsel %vm3267, %v3258, %v3274
    %v3276 = vsel %vm3266, %v3273, %v3275
    %v3277 = vsel %vm3265, %v3255, %v3258
    %v3278 = vsel %vm3268, %v3264, 1326507024
    %v3279 = vsel %vm3267, %v3261, %v3278
    %v3280 = vsel %vm3266, %v3277, %v3279
    %v3281 = vshll.u32 %v3241, 8
    %v3282 = vmul.u32.u64.compose %v3281, %v3280
    %v3283 = vextract.low.u32 %v3282
    %v3284 = vextract.high.u32 %v3282
    %v3285 = vmul.u32.u64.compose %v3281, %v3276
    %v3286 = vextract.low.u32 %v3285
    %v3287 = vextract.high.u32 %v3285
    %v3288 = vmul.u32 %v3281, %v3272
    %v3289 = vadd.s32 %v3284, %v3286
    %vm3290 = vc.u32 %v3284, %v3286
    %v3291 = vadd.s32 %v3287, 1
    %v3292 = vsel %vm3290, %v3291, %v3287
    %v3293 = vadd.s32 %v3288, %v3292
    %v3294 = vadd.s32 %v3293, 536870912
    %v3295 = vshrl.u32 %v3294, 30
    %v3296 = vshll.u32 %v3295, 30
    %v3297 = vsub.s32 %v3293, %v3296
    %vm3298 = vcmp.lt.s32.totalorder %v3297, 0
    %v3299 = vsub.s32 0, %v3297
    %v3300 = vsel %vm3298, %v3299, %v3297
    %v3301 = vclz %v3300
    %v3302 = vsub.s32 %v3301, 2
    %vm3303 = vcmp.gt.s32.totalorder 0, %v3302
    %v3304 = vsel %vm3303, 0, %v3302
    %v3305 = vsub.s32 32, %v3304
    %v3306 = vshll.u32 %v3297, %v3304
    %v3307 = vshrl.u32 %v3289, %v3305
    %v3308 = vor.u32 %v3306, %v3307
    %v3309 = vsub.s32 4294967266, %v3304
    %v3310 = vadd.s32 %v3309, 127
    %v3311 = vshll.u32 %v3310, 23
    %v3312 = vor.u32 4788187, %v3311
    %v3313 = vand.u32 2147483647, %v3312
    %v3315 = vcvt.s32.f32 %v3308
    %v3316 = vmul.f32 %v3315, %v3313
    %v3317 = vxor.u32 %v3316, 2147483648
    %v3318 = vsel %vm3235, %v3317, %v3316
    %v3319 = vsub.s32 4, %v3295
    %v3320 = vsel %vm3235, %v3319, %v3295
    %v3321 = vsel %vm3234, %v2183, %v3318
    %v3322 = vsel %vm3234, 0, %v3320
    %v3323 = vcosq.f32.pop %v3321
    %v3324 = vsinq.f32.pop %v3321
    %vm3325 = vweird.f32 %v2183
    %v3326 = vadd.s32 %v3322, 3
    %v3327 = vand.u32 %v3326, 3
    %vm3328 = vcmp.lt.s32.totalorder %v3327, 2
    %vm3329 = vcmp.eq.s32.totalorder %v3327, 0
    %v3330 = vxor.u32 %v3324, 2147483648
    %v3331 = vsel %vm3329, %v3323, %v3330
    %vm3332 = vcmp.eq.s32.totalorder %v3327, 2
    %v3333 = vxor.u32 %v3323, 2147483648
    %v3334 = vsel %vm3332, %v3333, %v3324
    %v3335 = vsel %vm3328, %v3331, %v3334
    %v3336 = vsel %vm3325, nan, %v3335
    %v3337 = vand.u32 2147483647, %v2185
    %vm3338 = vcmp.le.f32.partialorder %v3337, 0.7853982
    %vm3339 = vcmp.lt.s32.totalorder %v2185, 0
    %v3340 = vand.u32 %v2185, 2139095040
    %v3341 = vshrl.u32 %v3340, 23
    %v3342 = vsub.s32 %v3341, 127
    %v3343 = vand.u32 2147483647, %v2185
    %v3344 = vand.u32 %v3343, 8388607
    %v3345 = vor.u32 %v3344, 8388608
    %v3346 = vsub.s32 0, %v3345
    %v3347 = vadd.s32 %v3342, 1
    %vm3348 = vcmp.gt.s32.totalorder %v3347, 0
    %v3349 = vsel %vm3348, %v3347, 0
    %v3350 = vshrl.u32 %v3349, 5
    %v3351 = vand.u32 %v3349, 31
    %v3352 = vsub.s32 32, %v3351
    %v3353 = vshrl.u32 683565275, %v3352
    %v3354 = vshll.u32 683565275, %v3351
    %v3355 = vshrl.u32 2475754826, %v3352
    %v3356 = vor.u32 %v3354, %v3355
    %v3357 = vshll.u32 2475754826, %v3351
    %v3358 = vshrl.u32 2131351028, %v3352
    %v3359 = vor.u32 %v3357, %v3358
    %v3360 = vshll.u32 2131351028, %v3351
    %v3361 = vshrl.u32 2102212464, %v3352
    %v3362 = vor.u32 %v3360, %v3361
    %v3363 = vshll.u32 2102212464, %v3351
    %v3364 = vshrl.u32 920167782, %v3352
    %v3365 = vor.u32 %v3363, %v3364
    %v3366 = vshll.u32 920167782, %v3351
    %v3367 = vshrl.u32 1326507024, %v3352
    %v3368 = vor.u32 %v3366, %v3367
    %vm3369 = vcmp.lt.s32.totalorder %v3350, 1
    %vm3370 = vcmp.lt.s32.totalorder %v3350, 2
    %vm3371 = vcmp.lt.s32.totalorder %v3350, 3
    %vm3372 = vcmp.lt.s32.totalorder %v3350, 4
    %v3373 = vsel %vm3369, %v3353, %v3356
    %v3374 = vsel %vm3372, %v3362, 2102212464
    %v3375 = vsel %vm3371, %v3359, %v3374
    %v3376 = vsel %vm3370, %v3373, %v3375
    %v3377 = vsel %vm3369, %v3356, %v3359
    %v3378 = vsel %vm3372, %v3365, 920167782
    %v3379 = vsel %vm3371, %v3362, %v3378
    %v3380 = vsel %vm3370, %v3377, %v3379
    %v3381 = vsel %vm3369, %v3359, %v3362
    %v3382 = vsel %vm3372, %v3368, 1326507024
    %v3383 = vsel %vm3371, %v3365, %v3382
    %v3384 = vsel %vm3370, %v3381, %v3383
    %v3385 = vshll.u32 %v3345, 8
    %v3386 = vmul.u32.u64.compose %v3385, %v3384
    %v3387 = vextract.low.u32 %v3386
    %v3388 = vextract.high.u32 %v3386
    %v3389 = vmul.u32.u64.compose %v3385, %v3380
    %v3390 = vextract.low.u32 %v3389
    %v3391 = vextract.high.u32 %v3389
    %v3392 = vmul.u32 %v3385, %v3376
    %v3393 = vadd.s32 %v3388, %v3390
    %vm3394 = vc.u32 %v3388, %v3390
    %v3395 = vadd.s32 %v3391, 1
    %v3396 = vsel %vm3394, %v3395, %v3391
    %v3397 = vadd.s32 %v3392, %v3396
    %v3398 = vadd.s32 %v3397, 536870912
    %v3399 = vshrl.u32 %v3398, 30
    %v3400 = vshll.u32 %v3399, 30
    %v3401 = vsub.s32 %v3397, %v3400
    %vm3402 = vcmp.lt.s32.totalorder %v3401, 0
    %v3403 = vsub.s32 0, %v3401
    %v3404 = vsel %vm3402, %v3403, %v3401
    %v3405 = vclz %v3404
    %v3406 = vsub.s32 %v3405, 2
    %vm3407 = vcmp.gt.s32.totalorder 0, %v3406
    %v3408 = vsel %vm3407, 0, %v3406
    %v3409 = vsub.s32 32, %v3408
    %v3410 = vshll.u32 %v3401, %v3408
    %v3411 = vshrl.u32 %v3393, %v3409
    %v3412 = vor.u32 %v3410, %v3411
    %v3413 = vsub.s32 4294967266, %v3408
    %v3414 = vadd.s32 %v3413, 127
    %v3415 = vshll.u32 %v3414, 23
    %v3416 = vor.u32 4788187, %v3415
    %v3417 = vand.u32 2147483647, %v3416
    %v3419 = vcvt.s32.f32 %v3412
    %v3420 = vmul.f32 %v3419, %v3417
    %v3421 = vxor.u32 %v3420, 2147483648
    %v3422 = vsel %vm3339, %v3421, %v3420
    %v3423 = vsub.s32 4, %v3399
    %v3424 = vsel %vm3339, %v3423, %v3399
    %v3425 = vsel %vm3338, %v2185, %v3422
    %v3426 = vsel %vm3338, 0, %v3424
    %v3427 = vcosq.f32.pop %v3425
    %v3428 = vsinq.f32.pop %v3425
    %vm3429 = vweird.f32 %v2185
    %v3430 = vadd.s32 %v3426, 3
    %v3431 = vand.u32 %v3430, 3
    %vm3432 = vcmp.lt.s32.totalorder %v3431, 2
    %vm3433 = vcmp.eq.s32.totalorder %v3431, 0
    %v3434 = vxor.u32 %v3428, 2147483648
    %v3435 = vsel %vm3433, %v3427, %v3434
    %vm3436 = vcmp.eq.s32.totalorder %v3431, 2
    %v3437 = vxor.u32 %v3427, 2147483648
    %v3438 = vsel %vm3436, %v3437, %v3428
    %v3439 = vsel %vm3432, %v3435, %v3438
    %v3440 = vsel %vm3429, nan, %v3439
    %v3441 = vand.u32 2147483647, %v2100
    %vm3442 = vcmp.le.f32.partialorder %v3441, 0.7853982
    %vm3443 = vcmp.lt.s32.totalorder %v2100, 0
    %v3444 = vand.u32 %v2100, 2139095040
    %v3445 = vshrl.u32 %v3444, 23
    %v3446 = vsub.s32 %v3445, 127
    %v3447 = vand.u32 2147483647, %v2100
    %v3448 = vand.u32 %v3447, 8388607
    %v3449 = vor.u32 %v3448, 8388608
    %v3450 = vsub.s32 0, %v3449
    %v3451 = vadd.s32 %v3446, 1
    %vm3452 = vcmp.gt.s32.totalorder %v3451, 0
    %v3453 = vsel %vm3452, %v3451, 0
    %v3454 = vshrl.u32 %v3453, 5
    %v3455 = vand.u32 %v3453, 31
    %v3456 = vsub.s32 32, %v3455
    %v3457 = vshrl.u32 683565275, %v3456
    %v3458 = vshll.u32 683565275, %v3455
    %v3459 = vshrl.u32 2475754826, %v3456
    %v3460 = vor.u32 %v3458, %v3459
    %v3461 = vshll.u32 2475754826, %v3455
    %v3462 = vshrl.u32 2131351028, %v3456
    %v3463 = vor.u32 %v3461, %v3462
    %v3464 = vshll.u32 2131351028, %v3455
    %v3465 = vshrl.u32 2102212464, %v3456
    %v3466 = vor.u32 %v3464, %v3465
    %v3467 = vshll.u32 2102212464, %v3455
    %v3468 = vshrl.u32 920167782, %v3456
    %v3469 = vor.u32 %v3467, %v3468
    %v3470 = vshll.u32 920167782, %v3455
    %v3471 = vshrl.u32 1326507024, %v3456
    %v3472 = vor.u32 %v3470, %v3471
    %vm3473 = vcmp.lt.s32.totalorder %v3454, 1
    %vm3474 = vcmp.lt.s32.totalorder %v3454, 2
    %vm3475 = vcmp.lt.s32.totalorder %v3454, 3
    %vm3476 = vcmp.lt.s32.totalorder %v3454, 4
    %v3477 = vsel %vm3473, %v3457, %v3460
    %v3478 = vsel %vm3476, %v3466, 2102212464
    %v3479 = vsel %vm3475, %v3463, %v3478
    %v3480 = vsel %vm3474, %v3477, %v3479
    %v3481 = vsel %vm3473, %v3460, %v3463
    %v3482 = vsel %vm3476, %v3469, 920167782
    %v3483 = vsel %vm3475, %v3466, %v3482
    %v3484 = vsel %vm3474, %v3481, %v3483
    %v3485 = vsel %vm3473, %v3463, %v3466
    %v3486 = vsel %vm3476, %v3472, 1326507024
    %v3487 = vsel %vm3475, %v3469, %v3486
    %v3488 = vsel %vm3474, %v3485, %v3487
    %v3489 = vshll.u32 %v3449, 8
    %v3490 = vmul.u32.u64.compose %v3489, %v3488
    %v3491 = vextract.low.u32 %v3490
    %v3492 = vextract.high.u32 %v3490
    %v3493 = vmul.u32.u64.compose %v3489, %v3484
    %v3494 = vextract.low.u32 %v3493
    %v3495 = vextract.high.u32 %v3493
    %v3496 = vmul.u32 %v3489, %v3480
    %v3497 = vadd.s32 %v3492, %v3494
    %vm3498 = vc.u32 %v3492, %v3494
    %v3499 = vadd.s32 %v3495, 1
    %v3500 = vsel %vm3498, %v3499, %v3495
    %v3501 = vadd.s32 %v3496, %v3500
    %v3502 = vadd.s32 %v3501, 536870912
    %v3503 = vshrl.u32 %v3502, 30
    %v3504 = vshll.u32 %v3503, 30
    %v3505 = vsub.s32 %v3501, %v3504
    %vm3506 = vcmp.lt.s32.totalorder %v3505, 0
    %v3507 = vsub.s32 0, %v3505
    %v3508 = vsel %vm3506, %v3507, %v3505
    %v3509 = vclz %v3508
    %v3510 = vsub.s32 %v3509, 2
    %vm3511 = vcmp.gt.s32.totalorder 0, %v3510
    %v3512 = vsel %vm3511, 0, %v3510
    %v3513 = vsub.s32 32, %v3512
    %v3514 = vshll.u32 %v3505, %v3512
    %v3515 = vshrl.u32 %v3497, %v3513
    %v3516 = vor.u32 %v3514, %v3515
    %v3517 = vsub.s32 4294967266, %v3512
    %v3518 = vadd.s32 %v3517, 127
    %v3519 = vshll.u32 %v3518, 23
    %v3520 = vor.u32 4788187, %v3519
    %v3521 = vand.u32 2147483647, %v3520
    %v3523 = vcvt.s32.f32 %v3516
    %v3524 = vmul.f32 %v3523, %v3521
    %v3525 = vxor.u32 %v3524, 2147483648
    %v3526 = vsel %vm3443, %v3525, %v3524
    %v3527 = vsub.s32 4, %v3503
    %v3528 = vsel %vm3443, %v3527, %v3503
    %v3529 = vsel %vm3442, %v2100, %v3526
    %v3530 = vsel %vm3442, 0, %v3528
    %v3531 = vcosq.f32.pop %v3529
    %v3532 = vsinq.f32.pop %v3529
    %vm3533 = vweird.f32 %v2100
    %v3534 = vadd.s32 %v3530, 3
    %v3535 = vand.u32 %v3534, 3
    %vm3536 = vcmp.lt.s32.totalorder %v3535, 2
    %vm3537 = vcmp.eq.s32.totalorder %v3535, 0
    %v3538 = vxor.u32 %v3532, 2147483648
    %v3539 = vsel %vm3537, %v3531, %v3538
    %vm3540 = vcmp.eq.s32.totalorder %v3535, 2
    %v3541 = vxor.u32 %v3531, 2147483648
    %v3542 = vsel %vm3540, %v3541, %v3532
    %v3543 = vsel %vm3536, %v3539, %v3542
    %v3544 = vsel %vm3533, nan, %v3543
    %v3545 = vand.u32 2147483647, %v2102
    %vm3546 = vcmp.le.f32.partialorder %v3545, 0.7853982
    %vm3547 = vcmp.lt.s32.totalorder %v2102, 0
    %v3548 = vand.u32 %v2102, 2139095040
    %v3549 = vshrl.u32 %v3548, 23
    %v3550 = vsub.s32 %v3549, 127
    %v3551 = vand.u32 2147483647, %v2102
    %v3552 = vand.u32 %v3551, 8388607
    %v3553 = vor.u32 %v3552, 8388608
    %v3554 = vsub.s32 0, %v3553
    %v3555 = vadd.s32 %v3550, 1
    %vm3556 = vcmp.gt.s32.totalorder %v3555, 0
    %v3557 = vsel %vm3556, %v3555, 0
    %v3558 = vshrl.u32 %v3557, 5
    %v3559 = vand.u32 %v3557, 31
    %v3560 = vsub.s32 32, %v3559
    %v3561 = vshrl.u32 683565275, %v3560
    %v3562 = vshll.u32 683565275, %v3559
    %v3563 = vshrl.u32 2475754826, %v3560
    %v3564 = vor.u32 %v3562, %v3563
    %v3565 = vshll.u32 2475754826, %v3559
    %v3566 = vshrl.u32 2131351028, %v3560
    %v3567 = vor.u32 %v3565, %v3566
    %v3568 = vshll.u32 2131351028, %v3559
    %v3569 = vshrl.u32 2102212464, %v3560
    %v3570 = vor.u32 %v3568, %v3569
    %v3571 = vshll.u32 2102212464, %v3559
    %v3572 = vshrl.u32 920167782, %v3560
    %v3573 = vor.u32 %v3571, %v3572
    %v3574 = vshll.u32 920167782, %v3559
    %v3575 = vshrl.u32 1326507024, %v3560
    %v3576 = vor.u32 %v3574, %v3575
    %vm3577 = vcmp.lt.s32.totalorder %v3558, 1
    %vm3578 = vcmp.lt.s32.totalorder %v3558, 2
    %vm3579 = vcmp.lt.s32.totalorder %v3558, 3
    %vm3580 = vcmp.lt.s32.totalorder %v3558, 4
    %v3581 = vsel %vm3577, %v3561, %v3564
    %v3582 = vsel %vm3580, %v3570, 2102212464
    %v3583 = vsel %vm3579, %v3567, %v3582
    %v3584 = vsel %vm3578, %v3581, %v3583
    %v3585 = vsel %vm3577, %v3564, %v3567
    %v3586 = vsel %vm3580, %v3573, 920167782
    %v3587 = vsel %vm3579, %v3570, %v3586
    %v3588 = vsel %vm3578, %v3585, %v3587
    %v3589 = vsel %vm3577, %v3567, %v3570
    %v3590 = vsel %vm3580, %v3576, 1326507024
    %v3591 = vsel %vm3579, %v3573, %v3590
    %v3592 = vsel %vm3578, %v3589, %v3591
    %v3593 = vshll.u32 %v3553, 8
    %v3594 = vmul.u32.u64.compose %v3593, %v3592
    %v3595 = vextract.low.u32 %v3594
    %v3596 = vextract.high.u32 %v3594
    %v3597 = vmul.u32.u64.compose %v3593, %v3588
    %v3598 = vextract.low.u32 %v3597
    %v3599 = vextract.high.u32 %v3597
    %v3600 = vmul.u32 %v3593, %v3584
    %v3601 = vadd.s32 %v3596, %v3598
    %vm3602 = vc.u32 %v3596, %v3598
    %v3603 = vadd.s32 %v3599, 1
    %v3604 = vsel %vm3602, %v3603, %v3599
    %v3605 = vadd.s32 %v3600, %v3604
    %v3606 = vadd.s32 %v3605, 536870912
    %v3607 = vshrl.u32 %v3606, 30
    %v3608 = vshll.u32 %v3607, 30
    %v3609 = vsub.s32 %v3605, %v3608
    %vm3610 = vcmp.lt.s32.totalorder %v3609, 0
    %v3611 = vsub.s32 0, %v3609
    %v3612 = vsel %vm3610, %v3611, %v3609
    %v3613 = vclz %v3612
    %v3614 = vsub.s32 %v3613, 2
    %vm3615 = vcmp.gt.s32.totalorder 0, %v3614
    %v3616 = vsel %vm3615, 0, %v3614
    %v3617 = vsub.s32 32, %v3616
    %v3618 = vshll.u32 %v3609, %v3616
    %v3619 = vshrl.u32 %v3601, %v3617
    %v3620 = vor.u32 %v3618, %v3619
    %v3621 = vsub.s32 4294967266, %v3616
    %v3622 = vadd.s32 %v3621, 127
    %v3623 = vshll.u32 %v3622, 23
    %v3624 = vor.u32 4788187, %v3623
    %v3625 = vand.u32 2147483647, %v3624
    %v3627 = vcvt.s32.f32 %v3620
    %v3628 = vmul.f32 %v3627, %v3625
    %v3629 = vxor.u32 %v3628, 2147483648
    %v3630 = vsel %vm3547, %v3629, %v3628
    %v3631 = vsub.s32 4, %v3607
    %v3632 = vsel %vm3547, %v3631, %v3607
    %v3633 = vsel %vm3546, %v2102, %v3630
    %v3634 = vsel %vm3546, 0, %v3632
    %v3635 = vcosq.f32.pop %v3633
    %v3636 = vsinq.f32.pop %v3633
    %vm3637 = vweird.f32 %v2102
    %v3638 = vadd.s32 %v3634, 3
    %v3639 = vand.u32 %v3638, 3
    %vm3640 = vcmp.lt.s32.totalorder %v3639, 2
    %vm3641 = vcmp.eq.s32.totalorder %v3639, 0
    %v3642 = vxor.u32 %v3636, 2147483648
    %v3643 = vsel %vm3641, %v3635, %v3642
    %vm3644 = vcmp.eq.s32.totalorder %v3639, 2
    %v3645 = vxor.u32 %v3635, 2147483648
    %v3646 = vsel %vm3644, %v3645, %v3636
    %v3647 = vsel %vm3640, %v3643, %v3646
    %v3648 = vsel %vm3637, nan, %v3647
    %v3649 = vand.u32 2147483647, %v2189
    %vm3650 = vcmp.le.f32.partialorder %v3649, 0.7853982
    %vm3651 = vcmp.lt.s32.totalorder %v2189, 0
    %v3652 = vand.u32 %v2189, 2139095040
    %v3653 = vshrl.u32 %v3652, 23
    %v3654 = vsub.s32 %v3653, 127
    %v3655 = vand.u32 2147483647, %v2189
    %v3656 = vand.u32 %v3655, 8388607
    %v3657 = vor.u32 %v3656, 8388608
    %v3658 = vsub.s32 0, %v3657
    %v3659 = vadd.s32 %v3654, 1
    %vm3660 = vcmp.gt.s32.totalorder %v3659, 0
    %v3661 = vsel %vm3660, %v3659, 0
    %v3662 = vshrl.u32 %v3661, 5
    %v3663 = vand.u32 %v3661, 31
    %v3664 = vsub.s32 32, %v3663
    %v3665 = vshrl.u32 683565275, %v3664
    %v3666 = vshll.u32 683565275, %v3663
    %v3667 = vshrl.u32 2475754826, %v3664
    %v3668 = vor.u32 %v3666, %v3667
    %v3669 = vshll.u32 2475754826, %v3663
    %v3670 = vshrl.u32 2131351028, %v3664
    %v3671 = vor.u32 %v3669, %v3670
    %v3672 = vshll.u32 2131351028, %v3663
    %v3673 = vshrl.u32 2102212464, %v3664
    %v3674 = vor.u32 %v3672, %v3673
    %v3675 = vshll.u32 2102212464, %v3663
    %v3676 = vshrl.u32 920167782, %v3664
    %v3677 = vor.u32 %v3675, %v3676
    %v3678 = vshll.u32 920167782, %v3663
    %v3679 = vshrl.u32 1326507024, %v3664
    %v3680 = vor.u32 %v3678, %v3679
    %vm3681 = vcmp.lt.s32.totalorder %v3662, 1
    %vm3682 = vcmp.lt.s32.totalorder %v3662, 2
    %vm3683 = vcmp.lt.s32.totalorder %v3662, 3
    %vm3684 = vcmp.lt.s32.totalorder %v3662, 4
    %v3685 = vsel %vm3681, %v3665, %v3668
    %v3686 = vsel %vm3684, %v3674, 2102212464
    %v3687 = vsel %vm3683, %v3671, %v3686
    %v3688 = vsel %vm3682, %v3685, %v3687
    %v3689 = vsel %vm3681, %v3668, %v3671
    %v3690 = vsel %vm3684, %v3677, 920167782
    %v3691 = vsel %vm3683, %v3674, %v3690
    %v3692 = vsel %vm3682, %v3689, %v3691
    %v3693 = vsel %vm3681, %v3671, %v3674
    %v3694 = vsel %vm3684, %v3680, 1326507024
    %v3695 = vsel %vm3683, %v3677, %v3694
    %v3696 = vsel %vm3682, %v3693, %v3695
    %v3697 = vshll.u32 %v3657, 8
    %v3698 = vmul.u32.u64.compose %v3697, %v3696
    %v3699 = vextract.low.u32 %v3698
    %v3700 = vextract.high.u32 %v3698
    %v3701 = vmul.u32.u64.compose %v3697, %v3692
    %v3702 = vextract.low.u32 %v3701
    %v3703 = vextract.high.u32 %v3701
    %v3704 = vmul.u32 %v3697, %v3688
    %v3705 = vadd.s32 %v3700, %v3702
    %vm3706 = vc.u32 %v3700, %v3702
    %v3707 = vadd.s32 %v3703, 1
    %v3708 = vsel %vm3706, %v3707, %v3703
    %v3709 = vadd.s32 %v3704, %v3708
    %v3710 = vadd.s32 %v3709, 536870912
    %v3711 = vshrl.u32 %v3710, 30
    %v3712 = vshll.u32 %v3711, 30
    %v3713 = vsub.s32 %v3709, %v3712
    %vm3714 = vcmp.lt.s32.totalorder %v3713, 0
    %v3715 = vsub.s32 0, %v3713
    %v3716 = vsel %vm3714, %v3715, %v3713
    %v3717 = vclz %v3716
    %v3718 = vsub.s32 %v3717, 2
    %vm3719 = vcmp.gt.s32.totalorder 0, %v3718
    %v3720 = vsel %vm3719, 0, %v3718
    %v3721 = vsub.s32 32, %v3720
    %v3722 = vshll.u32 %v3713, %v3720
    %v3723 = vshrl.u32 %v3705, %v3721
    %v3724 = vor.u32 %v3722, %v3723
    %v3725 = vsub.s32 4294967266, %v3720
    %v3726 = vadd.s32 %v3725, 127
    %v3727 = vshll.u32 %v3726, 23
    %v3728 = vor.u32 4788187, %v3727
    %v3729 = vand.u32 2147483647, %v3728
    %v3731 = vcvt.s32.f32 %v3724
    %v3732 = vmul.f32 %v3731, %v3729
    %v3733 = vxor.u32 %v3732, 2147483648
    %v3734 = vsel %vm3651, %v3733, %v3732
    %v3735 = vsub.s32 4, %v3711
    %v3736 = vsel %vm3651, %v3735, %v3711
    %v3737 = vsel %vm3650, %v2189, %v3734
    %v3738 = vsel %vm3650, 0, %v3736
    %v3739 = vcosq.f32.pop %v3737
    %v3740 = vsinq.f32.pop %v3737
    %vm3741 = vweird.f32 %v2189
    %v3742 = vadd.s32 %v3738, 3
    %v3743 = vand.u32 %v3742, 3
    %vm3744 = vcmp.lt.s32.totalorder %v3743, 2
    %vm3745 = vcmp.eq.s32.totalorder %v3743, 0
    %v3746 = vxor.u32 %v3740, 2147483648
    %v3747 = vsel %vm3745, %v3739, %v3746
    %vm3748 = vcmp.eq.s32.totalorder %v3743, 2
    %v3749 = vxor.u32 %v3739, 2147483648
    %v3750 = vsel %vm3748, %v3749, %v3740
    %v3751 = vsel %vm3744, %v3747, %v3750
    %v3752 = vsel %vm3741, nan, %v3751
    %v3753 = vand.u32 2147483647, %v2191
    %vm3754 = vcmp.le.f32.partialorder %v3753, 0.7853982
    %vm3755 = vcmp.lt.s32.totalorder %v2191, 0
    %v3756 = vand.u32 %v2191, 2139095040
    %v3757 = vshrl.u32 %v3756, 23
    %v3758 = vsub.s32 %v3757, 127
    %v3759 = vand.u32 2147483647, %v2191
    %v3760 = vand.u32 %v3759, 8388607
    %v3761 = vor.u32 %v3760, 8388608
    %v3762 = vsub.s32 0, %v3761
    %v3763 = vadd.s32 %v3758, 1
    %vm3764 = vcmp.gt.s32.totalorder %v3763, 0
    %v3765 = vsel %vm3764, %v3763, 0
    %v3766 = vshrl.u32 %v3765, 5
    %v3767 = vand.u32 %v3765, 31
    %v3768 = vsub.s32 32, %v3767
    %v3769 = vshrl.u32 683565275, %v3768
    %v3770 = vshll.u32 683565275, %v3767
    %v3771 = vshrl.u32 2475754826, %v3768
    %v3772 = vor.u32 %v3770, %v3771
    %v3773 = vshll.u32 2475754826, %v3767
    %v3774 = vshrl.u32 2131351028, %v3768
    %v3775 = vor.u32 %v3773, %v3774
    %v3776 = vshll.u32 2131351028, %v3767
    %v3777 = vshrl.u32 2102212464, %v3768
    %v3778 = vor.u32 %v3776, %v3777
    %v3779 = vshll.u32 2102212464, %v3767
    %v3780 = vshrl.u32 920167782, %v3768
    %v3781 = vor.u32 %v3779, %v3780
    %v3782 = vshll.u32 920167782, %v3767
    %v3783 = vshrl.u32 1326507024, %v3768
    %v3784 = vor.u32 %v3782, %v3783
    %vm3785 = vcmp.lt.s32.totalorder %v3766, 1
    %vm3786 = vcmp.lt.s32.totalorder %v3766, 2
    %vm3787 = vcmp.lt.s32.totalorder %v3766, 3
    %vm3788 = vcmp.lt.s32.totalorder %v3766, 4
    %v3789 = vsel %vm3785, %v3769, %v3772
    %v3790 = vsel %vm3788, %v3778, 2102212464
    %v3791 = vsel %vm3787, %v3775, %v3790
    %v3792 = vsel %vm3786, %v3789, %v3791
    %v3793 = vsel %vm3785, %v3772, %v3775
    %v3794 = vsel %vm3788, %v3781, 920167782
    %v3795 = vsel %vm3787, %v3778, %v3794
    %v3796 = vsel %vm3786, %v3793, %v3795
    %v3797 = vsel %vm3785, %v3775, %v3778
    %v3798 = vsel %vm3788, %v3784, 1326507024
    %v3799 = vsel %vm3787, %v3781, %v3798
    %v3800 = vsel %vm3786, %v3797, %v3799
    %v3801 = vshll.u32 %v3761, 8
    %v3802 = vmul.u32.u64.compose %v3801, %v3800
    %v3803 = vextract.low.u32 %v3802
    %v3804 = vextract.high.u32 %v3802
    %v3805 = vmul.u32.u64.compose %v3801, %v3796
    %v3806 = vextract.low.u32 %v3805
    %v3807 = vextract.high.u32 %v3805
    %v3808 = vmul.u32 %v3801, %v3792
    %v3809 = vadd.s32 %v3804, %v3806
    %vm3810 = vc.u32 %v3804, %v3806
    %v3811 = vadd.s32 %v3807, 1
    %v3812 = vsel %vm3810, %v3811, %v3807
    %v3813 = vadd.s32 %v3808, %v3812
    %v3814 = vadd.s32 %v3813, 536870912
    %v3815 = vshrl.u32 %v3814, 30
    %v3816 = vshll.u32 %v3815, 30
    %v3817 = vsub.s32 %v3813, %v3816
    %vm3818 = vcmp.lt.s32.totalorder %v3817, 0
    %v3819 = vsub.s32 0, %v3817
    %v3820 = vsel %vm3818, %v3819, %v3817
    %v3821 = vclz %v3820
    %v3822 = vsub.s32 %v3821, 2
    %vm3823 = vcmp.gt.s32.totalorder 0, %v3822
    %v3824 = vsel %vm3823, 0, %v3822
    %v3825 = vsub.s32 32, %v3824
    %v3826 = vshll.u32 %v3817, %v3824
    %v3827 = vshrl.u32 %v3809, %v3825
    %v3828 = vor.u32 %v3826, %v3827
    %v3829 = vsub.s32 4294967266, %v3824
    %v3830 = vadd.s32 %v3829, 127
    %v3831 = vshll.u32 %v3830, 23
    %v3832 = vor.u32 4788187, %v3831
    %v3833 = vand.u32 2147483647, %v3832
    %v3835 = vcvt.s32.f32 %v3828
    %v3836 = vmul.f32 %v3835, %v3833
    %v3837 = vxor.u32 %v3836, 2147483648
    %v3838 = vsel %vm3755, %v3837, %v3836
    %v3839 = vsub.s32 4, %v3815
    %v3840 = vsel %vm3755, %v3839, %v3815
    %v3841 = vsel %vm3754, %v2191, %v3838
    %v3842 = vsel %vm3754, 0, %v3840
    %v3843 = vcosq.f32.pop %v3841
    %v3844 = vsinq.f32.pop %v3841
    %vm3845 = vweird.f32 %v2191
    %v3846 = vadd.s32 %v3842, 3
    %v3847 = vand.u32 %v3846, 3
    %vm3848 = vcmp.lt.s32.totalorder %v3847, 2
    %vm3849 = vcmp.eq.s32.totalorder %v3847, 0
    %v3850 = vxor.u32 %v3844, 2147483648
    %v3851 = vsel %vm3849, %v3843, %v3850
    %vm3852 = vcmp.eq.s32.totalorder %v3847, 2
    %v3853 = vxor.u32 %v3843, 2147483648
    %v3854 = vsel %vm3852, %v3853, %v3844
    %v3855 = vsel %vm3848, %v3851, %v3854
    %v3856 = vsel %vm3845, nan, %v3855
    %s3857 = scalar_lea.vmem %s2, 640
    %v3858 = vld [vmem:[%s3857] sm:$0xff]
    %v3859 = vld [vmem:[%s3857 + $0x8] sm:$0xff]
    %v3860 = vld [vmem:[%s3857 + $0x10] sm:$0xff]
    %v3861 = vld [vmem:[%s3857 + $0x18] sm:$0xff]
    %s3862 = scalar_lea.vmem %s3, 640
    %v3863 = vld [vmem:[%s3862] sm:$0xff]
    %v3864 = vld [vmem:[%s3862 + $0x8] sm:$0xff]
    %v3865 = vld [vmem:[%s3862 + $0x10] sm:$0xff]
    %v3866 = vld [vmem:[%s3862 + $0x18] sm:$0xff]
    %3868 = vset.pattern.permute.xlu0 0
    %3869 = vperm.xlu0 %3868, %v3863
    %v3870 = vpop.permute.xlu0 %3869
    %3873 = vset.pattern.permute.xlu0 0
    %3874 = vperm.xlu0 %3873, %v3864
    %v3875 = vpop.permute.xlu0 %3874
    %3878 = vset.pattern.permute.xlu0 0
    %3879 = vperm.xlu0 %3878, %v3865
    %v3880 = vpop.permute.xlu0 %3879
    %3883 = vset.pattern.permute.xlu0 0
    %3884 = vperm.xlu0 %3883, %v3866
    %v3885 = vpop.permute.xlu0 %3884
    %v3888 = vsel %vm332, %v3858, 0
    %v3891 = vsel %vm332, %v3859, 0
    %v3894 = vsel %vm332, %v3860, 0
    %v3897 = vsel %vm332, %v3861, 0
    %3899 = vmatprep.subr.mxu0 0.0
    %3900 = vmatpush1.msra.mxu0 0.0
    %3901 = vmatprep.subr.mxu0 0.0
    %3902 = vmatpush1.msra.mxu0 0.0
    %3903 = vmatprep.subr.mxu0 0.0
    %3904 = vmatpush1.msra.mxu0 0.0
    %3905 = vmatprep.subr.mxu0 0.0
    %3906 = vmatpush1.msra.mxu0 0.0
    %3907 = vmatprep.subr.mxu0 0.0
    %3908 = vmatpush1.msra.mxu0 0.0
    %3909 = vmatprep.subr.mxu0 0.0
    %3910 = vmatpush1.msra.mxu0 0.0
    %3911 = vmatprep.subr.mxu0 0.0
    %3912 = vmatpush1.msra.mxu0 0.0
    %3913 = vmatprep.subr.mxu0 0.0
    %3914 = vmatpush1.msra.mxu0 0.0
    %3915 = vmatprep.subr.mxu0 0.0
    %3916 = vmatpush1.msra.mxu0 0.0
    %3917 = vmatprep.subr.mxu0 0.0
    %3918 = vmatpush1.msra.mxu0 0.0
    %3919 = vmatprep.subr.mxu0 0.0
    %3920 = vmatpush1.msra.mxu0 0.0
    %3921 = vmatprep.subr.mxu0 0.0
    %3922 = vmatpush1.msra.mxu0 0.0
    %3923 = vmatprep.subr.mxu0 %v3648
    %3924 = vmatpush1.msra.mxu0 %v3544
    %3925 = vmatprep.subr.mxu0 %v3232
    %3926 = vmatpush1.msra.mxu0 %v3128
    %3927 = vmatprep.subr.mxu0 %v2816
    %3928 = vmatpush1.msra.mxu0 %v2712
    %3929 = vmatprep.subr.mxu0 %v2400
    %3930 = vmatpush1.msra.mxu0 %v2296
    %3931 = vmatprep.subr.mxu0 0.0
    %3932 = vmatpush2.msra.mxu0 0.0
    %3933 = vmatprep.subr.mxu0 0.0
    %3934 = vmatpush2.msra.mxu0 0.0
    %3935 = vmatprep.subr.mxu0 0.0
    %3936 = vmatpush2.msra.mxu0 0.0
    %3937 = vmatprep.subr.mxu0 0.0
    %3938 = vmatpush2.msra.mxu0 0.0
    %3939 = vmatprep.subr.mxu0 0.0
    %3940 = vmatpush2.msra.mxu0 0.0
    %3941 = vmatprep.subr.mxu0 0.0
    %3942 = vmatpush2.msra.mxu0 0.0
    %3943 = vmatprep.subr.mxu0 0.0
    %3944 = vmatpush2.msra.mxu0 0.0
    %3945 = vmatprep.subr.mxu0 0.0
    %3946 = vmatpush2.msra.mxu0 0.0
    %3947 = vmatprep.subr.mxu0 0.0
    %3948 = vmatpush2.msra.mxu0 0.0
    %3949 = vmatprep.subr.mxu0 0.0
    %3950 = vmatpush2.msra.mxu0 0.0
    %3951 = vmatprep.subr.mxu0 0.0
    %3952 = vmatpush2.msra.mxu0 0.0
    %3953 = vmatprep.subr.mxu0 0.0
    %3954 = vmatpush2.msra.mxu0 0.0
    %3955 = vmatprep.subr.mxu0 0.0
    %3956 = vmatpush2.msra.mxu0 0.0
    %3957 = vmatprep.subr.mxu0 0.0
    %3958 = vmatpush2.msra.mxu0 0.0
    %3959 = vmatprep.subr.mxu0 0.0
    %3960 = vmatpush2.msra.mxu0 0.0
    %3961 = vmatprep.subr.mxu0 0.0
    %3962 = vmatpush2.msra.mxu0 0.0
    %3963 = vmatprep.mubr.f32.mxu0 0.0
    %3964 = vmatmul.mubr.f32.gmra.mxu0 %v3888
    %v3965 = vpop.f32.mrf.mxu0
    %v3966 = vadd.f32 %v3870, %v3965
    %v3967 = vpop.f32.mrf.mxu0
    %v3968 = vadd.f32 %v3870, %v3967
    %3969 = vmatprep.mubr.f32.mxu0 0.0
    %3970 = vmatmul.mubr.f32.gmra.mxu0 %v3891
    %v3971 = vpop.f32.mrf.mxu0
    %v3972 = vadd.f32 %v3875, %v3971
    %v3973 = vpop.f32.mrf.mxu0
    %v3974 = vadd.f32 %v3875, %v3973
    %3975 = vmatprep.mubr.f32.mxu0 0.0
    %3976 = vmatmul.mubr.f32.gmra.mxu0 %v3894
    %v3977 = vpop.f32.mrf.mxu0
    %v3978 = vadd.f32 %v3880, %v3977
    %v3979 = vpop.f32.mrf.mxu0
    %v3980 = vadd.f32 %v3880, %v3979
    %3981 = vmatprep.mubr.f32.mxu0 0.0
    %3982 = vmatmul.mubr.f32.gmra.mxu0 %v3897
    %v3983 = vpop.f32.mrf.mxu0
    %v3984 = vadd.f32 %v3885, %v3983
    %v3985 = vpop.f32.mrf.mxu0
    %v3986 = vadd.f32 %v3885, %v3985
    %3987 = vdwg.mxu0
    %3988 = vmatprep.subr.mxu0 0.0
    %3989 = vmatpush1.msra.mxu0 0.0
    %3990 = vmatprep.subr.mxu0 0.0
    %3991 = vmatpush1.msra.mxu0 0.0
    %3992 = vmatprep.subr.mxu0 0.0
    %3993 = vmatpush1.msra.mxu0 0.0
    %3994 = vmatprep.subr.mxu0 0.0
    %3995 = vmatpush1.msra.mxu0 0.0
    %3996 = vmatprep.subr.mxu0 0.0
    %3997 = vmatpush1.msra.mxu0 0.0
    %3998 = vmatprep.subr.mxu0 0.0
    %3999 = vmatpush1.msra.mxu0 0.0
    %4000 = vmatprep.subr.mxu0 0.0
    %4001 = vmatpush1.msra.mxu0 0.0
    %4002 = vmatprep.subr.mxu0 0.0
    %4003 = vmatpush1.msra.mxu0 0.0
    %4004 = vmatprep.subr.mxu0 0.0
    %4005 = vmatpush1.msra.mxu0 0.0
    %4006 = vmatprep.subr.mxu0 0.0
    %4007 = vmatpush1.msra.mxu0 0.0
    %4008 = vmatprep.subr.mxu0 0.0
    %4009 = vmatpush1.msra.mxu0 0.0
    %4010 = vmatprep.subr.mxu0 0.0
    %4011 = vmatpush1.msra.mxu0 0.0
    %4012 = vmatprep.subr.mxu0 %v3856
    %4013 = vmatpush1.msra.mxu0 %v3752
    %4014 = vmatprep.subr.mxu0 %v3440
    %4015 = vmatpush1.msra.mxu0 %v3336
    %4016 = vmatprep.subr.mxu0 %v3024
    %4017 = vmatpush1.msra.mxu0 %v2920
    %4018 = vmatprep.subr.mxu0 %v2608
    %4019 = vmatpush1.msra.mxu0 %v2504
    %4020 = vmatprep.subr.mxu0 0.0
    %4021 = vmatpush2.msra.mxu0 0.0
    %4022 = vmatprep.subr.mxu0 0.0
    %4023 = vmatpush2.msra.mxu0 0.0
    %4024 = vmatprep.subr.mxu0 0.0
    %4025 = vmatpush2.msra.mxu0 0.0
    %4026 = vmatprep.subr.mxu0 0.0
    %4027 = vmatpush2.msra.mxu0 0.0
    %4028 = vmatprep.subr.mxu0 0.0
    %4029 = vmatpush2.msra.mxu0 0.0
    %4030 = vmatprep.subr.mxu0 0.0
    %4031 = vmatpush2.msra.mxu0 0.0
    %4032 = vmatprep.subr.mxu0 0.0
    %4033 = vmatpush2.msra.mxu0 0.0
    %4034 = vmatprep.subr.mxu0 0.0
    %4035 = vmatpush2.msra.mxu0 0.0
    %4036 = vmatprep.subr.mxu0 0.0
    %4037 = vmatpush2.msra.mxu0 0.0
    %4038 = vmatprep.subr.mxu0 0.0
    %4039 = vmatpush2.msra.mxu0 0.0
    %4040 = vmatprep.subr.mxu0 0.0
    %4041 = vmatpush2.msra.mxu0 0.0
    %4042 = vmatprep.subr.mxu0 0.0
    %4043 = vmatpush2.msra.mxu0 0.0
    %4044 = vmatprep.subr.mxu0 0.0
    %4045 = vmatpush2.msra.mxu0 0.0
    %4046 = vmatprep.subr.mxu0 0.0
    %4047 = vmatpush2.msra.mxu0 0.0
    %4048 = vmatprep.subr.mxu0 0.0
    %4049 = vmatpush2.msra.mxu0 0.0
    %4050 = vmatprep.subr.mxu0 0.0
    %4051 = vmatpush2.msra.mxu0 0.0
    %4052 = vmatprep.mubr.f32.mxu0 0.0
    %4053 = vmatmul.mubr.f32.gmra.mxu0 %v3888
    %v4054 = vpop.f32.mrf.mxu0
    %v4055 = vadd.f32 %v3870, %v4054
    %v4056 = vpop.f32.mrf.mxu0
    %v4057 = vadd.f32 %v3870, %v4056
    %4058 = vmatprep.mubr.f32.mxu0 0.0
    %4059 = vmatmul.mubr.f32.gmra.mxu0 %v3891
    %v4060 = vpop.f32.mrf.mxu0
    %v4061 = vadd.f32 %v3875, %v4060
    %v4062 = vpop.f32.mrf.mxu0
    %v4063 = vadd.f32 %v3875, %v4062
    %4064 = vmatprep.mubr.f32.mxu0 0.0
    %4065 = vmatmul.mubr.f32.gmra.mxu0 %v3894
    %v4066 = vpop.f32.mrf.mxu0
    %v4067 = vadd.f32 %v3880, %v4066
    %v4068 = vpop.f32.mrf.mxu0
    %v4069 = vadd.f32 %v3880, %v4068
    %4070 = vmatprep.mubr.f32.mxu0 0.0
    %4071 = vmatmul.mubr.f32.gmra.mxu0 %v3897
    %v4072 = vpop.f32.mrf.mxu0
    %v4073 = vadd.f32 %v3885, %v4072
    %v4074 = vpop.f32.mrf.mxu0
    %v4075 = vadd.f32 %v3885, %v4074
    %4076 = vdwg.mxu0
    %v4077 = vand.u32 2147483647, %v3966
    %vm4078 = vcmp.le.f32.partialorder %v4077, 0.7853982
    %vm4079 = vcmp.lt.s32.totalorder %v3966, 0
    %v4080 = vand.u32 %v3966, 2139095040
    %v4081 = vshrl.u32 %v4080, 23
    %v4082 = vsub.s32 %v4081, 127
    %v4083 = vand.u32 2147483647, %v3966
    %v4084 = vand.u32 %v4083, 8388607
    %v4085 = vor.u32 %v4084, 8388608
    %v4086 = vsub.s32 0, %v4085
    %v4087 = vadd.s32 %v4082, 1
    %vm4088 = vcmp.gt.s32.totalorder %v4087, 0
    %v4089 = vsel %vm4088, %v4087, 0
    %v4090 = vshrl.u32 %v4089, 5
    %v4091 = vand.u32 %v4089, 31
    %v4092 = vsub.s32 32, %v4091
    %v4093 = vshrl.u32 683565275, %v4092
    %v4094 = vshll.u32 683565275, %v4091
    %v4095 = vshrl.u32 2475754826, %v4092
    %v4096 = vor.u32 %v4094, %v4095
    %v4097 = vshll.u32 2475754826, %v4091
    %v4098 = vshrl.u32 2131351028, %v4092
    %v4099 = vor.u32 %v4097, %v4098
    %v4100 = vshll.u32 2131351028, %v4091
    %v4101 = vshrl.u32 2102212464, %v4092
    %v4102 = vor.u32 %v4100, %v4101
    %v4103 = vshll.u32 2102212464, %v4091
    %v4104 = vshrl.u32 920167782, %v4092
    %v4105 = vor.u32 %v4103, %v4104
    %v4106 = vshll.u32 920167782, %v4091
    %v4107 = vshrl.u32 1326507024, %v4092
    %v4108 = vor.u32 %v4106, %v4107
    %vm4109 = vcmp.lt.s32.totalorder %v4090, 1
    %vm4110 = vcmp.lt.s32.totalorder %v4090, 2
    %vm4111 = vcmp.lt.s32.totalorder %v4090, 3
    %vm4112 = vcmp.lt.s32.totalorder %v4090, 4
    %v4113 = vsel %vm4109, %v4093, %v4096
    %v4114 = vsel %vm4112, %v4102, 2102212464
    %v4115 = vsel %vm4111, %v4099, %v4114
    %v4116 = vsel %vm4110, %v4113, %v4115
    %v4117 = vsel %vm4109, %v4096, %v4099
    %v4118 = vsel %vm4112, %v4105, 920167782
    %v4119 = vsel %vm4111, %v4102, %v4118
    %v4120 = vsel %vm4110, %v4117, %v4119
    %v4121 = vsel %vm4109, %v4099, %v4102
    %v4122 = vsel %vm4112, %v4108, 1326507024
    %v4123 = vsel %vm4111, %v4105, %v4122
    %v4124 = vsel %vm4110, %v4121, %v4123
    %v4125 = vshll.u32 %v4085, 8
    %v4126 = vmul.u32.u64.compose %v4125, %v4124
    %v4127 = vextract.low.u32 %v4126
    %v4128 = vextract.high.u32 %v4126
    %v4129 = vmul.u32.u64.compose %v4125, %v4120
    %v4130 = vextract.low.u32 %v4129
    %v4131 = vextract.high.u32 %v4129
    %v4132 = vmul.u32 %v4125, %v4116
    %v4133 = vadd.s32 %v4128, %v4130
    %vm4134 = vc.u32 %v4128, %v4130
    %v4135 = vadd.s32 %v4131, 1
    %v4136 = vsel %vm4134, %v4135, %v4131
    %v4137 = vadd.s32 %v4132, %v4136
    %v4138 = vadd.s32 %v4137, 536870912
    %v4139 = vshrl.u32 %v4138, 30
    %v4140 = vshll.u32 %v4139, 30
    %v4141 = vsub.s32 %v4137, %v4140
    %vm4142 = vcmp.lt.s32.totalorder %v4141, 0
    %v4143 = vsub.s32 0, %v4141
    %v4144 = vsel %vm4142, %v4143, %v4141
    %v4145 = vclz %v4144
    %v4146 = vsub.s32 %v4145, 2
    %vm4147 = vcmp.gt.s32.totalorder 0, %v4146
    %v4148 = vsel %vm4147, 0, %v4146
    %v4149 = vsub.s32 32, %v4148
    %v4150 = vshll.u32 %v4141, %v4148
    %v4151 = vshrl.u32 %v4133, %v4149
    %v4152 = vor.u32 %v4150, %v4151
    %v4153 = vsub.s32 4294967266, %v4148
    %v4154 = vadd.s32 %v4153, 127
    %v4155 = vshll.u32 %v4154, 23
    %v4156 = vor.u32 4788187, %v4155
    %v4157 = vand.u32 2147483647, %v4156
    %v4159 = vcvt.s32.f32 %v4152
    %v4160 = vmul.f32 %v4159, %v4157
    %v4161 = vxor.u32 %v4160, 2147483648
    %v4162 = vsel %vm4079, %v4161, %v4160
    %v4163 = vsub.s32 4, %v4139
    %v4164 = vsel %vm4079, %v4163, %v4139
    %v4165 = vsel %vm4078, %v3966, %v4162
    %v4166 = vsel %vm4078, 0, %v4164
    %v4167 = vcosq.f32.pop %v4165
    %v4168 = vsinq.f32.pop %v4165
    %vm4169 = vweird.f32 %v3966
    %v4170 = vadd.s32 %v4166, 3
    %v4171 = vand.u32 %v4170, 3
    %vm4172 = vcmp.lt.s32.totalorder %v4171, 2
    %vm4173 = vcmp.eq.s32.totalorder %v4171, 0
    %v4174 = vxor.u32 %v4168, 2147483648
    %v4175 = vsel %vm4173, %v4167, %v4174
    %vm4176 = vcmp.eq.s32.totalorder %v4171, 2
    %v4177 = vxor.u32 %v4167, 2147483648
    %v4178 = vsel %vm4176, %v4177, %v4168
    %v4179 = vsel %vm4172, %v4175, %v4178
    %v4180 = vsel %vm4169, nan, %v4179
    %v4181 = vand.u32 2147483647, %v3968
    %vm4182 = vcmp.le.f32.partialorder %v4181, 0.7853982
    %vm4183 = vcmp.lt.s32.totalorder %v3968, 0
    %v4184 = vand.u32 %v3968, 2139095040
    %v4185 = vshrl.u32 %v4184, 23
    %v4186 = vsub.s32 %v4185, 127
    %v4187 = vand.u32 2147483647, %v3968
    %v4188 = vand.u32 %v4187, 8388607
    %v4189 = vor.u32 %v4188, 8388608
    %v4190 = vsub.s32 0, %v4189
    %v4191 = vadd.s32 %v4186, 1
    %vm4192 = vcmp.gt.s32.totalorder %v4191, 0
    %v4193 = vsel %vm4192, %v4191, 0
    %v4194 = vshrl.u32 %v4193, 5
    %v4195 = vand.u32 %v4193, 31
    %v4196 = vsub.s32 32, %v4195
    %v4197 = vshrl.u32 683565275, %v4196
    %v4198 = vshll.u32 683565275, %v4195
    %v4199 = vshrl.u32 2475754826, %v4196
    %v4200 = vor.u32 %v4198, %v4199
    %v4201 = vshll.u32 2475754826, %v4195
    %v4202 = vshrl.u32 2131351028, %v4196
    %v4203 = vor.u32 %v4201, %v4202
    %v4204 = vshll.u32 2131351028, %v4195
    %v4205 = vshrl.u32 2102212464, %v4196
    %v4206 = vor.u32 %v4204, %v4205
    %v4207 = vshll.u32 2102212464, %v4195
    %v4208 = vshrl.u32 920167782, %v4196
    %v4209 = vor.u32 %v4207, %v4208
    %v4210 = vshll.u32 920167782, %v4195
    %v4211 = vshrl.u32 1326507024, %v4196
    %v4212 = vor.u32 %v4210, %v4211
    %vm4213 = vcmp.lt.s32.totalorder %v4194, 1
    %vm4214 = vcmp.lt.s32.totalorder %v4194, 2
    %vm4215 = vcmp.lt.s32.totalorder %v4194, 3
    %vm4216 = vcmp.lt.s32.totalorder %v4194, 4
    %v4217 = vsel %vm4213, %v4197, %v4200
    %v4218 = vsel %vm4216, %v4206, 2102212464
    %v4219 = vsel %vm4215, %v4203, %v4218
    %v4220 = vsel %vm4214, %v4217, %v4219
    %v4221 = vsel %vm4213, %v4200, %v4203
    %v4222 = vsel %vm4216, %v4209, 920167782
    %v4223 = vsel %vm4215, %v4206, %v4222
    %v4224 = vsel %vm4214, %v4221, %v4223
    %v4225 = vsel %vm4213, %v4203, %v4206
    %v4226 = vsel %vm4216, %v4212, 1326507024
    %v4227 = vsel %vm4215, %v4209, %v4226
    %v4228 = vsel %vm4214, %v4225, %v4227
    %v4229 = vshll.u32 %v4189, 8
    %v4230 = vmul.u32.u64.compose %v4229, %v4228
    %v4231 = vextract.low.u32 %v4230
    %v4232 = vextract.high.u32 %v4230
    %v4233 = vmul.u32.u64.compose %v4229, %v4224
    %v4234 = vextract.low.u32 %v4233
    %v4235 = vextract.high.u32 %v4233
    %v4236 = vmul.u32 %v4229, %v4220
    %v4237 = vadd.s32 %v4232, %v4234
    %vm4238 = vc.u32 %v4232, %v4234
    %v4239 = vadd.s32 %v4235, 1
    %v4240 = vsel %vm4238, %v4239, %v4235
    %v4241 = vadd.s32 %v4236, %v4240
    %v4242 = vadd.s32 %v4241, 536870912
    %v4243 = vshrl.u32 %v4242, 30
    %v4244 = vshll.u32 %v4243, 30
    %v4245 = vsub.s32 %v4241, %v4244
    %vm4246 = vcmp.lt.s32.totalorder %v4245, 0
    %v4247 = vsub.s32 0, %v4245
    %v4248 = vsel %vm4246, %v4247, %v4245
    %v4249 = vclz %v4248
    %v4250 = vsub.s32 %v4249, 2
    %vm4251 = vcmp.gt.s32.totalorder 0, %v4250
    %v4252 = vsel %vm4251, 0, %v4250
    %v4253 = vsub.s32 32, %v4252
    %v4254 = vshll.u32 %v4245, %v4252
    %v4255 = vshrl.u32 %v4237, %v4253
    %v4256 = vor.u32 %v4254, %v4255
    %v4257 = vsub.s32 4294967266, %v4252
    %v4258 = vadd.s32 %v4257, 127
    %v4259 = vshll.u32 %v4258, 23
    %v4260 = vor.u32 4788187, %v4259
    %v4261 = vand.u32 2147483647, %v4260
    %v4263 = vcvt.s32.f32 %v4256
    %v4264 = vmul.f32 %v4263, %v4261
    %v4265 = vxor.u32 %v4264, 2147483648
    %v4266 = vsel %vm4183, %v4265, %v4264
    %v4267 = vsub.s32 4, %v4243
    %v4268 = vsel %vm4183, %v4267, %v4243
    %v4269 = vsel %vm4182, %v3968, %v4266
    %v4270 = vsel %vm4182, 0, %v4268
    %v4271 = vcosq.f32.pop %v4269
    %v4272 = vsinq.f32.pop %v4269
    %vm4273 = vweird.f32 %v3968
    %v4274 = vadd.s32 %v4270, 3
    %v4275 = vand.u32 %v4274, 3
    %vm4276 = vcmp.lt.s32.totalorder %v4275, 2
    %vm4277 = vcmp.eq.s32.totalorder %v4275, 0
    %v4278 = vxor.u32 %v4272, 2147483648
    %v4279 = vsel %vm4277, %v4271, %v4278
    %vm4280 = vcmp.eq.s32.totalorder %v4275, 2
    %v4281 = vxor.u32 %v4271, 2147483648
    %v4282 = vsel %vm4280, %v4281, %v4272
    %v4283 = vsel %vm4276, %v4279, %v4282
    %v4284 = vsel %vm4273, nan, %v4283
    %v4285 = vand.u32 2147483647, %v4055
    %vm4286 = vcmp.le.f32.partialorder %v4285, 0.7853982
    %vm4287 = vcmp.lt.s32.totalorder %v4055, 0
    %v4288 = vand.u32 %v4055, 2139095040
    %v4289 = vshrl.u32 %v4288, 23
    %v4290 = vsub.s32 %v4289, 127
    %v4291 = vand.u32 2147483647, %v4055
    %v4292 = vand.u32 %v4291, 8388607
    %v4293 = vor.u32 %v4292, 8388608
    %v4294 = vsub.s32 0, %v4293
    %v4295 = vadd.s32 %v4290, 1
    %vm4296 = vcmp.gt.s32.totalorder %v4295, 0
    %v4297 = vsel %vm4296, %v4295, 0
    %v4298 = vshrl.u32 %v4297, 5
    %v4299 = vand.u32 %v4297, 31
    %v4300 = vsub.s32 32, %v4299
    %v4301 = vshrl.u32 683565275, %v4300
    %v4302 = vshll.u32 683565275, %v4299
    %v4303 = vshrl.u32 2475754826, %v4300
    %v4304 = vor.u32 %v4302, %v4303
    %v4305 = vshll.u32 2475754826, %v4299
    %v4306 = vshrl.u32 2131351028, %v4300
    %v4307 = vor.u32 %v4305, %v4306
    %v4308 = vshll.u32 2131351028, %v4299
    %v4309 = vshrl.u32 2102212464, %v4300
    %v4310 = vor.u32 %v4308, %v4309
    %v4311 = vshll.u32 2102212464, %v4299
    %v4312 = vshrl.u32 920167782, %v4300
    %v4313 = vor.u32 %v4311, %v4312
    %v4314 = vshll.u32 920167782, %v4299
    %v4315 = vshrl.u32 1326507024, %v4300
    %v4316 = vor.u32 %v4314, %v4315
    %vm4317 = vcmp.lt.s32.totalorder %v4298, 1
    %vm4318 = vcmp.lt.s32.totalorder %v4298, 2
    %vm4319 = vcmp.lt.s32.totalorder %v4298, 3
    %vm4320 = vcmp.lt.s32.totalorder %v4298, 4
    %v4321 = vsel %vm4317, %v4301, %v4304
    %v4322 = vsel %vm4320, %v4310, 2102212464
    %v4323 = vsel %vm4319, %v4307, %v4322
    %v4324 = vsel %vm4318, %v4321, %v4323
    %v4325 = vsel %vm4317, %v4304, %v4307
    %v4326 = vsel %vm4320, %v4313, 920167782
    %v4327 = vsel %vm4319, %v4310, %v4326
    %v4328 = vsel %vm4318, %v4325, %v4327
    %v4329 = vsel %vm4317, %v4307, %v4310
    %v4330 = vsel %vm4320, %v4316, 1326507024
    %v4331 = vsel %vm4319, %v4313, %v4330
    %v4332 = vsel %vm4318, %v4329, %v4331
    %v4333 = vshll.u32 %v4293, 8
    %v4334 = vmul.u32.u64.compose %v4333, %v4332
    %v4335 = vextract.low.u32 %v4334
    %v4336 = vextract.high.u32 %v4334
    %v4337 = vmul.u32.u64.compose %v4333, %v4328
    %v4338 = vextract.low.u32 %v4337
    %v4339 = vextract.high.u32 %v4337
    %v4340 = vmul.u32 %v4333, %v4324
    %v4341 = vadd.s32 %v4336, %v4338
    %vm4342 = vc.u32 %v4336, %v4338
    %v4343 = vadd.s32 %v4339, 1
    %v4344 = vsel %vm4342, %v4343, %v4339
    %v4345 = vadd.s32 %v4340, %v4344
    %v4346 = vadd.s32 %v4345, 536870912
    %v4347 = vshrl.u32 %v4346, 30
    %v4348 = vshll.u32 %v4347, 30
    %v4349 = vsub.s32 %v4345, %v4348
    %vm4350 = vcmp.lt.s32.totalorder %v4349, 0
    %v4351 = vsub.s32 0, %v4349
    %v4352 = vsel %vm4350, %v4351, %v4349
    %v4353 = vclz %v4352
    %v4354 = vsub.s32 %v4353, 2
    %vm4355 = vcmp.gt.s32.totalorder 0, %v4354
    %v4356 = vsel %vm4355, 0, %v4354
    %v4357 = vsub.s32 32, %v4356
    %v4358 = vshll.u32 %v4349, %v4356
    %v4359 = vshrl.u32 %v4341, %v4357
    %v4360 = vor.u32 %v4358, %v4359
    %v4361 = vsub.s32 4294967266, %v4356
    %v4362 = vadd.s32 %v4361, 127
    %v4363 = vshll.u32 %v4362, 23
    %v4364 = vor.u32 4788187, %v4363
    %v4365 = vand.u32 2147483647, %v4364
    %v4367 = vcvt.s32.f32 %v4360
    %v4368 = vmul.f32 %v4367, %v4365
    %v4369 = vxor.u32 %v4368, 2147483648
    %v4370 = vsel %vm4287, %v4369, %v4368
    %v4371 = vsub.s32 4, %v4347
    %v4372 = vsel %vm4287, %v4371, %v4347
    %v4373 = vsel %vm4286, %v4055, %v4370
    %v4374 = vsel %vm4286, 0, %v4372
    %v4375 = vcosq.f32.pop %v4373
    %v4376 = vsinq.f32.pop %v4373
    %vm4377 = vweird.f32 %v4055
    %v4378 = vadd.s32 %v4374, 3
    %v4379 = vand.u32 %v4378, 3
    %vm4380 = vcmp.lt.s32.totalorder %v4379, 2
    %vm4381 = vcmp.eq.s32.totalorder %v4379, 0
    %v4382 = vxor.u32 %v4376, 2147483648
    %v4383 = vsel %vm4381, %v4375, %v4382
    %vm4384 = vcmp.eq.s32.totalorder %v4379, 2
    %v4385 = vxor.u32 %v4375, 2147483648
    %v4386 = vsel %vm4384, %v4385, %v4376
    %v4387 = vsel %vm4380, %v4383, %v4386
    %v4388 = vsel %vm4377, nan, %v4387
    %v4389 = vand.u32 2147483647, %v4057
    %vm4390 = vcmp.le.f32.partialorder %v4389, 0.7853982
    %vm4391 = vcmp.lt.s32.totalorder %v4057, 0
    %v4392 = vand.u32 %v4057, 2139095040
    %v4393 = vshrl.u32 %v4392, 23
    %v4394 = vsub.s32 %v4393, 127
    %v4395 = vand.u32 2147483647, %v4057
    %v4396 = vand.u32 %v4395, 8388607
    %v4397 = vor.u32 %v4396, 8388608
    %v4398 = vsub.s32 0, %v4397
    %v4399 = vadd.s32 %v4394, 1
    %vm4400 = vcmp.gt.s32.totalorder %v4399, 0
    %v4401 = vsel %vm4400, %v4399, 0
    %v4402 = vshrl.u32 %v4401, 5
    %v4403 = vand.u32 %v4401, 31
    %v4404 = vsub.s32 32, %v4403
    %v4405 = vshrl.u32 683565275, %v4404
    %v4406 = vshll.u32 683565275, %v4403
    %v4407 = vshrl.u32 2475754826, %v4404
    %v4408 = vor.u32 %v4406, %v4407
    %v4409 = vshll.u32 2475754826, %v4403
    %v4410 = vshrl.u32 2131351028, %v4404
    %v4411 = vor.u32 %v4409, %v4410
    %v4412 = vshll.u32 2131351028, %v4403
    %v4413 = vshrl.u32 2102212464, %v4404
    %v4414 = vor.u32 %v4412, %v4413
    %v4415 = vshll.u32 2102212464, %v4403
    %v4416 = vshrl.u32 920167782, %v4404
    %v4417 = vor.u32 %v4415, %v4416
    %v4418 = vshll.u32 920167782, %v4403
    %v4419 = vshrl.u32 1326507024, %v4404
    %v4420 = vor.u32 %v4418, %v4419
    %vm4421 = vcmp.lt.s32.totalorder %v4402, 1
    %vm4422 = vcmp.lt.s32.totalorder %v4402, 2
    %vm4423 = vcmp.lt.s32.totalorder %v4402, 3
    %vm4424 = vcmp.lt.s32.totalorder %v4402, 4
    %v4425 = vsel %vm4421, %v4405, %v4408
    %v4426 = vsel %vm4424, %v4414, 2102212464
    %v4427 = vsel %vm4423, %v4411, %v4426
    %v4428 = vsel %vm4422, %v4425, %v4427
    %v4429 = vsel %vm4421, %v4408, %v4411
    %v4430 = vsel %vm4424, %v4417, 920167782
    %v4431 = vsel %vm4423, %v4414, %v4430
    %v4432 = vsel %vm4422, %v4429, %v4431
    %v4433 = vsel %vm4421, %v4411, %v4414
    %v4434 = vsel %vm4424, %v4420, 1326507024
    %v4435 = vsel %vm4423, %v4417, %v4434
    %v4436 = vsel %vm4422, %v4433, %v4435
    %v4437 = vshll.u32 %v4397, 8
    %v4438 = vmul.u32.u64.compose %v4437, %v4436
    %v4439 = vextract.low.u32 %v4438
    %v4440 = vextract.high.u32 %v4438
    %v4441 = vmul.u32.u64.compose %v4437, %v4432
    %v4442 = vextract.low.u32 %v4441
    %v4443 = vextract.high.u32 %v4441
    %v4444 = vmul.u32 %v4437, %v4428
    %v4445 = vadd.s32 %v4440, %v4442
    %vm4446 = vc.u32 %v4440, %v4442
    %v4447 = vadd.s32 %v4443, 1
    %v4448 = vsel %vm4446, %v4447, %v4443
    %v4449 = vadd.s32 %v4444, %v4448
    %v4450 = vadd.s32 %v4449, 536870912
    %v4451 = vshrl.u32 %v4450, 30
    %v4452 = vshll.u32 %v4451, 30
    %v4453 = vsub.s32 %v4449, %v4452
    %vm4454 = vcmp.lt.s32.totalorder %v4453, 0
    %v4455 = vsub.s32 0, %v4453
    %v4456 = vsel %vm4454, %v4455, %v4453
    %v4457 = vclz %v4456
    %v4458 = vsub.s32 %v4457, 2
    %vm4459 = vcmp.gt.s32.totalorder 0, %v4458
    %v4460 = vsel %vm4459, 0, %v4458
    %v4461 = vsub.s32 32, %v4460
    %v4462 = vshll.u32 %v4453, %v4460
    %v4463 = vshrl.u32 %v4445, %v4461
    %v4464 = vor.u32 %v4462, %v4463
    %v4465 = vsub.s32 4294967266, %v4460
    %v4466 = vadd.s32 %v4465, 127
    %v4467 = vshll.u32 %v4466, 23
    %v4468 = vor.u32 4788187, %v4467
    %v4469 = vand.u32 2147483647, %v4468
    %v4471 = vcvt.s32.f32 %v4464
    %v4472 = vmul.f32 %v4471, %v4469
    %v4473 = vxor.u32 %v4472, 2147483648
    %v4474 = vsel %vm4391, %v4473, %v4472
    %v4475 = vsub.s32 4, %v4451
    %v4476 = vsel %vm4391, %v4475, %v4451
    %v4477 = vsel %vm4390, %v4057, %v4474
    %v4478 = vsel %vm4390, 0, %v4476
    %v4479 = vcosq.f32.pop %v4477
    %v4480 = vsinq.f32.pop %v4477
    %vm4481 = vweird.f32 %v4057
    %v4482 = vadd.s32 %v4478, 3
    %v4483 = vand.u32 %v4482, 3
    %vm4484 = vcmp.lt.s32.totalorder %v4483, 2
    %vm4485 = vcmp.eq.s32.totalorder %v4483, 0
    %v4486 = vxor.u32 %v4480, 2147483648
    %v4487 = vsel %vm4485, %v4479, %v4486
    %vm4488 = vcmp.eq.s32.totalorder %v4483, 2
    %v4489 = vxor.u32 %v4479, 2147483648
    %v4490 = vsel %vm4488, %v4489, %v4480
    %v4491 = vsel %vm4484, %v4487, %v4490
    %v4492 = vsel %vm4481, nan, %v4491
    %v4493 = vand.u32 2147483647, %v3972
    %vm4494 = vcmp.le.f32.partialorder %v4493, 0.7853982
    %vm4495 = vcmp.lt.s32.totalorder %v3972, 0
    %v4496 = vand.u32 %v3972, 2139095040
    %v4497 = vshrl.u32 %v4496, 23
    %v4498 = vsub.s32 %v4497, 127
    %v4499 = vand.u32 2147483647, %v3972
    %v4500 = vand.u32 %v4499, 8388607
    %v4501 = vor.u32 %v4500, 8388608
    %v4502 = vsub.s32 0, %v4501
    %v4503 = vadd.s32 %v4498, 1
    %vm4504 = vcmp.gt.s32.totalorder %v4503, 0
    %v4505 = vsel %vm4504, %v4503, 0
    %v4506 = vshrl.u32 %v4505, 5
    %v4507 = vand.u32 %v4505, 31
    %v4508 = vsub.s32 32, %v4507
    %v4509 = vshrl.u32 683565275, %v4508
    %v4510 = vshll.u32 683565275, %v4507
    %v4511 = vshrl.u32 2475754826, %v4508
    %v4512 = vor.u32 %v4510, %v4511
    %v4513 = vshll.u32 2475754826, %v4507
    %v4514 = vshrl.u32 2131351028, %v4508
    %v4515 = vor.u32 %v4513, %v4514
    %v4516 = vshll.u32 2131351028, %v4507
    %v4517 = vshrl.u32 2102212464, %v4508
    %v4518 = vor.u32 %v4516, %v4517
    %v4519 = vshll.u32 2102212464, %v4507
    %v4520 = vshrl.u32 920167782, %v4508
    %v4521 = vor.u32 %v4519, %v4520
    %v4522 = vshll.u32 920167782, %v4507
    %v4523 = vshrl.u32 1326507024, %v4508
    %v4524 = vor.u32 %v4522, %v4523
    %vm4525 = vcmp.lt.s32.totalorder %v4506, 1
    %vm4526 = vcmp.lt.s32.totalorder %v4506, 2
    %vm4527 = vcmp.lt.s32.totalorder %v4506, 3
    %vm4528 = vcmp.lt.s32.totalorder %v4506, 4
    %v4529 = vsel %vm4525, %v4509, %v4512
    %v4530 = vsel %vm4528, %v4518, 2102212464
    %v4531 = vsel %vm4527, %v4515, %v4530
    %v4532 = vsel %vm4526, %v4529, %v4531
    %v4533 = vsel %vm4525, %v4512, %v4515
    %v4534 = vsel %vm4528, %v4521, 920167782
    %v4535 = vsel %vm4527, %v4518, %v4534
    %v4536 = vsel %vm4526, %v4533, %v4535
    %v4537 = vsel %vm4525, %v4515, %v4518
    %v4538 = vsel %vm4528, %v4524, 1326507024
    %v4539 = vsel %vm4527, %v4521, %v4538
    %v4540 = vsel %vm4526, %v4537, %v4539
    %v4541 = vshll.u32 %v4501, 8
    %v4542 = vmul.u32.u64.compose %v4541, %v4540
    %v4543 = vextract.low.u32 %v4542
    %v4544 = vextract.high.u32 %v4542
    %v4545 = vmul.u32.u64.compose %v4541, %v4536
    %v4546 = vextract.low.u32 %v4545
    %v4547 = vextract.high.u32 %v4545
    %v4548 = vmul.u32 %v4541, %v4532
    %v4549 = vadd.s32 %v4544, %v4546
    %vm4550 = vc.u32 %v4544, %v4546
    %v4551 = vadd.s32 %v4547, 1
    %v4552 = vsel %vm4550, %v4551, %v4547
    %v4553 = vadd.s32 %v4548, %v4552
    %v4554 = vadd.s32 %v4553, 536870912
    %v4555 = vshrl.u32 %v4554, 30
    %v4556 = vshll.u32 %v4555, 30
    %v4557 = vsub.s32 %v4553, %v4556
    %vm4558 = vcmp.lt.s32.totalorder %v4557, 0
    %v4559 = vsub.s32 0, %v4557
    %v4560 = vsel %vm4558, %v4559, %v4557
    %v4561 = vclz %v4560
    %v4562 = vsub.s32 %v4561, 2
    %vm4563 = vcmp.gt.s32.totalorder 0, %v4562
    %v4564 = vsel %vm4563, 0, %v4562
    %v4565 = vsub.s32 32, %v4564
    %v4566 = vshll.u32 %v4557, %v4564
    %v4567 = vshrl.u32 %v4549, %v4565
    %v4568 = vor.u32 %v4566, %v4567
    %v4569 = vsub.s32 4294967266, %v4564
    %v4570 = vadd.s32 %v4569, 127
    %v4571 = vshll.u32 %v4570, 23
    %v4572 = vor.u32 4788187, %v4571
    %v4573 = vand.u32 2147483647, %v4572
    %v4575 = vcvt.s32.f32 %v4568
    %v4576 = vmul.f32 %v4575, %v4573
    %v4577 = vxor.u32 %v4576, 2147483648
    %v4578 = vsel %vm4495, %v4577, %v4576
    %v4579 = vsub.s32 4, %v4555
    %v4580 = vsel %vm4495, %v4579, %v4555
    %v4581 = vsel %vm4494, %v3972, %v4578
    %v4582 = vsel %vm4494, 0, %v4580
    %v4583 = vcosq.f32.pop %v4581
    %v4584 = vsinq.f32.pop %v4581
    %vm4585 = vweird.f32 %v3972
    %v4586 = vadd.s32 %v4582, 3
    %v4587 = vand.u32 %v4586, 3
    %vm4588 = vcmp.lt.s32.totalorder %v4587, 2
    %vm4589 = vcmp.eq.s32.totalorder %v4587, 0
    %v4590 = vxor.u32 %v4584, 2147483648
    %v4591 = vsel %vm4589, %v4583, %v4590
    %vm4592 = vcmp.eq.s32.totalorder %v4587, 2
    %v4593 = vxor.u32 %v4583, 2147483648
    %v4594 = vsel %vm4592, %v4593, %v4584
    %v4595 = vsel %vm4588, %v4591, %v4594
    %v4596 = vsel %vm4585, nan, %v4595
    %v4597 = vand.u32 2147483647, %v3974
    %vm4598 = vcmp.le.f32.partialorder %v4597, 0.7853982
    %vm4599 = vcmp.lt.s32.totalorder %v3974, 0
    %v4600 = vand.u32 %v3974, 2139095040
    %v4601 = vshrl.u32 %v4600, 23
    %v4602 = vsub.s32 %v4601, 127
    %v4603 = vand.u32 2147483647, %v3974
    %v4604 = vand.u32 %v4603, 8388607
    %v4605 = vor.u32 %v4604, 8388608
    %v4606 = vsub.s32 0, %v4605
    %v4607 = vadd.s32 %v4602, 1
    %vm4608 = vcmp.gt.s32.totalorder %v4607, 0
    %v4609 = vsel %vm4608, %v4607, 0
    %v4610 = vshrl.u32 %v4609, 5
    %v4611 = vand.u32 %v4609, 31
    %v4612 = vsub.s32 32, %v4611
    %v4613 = vshrl.u32 683565275, %v4612
    %v4614 = vshll.u32 683565275, %v4611
    %v4615 = vshrl.u32 2475754826, %v4612
    %v4616 = vor.u32 %v4614, %v4615
    %v4617 = vshll.u32 2475754826, %v4611
    %v4618 = vshrl.u32 2131351028, %v4612
    %v4619 = vor.u32 %v4617, %v4618
    %v4620 = vshll.u32 2131351028, %v4611
    %v4621 = vshrl.u32 2102212464, %v4612
    %v4622 = vor.u32 %v4620, %v4621
    %v4623 = vshll.u32 2102212464, %v4611
    %v4624 = vshrl.u32 920167782, %v4612
    %v4625 = vor.u32 %v4623, %v4624
    %v4626 = vshll.u32 920167782, %v4611
    %v4627 = vshrl.u32 1326507024, %v4612
    %v4628 = vor.u32 %v4626, %v4627
    %vm4629 = vcmp.lt.s32.totalorder %v4610, 1
    %vm4630 = vcmp.lt.s32.totalorder %v4610, 2
    %vm4631 = vcmp.lt.s32.totalorder %v4610, 3
    %vm4632 = vcmp.lt.s32.totalorder %v4610, 4
    %v4633 = vsel %vm4629, %v4613, %v4616
    %v4634 = vsel %vm4632, %v4622, 2102212464
    %v4635 = vsel %vm4631, %v4619, %v4634
    %v4636 = vsel %vm4630, %v4633, %v4635
    %v4637 = vsel %vm4629, %v4616, %v4619
    %v4638 = vsel %vm4632, %v4625, 920167782
    %v4639 = vsel %vm4631, %v4622, %v4638
    %v4640 = vsel %vm4630, %v4637, %v4639
    %v4641 = vsel %vm4629, %v4619, %v4622
    %v4642 = vsel %vm4632, %v4628, 1326507024
    %v4643 = vsel %vm4631, %v4625, %v4642
    %v4644 = vsel %vm4630, %v4641, %v4643
    %v4645 = vshll.u32 %v4605, 8
    %v4646 = vmul.u32.u64.compose %v4645, %v4644
    %v4647 = vextract.low.u32 %v4646
    %v4648 = vextract.high.u32 %v4646
    %v4649 = vmul.u32.u64.compose %v4645, %v4640
    %v4650 = vextract.low.u32 %v4649
    %v4651 = vextract.high.u32 %v4649
    %v4652 = vmul.u32 %v4645, %v4636
    %v4653 = vadd.s32 %v4648, %v4650
    %vm4654 = vc.u32 %v4648, %v4650
    %v4655 = vadd.s32 %v4651, 1
    %v4656 = vsel %vm4654, %v4655, %v4651
    %v4657 = vadd.s32 %v4652, %v4656
    %v4658 = vadd.s32 %v4657, 536870912
    %v4659 = vshrl.u32 %v4658, 30
    %v4660 = vshll.u32 %v4659, 30
    %v4661 = vsub.s32 %v4657, %v4660
    %vm4662 = vcmp.lt.s32.totalorder %v4661, 0
    %v4663 = vsub.s32 0, %v4661
    %v4664 = vsel %vm4662, %v4663, %v4661
    %v4665 = vclz %v4664
    %v4666 = vsub.s32 %v4665, 2
    %vm4667 = vcmp.gt.s32.totalorder 0, %v4666
    %v4668 = vsel %vm4667, 0, %v4666
    %v4669 = vsub.s32 32, %v4668
    %v4670 = vshll.u32 %v4661, %v4668
    %v4671 = vshrl.u32 %v4653, %v4669
    %v4672 = vor.u32 %v4670, %v4671
    %v4673 = vsub.s32 4294967266, %v4668
    %v4674 = vadd.s32 %v4673, 127
    %v4675 = vshll.u32 %v4674, 23
    %v4676 = vor.u32 4788187, %v4675
    %v4677 = vand.u32 2147483647, %v4676
    %v4679 = vcvt.s32.f32 %v4672
    %v4680 = vmul.f32 %v4679, %v4677
    %v4681 = vxor.u32 %v4680, 2147483648
    %v4682 = vsel %vm4599, %v4681, %v4680
    %v4683 = vsub.s32 4, %v4659
    %v4684 = vsel %vm4599, %v4683, %v4659
    %v4685 = vsel %vm4598, %v3974, %v4682
    %v4686 = vsel %vm4598, 0, %v4684
    %v4687 = vcosq.f32.pop %v4685
    %v4688 = vsinq.f32.pop %v4685
    %vm4689 = vweird.f32 %v3974
    %v4690 = vadd.s32 %v4686, 3
    %v4691 = vand.u32 %v4690, 3
    %vm4692 = vcmp.lt.s32.totalorder %v4691, 2
    %vm4693 = vcmp.eq.s32.totalorder %v4691, 0
    %v4694 = vxor.u32 %v4688, 2147483648
    %v4695 = vsel %vm4693, %v4687, %v4694
    %vm4696 = vcmp.eq.s32.totalorder %v4691, 2
    %v4697 = vxor.u32 %v4687, 2147483648
    %v4698 = vsel %vm4696, %v4697, %v4688
    %v4699 = vsel %vm4692, %v4695, %v4698
    %v4700 = vsel %vm4689, nan, %v4699
    %v4701 = vand.u32 2147483647, %v4061
    %vm4702 = vcmp.le.f32.partialorder %v4701, 0.7853982
    %vm4703 = vcmp.lt.s32.totalorder %v4061, 0
    %v4704 = vand.u32 %v4061, 2139095040
    %v4705 = vshrl.u32 %v4704, 23
    %v4706 = vsub.s32 %v4705, 127
    %v4707 = vand.u32 2147483647, %v4061
    %v4708 = vand.u32 %v4707, 8388607
    %v4709 = vor.u32 %v4708, 8388608
    %v4710 = vsub.s32 0, %v4709
    %v4711 = vadd.s32 %v4706, 1
    %vm4712 = vcmp.gt.s32.totalorder %v4711, 0
    %v4713 = vsel %vm4712, %v4711, 0
    %v4714 = vshrl.u32 %v4713, 5
    %v4715 = vand.u32 %v4713, 31
    %v4716 = vsub.s32 32, %v4715
    %v4717 = vshrl.u32 683565275, %v4716
    %v4718 = vshll.u32 683565275, %v4715
    %v4719 = vshrl.u32 2475754826, %v4716
    %v4720 = vor.u32 %v4718, %v4719
    %v4721 = vshll.u32 2475754826, %v4715
    %v4722 = vshrl.u32 2131351028, %v4716
    %v4723 = vor.u32 %v4721, %v4722
    %v4724 = vshll.u32 2131351028, %v4715
    %v4725 = vshrl.u32 2102212464, %v4716
    %v4726 = vor.u32 %v4724, %v4725
    %v4727 = vshll.u32 2102212464, %v4715
    %v4728 = vshrl.u32 920167782, %v4716
    %v4729 = vor.u32 %v4727, %v4728
    %v4730 = vshll.u32 920167782, %v4715
    %v4731 = vshrl.u32 1326507024, %v4716
    %v4732 = vor.u32 %v4730, %v4731
    %vm4733 = vcmp.lt.s32.totalorder %v4714, 1
    %vm4734 = vcmp.lt.s32.totalorder %v4714, 2
    %vm4735 = vcmp.lt.s32.totalorder %v4714, 3
    %vm4736 = vcmp.lt.s32.totalorder %v4714, 4
    %v4737 = vsel %vm4733, %v4717, %v4720
    %v4738 = vsel %vm4736, %v4726, 2102212464
    %v4739 = vsel %vm4735, %v4723, %v4738
    %v4740 = vsel %vm4734, %v4737, %v4739
    %v4741 = vsel %vm4733, %v4720, %v4723
    %v4742 = vsel %vm4736, %v4729, 920167782
    %v4743 = vsel %vm4735, %v4726, %v4742
    %v4744 = vsel %vm4734, %v4741, %v4743
    %v4745 = vsel %vm4733, %v4723, %v4726
    %v4746 = vsel %vm4736, %v4732, 1326507024
    %v4747 = vsel %vm4735, %v4729, %v4746
    %v4748 = vsel %vm4734, %v4745, %v4747
    %v4749 = vshll.u32 %v4709, 8
    %v4750 = vmul.u32.u64.compose %v4749, %v4748
    %v4751 = vextract.low.u32 %v4750
    %v4752 = vextract.high.u32 %v4750
    %v4753 = vmul.u32.u64.compose %v4749, %v4744
    %v4754 = vextract.low.u32 %v4753
    %v4755 = vextract.high.u32 %v4753
    %v4756 = vmul.u32 %v4749, %v4740
    %v4757 = vadd.s32 %v4752, %v4754
    %vm4758 = vc.u32 %v4752, %v4754
    %v4759 = vadd.s32 %v4755, 1
    %v4760 = vsel %vm4758, %v4759, %v4755
    %v4761 = vadd.s32 %v4756, %v4760
    %v4762 = vadd.s32 %v4761, 536870912
    %v4763 = vshrl.u32 %v4762, 30
    %v4764 = vshll.u32 %v4763, 30
    %v4765 = vsub.s32 %v4761, %v4764
    %vm4766 = vcmp.lt.s32.totalorder %v4765, 0
    %v4767 = vsub.s32 0, %v4765
    %v4768 = vsel %vm4766, %v4767, %v4765
    %v4769 = vclz %v4768
    %v4770 = vsub.s32 %v4769, 2
    %vm4771 = vcmp.gt.s32.totalorder 0, %v4770
    %v4772 = vsel %vm4771, 0, %v4770
    %v4773 = vsub.s32 32, %v4772
    %v4774 = vshll.u32 %v4765, %v4772
    %v4775 = vshrl.u32 %v4757, %v4773
    %v4776 = vor.u32 %v4774, %v4775
    %v4777 = vsub.s32 4294967266, %v4772
    %v4778 = vadd.s32 %v4777, 127
    %v4779 = vshll.u32 %v4778, 23
    %v4780 = vor.u32 4788187, %v4779
    %v4781 = vand.u32 2147483647, %v4780
    %v4783 = vcvt.s32.f32 %v4776
    %v4784 = vmul.f32 %v4783, %v4781
    %v4785 = vxor.u32 %v4784, 2147483648
    %v4786 = vsel %vm4703, %v4785, %v4784
    %v4787 = vsub.s32 4, %v4763
    %v4788 = vsel %vm4703, %v4787, %v4763
    %v4789 = vsel %vm4702, %v4061, %v4786
    %v4790 = vsel %vm4702, 0, %v4788
    %v4791 = vcosq.f32.pop %v4789
    %v4792 = vsinq.f32.pop %v4789
    %vm4793 = vweird.f32 %v4061
    %v4794 = vadd.s32 %v4790, 3
    %v4795 = vand.u32 %v4794, 3
    %vm4796 = vcmp.lt.s32.totalorder %v4795, 2
    %vm4797 = vcmp.eq.s32.totalorder %v4795, 0
    %v4798 = vxor.u32 %v4792, 2147483648
    %v4799 = vsel %vm4797, %v4791, %v4798
    %vm4800 = vcmp.eq.s32.totalorder %v4795, 2
    %v4801 = vxor.u32 %v4791, 2147483648
    %v4802 = vsel %vm4800, %v4801, %v4792
    %v4803 = vsel %vm4796, %v4799, %v4802
    %v4804 = vsel %vm4793, nan, %v4803
    %v4805 = vand.u32 2147483647, %v4063
    %vm4806 = vcmp.le.f32.partialorder %v4805, 0.7853982
    %vm4807 = vcmp.lt.s32.totalorder %v4063, 0
    %v4808 = vand.u32 %v4063, 2139095040
    %v4809 = vshrl.u32 %v4808, 23
    %v4810 = vsub.s32 %v4809, 127
    %v4811 = vand.u32 2147483647, %v4063
    %v4812 = vand.u32 %v4811, 8388607
    %v4813 = vor.u32 %v4812, 8388608
    %v4814 = vsub.s32 0, %v4813
    %v4815 = vadd.s32 %v4810, 1
    %vm4816 = vcmp.gt.s32.totalorder %v4815, 0
    %v4817 = vsel %vm4816, %v4815, 0
    %v4818 = vshrl.u32 %v4817, 5
    %v4819 = vand.u32 %v4817, 31
    %v4820 = vsub.s32 32, %v4819
    %v4821 = vshrl.u32 683565275, %v4820
    %v4822 = vshll.u32 683565275, %v4819
    %v4823 = vshrl.u32 2475754826, %v4820
    %v4824 = vor.u32 %v4822, %v4823
    %v4825 = vshll.u32 2475754826, %v4819
    %v4826 = vshrl.u32 2131351028, %v4820
    %v4827 = vor.u32 %v4825, %v4826
    %v4828 = vshll.u32 2131351028, %v4819
    %v4829 = vshrl.u32 2102212464, %v4820
    %v4830 = vor.u32 %v4828, %v4829
    %v4831 = vshll.u32 2102212464, %v4819
    %v4832 = vshrl.u32 920167782, %v4820
    %v4833 = vor.u32 %v4831, %v4832
    %v4834 = vshll.u32 920167782, %v4819
    %v4835 = vshrl.u32 1326507024, %v4820
    %v4836 = vor.u32 %v4834, %v4835
    %vm4837 = vcmp.lt.s32.totalorder %v4818, 1
    %vm4838 = vcmp.lt.s32.totalorder %v4818, 2
    %vm4839 = vcmp.lt.s32.totalorder %v4818, 3
    %vm4840 = vcmp.lt.s32.totalorder %v4818, 4
    %v4841 = vsel %vm4837, %v4821, %v4824
    %v4842 = vsel %vm4840, %v4830, 2102212464
    %v4843 = vsel %vm4839, %v4827, %v4842
    %v4844 = vsel %vm4838, %v4841, %v4843
    %v4845 = vsel %vm4837, %v4824, %v4827
    %v4846 = vsel %vm4840, %v4833, 920167782
    %v4847 = vsel %vm4839, %v4830, %v4846
    %v4848 = vsel %vm4838, %v4845, %v4847
    %v4849 = vsel %vm4837, %v4827, %v4830
    %v4850 = vsel %vm4840, %v4836, 1326507024
    %v4851 = vsel %vm4839, %v4833, %v4850
    %v4852 = vsel %vm4838, %v4849, %v4851
    %v4853 = vshll.u32 %v4813, 8
    %v4854 = vmul.u32.u64.compose %v4853, %v4852
    %v4855 = vextract.low.u32 %v4854
    %v4856 = vextract.high.u32 %v4854
    %v4857 = vmul.u32.u64.compose %v4853, %v4848
    %v4858 = vextract.low.u32 %v4857
    %v4859 = vextract.high.u32 %v4857
    %v4860 = vmul.u32 %v4853, %v4844
    %v4861 = vadd.s32 %v4856, %v4858
    %vm4862 = vc.u32 %v4856, %v4858
    %v4863 = vadd.s32 %v4859, 1
    %v4864 = vsel %vm4862, %v4863, %v4859
    %v4865 = vadd.s32 %v4860, %v4864
    %v4866 = vadd.s32 %v4865, 536870912
    %v4867 = vshrl.u32 %v4866, 30
    %v4868 = vshll.u32 %v4867, 30
    %v4869 = vsub.s32 %v4865, %v4868
    %vm4870 = vcmp.lt.s32.totalorder %v4869, 0
    %v4871 = vsub.s32 0, %v4869
    %v4872 = vsel %vm4870, %v4871, %v4869
    %v4873 = vclz %v4872
    %v4874 = vsub.s32 %v4873, 2
    %vm4875 = vcmp.gt.s32.totalorder 0, %v4874
    %v4876 = vsel %vm4875, 0, %v4874
    %v4877 = vsub.s32 32, %v4876
    %v4878 = vshll.u32 %v4869, %v4876
    %v4879 = vshrl.u32 %v4861, %v4877
    %v4880 = vor.u32 %v4878, %v4879
    %v4881 = vsub.s32 4294967266, %v4876
    %v4882 = vadd.s32 %v4881, 127
    %v4883 = vshll.u32 %v4882, 23
    %v4884 = vor.u32 4788187, %v4883
    %v4885 = vand.u32 2147483647, %v4884
    %v4887 = vcvt.s32.f32 %v4880
    %v4888 = vmul.f32 %v4887, %v4885
    %v4889 = vxor.u32 %v4888, 2147483648
    %v4890 = vsel %vm4807, %v4889, %v4888
    %v4891 = vsub.s32 4, %v4867
    %v4892 = vsel %vm4807, %v4891, %v4867
    %v4893 = vsel %vm4806, %v4063, %v4890
    %v4894 = vsel %vm4806, 0, %v4892
    %v4895 = vcosq.f32.pop %v4893
    %v4896 = vsinq.f32.pop %v4893
    %vm4897 = vweird.f32 %v4063
    %v4898 = vadd.s32 %v4894, 3
    %v4899 = vand.u32 %v4898, 3
    %vm4900 = vcmp.lt.s32.totalorder %v4899, 2
    %vm4901 = vcmp.eq.s32.totalorder %v4899, 0
    %v4902 = vxor.u32 %v4896, 2147483648
    %v4903 = vsel %vm4901, %v4895, %v4902
    %vm4904 = vcmp.eq.s32.totalorder %v4899, 2
    %v4905 = vxor.u32 %v4895, 2147483648
    %v4906 = vsel %vm4904, %v4905, %v4896
    %v4907 = vsel %vm4900, %v4903, %v4906
    %v4908 = vsel %vm4897, nan, %v4907
    %v4909 = vand.u32 2147483647, %v3978
    %vm4910 = vcmp.le.f32.partialorder %v4909, 0.7853982
    %vm4911 = vcmp.lt.s32.totalorder %v3978, 0
    %v4912 = vand.u32 %v3978, 2139095040
    %v4913 = vshrl.u32 %v4912, 23
    %v4914 = vsub.s32 %v4913, 127
    %v4915 = vand.u32 2147483647, %v3978
    %v4916 = vand.u32 %v4915, 8388607
    %v4917 = vor.u32 %v4916, 8388608
    %v4918 = vsub.s32 0, %v4917
    %v4919 = vadd.s32 %v4914, 1
    %vm4920 = vcmp.gt.s32.totalorder %v4919, 0
    %v4921 = vsel %vm4920, %v4919, 0
    %v4922 = vshrl.u32 %v4921, 5
    %v4923 = vand.u32 %v4921, 31
    %v4924 = vsub.s32 32, %v4923
    %v4925 = vshrl.u32 683565275, %v4924
    %v4926 = vshll.u32 683565275, %v4923
    %v4927 = vshrl.u32 2475754826, %v4924
    %v4928 = vor.u32 %v4926, %v4927
    %v4929 = vshll.u32 2475754826, %v4923
    %v4930 = vshrl.u32 2131351028, %v4924
    %v4931 = vor.u32 %v4929, %v4930
    %v4932 = vshll.u32 2131351028, %v4923
    %v4933 = vshrl.u32 2102212464, %v4924
    %v4934 = vor.u32 %v4932, %v4933
    %v4935 = vshll.u32 2102212464, %v4923
    %v4936 = vshrl.u32 920167782, %v4924
    %v4937 = vor.u32 %v4935, %v4936
    %v4938 = vshll.u32 920167782, %v4923
    %v4939 = vshrl.u32 1326507024, %v4924
    %v4940 = vor.u32 %v4938, %v4939
    %vm4941 = vcmp.lt.s32.totalorder %v4922, 1
    %vm4942 = vcmp.lt.s32.totalorder %v4922, 2
    %vm4943 = vcmp.lt.s32.totalorder %v4922, 3
    %vm4944 = vcmp.lt.s32.totalorder %v4922, 4
    %v4945 = vsel %vm4941, %v4925, %v4928
    %v4946 = vsel %vm4944, %v4934, 2102212464
    %v4947 = vsel %vm4943, %v4931, %v4946
    %v4948 = vsel %vm4942, %v4945, %v4947
    %v4949 = vsel %vm4941, %v4928, %v4931
    %v4950 = vsel %vm4944, %v4937, 920167782
    %v4951 = vsel %vm4943, %v4934, %v4950
    %v4952 = vsel %vm4942, %v4949, %v4951
    %v4953 = vsel %vm4941, %v4931, %v4934
    %v4954 = vsel %vm4944, %v4940, 1326507024
    %v4955 = vsel %vm4943, %v4937, %v4954
    %v4956 = vsel %vm4942, %v4953, %v4955
    %v4957 = vshll.u32 %v4917, 8
    %v4958 = vmul.u32.u64.compose %v4957, %v4956
    %v4959 = vextract.low.u32 %v4958
    %v4960 = vextract.high.u32 %v4958
    %v4961 = vmul.u32.u64.compose %v4957, %v4952
    %v4962 = vextract.low.u32 %v4961
    %v4963 = vextract.high.u32 %v4961
    %v4964 = vmul.u32 %v4957, %v4948
    %v4965 = vadd.s32 %v4960, %v4962
    %vm4966 = vc.u32 %v4960, %v4962
    %v4967 = vadd.s32 %v4963, 1
    %v4968 = vsel %vm4966, %v4967, %v4963
    %v4969 = vadd.s32 %v4964, %v4968
    %v4970 = vadd.s32 %v4969, 536870912
    %v4971 = vshrl.u32 %v4970, 30
    %v4972 = vshll.u32 %v4971, 30
    %v4973 = vsub.s32 %v4969, %v4972
    %vm4974 = vcmp.lt.s32.totalorder %v4973, 0
    %v4975 = vsub.s32 0, %v4973
    %v4976 = vsel %vm4974, %v4975, %v4973
    %v4977 = vclz %v4976
    %v4978 = vsub.s32 %v4977, 2
    %vm4979 = vcmp.gt.s32.totalorder 0, %v4978
    %v4980 = vsel %vm4979, 0, %v4978
    %v4981 = vsub.s32 32, %v4980
    %v4982 = vshll.u32 %v4973, %v4980
    %v4983 = vshrl.u32 %v4965, %v4981
    %v4984 = vor.u32 %v4982, %v4983
    %v4985 = vsub.s32 4294967266, %v4980
    %v4986 = vadd.s32 %v4985, 127
    %v4987 = vshll.u32 %v4986, 23
    %v4988 = vor.u32 4788187, %v4987
    %v4989 = vand.u32 2147483647, %v4988
    %v4991 = vcvt.s32.f32 %v4984
    %v4992 = vmul.f32 %v4991, %v4989
    %v4993 = vxor.u32 %v4992, 2147483648
    %v4994 = vsel %vm4911, %v4993, %v4992
    %v4995 = vsub.s32 4, %v4971
    %v4996 = vsel %vm4911, %v4995, %v4971
    %v4997 = vsel %vm4910, %v3978, %v4994
    %v4998 = vsel %vm4910, 0, %v4996
    %v4999 = vcosq.f32.pop %v4997
    %v5000 = vsinq.f32.pop %v4997
    %vm5001 = vweird.f32 %v3978
    %v5002 = vadd.s32 %v4998, 3
    %v5003 = vand.u32 %v5002, 3
    %vm5004 = vcmp.lt.s32.totalorder %v5003, 2
    %vm5005 = vcmp.eq.s32.totalorder %v5003, 0
    %v5006 = vxor.u32 %v5000, 2147483648
    %v5007 = vsel %vm5005, %v4999, %v5006
    %vm5008 = vcmp.eq.s32.totalorder %v5003, 2
    %v5009 = vxor.u32 %v4999, 2147483648
    %v5010 = vsel %vm5008, %v5009, %v5000
    %v5011 = vsel %vm5004, %v5007, %v5010
    %v5012 = vsel %vm5001, nan, %v5011
    %v5013 = vand.u32 2147483647, %v3980
    %vm5014 = vcmp.le.f32.partialorder %v5013, 0.7853982
    %vm5015 = vcmp.lt.s32.totalorder %v3980, 0
    %v5016 = vand.u32 %v3980, 2139095040
    %v5017 = vshrl.u32 %v5016, 23
    %v5018 = vsub.s32 %v5017, 127
    %v5019 = vand.u32 2147483647, %v3980
    %v5020 = vand.u32 %v5019, 8388607
    %v5021 = vor.u32 %v5020, 8388608
    %v5022 = vsub.s32 0, %v5021
    %v5023 = vadd.s32 %v5018, 1
    %vm5024 = vcmp.gt.s32.totalorder %v5023, 0
    %v5025 = vsel %vm5024, %v5023, 0
    %v5026 = vshrl.u32 %v5025, 5
    %v5027 = vand.u32 %v5025, 31
    %v5028 = vsub.s32 32, %v5027
    %v5029 = vshrl.u32 683565275, %v5028
    %v5030 = vshll.u32 683565275, %v5027
    %v5031 = vshrl.u32 2475754826, %v5028
    %v5032 = vor.u32 %v5030, %v5031
    %v5033 = vshll.u32 2475754826, %v5027
    %v5034 = vshrl.u32 2131351028, %v5028
    %v5035 = vor.u32 %v5033, %v5034
    %v5036 = vshll.u32 2131351028, %v5027
    %v5037 = vshrl.u32 2102212464, %v5028
    %v5038 = vor.u32 %v5036, %v5037
    %v5039 = vshll.u32 2102212464, %v5027
    %v5040 = vshrl.u32 920167782, %v5028
    %v5041 = vor.u32 %v5039, %v5040
    %v5042 = vshll.u32 920167782, %v5027
    %v5043 = vshrl.u32 1326507024, %v5028
    %v5044 = vor.u32 %v5042, %v5043
    %vm5045 = vcmp.lt.s32.totalorder %v5026, 1
    %vm5046 = vcmp.lt.s32.totalorder %v5026, 2
    %vm5047 = vcmp.lt.s32.totalorder %v5026, 3
    %vm5048 = vcmp.lt.s32.totalorder %v5026, 4
    %v5049 = vsel %vm5045, %v5029, %v5032
    %v5050 = vsel %vm5048, %v5038, 2102212464
    %v5051 = vsel %vm5047, %v5035, %v5050
    %v5052 = vsel %vm5046, %v5049, %v5051
    %v5053 = vsel %vm5045, %v5032, %v5035
    %v5054 = vsel %vm5048, %v5041, 920167782
    %v5055 = vsel %vm5047, %v5038, %v5054
    %v5056 = vsel %vm5046, %v5053, %v5055
    %v5057 = vsel %vm5045, %v5035, %v5038
    %v5058 = vsel %vm5048, %v5044, 1326507024
    %v5059 = vsel %vm5047, %v5041, %v5058
    %v5060 = vsel %vm5046, %v5057, %v5059
    %v5061 = vshll.u32 %v5021, 8
    %v5062 = vmul.u32.u64.compose %v5061, %v5060
    %v5063 = vextract.low.u32 %v5062
    %v5064 = vextract.high.u32 %v5062
    %v5065 = vmul.u32.u64.compose %v5061, %v5056
    %v5066 = vextract.low.u32 %v5065
    %v5067 = vextract.high.u32 %v5065
    %v5068 = vmul.u32 %v5061, %v5052
    %v5069 = vadd.s32 %v5064, %v5066
    %vm5070 = vc.u32 %v5064, %v5066
    %v5071 = vadd.s32 %v5067, 1
    %v5072 = vsel %vm5070, %v5071, %v5067
    %v5073 = vadd.s32 %v5068, %v5072
    %v5074 = vadd.s32 %v5073, 536870912
    %v5075 = vshrl.u32 %v5074, 30
    %v5076 = vshll.u32 %v5075, 30
    %v5077 = vsub.s32 %v5073, %v5076
    %vm5078 = vcmp.lt.s32.totalorder %v5077, 0
    %v5079 = vsub.s32 0, %v5077
    %v5080 = vsel %vm5078, %v5079, %v5077
    %v5081 = vclz %v5080
    %v5082 = vsub.s32 %v5081, 2
    %vm5083 = vcmp.gt.s32.totalorder 0, %v5082
    %v5084 = vsel %vm5083, 0, %v5082
    %v5085 = vsub.s32 32, %v5084
    %v5086 = vshll.u32 %v5077, %v5084
    %v5087 = vshrl.u32 %v5069, %v5085
    %v5088 = vor.u32 %v5086, %v5087
    %v5089 = vsub.s32 4294967266, %v5084
    %v5090 = vadd.s32 %v5089, 127
    %v5091 = vshll.u32 %v5090, 23
    %v5092 = vor.u32 4788187, %v5091
    %v5093 = vand.u32 2147483647, %v5092
    %v5095 = vcvt.s32.f32 %v5088
    %v5096 = vmul.f32 %v5095, %v5093
    %v5097 = vxor.u32 %v5096, 2147483648
    %v5098 = vsel %vm5015, %v5097, %v5096
    %v5099 = vsub.s32 4, %v5075
    %v5100 = vsel %vm5015, %v5099, %v5075
    %v5101 = vsel %vm5014, %v3980, %v5098
    %v5102 = vsel %vm5014, 0, %v5100
    %v5103 = vcosq.f32.pop %v5101
    %v5104 = vsinq.f32.pop %v5101
    %vm5105 = vweird.f32 %v3980
    %v5106 = vadd.s32 %v5102, 3
    %v5107 = vand.u32 %v5106, 3
    %vm5108 = vcmp.lt.s32.totalorder %v5107, 2
    %vm5109 = vcmp.eq.s32.totalorder %v5107, 0
    %v5110 = vxor.u32 %v5104, 2147483648
    %v5111 = vsel %vm5109, %v5103, %v5110
    %vm5112 = vcmp.eq.s32.totalorder %v5107, 2
    %v5113 = vxor.u32 %v5103, 2147483648
    %v5114 = vsel %vm5112, %v5113, %v5104
    %v5115 = vsel %vm5108, %v5111, %v5114
    %v5116 = vsel %vm5105, nan, %v5115
    %v5117 = vand.u32 2147483647, %v4067
    %vm5118 = vcmp.le.f32.partialorder %v5117, 0.7853982
    %vm5119 = vcmp.lt.s32.totalorder %v4067, 0
    %v5120 = vand.u32 %v4067, 2139095040
    %v5121 = vshrl.u32 %v5120, 23
    %v5122 = vsub.s32 %v5121, 127
    %v5123 = vand.u32 2147483647, %v4067
    %v5124 = vand.u32 %v5123, 8388607
    %v5125 = vor.u32 %v5124, 8388608
    %v5126 = vsub.s32 0, %v5125
    %v5127 = vadd.s32 %v5122, 1
    %vm5128 = vcmp.gt.s32.totalorder %v5127, 0
    %v5129 = vsel %vm5128, %v5127, 0
    %v5130 = vshrl.u32 %v5129, 5
    %v5131 = vand.u32 %v5129, 31
    %v5132 = vsub.s32 32, %v5131
    %v5133 = vshrl.u32 683565275, %v5132
    %v5134 = vshll.u32 683565275, %v5131
    %v5135 = vshrl.u32 2475754826, %v5132
    %v5136 = vor.u32 %v5134, %v5135
    %v5137 = vshll.u32 2475754826, %v5131
    %v5138 = vshrl.u32 2131351028, %v5132
    %v5139 = vor.u32 %v5137, %v5138
    %v5140 = vshll.u32 2131351028, %v5131
    %v5141 = vshrl.u32 2102212464, %v5132
    %v5142 = vor.u32 %v5140, %v5141
    %v5143 = vshll.u32 2102212464, %v5131
    %v5144 = vshrl.u32 920167782, %v5132
    %v5145 = vor.u32 %v5143, %v5144
    %v5146 = vshll.u32 920167782, %v5131
    %v5147 = vshrl.u32 1326507024, %v5132
    %v5148 = vor.u32 %v5146, %v5147
    %vm5149 = vcmp.lt.s32.totalorder %v5130, 1
    %vm5150 = vcmp.lt.s32.totalorder %v5130, 2
    %vm5151 = vcmp.lt.s32.totalorder %v5130, 3
    %vm5152 = vcmp.lt.s32.totalorder %v5130, 4
    %v5153 = vsel %vm5149, %v5133, %v5136
    %v5154 = vsel %vm5152, %v5142, 2102212464
    %v5155 = vsel %vm5151, %v5139, %v5154
    %v5156 = vsel %vm5150, %v5153, %v5155
    %v5157 = vsel %vm5149, %v5136, %v5139
    %v5158 = vsel %vm5152, %v5145, 920167782
    %v5159 = vsel %vm5151, %v5142, %v5158
    %v5160 = vsel %vm5150, %v5157, %v5159
    %v5161 = vsel %vm5149, %v5139, %v5142
    %v5162 = vsel %vm5152, %v5148, 1326507024
    %v5163 = vsel %vm5151, %v5145, %v5162
    %v5164 = vsel %vm5150, %v5161, %v5163
    %v5165 = vshll.u32 %v5125, 8
    %v5166 = vmul.u32.u64.compose %v5165, %v5164
    %v5167 = vextract.low.u32 %v5166
    %v5168 = vextract.high.u32 %v5166
    %v5169 = vmul.u32.u64.compose %v5165, %v5160
    %v5170 = vextract.low.u32 %v5169
    %v5171 = vextract.high.u32 %v5169
    %v5172 = vmul.u32 %v5165, %v5156
    %v5173 = vadd.s32 %v5168, %v5170
    %vm5174 = vc.u32 %v5168, %v5170
    %v5175 = vadd.s32 %v5171, 1
    %v5176 = vsel %vm5174, %v5175, %v5171
    %v5177 = vadd.s32 %v5172, %v5176
    %v5178 = vadd.s32 %v5177, 536870912
    %v5179 = vshrl.u32 %v5178, 30
    %v5180 = vshll.u32 %v5179, 30
    %v5181 = vsub.s32 %v5177, %v5180
    %vm5182 = vcmp.lt.s32.totalorder %v5181, 0
    %v5183 = vsub.s32 0, %v5181
    %v5184 = vsel %vm5182, %v5183, %v5181
    %v5185 = vclz %v5184
    %v5186 = vsub.s32 %v5185, 2
    %vm5187 = vcmp.gt.s32.totalorder 0, %v5186
    %v5188 = vsel %vm5187, 0, %v5186
    %v5189 = vsub.s32 32, %v5188
    %v5190 = vshll.u32 %v5181, %v5188
    %v5191 = vshrl.u32 %v5173, %v5189
    %v5192 = vor.u32 %v5190, %v5191
    %v5193 = vsub.s32 4294967266, %v5188
    %v5194 = vadd.s32 %v5193, 127
    %v5195 = vshll.u32 %v5194, 23
    %v5196 = vor.u32 4788187, %v5195
    %v5197 = vand.u32 2147483647, %v5196
    %v5199 = vcvt.s32.f32 %v5192
    %v5200 = vmul.f32 %v5199, %v5197
    %v5201 = vxor.u32 %v5200, 2147483648
    %v5202 = vsel %vm5119, %v5201, %v5200
    %v5203 = vsub.s32 4, %v5179
    %v5204 = vsel %vm5119, %v5203, %v5179
    %v5205 = vsel %vm5118, %v4067, %v5202
    %v5206 = vsel %vm5118, 0, %v5204
    %v5207 = vcosq.f32.pop %v5205
    %v5208 = vsinq.f32.pop %v5205
    %vm5209 = vweird.f32 %v4067
    %v5210 = vadd.s32 %v5206, 3
    %v5211 = vand.u32 %v5210, 3
    %vm5212 = vcmp.lt.s32.totalorder %v5211, 2
    %vm5213 = vcmp.eq.s32.totalorder %v5211, 0
    %v5214 = vxor.u32 %v5208, 2147483648
    %v5215 = vsel %vm5213, %v5207, %v5214
    %vm5216 = vcmp.eq.s32.totalorder %v5211, 2
    %v5217 = vxor.u32 %v5207, 2147483648
    %v5218 = vsel %vm5216, %v5217, %v5208
    %v5219 = vsel %vm5212, %v5215, %v5218
    %v5220 = vsel %vm5209, nan, %v5219
    %v5221 = vand.u32 2147483647, %v4069
    %vm5222 = vcmp.le.f32.partialorder %v5221, 0.7853982
    %vm5223 = vcmp.lt.s32.totalorder %v4069, 0
    %v5224 = vand.u32 %v4069, 2139095040
    %v5225 = vshrl.u32 %v5224, 23
    %v5226 = vsub.s32 %v5225, 127
    %v5227 = vand.u32 2147483647, %v4069
    %v5228 = vand.u32 %v5227, 8388607
    %v5229 = vor.u32 %v5228, 8388608
    %v5230 = vsub.s32 0, %v5229
    %v5231 = vadd.s32 %v5226, 1
    %vm5232 = vcmp.gt.s32.totalorder %v5231, 0
    %v5233 = vsel %vm5232, %v5231, 0
    %v5234 = vshrl.u32 %v5233, 5
    %v5235 = vand.u32 %v5233, 31
    %v5236 = vsub.s32 32, %v5235
    %v5237 = vshrl.u32 683565275, %v5236
    %v5238 = vshll.u32 683565275, %v5235
    %v5239 = vshrl.u32 2475754826, %v5236
    %v5240 = vor.u32 %v5238, %v5239
    %v5241 = vshll.u32 2475754826, %v5235
    %v5242 = vshrl.u32 2131351028, %v5236
    %v5243 = vor.u32 %v5241, %v5242
    %v5244 = vshll.u32 2131351028, %v5235
    %v5245 = vshrl.u32 2102212464, %v5236
    %v5246 = vor.u32 %v5244, %v5245
    %v5247 = vshll.u32 2102212464, %v5235
    %v5248 = vshrl.u32 920167782, %v5236
    %v5249 = vor.u32 %v5247, %v5248
    %v5250 = vshll.u32 920167782, %v5235
    %v5251 = vshrl.u32 1326507024, %v5236
    %v5252 = vor.u32 %v5250, %v5251
    %vm5253 = vcmp.lt.s32.totalorder %v5234, 1
    %vm5254 = vcmp.lt.s32.totalorder %v5234, 2
    %vm5255 = vcmp.lt.s32.totalorder %v5234, 3
    %vm5256 = vcmp.lt.s32.totalorder %v5234, 4
    %v5257 = vsel %vm5253, %v5237, %v5240
    %v5258 = vsel %vm5256, %v5246, 2102212464
    %v5259 = vsel %vm5255, %v5243, %v5258
    %v5260 = vsel %vm5254, %v5257, %v5259
    %v5261 = vsel %vm5253, %v5240, %v5243
    %v5262 = vsel %vm5256, %v5249, 920167782
    %v5263 = vsel %vm5255, %v5246, %v5262
    %v5264 = vsel %vm5254, %v5261, %v5263
    %v5265 = vsel %vm5253, %v5243, %v5246
    %v5266 = vsel %vm5256, %v5252, 1326507024
    %v5267 = vsel %vm5255, %v5249, %v5266
    %v5268 = vsel %vm5254, %v5265, %v5267
    %v5269 = vshll.u32 %v5229, 8
    %v5270 = vmul.u32.u64.compose %v5269, %v5268
    %v5271 = vextract.low.u32 %v5270
    %v5272 = vextract.high.u32 %v5270
    %v5273 = vmul.u32.u64.compose %v5269, %v5264
    %v5274 = vextract.low.u32 %v5273
    %v5275 = vextract.high.u32 %v5273
    %v5276 = vmul.u32 %v5269, %v5260
    %v5277 = vadd.s32 %v5272, %v5274
    %vm5278 = vc.u32 %v5272, %v5274
    %v5279 = vadd.s32 %v5275, 1
    %v5280 = vsel %vm5278, %v5279, %v5275
    %v5281 = vadd.s32 %v5276, %v5280
    %v5282 = vadd.s32 %v5281, 536870912
    %v5283 = vshrl.u32 %v5282, 30
    %v5284 = vshll.u32 %v5283, 30
    %v5285 = vsub.s32 %v5281, %v5284
    %vm5286 = vcmp.lt.s32.totalorder %v5285, 0
    %v5287 = vsub.s32 0, %v5285
    %v5288 = vsel %vm5286, %v5287, %v5285
    %v5289 = vclz %v5288
    %v5290 = vsub.s32 %v5289, 2
    %vm5291 = vcmp.gt.s32.totalorder 0, %v5290
    %v5292 = vsel %vm5291, 0, %v5290
    %v5293 = vsub.s32 32, %v5292
    %v5294 = vshll.u32 %v5285, %v5292
    %v5295 = vshrl.u32 %v5277, %v5293
    %v5296 = vor.u32 %v5294, %v5295
    %v5297 = vsub.s32 4294967266, %v5292
    %v5298 = vadd.s32 %v5297, 127
    %v5299 = vshll.u32 %v5298, 23
    %v5300 = vor.u32 4788187, %v5299
    %v5301 = vand.u32 2147483647, %v5300
    %v5303 = vcvt.s32.f32 %v5296
    %v5304 = vmul.f32 %v5303, %v5301
    %v5305 = vxor.u32 %v5304, 2147483648
    %v5306 = vsel %vm5223, %v5305, %v5304
    %v5307 = vsub.s32 4, %v5283
    %v5308 = vsel %vm5223, %v5307, %v5283
    %v5309 = vsel %vm5222, %v4069, %v5306
    %v5310 = vsel %vm5222, 0, %v5308
    %v5311 = vcosq.f32.pop %v5309
    %v5312 = vsinq.f32.pop %v5309
    %vm5313 = vweird.f32 %v4069
    %v5314 = vadd.s32 %v5310, 3
    %v5315 = vand.u32 %v5314, 3
    %vm5316 = vcmp.lt.s32.totalorder %v5315, 2
    %vm5317 = vcmp.eq.s32.totalorder %v5315, 0
    %v5318 = vxor.u32 %v5312, 2147483648
    %v5319 = vsel %vm5317, %v5311, %v5318
    %vm5320 = vcmp.eq.s32.totalorder %v5315, 2
    %v5321 = vxor.u32 %v5311, 2147483648
    %v5322 = vsel %vm5320, %v5321, %v5312
    %v5323 = vsel %vm5316, %v5319, %v5322
    %v5324 = vsel %vm5313, nan, %v5323
    %v5325 = vand.u32 2147483647, %v3984
    %vm5326 = vcmp.le.f32.partialorder %v5325, 0.7853982
    %vm5327 = vcmp.lt.s32.totalorder %v3984, 0
    %v5328 = vand.u32 %v3984, 2139095040
    %v5329 = vshrl.u32 %v5328, 23
    %v5330 = vsub.s32 %v5329, 127
    %v5331 = vand.u32 2147483647, %v3984
    %v5332 = vand.u32 %v5331, 8388607
    %v5333 = vor.u32 %v5332, 8388608
    %v5334 = vsub.s32 0, %v5333
    %v5335 = vadd.s32 %v5330, 1
    %vm5336 = vcmp.gt.s32.totalorder %v5335, 0
    %v5337 = vsel %vm5336, %v5335, 0
    %v5338 = vshrl.u32 %v5337, 5
    %v5339 = vand.u32 %v5337, 31
    %v5340 = vsub.s32 32, %v5339
    %v5341 = vshrl.u32 683565275, %v5340
    %v5342 = vshll.u32 683565275, %v5339
    %v5343 = vshrl.u32 2475754826, %v5340
    %v5344 = vor.u32 %v5342, %v5343
    %v5345 = vshll.u32 2475754826, %v5339
    %v5346 = vshrl.u32 2131351028, %v5340
    %v5347 = vor.u32 %v5345, %v5346
    %v5348 = vshll.u32 2131351028, %v5339
    %v5349 = vshrl.u32 2102212464, %v5340
    %v5350 = vor.u32 %v5348, %v5349
    %v5351 = vshll.u32 2102212464, %v5339
    %v5352 = vshrl.u32 920167782, %v5340
    %v5353 = vor.u32 %v5351, %v5352
    %v5354 = vshll.u32 920167782, %v5339
    %v5355 = vshrl.u32 1326507024, %v5340
    %v5356 = vor.u32 %v5354, %v5355
    %vm5357 = vcmp.lt.s32.totalorder %v5338, 1
    %vm5358 = vcmp.lt.s32.totalorder %v5338, 2
    %vm5359 = vcmp.lt.s32.totalorder %v5338, 3
    %vm5360 = vcmp.lt.s32.totalorder %v5338, 4
    %v5361 = vsel %vm5357, %v5341, %v5344
    %v5362 = vsel %vm5360, %v5350, 2102212464
    %v5363 = vsel %vm5359, %v5347, %v5362
    %v5364 = vsel %vm5358, %v5361, %v5363
    %v5365 = vsel %vm5357, %v5344, %v5347
    %v5366 = vsel %vm5360, %v5353, 920167782
    %v5367 = vsel %vm5359, %v5350, %v5366
    %v5368 = vsel %vm5358, %v5365, %v5367
    %v5369 = vsel %vm5357, %v5347, %v5350
    %v5370 = vsel %vm5360, %v5356, 1326507024
    %v5371 = vsel %vm5359, %v5353, %v5370
    %v5372 = vsel %vm5358, %v5369, %v5371
    %v5373 = vshll.u32 %v5333, 8
    %v5374 = vmul.u32.u64.compose %v5373, %v5372
    %v5375 = vextract.low.u32 %v5374
    %v5376 = vextract.high.u32 %v5374
    %v5377 = vmul.u32.u64.compose %v5373, %v5368
    %v5378 = vextract.low.u32 %v5377
    %v5379 = vextract.high.u32 %v5377
    %v5380 = vmul.u32 %v5373, %v5364
    %v5381 = vadd.s32 %v5376, %v5378
    %vm5382 = vc.u32 %v5376, %v5378
    %v5383 = vadd.s32 %v5379, 1
    %v5384 = vsel %vm5382, %v5383, %v5379
    %v5385 = vadd.s32 %v5380, %v5384
    %v5386 = vadd.s32 %v5385, 536870912
    %v5387 = vshrl.u32 %v5386, 30
    %v5388 = vshll.u32 %v5387, 30
    %v5389 = vsub.s32 %v5385, %v5388
    %vm5390 = vcmp.lt.s32.totalorder %v5389, 0
    %v5391 = vsub.s32 0, %v5389
    %v5392 = vsel %vm5390, %v5391, %v5389
    %v5393 = vclz %v5392
    %v5394 = vsub.s32 %v5393, 2
    %vm5395 = vcmp.gt.s32.totalorder 0, %v5394
    %v5396 = vsel %vm5395, 0, %v5394
    %v5397 = vsub.s32 32, %v5396
    %v5398 = vshll.u32 %v5389, %v5396
    %v5399 = vshrl.u32 %v5381, %v5397
    %v5400 = vor.u32 %v5398, %v5399
    %v5401 = vsub.s32 4294967266, %v5396
    %v5402 = vadd.s32 %v5401, 127
    %v5403 = vshll.u32 %v5402, 23
    %v5404 = vor.u32 4788187, %v5403
    %v5405 = vand.u32 2147483647, %v5404
    %v5407 = vcvt.s32.f32 %v5400
    %v5408 = vmul.f32 %v5407, %v5405
    %v5409 = vxor.u32 %v5408, 2147483648
    %v5410 = vsel %vm5327, %v5409, %v5408
    %v5411 = vsub.s32 4, %v5387
    %v5412 = vsel %vm5327, %v5411, %v5387
    %v5413 = vsel %vm5326, %v3984, %v5410
    %v5414 = vsel %vm5326, 0, %v5412
    %v5415 = vcosq.f32.pop %v5413
    %v5416 = vsinq.f32.pop %v5413
    %vm5417 = vweird.f32 %v3984
    %v5418 = vadd.s32 %v5414, 3
    %v5419 = vand.u32 %v5418, 3
    %vm5420 = vcmp.lt.s32.totalorder %v5419, 2
    %vm5421 = vcmp.eq.s32.totalorder %v5419, 0
    %v5422 = vxor.u32 %v5416, 2147483648
    %v5423 = vsel %vm5421, %v5415, %v5422
    %vm5424 = vcmp.eq.s32.totalorder %v5419, 2
    %v5425 = vxor.u32 %v5415, 2147483648
    %v5426 = vsel %vm5424, %v5425, %v5416
    %v5427 = vsel %vm5420, %v5423, %v5426
    %v5428 = vsel %vm5417, nan, %v5427
    %v5429 = vand.u32 2147483647, %v3986
    %vm5430 = vcmp.le.f32.partialorder %v5429, 0.7853982
    %vm5431 = vcmp.lt.s32.totalorder %v3986, 0
    %v5432 = vand.u32 %v3986, 2139095040
    %v5433 = vshrl.u32 %v5432, 23
    %v5434 = vsub.s32 %v5433, 127
    %v5435 = vand.u32 2147483647, %v3986
    %v5436 = vand.u32 %v5435, 8388607
    %v5437 = vor.u32 %v5436, 8388608
    %v5438 = vsub.s32 0, %v5437
    %v5439 = vadd.s32 %v5434, 1
    %vm5440 = vcmp.gt.s32.totalorder %v5439, 0
    %v5441 = vsel %vm5440, %v5439, 0
    %v5442 = vshrl.u32 %v5441, 5
    %v5443 = vand.u32 %v5441, 31
    %v5444 = vsub.s32 32, %v5443
    %v5445 = vshrl.u32 683565275, %v5444
    %v5446 = vshll.u32 683565275, %v5443
    %v5447 = vshrl.u32 2475754826, %v5444
    %v5448 = vor.u32 %v5446, %v5447
    %v5449 = vshll.u32 2475754826, %v5443
    %v5450 = vshrl.u32 2131351028, %v5444
    %v5451 = vor.u32 %v5449, %v5450
    %v5452 = vshll.u32 2131351028, %v5443
    %v5453 = vshrl.u32 2102212464, %v5444
    %v5454 = vor.u32 %v5452, %v5453
    %v5455 = vshll.u32 2102212464, %v5443
    %v5456 = vshrl.u32 920167782, %v5444
    %v5457 = vor.u32 %v5455, %v5456
    %v5458 = vshll.u32 920167782, %v5443
    %v5459 = vshrl.u32 1326507024, %v5444
    %v5460 = vor.u32 %v5458, %v5459
    %vm5461 = vcmp.lt.s32.totalorder %v5442, 1
    %vm5462 = vcmp.lt.s32.totalorder %v5442, 2
    %vm5463 = vcmp.lt.s32.totalorder %v5442, 3
    %vm5464 = vcmp.lt.s32.totalorder %v5442, 4
    %v5465 = vsel %vm5461, %v5445, %v5448
    %v5466 = vsel %vm5464, %v5454, 2102212464
    %v5467 = vsel %vm5463, %v5451, %v5466
    %v5468 = vsel %vm5462, %v5465, %v5467
    %v5469 = vsel %vm5461, %v5448, %v5451
    %v5470 = vsel %vm5464, %v5457, 920167782
    %v5471 = vsel %vm5463, %v5454, %v5470
    %v5472 = vsel %vm5462, %v5469, %v5471
    %v5473 = vsel %vm5461, %v5451, %v5454
    %v5474 = vsel %vm5464, %v5460, 1326507024
    %v5475 = vsel %vm5463, %v5457, %v5474
    %v5476 = vsel %vm5462, %v5473, %v5475
    %v5477 = vshll.u32 %v5437, 8
    %v5478 = vmul.u32.u64.compose %v5477, %v5476
    %v5479 = vextract.low.u32 %v5478
    %v5480 = vextract.high.u32 %v5478
    %v5481 = vmul.u32.u64.compose %v5477, %v5472
    %v5482 = vextract.low.u32 %v5481
    %v5483 = vextract.high.u32 %v5481
    %v5484 = vmul.u32 %v5477, %v5468
    %v5485 = vadd.s32 %v5480, %v5482
    %vm5486 = vc.u32 %v5480, %v5482
    %v5487 = vadd.s32 %v5483, 1
    %v5488 = vsel %vm5486, %v5487, %v5483
    %v5489 = vadd.s32 %v5484, %v5488
    %v5490 = vadd.s32 %v5489, 536870912
    %v5491 = vshrl.u32 %v5490, 30
    %v5492 = vshll.u32 %v5491, 30
    %v5493 = vsub.s32 %v5489, %v5492
    %vm5494 = vcmp.lt.s32.totalorder %v5493, 0
    %v5495 = vsub.s32 0, %v5493
    %v5496 = vsel %vm5494, %v5495, %v5493
    %v5497 = vclz %v5496
    %v5498 = vsub.s32 %v5497, 2
    %vm5499 = vcmp.gt.s32.totalorder 0, %v5498
    %v5500 = vsel %vm5499, 0, %v5498
    %v5501 = vsub.s32 32, %v5500
    %v5502 = vshll.u32 %v5493, %v5500
    %v5503 = vshrl.u32 %v5485, %v5501
    %v5504 = vor.u32 %v5502, %v5503
    %v5505 = vsub.s32 4294967266, %v5500
    %v5506 = vadd.s32 %v5505, 127
    %v5507 = vshll.u32 %v5506, 23
    %v5508 = vor.u32 4788187, %v5507
    %v5509 = vand.u32 2147483647, %v5508
    %v5511 = vcvt.s32.f32 %v5504
    %v5512 = vmul.f32 %v5511, %v5509
    %v5513 = vxor.u32 %v5512, 2147483648
    %v5514 = vsel %vm5431, %v5513, %v5512
    %v5515 = vsub.s32 4, %v5491
    %v5516 = vsel %vm5431, %v5515, %v5491
    %v5517 = vsel %vm5430, %v3986, %v5514
    %v5518 = vsel %vm5430, 0, %v5516
    %v5519 = vcosq.f32.pop %v5517
    %v5520 = vsinq.f32.pop %v5517
    %vm5521 = vweird.f32 %v3986
    %v5522 = vadd.s32 %v5518, 3
    %v5523 = vand.u32 %v5522, 3
    %vm5524 = vcmp.lt.s32.totalorder %v5523, 2
    %vm5525 = vcmp.eq.s32.totalorder %v5523, 0
    %v5526 = vxor.u32 %v5520, 2147483648
    %v5527 = vsel %vm5525, %v5519, %v5526
    %vm5528 = vcmp.eq.s32.totalorder %v5523, 2
    %v5529 = vxor.u32 %v5519, 2147483648
    %v5530 = vsel %vm5528, %v5529, %v5520
    %v5531 = vsel %vm5524, %v5527, %v5530
    %v5532 = vsel %vm5521, nan, %v5531
    %v5533 = vand.u32 2147483647, %v4073
    %vm5534 = vcmp.le.f32.partialorder %v5533, 0.7853982
    %vm5535 = vcmp.lt.s32.totalorder %v4073, 0
    %v5536 = vand.u32 %v4073, 2139095040
    %v5537 = vshrl.u32 %v5536, 23
    %v5538 = vsub.s32 %v5537, 127
    %v5539 = vand.u32 2147483647, %v4073
    %v5540 = vand.u32 %v5539, 8388607
    %v5541 = vor.u32 %v5540, 8388608
    %v5542 = vsub.s32 0, %v5541
    %v5543 = vadd.s32 %v5538, 1
    %vm5544 = vcmp.gt.s32.totalorder %v5543, 0
    %v5545 = vsel %vm5544, %v5543, 0
    %v5546 = vshrl.u32 %v5545, 5
    %v5547 = vand.u32 %v5545, 31
    %v5548 = vsub.s32 32, %v5547
    %v5549 = vshrl.u32 683565275, %v5548
    %v5550 = vshll.u32 683565275, %v5547
    %v5551 = vshrl.u32 2475754826, %v5548
    %v5552 = vor.u32 %v5550, %v5551
    %v5553 = vshll.u32 2475754826, %v5547
    %v5554 = vshrl.u32 2131351028, %v5548
    %v5555 = vor.u32 %v5553, %v5554
    %v5556 = vshll.u32 2131351028, %v5547
    %v5557 = vshrl.u32 2102212464, %v5548
    %v5558 = vor.u32 %v5556, %v5557
    %v5559 = vshll.u32 2102212464, %v5547
    %v5560 = vshrl.u32 920167782, %v5548
    %v5561 = vor.u32 %v5559, %v5560
    %v5562 = vshll.u32 920167782, %v5547
    %v5563 = vshrl.u32 1326507024, %v5548
    %v5564 = vor.u32 %v5562, %v5563
    %vm5565 = vcmp.lt.s32.totalorder %v5546, 1
    %vm5566 = vcmp.lt.s32.totalorder %v5546, 2
    %vm5567 = vcmp.lt.s32.totalorder %v5546, 3
    %vm5568 = vcmp.lt.s32.totalorder %v5546, 4
    %v5569 = vsel %vm5565, %v5549, %v5552
    %v5570 = vsel %vm5568, %v5558, 2102212464
    %v5571 = vsel %vm5567, %v5555, %v5570
    %v5572 = vsel %vm5566, %v5569, %v5571
    %v5573 = vsel %vm5565, %v5552, %v5555
    %v5574 = vsel %vm5568, %v5561, 920167782
    %v5575 = vsel %vm5567, %v5558, %v5574
    %v5576 = vsel %vm5566, %v5573, %v5575
    %v5577 = vsel %vm5565, %v5555, %v5558
    %v5578 = vsel %vm5568, %v5564, 1326507024
    %v5579 = vsel %vm5567, %v5561, %v5578
    %v5580 = vsel %vm5566, %v5577, %v5579
    %v5581 = vshll.u32 %v5541, 8
    %v5582 = vmul.u32.u64.compose %v5581, %v5580
    %v5583 = vextract.low.u32 %v5582
    %v5584 = vextract.high.u32 %v5582
    %v5585 = vmul.u32.u64.compose %v5581, %v5576
    %v5586 = vextract.low.u32 %v5585
    %v5587 = vextract.high.u32 %v5585
    %v5588 = vmul.u32 %v5581, %v5572
    %v5589 = vadd.s32 %v5584, %v5586
    %vm5590 = vc.u32 %v5584, %v5586
    %v5591 = vadd.s32 %v5587, 1
    %v5592 = vsel %vm5590, %v5591, %v5587
    %v5593 = vadd.s32 %v5588, %v5592
    %v5594 = vadd.s32 %v5593, 536870912
    %v5595 = vshrl.u32 %v5594, 30
    %v5596 = vshll.u32 %v5595, 30
    %v5597 = vsub.s32 %v5593, %v5596
    %vm5598 = vcmp.lt.s32.totalorder %v5597, 0
    %v5599 = vsub.s32 0, %v5597
    %v5600 = vsel %vm5598, %v5599, %v5597
    %v5601 = vclz %v5600
    %v5602 = vsub.s32 %v5601, 2
    %vm5603 = vcmp.gt.s32.totalorder 0, %v5602
    %v5604 = vsel %vm5603, 0, %v5602
    %v5605 = vsub.s32 32, %v5604
    %v5606 = vshll.u32 %v5597, %v5604
    %v5607 = vshrl.u32 %v5589, %v5605
    %v5608 = vor.u32 %v5606, %v5607
    %v5609 = vsub.s32 4294967266, %v5604
    %v5610 = vadd.s32 %v5609, 127
    %v5611 = vshll.u32 %v5610, 23
    %v5612 = vor.u32 4788187, %v5611
    %v5613 = vand.u32 2147483647, %v5612
    %v5615 = vcvt.s32.f32 %v5608
    %v5616 = vmul.f32 %v5615, %v5613
    %v5617 = vxor.u32 %v5616, 2147483648
    %v5618 = vsel %vm5535, %v5617, %v5616
    %v5619 = vsub.s32 4, %v5595
    %v5620 = vsel %vm5535, %v5619, %v5595
    %v5621 = vsel %vm5534, %v4073, %v5618
    %v5622 = vsel %vm5534, 0, %v5620
    %v5623 = vcosq.f32.pop %v5621
    %v5624 = vsinq.f32.pop %v5621
    %vm5625 = vweird.f32 %v4073
    %v5626 = vadd.s32 %v5622, 3
    %v5627 = vand.u32 %v5626, 3
    %vm5628 = vcmp.lt.s32.totalorder %v5627, 2
    %vm5629 = vcmp.eq.s32.totalorder %v5627, 0
    %v5630 = vxor.u32 %v5624, 2147483648
    %v5631 = vsel %vm5629, %v5623, %v5630
    %vm5632 = vcmp.eq.s32.totalorder %v5627, 2
    %v5633 = vxor.u32 %v5623, 2147483648
    %v5634 = vsel %vm5632, %v5633, %v5624
    %v5635 = vsel %vm5628, %v5631, %v5634
    %v5636 = vsel %vm5625, nan, %v5635
    %v5637 = vand.u32 2147483647, %v4075
    %vm5638 = vcmp.le.f32.partialorder %v5637, 0.7853982
    %vm5639 = vcmp.lt.s32.totalorder %v4075, 0
    %v5640 = vand.u32 %v4075, 2139095040
    %v5641 = vshrl.u32 %v5640, 23
    %v5642 = vsub.s32 %v5641, 127
    %v5643 = vand.u32 2147483647, %v4075
    %v5644 = vand.u32 %v5643, 8388607
    %v5645 = vor.u32 %v5644, 8388608
    %v5646 = vsub.s32 0, %v5645
    %v5647 = vadd.s32 %v5642, 1
    %vm5648 = vcmp.gt.s32.totalorder %v5647, 0
    %v5649 = vsel %vm5648, %v5647, 0
    %v5650 = vshrl.u32 %v5649, 5
    %v5651 = vand.u32 %v5649, 31
    %v5652 = vsub.s32 32, %v5651
    %v5653 = vshrl.u32 683565275, %v5652
    %v5654 = vshll.u32 683565275, %v5651
    %v5655 = vshrl.u32 2475754826, %v5652
    %v5656 = vor.u32 %v5654, %v5655
    %v5657 = vshll.u32 2475754826, %v5651
    %v5658 = vshrl.u32 2131351028, %v5652
    %v5659 = vor.u32 %v5657, %v5658
    %v5660 = vshll.u32 2131351028, %v5651
    %v5661 = vshrl.u32 2102212464, %v5652
    %v5662 = vor.u32 %v5660, %v5661
    %v5663 = vshll.u32 2102212464, %v5651
    %v5664 = vshrl.u32 920167782, %v5652
    %v5665 = vor.u32 %v5663, %v5664
    %v5666 = vshll.u32 920167782, %v5651
    %v5667 = vshrl.u32 1326507024, %v5652
    %v5668 = vor.u32 %v5666, %v5667
    %vm5669 = vcmp.lt.s32.totalorder %v5650, 1
    %vm5670 = vcmp.lt.s32.totalorder %v5650, 2
    %vm5671 = vcmp.lt.s32.totalorder %v5650, 3
    %vm5672 = vcmp.lt.s32.totalorder %v5650, 4
    %v5673 = vsel %vm5669, %v5653, %v5656
    %v5674 = vsel %vm5672, %v5662, 2102212464
    %v5675 = vsel %vm5671, %v5659, %v5674
    %v5676 = vsel %vm5670, %v5673, %v5675
    %v5677 = vsel %vm5669, %v5656, %v5659
    %v5678 = vsel %vm5672, %v5665, 920167782
    %v5679 = vsel %vm5671, %v5662, %v5678
    %v5680 = vsel %vm5670, %v5677, %v5679
    %v5681 = vsel %vm5669, %v5659, %v5662
    %v5682 = vsel %vm5672, %v5668, 1326507024
    %v5683 = vsel %vm5671, %v5665, %v5682
    %v5684 = vsel %vm5670, %v5681, %v5683
    %v5685 = vshll.u32 %v5645, 8
    %v5686 = vmul.u32.u64.compose %v5685, %v5684
    %v5687 = vextract.low.u32 %v5686
    %v5688 = vextract.high.u32 %v5686
    %v5689 = vmul.u32.u64.compose %v5685, %v5680
    %v5690 = vextract.low.u32 %v5689
    %v5691 = vextract.high.u32 %v5689
    %v5692 = vmul.u32 %v5685, %v5676
    %v5693 = vadd.s32 %v5688, %v5690
    %vm5694 = vc.u32 %v5688, %v5690
    %v5695 = vadd.s32 %v5691, 1
    %v5696 = vsel %vm5694, %v5695, %v5691
    %v5697 = vadd.s32 %v5692, %v5696
    %v5698 = vadd.s32 %v5697, 536870912
    %v5699 = vshrl.u32 %v5698, 30
    %v5700 = vshll.u32 %v5699, 30
    %v5701 = vsub.s32 %v5697, %v5700
    %vm5702 = vcmp.lt.s32.totalorder %v5701, 0
    %v5703 = vsub.s32 0, %v5701
    %v5704 = vsel %vm5702, %v5703, %v5701
    %v5705 = vclz %v5704
    %v5706 = vsub.s32 %v5705, 2
    %vm5707 = vcmp.gt.s32.totalorder 0, %v5706
    %v5708 = vsel %vm5707, 0, %v5706
    %v5709 = vsub.s32 32, %v5708
    %v5710 = vshll.u32 %v5701, %v5708
    %v5711 = vshrl.u32 %v5693, %v5709
    %v5712 = vor.u32 %v5710, %v5711
    %v5713 = vsub.s32 4294967266, %v5708
    %v5714 = vadd.s32 %v5713, 127
    %v5715 = vshll.u32 %v5714, 23
    %v5716 = vor.u32 4788187, %v5715
    %v5717 = vand.u32 2147483647, %v5716
    %v5719 = vcvt.s32.f32 %v5712
    %v5720 = vmul.f32 %v5719, %v5717
    %v5721 = vxor.u32 %v5720, 2147483648
    %v5722 = vsel %vm5639, %v5721, %v5720
    %v5723 = vsub.s32 4, %v5699
    %v5724 = vsel %vm5639, %v5723, %v5699
    %v5725 = vsel %vm5638, %v4075, %v5722
    %v5726 = vsel %vm5638, 0, %v5724
    %v5727 = vcosq.f32.pop %v5725
    %v5728 = vsinq.f32.pop %v5725
    %vm5729 = vweird.f32 %v4075
    %v5730 = vadd.s32 %v5726, 3
    %v5731 = vand.u32 %v5730, 3
    %vm5732 = vcmp.lt.s32.totalorder %v5731, 2
    %vm5733 = vcmp.eq.s32.totalorder %v5731, 0
    %v5734 = vxor.u32 %v5728, 2147483648
    %v5735 = vsel %vm5733, %v5727, %v5734
    %vm5736 = vcmp.eq.s32.totalorder %v5731, 2
    %v5737 = vxor.u32 %v5727, 2147483648
    %v5738 = vsel %vm5736, %v5737, %v5728
    %v5739 = vsel %vm5732, %v5735, %v5738
    %v5740 = vsel %vm5729, nan, %v5739
    %s5741 = scalar_lea.vmem %s2, 704
    %v5742 = vld [vmem:[%s5741] sm:$0xff]
    %v5743 = vld [vmem:[%s5741 + $0x8] sm:$0xff]
    %v5744 = vld [vmem:[%s5741 + $0x10] sm:$0xff]
    %v5745 = vld [vmem:[%s5741 + $0x18] sm:$0xff]
    %v5746 = vld [vmem:[%s5741 + $0x20] sm:$0xff]
    %v5747 = vld [vmem:[%s5741 + $0x28] sm:$0xff]
    %v5748 = vld [vmem:[%s5741 + $0x30] sm:$0xff]
    %v5749 = vld [vmem:[%s5741 + $0x38] sm:$0xff]
    %s5750 = scalar_lea.vmem %s3, 704
    %v5751 = vld [vmem:[%s5750] sm:$0xff]
    %v5752 = vld [vmem:[%s5750 + $0x8] sm:$0xff]
    %v5753 = vld [vmem:[%s5750 + $0x10] sm:$0xff]
    %v5754 = vld [vmem:[%s5750 + $0x18] sm:$0xff]
    %v5755 = vld [vmem:[%s5750 + $0x20] sm:$0xff]
    %v5756 = vld [vmem:[%s5750 + $0x28] sm:$0xff]
    %v5757 = vld [vmem:[%s5750 + $0x30] sm:$0xff]
    %v5758 = vld [vmem:[%s5750 + $0x38] sm:$0xff]
    %v5759 = vld [vmem:[%s4] sm:$0x3]
    %s5760 = sld [smem:[#allocation4]]
    %5762 = vset.pattern.permute.xlu0 0
    %5763 = vperm.xlu0 %5762, %v1935
    %v5764 = vpop.permute.xlu0 %5763
    %5767 = vset.pattern.permute.xlu0 0
    %5768 = vperm.xlu0 %5767, %v1940
    %v5769 = vpop.permute.xlu0 %5768
    %5772 = vset.pattern.permute.xlu0 0
    %5773 = vperm.xlu0 %5772, %v1945
    %v5774 = vpop.permute.xlu0 %5773
    %5777 = vset.pattern.permute.xlu0 0
    %5778 = vperm.xlu0 %5777, %v1950
    %v5779 = vpop.permute.xlu0 %5778
    %5782 = vset.pattern.permute.xlu0 0
    %5783 = vperm.xlu0 %5782, %v1955
    %v5784 = vpop.permute.xlu0 %5783
    %5787 = vset.pattern.permute.xlu0 0
    %5788 = vperm.xlu0 %5787, %v1960
    %v5789 = vpop.permute.xlu0 %5788
    %5792 = vset.pattern.permute.xlu0 0
    %5793 = vperm.xlu0 %5792, %v1965
    %v5794 = vpop.permute.xlu0 %5793
    %5797 = vset.pattern.permute.xlu0 0
    %5798 = vperm.xlu0 %5797, %v1970
    %v5799 = vpop.permute.xlu0 %5798
    %v5801 = vmul.f32 %v5764, %v5742
    %v5802 = vmul.f32 %v5769, %v5743
    %v5803 = vmul.f32 %v5774, %v5744
    %v5804 = vmul.f32 %v5779, %v5745
    %v5805 = vmul.f32 %v5784, %v5746
    %v5806 = vmul.f32 %v5789, %v5747
    %v5807 = vmul.f32 %v5794, %v5748
    %v5808 = vmul.f32 %v5799, %v5749
    %vm5809 = vcmask 523264
    %v5811 = vsel %vm5809, %v5759, 0
    %5813 = vmatprep.subr.mxu0 0.0
    %5814 = vmatpush1.msra.mxu0 0.0
    %5815 = vmatprep.subr.mxu0 0.0
    %5816 = vmatpush1.msra.mxu0 0.0
    %5817 = vmatprep.subr.mxu0 0.0
    %5818 = vmatpush1.msra.mxu0 0.0
    %5819 = vmatprep.subr.mxu0 0.0
    %5820 = vmatpush1.msra.mxu0 0.0
    %5821 = vmatprep.subr.mxu0 0.0
    %5822 = vmatpush1.msra.mxu0 0.0
    %5823 = vmatprep.subr.mxu0 0.0
    %5824 = vmatpush1.msra.mxu0 0.0
    %5825 = vmatprep.subr.mxu0 0.0
    %5826 = vmatpush1.msra.mxu0 0.0
    %5827 = vmatprep.subr.mxu0 0.0
    %5828 = vmatpush1.msra.mxu0 0.0
    %5829 = vmatprep.subr.mxu0 0.0
    %5830 = vmatpush1.msra.mxu0 %v5808
    %5831 = vmatprep.subr.mxu0 0.0
    %5832 = vmatpush1.msra.mxu0 %v5807
    %5833 = vmatprep.subr.mxu0 0.0
    %5834 = vmatpush1.msra.mxu0 %v5806
    %5835 = vmatprep.subr.mxu0 0.0
    %5836 = vmatpush1.msra.mxu0 %v5805
    %5837 = vmatprep.subr.mxu0 0.0
    %5838 = vmatpush1.msra.mxu0 %v5804
    %5839 = vmatprep.subr.mxu0 0.0
    %5840 = vmatpush1.msra.mxu0 %v5803
    %5841 = vmatprep.subr.mxu0 0.0
    %5842 = vmatpush1.msra.mxu0 %v5802
    %5843 = vmatprep.subr.mxu0 0.0
    %5844 = vmatpush1.msra.mxu0 %v5801
    %5845 = vmatprep.subr.mxu0 0.0
    %5846 = vmatpush2.msra.mxu0 0.0
    %5847 = vmatprep.subr.mxu0 0.0
    %5848 = vmatpush2.msra.mxu0 0.0
    %5849 = vmatprep.subr.mxu0 0.0
    %5850 = vmatpush2.msra.mxu0 0.0
    %5851 = vmatprep.subr.mxu0 0.0
    %5852 = vmatpush2.msra.mxu0 0.0
    %5853 = vmatprep.subr.mxu0 0.0
    %5854 = vmatpush2.msra.mxu0 0.0
    %5855 = vmatprep.subr.mxu0 0.0
    %5856 = vmatpush2.msra.mxu0 0.0
    %5857 = vmatprep.subr.mxu0 0.0
    %5858 = vmatpush2.msra.mxu0 0.0
    %5859 = vmatprep.subr.mxu0 0.0
    %5860 = vmatpush2.msra.mxu0 0.0
    %5861 = vmatprep.subr.mxu0 0.0
    %5862 = vmatpush2.msra.mxu0 0.0
    %5863 = vmatprep.subr.mxu0 0.0
    %5864 = vmatpush2.msra.mxu0 0.0
    %5865 = vmatprep.subr.mxu0 0.0
    %5866 = vmatpush2.msra.mxu0 0.0
    %5867 = vmatprep.subr.mxu0 0.0
    %5868 = vmatpush2.msra.mxu0 0.0
    %5869 = vmatprep.subr.mxu0 0.0
    %5870 = vmatpush2.msra.mxu0 0.0
    %5871 = vmatprep.subr.mxu0 0.0
    %5872 = vmatpush2.msra.mxu0 0.0
    %5873 = vmatprep.subr.mxu0 0.0
    %5874 = vmatpush2.msra.mxu0 0.0
    %5875 = vmatprep.subr.mxu0 0.0
    %5876 = vmatpush2.msra.mxu0 0.0
    %5877 = vmatprep.mubr.f32.mxu0 0.0
    %5878 = vmatmul.mubr.f32.gmra.mxu0 %v5811
    %v5879 = vpop.f32.mrf.mxu0
    %v5880 = vadd.f32 0.0, %v5879
    %v5881 = vpop.f32.mrf.mxu0
    %5882 = vdwg.mxu0
    %v5883 = vmul.f32 %v1935, %v5751
    %v5884 = vmul.f32 %v1940, %v5752
    %v5885 = vmul.f32 %v1945, %v5753
    %v5886 = vmul.f32 %v1950, %v5754
    %v5887 = vmul.f32 %v1955, %v5755
    %v5888 = vmul.f32 %v1960, %v5756
    %v5889 = vmul.f32 %v1965, %v5757
    %v5890 = vmul.f32 %v1970, %v5758
    %5891 = vmatprep.subr.mxu0 0.0
    %5892 = vmatpush1.msra.mxu0 0.0
    %5893 = vmatprep.subr.mxu0 0.0
    %5894 = vmatpush1.msra.mxu0 0.0
    %5895 = vmatprep.subr.mxu0 0.0
    %5896 = vmatpush1.msra.mxu0 0.0
    %5897 = vmatprep.subr.mxu0 0.0
    %5898 = vmatpush1.msra.mxu0 0.0
    %5899 = vmatprep.subr.mxu0 0.0
    %5900 = vmatpush1.msra.mxu0 0.0
    %5901 = vmatprep.subr.mxu0 0.0
    %5902 = vmatpush1.msra.mxu0 0.0
    %5903 = vmatprep.subr.mxu0 0.0
    %5904 = vmatpush1.msra.mxu0 0.0
    %5905 = vmatprep.subr.mxu0 0.0
    %5906 = vmatpush1.msra.mxu0 0.0
    %5907 = vmatprep.subr.mxu0 0.0
    %5908 = vmatpush1.msra.mxu0 %v5890
    %5909 = vmatprep.subr.mxu0 0.0
    %5910 = vmatpush1.msra.mxu0 %v5889
    %5911 = vmatprep.subr.mxu0 0.0
    %5912 = vmatpush1.msra.mxu0 %v5888
    %5913 = vmatprep.subr.mxu0 0.0
    %5914 = vmatpush1.msra.mxu0 %v5887
    %5915 = vmatprep.subr.mxu0 0.0
    %5916 = vmatpush1.msra.mxu0 %v5886
    %5917 = vmatprep.subr.mxu0 0.0
    %5918 = vmatpush1.msra.mxu0 %v5885
    %5919 = vmatprep.subr.mxu0 0.0
    %5920 = vmatpush1.msra.mxu0 %v5884
    %5921 = vmatprep.subr.mxu0 0.0
    %5922 = vmatpush1.msra.mxu0 %v5883
    %5923 = vmatprep.subr.mxu0 0.0
    %5924 = vmatpush2.msra.mxu0 0.0
    %5925 = vmatprep.subr.mxu0 0.0
    %5926 = vmatpush2.msra.mxu0 0.0
    %5927 = vmatprep.subr.mxu0 0.0
    %5928 = vmatpush2.msra.mxu0 0.0
    %5929 = vmatprep.subr.mxu0 0.0
    %5930 = vmatpush2.msra.mxu0 0.0
    %5931 = vmatprep.subr.mxu0 0.0
    %5932 = vmatpush2.msra.mxu0 0.0
    %5933 = vmatprep.subr.mxu0 0.0
    %5934 = vmatpush2.msra.mxu0 0.0
    %5935 = vmatprep.subr.mxu0 0.0
    %5936 = vmatpush2.msra.mxu0 0.0
    %5937 = vmatprep.subr.mxu0 0.0
    %5938 = vmatpush2.msra.mxu0 0.0
    %5939 = vmatprep.subr.mxu0 0.0
    %5940 = vmatpush2.msra.mxu0 0.0
    %5941 = vmatprep.subr.mxu0 0.0
    %5942 = vmatpush2.msra.mxu0 0.0
    %5943 = vmatprep.subr.mxu0 0.0
    %5944 = vmatpush2.msra.mxu0 0.0
    %5945 = vmatprep.subr.mxu0 0.0
    %5946 = vmatpush2.msra.mxu0 0.0
    %5947 = vmatprep.subr.mxu0 0.0
    %5948 = vmatpush2.msra.mxu0 0.0
    %5949 = vmatprep.subr.mxu0 0.0
    %5950 = vmatpush2.msra.mxu0 0.0
    %5951 = vmatprep.subr.mxu0 0.0
    %5952 = vmatpush2.msra.mxu0 0.0
    %5953 = vmatprep.subr.mxu0 0.0
    %5954 = vmatpush2.msra.mxu0 0.0
    %5955 = vmatprep.mubr.f32.mxu0 0.0
    %5956 = vmatmul.mubr.f32.gmra.mxu0 %v5811
    %v5957 = vpop.f32.mrf.mxu0
    %v5958 = vadd.f32 0.0, %v5957
    %v5959 = vpop.f32.mrf.mxu0
    %5960 = vdwg.mxu0
    %5962 = vset.pattern.permute.xlu0 0
    %5963 = vperm.xlu0 %5962, %v5958
    %v5964 = vpop.permute.xlu0 %5963
    %v5967 = vsel %vm332, %v5880, 0
    %5969 = vmatprep.subr.mxu0 0.0
    %5970 = vmatpush1.msra.mxu0 0.0
    %5971 = vmatprep.subr.mxu0 0.0
    %5972 = vmatpush1.msra.mxu0 0.0
    %5973 = vmatprep.subr.mxu0 0.0
    %5974 = vmatpush1.msra.mxu0 0.0
    %5975 = vmatprep.subr.mxu0 0.0
    %5976 = vmatpush1.msra.mxu0 0.0
    %5977 = vmatprep.subr.mxu0 0.0
    %5978 = vmatpush1.msra.mxu0 0.0
    %5979 = vmatprep.subr.mxu0 0.0
    %5980 = vmatpush1.msra.mxu0 0.0
    %5981 = vmatprep.subr.mxu0 0.0
    %5982 = vmatpush1.msra.mxu0 0.0
    %5983 = vmatprep.subr.mxu0 0.0
    %5984 = vmatpush1.msra.mxu0 0.0
    %5985 = vmatprep.subr.mxu0 0.0
    %5986 = vmatpush1.msra.mxu0 0.0
    %5987 = vmatprep.subr.mxu0 0.0
    %5988 = vmatpush1.msra.mxu0 0.0
    %5989 = vmatprep.subr.mxu0 0.0
    %5990 = vmatpush1.msra.mxu0 0.0
    %5991 = vmatprep.subr.mxu0 0.0
    %5992 = vmatpush1.msra.mxu0 0.0
    %5993 = vmatprep.subr.mxu0 %v5532
    %5994 = vmatpush1.msra.mxu0 %v5428
    %5995 = vmatprep.subr.mxu0 %v5116
    %5996 = vmatpush1.msra.mxu0 %v5012
    %5997 = vmatprep.subr.mxu0 %v4700
    %5998 = vmatpush1.msra.mxu0 %v4596
    %5999 = vmatprep.subr.mxu0 %v4284
    %6000 = vmatpush1.msra.mxu0 %v4180
    %6001 = vmatprep.subr.mxu0 0.0
    %6002 = vmatpush2.msra.mxu0 0.0
    %6003 = vmatprep.subr.mxu0 0.0
    %6004 = vmatpush2.msra.mxu0 0.0
    %6005 = vmatprep.subr.mxu0 0.0
    %6006 = vmatpush2.msra.mxu0 0.0
    %6007 = vmatprep.subr.mxu0 0.0
    %6008 = vmatpush2.msra.mxu0 0.0
    %6009 = vmatprep.subr.mxu0 0.0
    %6010 = vmatpush2.msra.mxu0 0.0
    %6011 = vmatprep.subr.mxu0 0.0
    %6012 = vmatpush2.msra.mxu0 0.0
    %6013 = vmatprep.subr.mxu0 0.0
    %6014 = vmatpush2.msra.mxu0 0.0
    %6015 = vmatprep.subr.mxu0 0.0
    %6016 = vmatpush2.msra.mxu0 0.0
    %6017 = vmatprep.subr.mxu0 0.0
    %6018 = vmatpush2.msra.mxu0 0.0
    %6019 = vmatprep.subr.mxu0 0.0
    %6020 = vmatpush2.msra.mxu0 0.0
    %6021 = vmatprep.subr.mxu0 0.0
    %6022 = vmatpush2.msra.mxu0 0.0
    %6023 = vmatprep.subr.mxu0 0.0
    %6024 = vmatpush2.msra.mxu0 0.0
    %6025 = vmatprep.subr.mxu0 0.0
    %6026 = vmatpush2.msra.mxu0 0.0
    %6027 = vmatprep.subr.mxu0 0.0
    %6028 = vmatpush2.msra.mxu0 0.0
    %6029 = vmatprep.subr.mxu0 0.0
    %6030 = vmatpush2.msra.mxu0 0.0
    %6031 = vmatprep.subr.mxu0 0.0
    %6032 = vmatpush2.msra.mxu0 0.0
    %6033 = vmatprep.mubr.f32.mxu0 0.0
    %6034 = vmatmul.mubr.f32.gmra.mxu0 %v5967
    %v6035 = vpop.f32.mrf.mxu0
    %v6036 = vadd.f32 %v5964, %v6035
    %v6037 = vpop.f32.mrf.mxu0
    %v6038 = vadd.f32 %v5964, %v6037
    %6039 = vdwg.mxu0
    %v6040 = vstv %s5760
    %v6041 = vadd.f32 %v6036, %v6040
    %v6042 = vadd.f32 %v6038, %v6040
    %v6045 = vcombine.low %v6041, %v6042
    %v6047 = vunpack.c.l.s4 1983009808
    %v6048 = vunpack.c.0.s8 %v6047
    %v6049 = vlaneseq
    %v6050 = vshrl.u32 %v6049, 7
    %v6051 = vsub.s32 %v6048, %v6050
    %v6052 = vrot.slane %v6045, %v6051
    %6054 = vst [vmem:[#allocation5] sm:$0xf] %v6052
    %6055 = vset.pattern.permute.xlu0 1
    %6056 = vperm.xlu0 %6055, %v1935
    %v6057 = vpop.permute.xlu0 %6056
    %6059 = vset.pattern.permute.xlu0 1
    %6060 = vperm.xlu0 %6059, %v1940
    %v6061 = vpop.permute.xlu0 %6060
    %6063 = vset.pattern.permute.xlu0 1
    %6064 = vperm.xlu0 %6063, %v1945
    %v6065 = vpop.permute.xlu0 %6064
    %6067 = vset.pattern.permute.xlu0 1
    %6068 = vperm.xlu0 %6067, %v1950
    %v6069 = vpop.permute.xlu0 %6068
    %6071 = vset.pattern.permute.xlu0 1
    %6072 = vperm.xlu0 %6071, %v1955
    %v6073 = vpop.permute.xlu0 %6072
    %6075 = vset.pattern.permute.xlu0 1
    %6076 = vperm.xlu0 %6075, %v1960
    %v6077 = vpop.permute.xlu0 %6076
    %6079 = vset.pattern.permute.xlu0 1
    %6080 = vperm.xlu0 %6079, %v1965
    %v6081 = vpop.permute.xlu0 %6080
    %6083 = vset.pattern.permute.xlu0 1
    %6084 = vperm.xlu0 %6083, %v1970
    %v6085 = vpop.permute.xlu0 %6084
    %v6087 = vmul.f32 %v6057, %v5742
    %v6088 = vmul.f32 %v6061, %v5743
    %v6089 = vmul.f32 %v6065, %v5744
    %v6090 = vmul.f32 %v6069, %v5745
    %v6091 = vmul.f32 %v6073, %v5746
    %v6092 = vmul.f32 %v6077, %v5747
    %v6093 = vmul.f32 %v6081, %v5748
    %v6094 = vmul.f32 %v6085, %v5749
    %6095 = vmatprep.subr.mxu0 0.0
    %6096 = vmatpush1.msra.mxu0 0.0
    %6097 = vmatprep.subr.mxu0 0.0
    %6098 = vmatpush1.msra.mxu0 0.0
    %6099 = vmatprep.subr.mxu0 0.0
    %6100 = vmatpush1.msra.mxu0 0.0
    %6101 = vmatprep.subr.mxu0 0.0
    %6102 = vmatpush1.msra.mxu0 0.0
    %6103 = vmatprep.subr.mxu0 0.0
    %6104 = vmatpush1.msra.mxu0 0.0
    %6105 = vmatprep.subr.mxu0 0.0
    %6106 = vmatpush1.msra.mxu0 0.0
    %6107 = vmatprep.subr.mxu0 0.0
    %6108 = vmatpush1.msra.mxu0 0.0
    %6109 = vmatprep.subr.mxu0 0.0
    %6110 = vmatpush1.msra.mxu0 0.0
    %6111 = vmatprep.subr.mxu0 0.0
    %6112 = vmatpush1.msra.mxu0 %v6094
    %6113 = vmatprep.subr.mxu0 0.0
    %6114 = vmatpush1.msra.mxu0 %v6093
    %6115 = vmatprep.subr.mxu0 0.0
    %6116 = vmatpush1.msra.mxu0 %v6092
    %6117 = vmatprep.subr.mxu0 0.0
    %6118 = vmatpush1.msra.mxu0 %v6091
    %6119 = vmatprep.subr.mxu0 0.0
    %6120 = vmatpush1.msra.mxu0 %v6090
    %6121 = vmatprep.subr.mxu0 0.0
    %6122 = vmatpush1.msra.mxu0 %v6089
    %6123 = vmatprep.subr.mxu0 0.0
    %6124 = vmatpush1.msra.mxu0 %v6088
    %6125 = vmatprep.subr.mxu0 0.0
    %6126 = vmatpush1.msra.mxu0 %v6087
    %6127 = vmatprep.subr.mxu0 0.0
    %6128 = vmatpush2.msra.mxu0 0.0
    %6129 = vmatprep.subr.mxu0 0.0
    %6130 = vmatpush2.msra.mxu0 0.0
    %6131 = vmatprep.subr.mxu0 0.0
    %6132 = vmatpush2.msra.mxu0 0.0
    %6133 = vmatprep.subr.mxu0 0.0
    %6134 = vmatpush2.msra.mxu0 0.0
    %6135 = vmatprep.subr.mxu0 0.0
    %6136 = vmatpush2.msra.mxu0 0.0
    %6137 = vmatprep.subr.mxu0 0.0
    %6138 = vmatpush2.msra.mxu0 0.0
    %6139 = vmatprep.subr.mxu0 0.0
    %6140 = vmatpush2.msra.mxu0 0.0
    %6141 = vmatprep.subr.mxu0 0.0
    %6142 = vmatpush2.msra.mxu0 0.0
    %6143 = vmatprep.subr.mxu0 0.0
    %6144 = vmatpush2.msra.mxu0 0.0
    %6145 = vmatprep.subr.mxu0 0.0
    %6146 = vmatpush2.msra.mxu0 0.0
    %6147 = vmatprep.subr.mxu0 0.0
    %6148 = vmatpush2.msra.mxu0 0.0
    %6149 = vmatprep.subr.mxu0 0.0
    %6150 = vmatpush2.msra.mxu0 0.0
    %6151 = vmatprep.subr.mxu0 0.0
    %6152 = vmatpush2.msra.mxu0 0.0
    %6153 = vmatprep.subr.mxu0 0.0
    %6154 = vmatpush2.msra.mxu0 0.0
    %6155 = vmatprep.subr.mxu0 0.0
    %6156 = vmatpush2.msra.mxu0 0.0
    %6157 = vmatprep.subr.mxu0 0.0
    %6158 = vmatpush2.msra.mxu0 0.0
    %6159 = vmatprep.mubr.f32.mxu0 0.0
    %6160 = vmatmul.mubr.f32.gmra.mxu0 %v5811
    %v6161 = vpop.f32.mrf.mxu0
    %v6162 = vadd.f32 0.0, %v6161
    %v6163 = vpop.f32.mrf.mxu0
    %6164 = vdwg.mxu0
    %6173 = vrot.lane.b32.xlu0 %v5751, 1
    %v6174 = vpop.permute.xlu0 %6173
    %6175 = vrot.lane.b32.xlu0 %v5752, 1
    %v6176 = vpop.permute.xlu0 %6175
    %6177 = vrot.lane.b32.xlu0 %v5753, 1
    %v6178 = vpop.permute.xlu0 %6177
    %6179 = vrot.lane.b32.xlu0 %v5754, 1
    %v6180 = vpop.permute.xlu0 %6179
    %6181 = vrot.lane.b32.xlu0 %v5755, 1
    %v6182 = vpop.permute.xlu0 %6181
    %6183 = vrot.lane.b32.xlu0 %v5756, 1
    %v6184 = vpop.permute.xlu0 %6183
    %6185 = vrot.lane.b32.xlu0 %v5757, 1
    %v6186 = vpop.permute.xlu0 %6185
    %6187 = vrot.lane.b32.xlu0 %v5758, 1
    %v6188 = vpop.permute.xlu0 %6187
    %v6197 = vmul.f32 %v1935, %v6174
    %v6198 = vmul.f32 %v1940, %v6176
    %v6199 = vmul.f32 %v1945, %v6178
    %v6200 = vmul.f32 %v1950, %v6180
    %v6201 = vmul.f32 %v1955, %v6182
    %v6202 = vmul.f32 %v1960, %v6184
    %v6203 = vmul.f32 %v1965, %v6186
    %v6204 = vmul.f32 %v1970, %v6188
    %6213 = vrot.lane.b32.xlu0 %v6197, 127
    %v6214 = vpop.permute.xlu0 %6213
    %6215 = vrot.lane.b32.xlu0 %v6198, 127
    %v6216 = vpop.permute.xlu0 %6215
    %6217 = vrot.lane.b32.xlu0 %v6199, 127
    %v6218 = vpop.permute.xlu0 %6217
    %6219 = vrot.lane.b32.xlu0 %v6200, 127
    %v6220 = vpop.permute.xlu0 %6219
    %6221 = vrot.lane.b32.xlu0 %v6201, 127
    %v6222 = vpop.permute.xlu0 %6221
    %6223 = vrot.lane.b32.xlu0 %v6202, 127
    %v6224 = vpop.permute.xlu0 %6223
    %6225 = vrot.lane.b32.xlu0 %v6203, 127
    %v6226 = vpop.permute.xlu0 %6225
    %6227 = vrot.lane.b32.xlu0 %v6204, 127
    %v6228 = vpop.permute.xlu0 %6227
    %6237 = vmatprep.subr.mxu0 0.0
    %6238 = vmatpush1.msra.mxu0 0.0
    %6239 = vmatprep.subr.mxu0 0.0
    %6240 = vmatpush1.msra.mxu0 0.0
    %6241 = vmatprep.subr.mxu0 0.0
    %6242 = vmatpush1.msra.mxu0 0.0
    %6243 = vmatprep.subr.mxu0 0.0
    %6244 = vmatpush1.msra.mxu0 0.0
    %6245 = vmatprep.subr.mxu0 0.0
    %6246 = vmatpush1.msra.mxu0 0.0
    %6247 = vmatprep.subr.mxu0 0.0
    %6248 = vmatpush1.msra.mxu0 0.0
    %6249 = vmatprep.subr.mxu0 0.0
    %6250 = vmatpush1.msra.mxu0 0.0
    %6251 = vmatprep.subr.mxu0 0.0
    %6252 = vmatpush1.msra.mxu0 0.0
    %6253 = vmatprep.subr.mxu0 0.0
    %6254 = vmatpush1.msra.mxu0 %v6228
    %6255 = vmatprep.subr.mxu0 0.0
    %6256 = vmatpush1.msra.mxu0 %v6226
    %6257 = vmatprep.subr.mxu0 0.0
    %6258 = vmatpush1.msra.mxu0 %v6224
    %6259 = vmatprep.subr.mxu0 0.0
    %6260 = vmatpush1.msra.mxu0 %v6222
    %6261 = vmatprep.subr.mxu0 0.0
    %6262 = vmatpush1.msra.mxu0 %v6220
    %6263 = vmatprep.subr.mxu0 0.0
    %6264 = vmatpush1.msra.mxu0 %v6218
    %6265 = vmatprep.subr.mxu0 0.0
    %6266 = vmatpush1.msra.mxu0 %v6216
    %6267 = vmatprep.subr.mxu0 0.0
    %6268 = vmatpush1.msra.mxu0 %v6214
    %6269 = vmatprep.subr.mxu0 0.0
    %6270 = vmatpush2.msra.mxu0 0.0
    %6271 = vmatprep.subr.mxu0 0.0
    %6272 = vmatpush2.msra.mxu0 0.0
    %6273 = vmatprep.subr.mxu0 0.0
    %6274 = vmatpush2.msra.mxu0 0.0
    %6275 = vmatprep.subr.mxu0 0.0
    %6276 = vmatpush2.msra.mxu0 0.0
    %6277 = vmatprep.subr.mxu0 0.0
    %6278 = vmatpush2.msra.mxu0 0.0
    %6279 = vmatprep.subr.mxu0 0.0
    %6280 = vmatpush2.msra.mxu0 0.0
    %6281 = vmatprep.subr.mxu0 0.0
    %6282 = vmatpush2.msra.mxu0 0.0
    %6283 = vmatprep.subr.mxu0 0.0
    %6284 = vmatpush2.msra.mxu0 0.0
    %6285 = vmatprep.subr.mxu0 0.0
    %6286 = vmatpush2.msra.mxu0 0.0
    %6287 = vmatprep.subr.mxu0 0.0
    %6288 = vmatpush2.msra.mxu0 0.0
    %6289 = vmatprep.subr.mxu0 0.0
    %6290 = vmatpush2.msra.mxu0 0.0
    %6291 = vmatprep.subr.mxu0 0.0
    %6292 = vmatpush2.msra.mxu0 0.0
    %6293 = vmatprep.subr.mxu0 0.0
    %6294 = vmatpush2.msra.mxu0 0.0
    %6295 = vmatprep.subr.mxu0 0.0
    %6296 = vmatpush2.msra.mxu0 0.0
    %6297 = vmatprep.subr.mxu0 0.0
    %6298 = vmatpush2.msra.mxu0 0.0
    %6299 = vmatprep.subr.mxu0 0.0
    %6300 = vmatpush2.msra.mxu0 0.0
    %6301 = vmatprep.mubr.f32.mxu0 0.0
    %6302 = vmatmul.mubr.f32.gmra.mxu0 %v5811
    %v6303 = vpop.f32.mrf.mxu0
    %v6304 = vadd.f32 0.0, %v6303
    %v6305 = vpop.f32.mrf.mxu0
    %6306 = vdwg.mxu0
    %6308 = vset.pattern.permute.xlu0 0
    %6309 = vperm.xlu0 %6308, %v6304
    %v6310 = vpop.permute.xlu0 %6309
    %v6313 = vsel %vm332, %v6162, 0
    %6315 = vmatprep.subr.mxu0 0.0
    %6316 = vmatpush1.msra.mxu0 0.0
    %6317 = vmatprep.subr.mxu0 0.0
    %6318 = vmatpush1.msra.mxu0 0.0
    %6319 = vmatprep.subr.mxu0 0.0
    %6320 = vmatpush1.msra.mxu0 0.0
    %6321 = vmatprep.subr.mxu0 0.0
    %6322 = vmatpush1.msra.mxu0 0.0
    %6323 = vmatprep.subr.mxu0 0.0
    %6324 = vmatpush1.msra.mxu0 0.0
    %6325 = vmatprep.subr.mxu0 0.0
    %6326 = vmatpush1.msra.mxu0 0.0
    %6327 = vmatprep.subr.mxu0 0.0
    %6328 = vmatpush1.msra.mxu0 0.0
    %6329 = vmatprep.subr.mxu0 0.0
    %6330 = vmatpush1.msra.mxu0 0.0
    %6331 = vmatprep.subr.mxu0 0.0
    %6332 = vmatpush1.msra.mxu0 0.0
    %6333 = vmatprep.subr.mxu0 0.0
    %6334 = vmatpush1.msra.mxu0 0.0
    %6335 = vmatprep.subr.mxu0 0.0
    %6336 = vmatpush1.msra.mxu0 0.0
    %6337 = vmatprep.subr.mxu0 0.0
    %6338 = vmatpush1.msra.mxu0 0.0
    %6339 = vmatprep.subr.mxu0 %v5740
    %6340 = vmatpush1.msra.mxu0 %v5636
    %6341 = vmatprep.subr.mxu0 %v5324
    %6342 = vmatpush1.msra.mxu0 %v5220
    %6343 = vmatprep.subr.mxu0 %v4908
    %6344 = vmatpush1.msra.mxu0 %v4804
    %6345 = vmatprep.subr.mxu0 %v4492
    %6346 = vmatpush1.msra.mxu0 %v4388
    %6347 = vmatprep.subr.mxu0 0.0
    %6348 = vmatpush2.msra.mxu0 0.0
    %6349 = vmatprep.subr.mxu0 0.0
    %6350 = vmatpush2.msra.mxu0 0.0
    %6351 = vmatprep.subr.mxu0 0.0
    %6352 = vmatpush2.msra.mxu0 0.0
    %6353 = vmatprep.subr.mxu0 0.0
    %6354 = vmatpush2.msra.mxu0 0.0
    %6355 = vmatprep.subr.mxu0 0.0
    %6356 = vmatpush2.msra.mxu0 0.0
    %6357 = vmatprep.subr.mxu0 0.0
    %6358 = vmatpush2.msra.mxu0 0.0
    %6359 = vmatprep.subr.mxu0 0.0
    %6360 = vmatpush2.msra.mxu0 0.0
    %6361 = vmatprep.subr.mxu0 0.0
    %6362 = vmatpush2.msra.mxu0 0.0
    %6363 = vmatprep.subr.mxu0 0.0
    %6364 = vmatpush2.msra.mxu0 0.0
    %6365 = vmatprep.subr.mxu0 0.0
    %6366 = vmatpush2.msra.mxu0 0.0
    %6367 = vmatprep.subr.mxu0 0.0
    %6368 = vmatpush2.msra.mxu0 0.0
    %6369 = vmatprep.subr.mxu0 0.0
    %6370 = vmatpush2.msra.mxu0 0.0
    %6371 = vmatprep.subr.mxu0 0.0
    %6372 = vmatpush2.msra.mxu0 0.0
    %6373 = vmatprep.subr.mxu0 0.0
    %6374 = vmatpush2.msra.mxu0 0.0
    %6375 = vmatprep.subr.mxu0 0.0
    %6376 = vmatpush2.msra.mxu0 0.0
    %6377 = vmatprep.subr.mxu0 0.0
    %6378 = vmatpush2.msra.mxu0 0.0
    %6379 = vmatprep.mubr.f32.mxu0 0.0
    %6380 = vmatmul.mubr.f32.gmra.mxu0 %v6313
    %v6381 = vpop.f32.mrf.mxu0
    %v6382 = vadd.f32 %v6310, %v6381
    %v6383 = vpop.f32.mrf.mxu0
    %v6384 = vadd.f32 %v6310, %v6383
    %6385 = vdwg.mxu0
    %v6386 = vadd.f32 %v6382, %v6040
    %v6387 = vadd.f32 %v6384, %v6040
    %v6390 = vcombine.low %v6386, %v6387
    %v6392 = vunpack.c.l.s4 1983009808
    %v6393 = vunpack.c.0.s8 %v6392
    %v6394 = vlaneseq
    %v6395 = vshrl.u32 %v6394, 7
    %v6396 = vsub.s32 %v6393, %v6395
    %v6397 = vrot.slane %v6390, %v6396
    %s6399 = scalar_lea.vmem [#allocation5], 4
    %6400 = vst [vmem:[%s6399] sm:$0xf] %v6397
    // Predicated region
    $region26: #{tpu_custom_call.1} parent=1 // pred_check
      _
    $region27: #{tpu_custom_call.1} parent=1 // pred_check_branch
      %6402 = sbr.rel (0) target = $region29
    $region28: #{tpu_custom_call.1} parent=1 // pred_region
      %s6404 = ssub.s32 128, 128
      %6405 = vsyncadd [#allocation6], %s6404
      %s6406 = sshll.u32 [#allocation5], 4
      %s6407 = int_to_ptr.vmem [resolvable:$true] %s6406
      %6412 = dma.vmem_to_hbm [thread:$0]  %s6407, 128, %s6, [#allocation6], 64, 64, 4
    $region29: #{tpu_custom_call.1} parent=1 // pred_fallthru
      _
    // Predicated region
    $region30: #{tpu_custom_call.1} parent=1 // pred_check
      _
    $region31: #{tpu_custom_call.1} parent=1 // pred_check_branch
      %6414 = sbr.rel (0) target = $region33
    $region32: #{tpu_custom_call.1} parent=1 // pred_region
      %6415 = dma.done [#allocation6], 128
    $region33: #{tpu_custom_call.1} parent=1 // pred_fallthru
      _
    %6416 = vsyncpa [#allocation6], 1

</llo_original>
